<compile_context>
chip_gen: v6e
topology: v6e:2x2x1
jax: 0.10.0
libtpu: 0.0.40
codegen_flags: <defaults>
</compile_context>

<pallas_src>
import functools

import jax
import jax.numpy as jnp
from jax.experimental import pallas as pl
from jax.experimental.pallas import tpu as pltpu

KH, KW = 3, 6          # conv kernel size used by both conv layers
GRU_H = 32             # GRU hidden size


# ----------------------------------------------------------------------------
# helpers
# ----------------------------------------------------------------------------
def _full_spec(shape):
    nd = len(shape)
    return pl.BlockSpec(tuple(shape), lambda i, _n=nd: (0,) * _n)


def _pick_tile(m, cap=512):
    """Tile of the pooled-position axis: whole axis if small, otherwise a
    divisor that is a multiple of 8 (keeps the BlockSpec (8,128)-legal)."""
    if m <= cap:
        return m
    for d in range(cap - cap % 8, 7, -8):
        if m % d == 0:
            return d
    return m


# ----------------------------------------------------------------------------
# fused conv-as-GEMM + bias + ReLU + 2x2 max-pool
# ----------------------------------------------------------------------------
def _conv_gemm_pool_kernel(p_ref, w_ref, b_ref, o_ref):
    # p_ref: (1, 4, TM, K)  im2col patches, one 2x2-pooling phase per axis-1 idx
    # w_ref: (K, Cout)   b_ref: (1, Cout)   o_ref: (1, TM, Cout)
    w = w_ref[...]
    m = jnp.dot(p_ref[0, 0], w, preferred_element_type=jnp.float32)
    for ph in range(1, p_ref.shape[1]):
        m = jnp.maximum(
            m, jnp.dot(p_ref[0, ph], w, preferred_element_type=jnp.float32))
    # bias add / ReLU once, after the phase max (both commute with max).
    o_ref[0] = jnp.maximum(m + b_ref[...], 0.0)


def _phase_patches(xp, hpo, wpo):
    """im2col patches grouped by 2x2-pooling phase.

    xp: padded NHWC input (N, Hp, Wp, Cin) -> (N, 4, hpo*wpo, KH*KW*Cin).
    K-index order is (kh, kw, cin), matching the flattened conv weight.
    """
    n, _, _, cin = xp.shape
    phases = []
    for dh in range(2):
        for dw in range(2):
            taps = []
            for di in range(KH):
                for dj in range(KW):
                    a, b = dh + di, dw + dj
                    taps.append(xp[:, a:a + 2 * hpo:2, b:b + 2 * wpo:2, :])
            ph = jnp.concatenate(taps, axis=-1)
            phases.append(ph.reshape(n, hpo * wpo, KH * KW * cin))
    return jnp.stack(phases, axis=1)


def conv_relu_pool(x_nhwc, w_mat, b_row):
    """Conv2d(kernel (3,6), padding (1,1)) + ReLU + MaxPool2d(2), NHWC in/out.

    Returns pooled activations channels-last: (N, Ho//2, Wo//2, Cout).
    """
    n, hin, win, cin = x_nhwc.shape
    ho, wo = hin + 2 - KH + 1, win + 2 - KW + 1
    hpo, wpo = ho // 2, wo // 2
    xp = jnp.pad(x_nhwc, ((0, 0), (1, 1), (1, 1), (0, 0)))
    # TODO(synk): for large widths/batches, assemble these patches in VMEM with
    # manual DMA instead of materializing the im2col blow-up in HBM.
    patches = _phase_patches(xp, hpo, wpo)              # (N, 4, M', K)
    mp, k = hpo * wpo, KH * KW * cin
    cout = w_mat.shape[1]
    tm = _pick_tile(mp)
    out = pl.pallas_call(
        _conv_gemm_pool_kernel,
        out_shape=jax.ShapeDtypeStruct((n, mp, cout), jnp.float32),
        grid=(n, mp // tm),
        in_specs=[
            pl.BlockSpec((1, 4, tm, k), lambda i, j: (i, 0, j, 0)),
            pl.BlockSpec((k, cout), lambda i, j: (0, 0)),
            pl.BlockSpec((1, cout), lambda i, j: (0, 0)),
        ],
        out_specs=pl.BlockSpec((1, tm, cout), lambda i, j: (i, j, 0)),
        compiler_params=pltpu.CompilerParams(
            dimension_semantics=("parallel", "parallel")),
    )(patches, w_mat, b_row)
    return out.reshape(n, hpo, wpo, cout)


# ----------------------------------------------------------------------------
# fused head: fcc1 + ReLU -> 2-layer bidirectional GRU -> fcc2
# ----------------------------------------------------------------------------
def _head_kernel(feat_ref, w1_ref, b1_ref, gw_ref, gb_ref, w2_ref, b2_ref,
                 o_ref, gx_scr, yf_scr, yb_scr, *, T, NP, H):
    # feat_ref: (T*NP, 640) time-major rows (NP = 8-padded batch)
    # gw_ref:   (4, 96, 96) per (layer, dir): rows 0:64 = W_ih^T, 64:96 = W_hh^T
    # gb_ref:   (4, 2, 96)  per (layer, dir): [b_ih, b_hh]
    # w2_ref:   (64, CP)    fcc2 weight, class axis padded to 128 lanes
    # o_ref:    (T*NP, CP)

    # fcc1 + ReLU (Dropout(0.4) is an eval-mode identity).
    x0 = jnp.maximum(
        jnp.dot(feat_ref[...], w1_ref[...], preferred_element_type=jnp.float32)
        + b1_ref[...], 0.0)                              # (T*NP, 64)

    # layer input as (value, row-offset into W_ih^T, width) parts — avoids any
    # in-kernel concatenation of the two GRU directions.
    x_parts = [(x0, 0, 2 * H)]
    for layer in range(2):
        for d in range(2):                               # 0 = fwd, 1 = bwd
            k = 2 * layer + d
            # Hoisted input projection for ALL timesteps: X @ W_ih^T + b_ih.
            gx = gb_ref[k, 0:1, :]
            for val, off, width in x_parts:
                gx = gx + jnp.dot(val, gw_ref[k, off:off + width, :],
                                  preferred_element_type=jnp.float32)
            gx_scr[...] = gx                             # (T*NP, 3H)

            whh_t = gw_ref[k, 2 * H:3 * H, :]            # (H, 3H)
            bhh = gb_ref[k, 1:2, :]                      # (1, 3H)
            y_scr = yf_scr if d == 0 else yb_scr

            def step(i, h):
                # backward direction walks time in reverse inside the kernel
                t = (T - 1 - i) if d == 1 else i
                base = pl.multiple_of(t * NP, NP)        # 8-aligned row block
                g = gx_scr[pl.ds(base, NP), :]
                gh = jnp.dot(h, whh_t,
                             preferred_element_type=jnp.float32) + bhh
                r = jax.nn.sigmoid(g[:, 0:H] + gh[:, 0:H])
                z = jax.nn.sigmoid(g[:, H:2 * H] + gh[:, H:2 * H])
                nn_ = jnp.tanh(g[:, 2 * H:3 * H] + r * gh[:, 2 * H:3 * H])
                h_new = (1.0 - z) * nn_ + z * h
                y_scr[pl.ds(base, NP), :] = h_new
                return h_new

            jax.lax.fori_loop(0, T, step, jnp.zeros((NP, H), jnp.float32),
                              unroll=True)
        # bidirectional output = [fwd, bwd] features; inter-layer Dropout(0.3)
        # is an eval-mode identity.
        x_parts = [(yf_scr[...], 0, H), (yb_scr[...], H, H)]

    # fcc2 on the 128-lane-padded class axis (lane-dense store).
    out = b2_ref[...]
    for val, off, width in x_parts:
        out = out + jnp.dot(val, w2_ref[off:off + width, :],
                            preferred_element_type=jnp.float32)
    o_ref[...] = out


def head_forward(feat2d, pp, t, np_):
    tnp, f = feat2d.shape
    h = pp["gru_b"].shape[2] // 3
    cp = pp["fcc2_w"].shape[1]
    kern = functools.partial(_head_kernel, T=t, NP=np_, H=h)
    return pl.pallas_call(
        kern,
        out_shape=jax.ShapeDtypeStruct((tnp, cp), jnp.float32),
        grid=(1,),
        in_specs=[
            _full_spec((tnp, f)),
            _full_spec(pp["fcc1_w"].shape),
            _full_spec(pp["fcc1_b"].shape),
            _full_spec(pp["gru_w"].shape),
            _full_spec(pp["gru_b"].shape),
            _full_spec(pp["fcc2_w"].shape),
            _full_spec(pp["fcc2_b"].shape),
        ],
        out_specs=_full_spec((tnp, cp)),
        scratch_shapes=[
            pltpu.VMEM((tnp, 3 * h), jnp.float32),   # hoisted gate projections
            pltpu.VMEM((tnp, h), jnp.float32),       # forward hidden states
            pltpu.VMEM((tnp, h), jnp.float32),       # backward hidden states
        ],
    )(feat2d, pp["fcc1_w"], pp["fcc1_b"], pp["gru_w"], pp["gru_b"],
      pp["fcc2_w"], pp["fcc2_b"])


# ----------------------------------------------------------------------------
# parameters: PyTorch-layout init + one-time re-layout for the kernels
# ----------------------------------------------------------------------------
def _uinit(key, shape, fan_in):
    bound = 1.0 / jnp.sqrt(jnp.float32(fan_in))
    return jax.random.uniform(key, shape, jnp.float32, -bound, bound)


def init_params(key, num_chars):
    k = iter(jax.random.split(key, 32))
    p = {}
    p["conv1_w"] = _uinit(next(k), (128, 1, KH, KW), 1 * KH * KW)
    p["conv1_b"] = _uinit(next(k), (128,), 1 * KH * KW)
    p["conv2_w"] = _uinit(next(k), (64, 128, KH, KW), 128 * KH * KW)
    p["conv2_b"] = _uinit(next(k), (64,), 128 * KH * KW)
    p["fcc1_w"] = _uinit(next(k), (64, 640), 640)
    p["fcc1_b"] = _uinit(next(k), (64,), 640)
    h = GRU_H
    for layer in (0, 1):
        in_sz = 64                      # layer0 input 64, layer1 input 2*H=64
        for tag in ("f", "b"):
            p[f"gru_l{layer}_{tag}"] = (
                _uinit(next(k), (3 * h, in_sz), h),   # weight_ih
                _uinit(next(k), (3 * h, h), h),       # weight_hh
                _uinit(next(k), (3 * h,), h),         # bias_ih
                _uinit(next(k), (3 * h,), h),         # bias_hh
            )
    p["fcc2_w"] = _uinit(next(k), (num_chars + 1, 64), 64)
    p["fcc2_b"] = _uinit(next(k), (num_chars + 1,), 64)
    return p


def prepare_params(p, num_chars):
    """One-time re-layout: flatten/transpose conv & linear weights, stack GRU
    weights per (layer, direction), pad fcc2's class axis to 128 lanes."""
    num_classes = num_chars + 1
    cp = ((num_classes + 127) // 128) * 128
    gw, gb = [], []
    for layer in (0, 1):
        for tag in ("f", "b"):
            wih, whh, bih, bhh = p[f"gru_l{layer}_{tag}"]
            gw.append(jnp.concatenate([wih.T, whh.T], axis=0))   # (96, 96)
            gb.append(jnp.stack([bih, bhh], axis=0))             # (2, 96)
    return {
        "conv1_w": jnp.transpose(p["conv1_w"], (2, 3, 1, 0)).reshape(KH * KW, 128),
        "conv1_b": p["conv1_b"][None, :],
        "conv2_w": jnp.transpose(p["conv2_w"], (2, 3, 1, 0)).reshape(KH * KW * 128, 64),
        "conv2_b": p["conv2_b"][None, :],
        "fcc1_w": p["fcc1_w"].T,                                  # (640, 64)
        "fcc1_b": p["fcc1_b"][None, :],
        "gru_w": jnp.stack(gw, axis=0),                           # (4, 96, 96)
        "gru_b": jnp.stack(gb, axis=0),                           # (4, 2, 96)
        "fcc2_w": jnp.pad(p["fcc2_w"], ((0, cp - num_classes), (0, 0))).T,
        "fcc2_b": jnp.pad(p["fcc2_b"], (0, cp - num_classes))[None, :],
    }


# ----------------------------------------------------------------------------
# full forward pass
# ----------------------------------------------------------------------------
@functools.partial(jax.jit, static_argnums=(2,))
def captcha_forward(pp, x, num_classes):
    n = x.shape[0]
    x_nhwc = jnp.transpose(x, (0, 2, 3, 1))                      # NCHW -> NHWC
    a1 = conv_relu_pool(x_nhwc, pp["conv1_w"], pp["conv1_b"])    # (N,20,12,128)
    a2 = conv_relu_pool(a1, pp["conv2_w"], pp["conv2_b"])        # (N,10,T, 64)
    _, hf, t, c = a2.shape
    # PyTorch: permute(0,3,1,2).view(N, T, C*Hf) -> feature index c*Hf + h
    feat = jnp.transpose(a2, (0, 2, 3, 1)).reshape(n, t, c * hf)   # (N,T,640)
    # time-major rows, batch padded to a multiple of 8 (aligned GRU slicing)
    np_ = ((n + 7) // 8) * 8
    feat_t = jnp.pad(jnp.transpose(feat, (1, 0, 2)),
                     ((0, 0), (0, np_ - n), (0, 0)))
    logits = head_forward(feat_t.reshape(t * np_, c * hf), pp, t, np_)
    return logits.reshape(t, np_, -1)[:, :n, :num_classes]      # (T,N,classes)


if __name__ == "__main__":
    num_chars = 19
    # batch=2, 1 channel, H=40 (required by Linear(640, 64)), W=27 -> T=4
    x = jax.random.normal(jax.random.PRNGKey(0), (2, 1, 40, 27), jnp.float32)
    params = prepare_params(init_params(jax.random.PRNGKey(1), num_chars),
                            num_chars)

    out = captcha_forward(params, x, num_chars + 1)
    out = jax.block_until_ready(out)

    assert out.shape == (4, 2, num_chars + 1), out.shape
    assert out.dtype == jnp.float32
    print("KERNEL_OK")
</pallas_src>

<mosaic_0001>
module attributes {stable_mosaic.version = 11 : i64} {
  func.func @_conv_gemm_pool_kernel(%arg0: i32, %arg1: i32, %arg2: memref<1x4x240x18xf32, #tpu.memory_space<vmem>>, %arg3: memref<18x128xf32, #tpu.memory_space<vmem>>, %arg4: memref<1x128xf32, #tpu.memory_space<vmem>>, %arg5: memref<1x240x128xf32, #tpu.memory_space<vmem>>) attributes {dimension_semantics = [#tpu.dimension_semantics<parallel>, #tpu.dimension_semantics<parallel>], iteration_bounds = array<i64: 2, 1>, scalar_prefetch = 0 : i64, scratch_operands = 0 : i64, tpu.core_type = #tpu.core_type<tc>, window_params = [{transform_indices = @transform_0, window_bounds = array<i64: 1, 4, 240, 18>}, {pipeline_mode = #tpu.pipeline_mode<synchronous>, transform_indices = @transform_1, window_bounds = array<i64: 18, 128>}, {pipeline_mode = #tpu.pipeline_mode<synchronous>, transform_indices = @transform_2, window_bounds = array<i64: 1, 128>}, {transform_indices = @transform_3, window_bounds = array<i64: 1, 240, 128>}]} {
    %c0 = arith.constant 0 : index
    %c0_0 = arith.constant 0 : index
    %0 = vector.load %arg3[%c0, %c0_0] : memref<18x128xf32, #tpu.memory_space<vmem>>, vector<18x128xf32>
    %c0_1 = arith.constant 0 : index
    %c0_2 = arith.constant 0 : index
    %c0_3 = arith.constant 0 : index
    %c0_4 = arith.constant 0 : index
    %1 = vector.load %arg2[%c0_1, %c0_2, %c0_3, %c0_4] : memref<1x4x240x18xf32, #tpu.memory_space<vmem>>, vector<1x1x240x18xf32>
    %2 = vector.shape_cast %1 : vector<1x1x240x18xf32> to vector<240x18xf32>
    %cst = arith.constant dense<0.000000e+00> : vector<240x128xf32>
    %3 = tpu.matmul %2, %0, %cst {dimension_numbers = #tpu.dot_dimension_numbers<[1], [0], [0], [1], [0, 0, 1, 1], [], []>} : vector<240x18xf32>, vector<18x128xf32>, vector<240x128xf32> -> vector<240x128xf32>
    %c0_5 = arith.constant 0 : index
    %c1 = arith.constant 1 : index
    %c0_6 = arith.constant 0 : index
    %c0_7 = arith.constant 0 : index
    %4 = vector.load %arg2[%c0_5, %c1, %c0_6, %c0_7] : memref<1x4x240x18xf32, #tpu.memory_space<vmem>>, vector<1x1x240x18xf32>
    %5 = vector.shape_cast %4 : vector<1x1x240x18xf32> to vector<240x18xf32>
    %cst_8 = arith.constant dense<0.000000e+00> : vector<240x128xf32>
    %6 = tpu.matmul %5, %0, %cst_8 {dimension_numbers = #tpu.dot_dimension_numbers<[1], [0], [0], [1], [0, 0, 1, 1], [], []>} : vector<240x18xf32>, vector<18x128xf32>, vector<240x128xf32> -> vector<240x128xf32>
    %7 = arith.maximumf %3, %6 : vector<240x128xf32>
    %c0_9 = arith.constant 0 : index
    %c2 = arith.constant 2 : index
    %c0_10 = arith.constant 0 : index
    %c0_11 = arith.constant 0 : index
    %8 = vector.load %arg2[%c0_9, %c2, %c0_10, %c0_11] : memref<1x4x240x18xf32, #tpu.memory_space<vmem>>, vector<1x1x240x18xf32>
    %9 = vector.shape_cast %8 : vector<1x1x240x18xf32> to vector<240x18xf32>
    %cst_12 = arith.constant dense<0.000000e+00> : vector<240x128xf32>
    %10 = tpu.matmul %9, %0, %cst_12 {dimension_numbers = #tpu.dot_dimension_numbers<[1], [0], [0], [1], [0, 0, 1, 1], [], []>} : vector<240x18xf32>, vector<18x128xf32>, vector<240x128xf32> -> vector<240x128xf32>
    %11 = arith.maximumf %7, %10 : vector<240x128xf32>
    %c0_13 = arith.constant 0 : index
    %c3 = arith.constant 3 : index
    %c0_14 = arith.constant 0 : index
    %c0_15 = arith.constant 0 : index
    %12 = vector.load %arg2[%c0_13, %c3, %c0_14, %c0_15] : memref<1x4x240x18xf32, #tpu.memory_space<vmem>>, vector<1x1x240x18xf32>
    %13 = vector.shape_cast %12 : vector<1x1x240x18xf32> to vector<240x18xf32>
    %cst_16 = arith.constant dense<0.000000e+00> : vector<240x128xf32>
    %14 = tpu.matmul %13, %0, %cst_16 {dimension_numbers = #tpu.dot_dimension_numbers<[1], [0], [0], [1], [0, 0, 1, 1], [], []>} : vector<240x18xf32>, vector<18x128xf32>, vector<240x128xf32> -> vector<240x128xf32>
    %15 = arith.maximumf %11, %14 : vector<240x128xf32>
    %c0_17 = arith.constant 0 : index
    %c0_18 = arith.constant 0 : index
    %16 = vector.load %arg4[%c0_17, %c0_18] : memref<1x128xf32, #tpu.memory_space<vmem>>, vector<1x128xf32>
    %17 = vector.broadcast %16 : vector<1x128xf32> to vector<240x128xf32>
    %18 = arith.addf %15, %17 : vector<240x128xf32>
    %cst_19 = arith.constant 0.000000e+00 : f32
    %19 = vector.broadcast %cst_19 : f32 to vector<240x128xf32>
    %20 = arith.maximumf %18, %19 : vector<240x128xf32>
    %c0_20 = arith.constant 0 : index
    %c0_21 = arith.constant 0 : index
    %c0_22 = arith.constant 0 : index
    %21 = vector.load %arg5[%c0_20, %c0_21, %c0_22] : memref<1x240x128xf32, #tpu.memory_space<vmem>>, vector<1x240x128xf32>
    %22 = vector.shape_cast %21 : vector<1x240x128xf32> to vector<240x128xf32>
    %23 = vector.shape_cast %20 : vector<240x128xf32> to vector<1x240x128xf32>
    tpu.vector_store %arg5[%c0_20, %c0_21, %c0_22], %23 {strides = array<i32>} : memref<1x240x128xf32, #tpu.memory_space<vmem>>, vector<1x240x128xf32>,
    return
  }
  func.func @transform_0(%arg0: i32, %arg1: i32) -> (i32, i32, i32, i32) {
    %c0_i32 = arith.constant 0 : i32
    %c0_i32_0 = arith.constant 0 : i32
    %c0_i32_1 = arith.constant 0 : i32
    return %arg0, %c0_i32, %arg1, %c0_i32_0 : i32, i32, i32, i32
  }
  func.func @transform_1(%arg0: i32, %arg1: i32) -> (i32, i32) {
    %c0_i32 = arith.constant 0 : i32
    %c0_i32_0 = arith.constant 0 : i32
    %c0_i32_1 = arith.constant 0 : i32
    return %c0_i32, %c0_i32_0 : i32, i32
  }
  func.func @transform_2(%arg0: i32, %arg1: i32) -> (i32, i32) {
    %c0_i32 = arith.constant 0 : i32
    %c0_i32_0 = arith.constant 0 : i32
    %c0_i32_1 = arith.constant 0 : i32
    return %c0_i32, %c0_i32_0 : i32, i32
  }
  func.func @transform_3(%arg0: i32, %arg1: i32) -> (i32, i32, i32) {
    %c0_i32 = arith.constant 0 : i32
    %c0_i32_0 = arith.constant 0 : i32
    return %arg0, %arg1, %c0_i32 : i32, i32, i32
  }
}

module attributes {stable_mosaic.version = 11 : i64} {
  func.func @_conv_gemm_pool_kernel(%arg0: i32, %arg1: i32, %arg2: memref<1x4x40x2304xf32, #tpu.memory_space<vmem>>, %arg3: memref<2304x64xf32, #tpu.memory_space<vmem>>, %arg4: memref<1x64xf32, #tpu.memory_space<vmem>>, %arg5: memref<1x40x64xf32, #tpu.memory_space<vmem>>) attributes {dimension_semantics = [#tpu.dimension_semantics<parallel>, #tpu.dimension_semantics<parallel>], iteration_bounds = array<i64: 2, 1>, scalar_prefetch = 0 : i64, scratch_operands = 0 : i64, tpu.core_type = #tpu.core_type<tc>, window_params = [{transform_indices = @transform_0, window_bounds = array<i64: 1, 4, 40, 2304>}, {pipeline_mode = #tpu.pipeline_mode<synchronous>, transform_indices = @transform_1, window_bounds = array<i64: 2304, 64>}, {pipeline_mode = #tpu.pipeline_mode<synchronous>, transform_indices = @transform_2, window_bounds = array<i64: 1, 64>}, {transform_indices = @transform_3, window_bounds = array<i64: 1, 40, 64>}]} {
    %c0 = arith.constant 0 : index
    %c0_0 = arith.constant 0 : index
    %0 = vector.load %arg3[%c0, %c0_0] : memref<2304x64xf32, #tpu.memory_space<vmem>>, vector<2304x64xf32>
    %c0_1 = arith.constant 0 : index
    %c0_2 = arith.constant 0 : index
    %c0_3 = arith.constant 0 : index
    %c0_4 = arith.constant 0 : index
    %1 = vector.load %arg2[%c0_1, %c0_2, %c0_3, %c0_4] : memref<1x4x40x2304xf32, #tpu.memory_space<vmem>>, vector<1x1x40x2304xf32>
    %2 = vector.shape_cast %1 : vector<1x1x40x2304xf32> to vector<40x2304xf32>
    %cst = arith.constant dense<0.000000e+00> : vector<40x64xf32>
    %3 = tpu.matmul %2, %0, %cst {dimension_numbers = #tpu.dot_dimension_numbers<[1], [0], [0], [1], [0, 0, 1, 1], [], []>} : vector<40x2304xf32>, vector<2304x64xf32>, vector<40x64xf32> -> vector<40x64xf32>
    %c0_5 = arith.constant 0 : index
    %c1 = arith.constant 1 : index
    %c0_6 = arith.constant 0 : index
    %c0_7 = arith.constant 0 : index
    %4 = vector.load %arg2[%c0_5, %c1, %c0_6, %c0_7] : memref<1x4x40x2304xf32, #tpu.memory_space<vmem>>, vector<1x1x40x2304xf32>
    %5 = vector.shape_cast %4 : vector<1x1x40x2304xf32> to vector<40x2304xf32>
    %cst_8 = arith.constant dense<0.000000e+00> : vector<40x64xf32>
    %6 = tpu.matmul %5, %0, %cst_8 {dimension_numbers = #tpu.dot_dimension_numbers<[1], [0], [0], [1], [0, 0, 1, 1], [], []>} : vector<40x2304xf32>, vector<2304x64xf32>, vector<40x64xf32> -> vector<40x64xf32>
    %7 = arith.maximumf %3, %6 : vector<40x64xf32>
    %c0_9 = arith.constant 0 : index
    %c2 = arith.constant 2 : index
    %c0_10 = arith.constant 0 : index
    %c0_11 = arith.constant 0 : index
    %8 = vector.load %arg2[%c0_9, %c2, %c0_10, %c0_11] : memref<1x4x40x2304xf32, #tpu.memory_space<vmem>>, vector<1x1x40x2304xf32>
    %9 = vector.shape_cast %8 : vector<1x1x40x2304xf32> to vector<40x2304xf32>
    %cst_12 = arith.constant dense<0.000000e+00> : vector<40x64xf32>
    %10 = tpu.matmul %9, %0, %cst_12 {dimension_numbers = #tpu.dot_dimension_numbers<[1], [0], [0], [1], [0, 0, 1, 1], [], []>} : vector<40x2304xf32>, vector<2304x64xf32>, vector<40x64xf32> -> vector<40x64xf32>
    %11 = arith.maximumf %7, %10 : vector<40x64xf32>
    %c0_13 = arith.constant 0 : index
    %c3 = arith.constant 3 : index
    %c0_14 = arith.constant 0 : index
    %c0_15 = arith.constant 0 : index
    %12 = vector.load %arg2[%c0_13, %c3, %c0_14, %c0_15] : memref<1x4x40x2304xf32, #tpu.memory_space<vmem>>, vector<1x1x40x2304xf32>
    %13 = vector.shape_cast %12 : vector<1x1x40x2304xf32> to vector<40x2304xf32>
    %cst_16 = arith.constant dense<0.000000e+00> : vector<40x64xf32>
    %14 = tpu.matmul %13, %0, %cst_16 {dimension_numbers = #tpu.dot_dimension_numbers<[1], [0], [0], [1], [0, 0, 1, 1], [], []>} : vector<40x2304xf32>, vector<2304x64xf32>, vector<40x64xf32> -> vector<40x64xf32>
    %15 = arith.maximumf %11, %14 : vector<40x64xf32>
    %c0_17 = arith.constant 0 : index
    %c0_18 = arith.constant 0 : index
    %16 = vector.load %arg4[%c0_17, %c0_18] : memref<1x64xf32, #tpu.memory_space<vmem>>, vector<1x64xf32>
    %17 = vector.broadcast %16 : vector<1x64xf32> to vector<40x64xf32>
    %18 = arith.addf %15, %17 : vector<40x64xf32>
    %cst_19 = arith.constant 0.000000e+00 : f32
    %19 = vector.broadcast %cst_19 : f32 to vector<40x64xf32>
    %20 = arith.maximumf %18, %19 : vector<40x64xf32>
    %c0_20 = arith.constant 0 : index
    %c0_21 = arith.constant 0 : index
    %c0_22 = arith.constant 0 : index
    %21 = vector.load %arg5[%c0_20, %c0_21, %c0_22] : memref<1x40x64xf32, #tpu.memory_space<vmem>>, vector<1x40x64xf32>
    %22 = vector.shape_cast %21 : vector<1x40x64xf32> to vector<40x64xf32>
    %23 = vector.shape_cast %20 : vector<40x64xf32> to vector<1x40x64xf32>
    tpu.vector_store %arg5[%c0_20, %c0_21, %c0_22], %23 {strides = array<i32>} : memref<1x40x64xf32, #tpu.memory_space<vmem>>, vector<1x40x64xf32>,
    return
  }
  func.func @transform_0(%arg0: i32, %arg1: i32) -> (i32, i32, i32, i32) {
    %c0_i32 = arith.constant 0 : i32
    %c0_i32_0 = arith.constant 0 : i32
    %c0_i32_1 = arith.constant 0 : i32
    return %arg0, %c0_i32, %arg1, %c0_i32_0 : i32, i32, i32, i32
  }
  func.func @transform_1(%arg0: i32, %arg1: i32) -> (i32, i32) {
    %c0_i32 = arith.constant 0 : i32
    %c0_i32_0 = arith.constant 0 : i32
    %c0_i32_1 = arith.constant 0 : i32
    return %c0_i32, %c0_i32_0 : i32, i32
  }
  func.func @transform_2(%arg0: i32, %arg1: i32) -> (i32, i32) {
    %c0_i32 = arith.constant 0 : i32
    %c0_i32_0 = arith.constant 0 : i32
    %c0_i32_1 = arith.constant 0 : i32
    return %c0_i32, %c0_i32_0 : i32, i32
  }
  func.func @transform_3(%arg0: i32, %arg1: i32) -> (i32, i32, i32) {
    %c0_i32 = arith.constant 0 : i32
    %c0_i32_0 = arith.constant 0 : i32
    return %arg0, %arg1, %c0_i32 : i32, i32, i32
  }
}

module attributes {stable_mosaic.version = 11 : i64} {
  func.func @_head_kernel(%arg0: i32, %arg1: memref<32x640xf32, #tpu.memory_space<vmem>>, %arg2: memref<640x64xf32, #tpu.memory_space<vmem>>, %arg3: memref<1x64xf32, #tpu.memory_space<vmem>>, %arg4: memref<4x96x96xf32, #tpu.memory_space<vmem>>, %arg5: memref<4x2x96xf32, #tpu.memory_space<vmem>>, %arg6: memref<64x128xf32, #tpu.memory_space<vmem>>, %arg7: memref<1x128xf32, #tpu.memory_space<vmem>>, %arg8: memref<32x128xf32, #tpu.memory_space<vmem>>, %arg9: memref<32x96xf32, #tpu.memory_space<vmem>>, %arg10: memref<32x32xf32, #tpu.memory_space<vmem>>, %arg11: memref<32x32xf32, #tpu.memory_space<vmem>>) attributes {dimension_semantics = [#tpu.dimension_semantics<arbitrary>], iteration_bounds = array<i64: 1>, scalar_prefetch = 0 : i64, scratch_operands = 3 : i64, tpu.core_type = #tpu.core_type<tc>, window_params = [{pipeline_mode = #tpu.pipeline_mode<synchronous>, transform_indices = @transform_0, window_bounds = array<i64: 32, 640>}, {pipeline_mode = #tpu.pipeline_mode<synchronous>, transform_indices = @transform_1, window_bounds = array<i64: 640, 64>}, {pipeline_mode = #tpu.pipeline_mode<synchronous>, transform_indices = @transform_2, window_bounds = array<i64: 1, 64>}, {pipeline_mode = #tpu.pipeline_mode<synchronous>, transform_indices = @transform_3, window_bounds = array<i64: 4, 96, 96>}, {pipeline_mode = #tpu.pipeline_mode<synchronous>, transform_indices = @transform_4, window_bounds = array<i64: 4, 2, 96>}, {pipeline_mode = #tpu.pipeline_mode<synchronous>, transform_indices = @transform_5, window_bounds = array<i64: 64, 128>}, {pipeline_mode = #tpu.pipeline_mode<synchronous>, transform_indices = @transform_6, window_bounds = array<i64: 1, 128>}, {pipeline_mode = #tpu.pipeline_mode<synchronous>, transform_indices = @transform_7, window_bounds = array<i64: 32, 128>}]} {
    %c0 = arith.constant 0 : index
    %c0_0 = arith.constant 0 : index
    %0 = vector.load %arg1[%c0, %c0_0] : memref<32x640xf32, #tpu.memory_space<vmem>>, vector<32x640xf32>
    %c0_1 = arith.constant 0 : index
    %c0_2 = arith.constant 0 : index
    %1 = vector.load %arg2[%c0_1, %c0_2] : memref<640x64xf32, #tpu.memory_space<vmem>>, vector<640x64xf32>
    %cst = arith.constant dense<0.000000e+00> : vector<32x64xf32>
    %2 = tpu.matmul %0, %1, %cst {dimension_numbers = #tpu.dot_dimension_numbers<[1], [0], [0], [1], [0, 0, 1, 1], [], []>} : vector<32x640xf32>, vector<640x64xf32>, vector<32x64xf32> -> vector<32x64xf32>
    %c0_3 = arith.constant 0 : index
    %c0_4 = arith.constant 0 : index
    %3 = vector.load %arg3[%c0_3, %c0_4] : memref<1x64xf32, #tpu.memory_space<vmem>>, vector<1x64xf32>
    %4 = vector.broadcast %3 : vector<1x64xf32> to vector<32x64xf32>
    %5 = arith.addf %2, %4 : vector<32x64xf32>
    %cst_5 = arith.constant 0.000000e+00 : f32
    %6 = vector.broadcast %cst_5 : f32 to vector<32x64xf32>
    %7 = arith.maximumf %5, %6 : vector<32x64xf32>
    %c0_6 = arith.constant 0 : index
    %c0_7 = arith.constant 0 : index
    %c0_8 = arith.constant 0 : index
    %8 = vector.load %arg5[%c0_6, %c0_7, %c0_8] : memref<4x2x96xf32, #tpu.memory_space<vmem>>, vector<1x1x96xf32>
    %9 = vector.shape_cast %8 : vector<1x1x96xf32> to vector<1x96xf32>
    %c0_9 = arith.constant 0 : index
    %c0_10 = arith.constant 0 : index
    %c0_11 = arith.constant 0 : index
    %10 = vector.load %arg4[%c0_9, %c0_10, %c0_11] : memref<4x96x96xf32, #tpu.memory_space<vmem>>, vector<1x64x96xf32>
    %11 = vector.shape_cast %10 : vector<1x64x96xf32> to vector<64x96xf32>
    %cst_12 = arith.constant dense<0.000000e+00> : vector<32x96xf32>
    %12 = tpu.matmul %7, %11, %cst_12 {dimension_numbers = #tpu.dot_dimension_numbers<[1], [0], [0], [1], [0, 0, 1, 1], [], []>} : vector<32x64xf32>, vector<64x96xf32>, vector<32x96xf32> -> vector<32x96xf32>
    %13 = vector.broadcast %9 : vector<1x96xf32> to vector<32x96xf32>
    %14 = arith.addf %13, %12 : vector<32x96xf32>
    %c0_13 = arith.constant 0 : index
    %c0_14 = arith.constant 0 : index
    %15 = vector.load %arg9[%c0_13, %c0_14] : memref<32x96xf32, #tpu.memory_space<vmem>>, vector<32x96xf32>
    tpu.vector_store %arg9[%c0_13, %c0_14], %14 {strides = array<i32>} : memref<32x96xf32, #tpu.memory_space<vmem>>, vector<32x96xf32>,
    %c0_15 = arith.constant 0 : index
    %c64 = arith.constant 64 : index
    %c0_16 = arith.constant 0 : index
    %16 = vector.load %arg4[%c0_15, %c64, %c0_16] : memref<4x96x96xf32, #tpu.memory_space<vmem>>, vector<1x32x96xf32>
    %17 = vector.shape_cast %16 : vector<1x32x96xf32> to vector<32x96xf32>
    %c0_17 = arith.constant 0 : index
    %c1 = arith.constant 1 : index
    %c0_18 = arith.constant 0 : index
    %18 = vector.load %arg5[%c0_17, %c1, %c0_18] : memref<4x2x96xf32, #tpu.memory_space<vmem>>, vector<1x1x96xf32>
    %19 = vector.shape_cast %18 : vector<1x1x96xf32> to vector<1x96xf32>
    %cst_19 = arith.constant 0.000000e+00 : f32
    %20 = vector.broadcast %cst_19 : f32 to vector<8x32xf32>
    %c0_i32 = arith.constant 0 : i32
    %c8_i32 = arith.constant 8 : i32
    %21 = arith.muli %c0_i32, %c8_i32 : i32
    %22 = tpu.assume_multiple %21, 8 : i32
    %23 = arith.index_cast %22 : i32 to index
    %c0_20 = arith.constant 0 : index
    %24 = vector.load %arg9[%23, %c0_20] : memref<32x96xf32, #tpu.memory_space<vmem>>, vector<8x96xf32>
    %cst_21 = arith.constant dense<0.000000e+00> : vector<8x96xf32>
    %25 = tpu.matmul %20, %17, %cst_21 {dimension_numbers = #tpu.dot_dimension_numbers<[1], [0], [0], [1], [0, 0, 1, 1], [], []>} : vector<8x32xf32>, vector<32x96xf32>, vector<8x96xf32> -> vector<8x96xf32>
    %26 = vector.broadcast %19 : vector<1x96xf32> to vector<8x96xf32>
    %27 = arith.addf %25, %26 : vector<8x96xf32>
    %28 = vector.extract_strided_slice %24 {offsets = [0, 0], sizes = [8, 32], strides = [1, 1]} : vector<8x96xf32> to vector<8x32xf32>
    %29 = vector.extract_strided_slice %27 {offsets = [0, 0], sizes = [8, 32], strides = [1, 1]} : vector<8x96xf32> to vector<8x32xf32>
    %30 = arith.addf %28, %29 : vector<8x32xf32>
    %31 = arith.negf %30 : vector<8x32xf32>
    %32 = math.exp %31 : vector<8x32xf32>
    %cst_22 = arith.constant 1.000000e+00 : f32
    %33 = vector.broadcast %cst_22 : f32 to vector<8x32xf32>
    %34 = arith.addf %33, %32 : vector<8x32xf32>
    %35 = arith.divf %33, %34 : vector<8x32xf32>
    %36 = vector.extract_strided_slice %24 {offsets = [0, 32], sizes = [8, 32], strides = [1, 1]} : vector<8x96xf32> to vector<8x32xf32>
    %37 = vector.extract_strided_slice %27 {offsets = [0, 32], sizes = [8, 32], strides = [1, 1]} : vector<8x96xf32> to vector<8x32xf32>
    %38 = arith.addf %36, %37 : vector<8x32xf32>
    %39 = arith.negf %38 : vector<8x32xf32>
    %40 = math.exp %39 : vector<8x32xf32>
    %cst_23 = arith.constant 1.000000e+00 : f32
    %41 = vector.broadcast %cst_23 : f32 to vector<8x32xf32>
    %42 = arith.addf %41, %40 : vector<8x32xf32>
    %43 = arith.divf %41, %42 : vector<8x32xf32>
    %44 = vector.extract_strided_slice %24 {offsets = [0, 64], sizes = [8, 32], strides = [1, 1]} : vector<8x96xf32> to vector<8x32xf32>
    %45 = vector.extract_strided_slice %27 {offsets = [0, 64], sizes = [8, 32], strides = [1, 1]} : vector<8x96xf32> to vector<8x32xf32>
    %46 = arith.mulf %35, %45 : vector<8x32xf32>
    %47 = arith.addf %44, %46 : vector<8x32xf32>
    %48 = math.tanh %47 : vector<8x32xf32>
    %cst_24 = arith.constant 1.000000e+00 : f32
    %49 = vector.broadcast %cst_24 : f32 to vector<8x32xf32>
    %50 = arith.subf %49, %43 : vector<8x32xf32>
    %51 = arith.mulf %50, %48 : vector<8x32xf32>
    %52 = arith.mulf %43, %20 : vector<8x32xf32>
    %53 = arith.addf %51, %52 : vector<8x32xf32>
    %54 = arith.index_cast %22 : i32 to index
    %c0_25 = arith.constant 0 : index
    %55 = vector.load %arg10[%54, %c0_25] : memref<32x32xf32, #tpu.memory_space<vmem>>, vector<8x32xf32>
    tpu.vector_store %arg10[%54, %c0_25], %53 {strides = array<i32>} : memref<32x32xf32, #tpu.memory_space<vmem>>, vector<8x32xf32>,
    %c1_i32 = arith.constant 1 : i32
    %c8_i32_26 = arith.constant 8 : i32
    %56 = arith.muli %c1_i32, %c8_i32_26 : i32
    %57 = tpu.assume_multiple %56, 8 : i32
    %58 = arith.index_cast %57 : i32 to index
    %c0_27 = arith.constant 0 : index
    %59 = vector.load %arg9[%58, %c0_27] : memref<32x96xf32, #tpu.memory_space<vmem>>, vector<8x96xf32>
    %cst_28 = arith.constant dense<0.000000e+00> : vector<8x96xf32>
    %60 = tpu.matmul %53, %17, %cst_28 {dimension_numbers = #tpu.dot_dimension_numbers<[1], [0], [0], [1], [0, 0, 1, 1], [], []>} : vector<8x32xf32>, vector<32x96xf32>, vector<8x96xf32> -> vector<8x96xf32>
    %61 = vector.broadcast %19 : vector<1x96xf32> to vector<8x96xf32>
    %62 = arith.addf %60, %61 : vector<8x96xf32>
    %63 = vector.extract_strided_slice %59 {offsets = [0, 0], sizes = [8, 32], strides = [1, 1]} : vector<8x96xf32> to vector<8x32xf32>
    %64 = vector.extract_strided_slice %62 {offsets = [0, 0], sizes = [8, 32], strides = [1, 1]} : vector<8x96xf32> to vector<8x32xf32>
    %65 = arith.addf %63, %64 : vector<8x32xf32>
    %66 = arith.negf %65 : vector<8x32xf32>
    %67 = math.exp %66 : vector<8x32xf32>
    %cst_29 = arith.constant 1.000000e+00 : f32
    %68 = vector.broadcast %cst_29 : f32 to vector<8x32xf32>
    %69 = arith.addf %68, %67 : vector<8x32xf32>
    %70 = arith.divf %68, %69 : vector<8x32xf32>
    %71 = vector.extract_strided_slice %59 {offsets = [0, 32], sizes = [8, 32], strides = [1, 1]} : vector<8x96xf32> to vector<8x32xf32>
    %72 = vector.extract_strided_slice %62 {offsets = [0, 32], sizes = [8, 32], strides = [1, 1]} : vector<8x96xf32> to vector<8x32xf32>
    %73 = arith.addf %71, %72 : vector<8x32xf32>
    %74 = arith.negf %73 : vector<8x32xf32>
    %75 = math.exp %74 : vector<8x32xf32>
    %cst_30 = arith.constant 1.000000e+00 : f32
    %76 = vector.broadcast %cst_30 : f32 to vector<8x32xf32>
    %77 = arith.addf %76, %75 : vector<8x32xf32>
    %78 = arith.divf %76, %77 : vector<8x32xf32>
    %79 = vector.extract_strided_slice %59 {offsets = [0, 64], sizes = [8, 32], strides = [1, 1]} : vector<8x96xf32> to vector<8x32xf32>
    %80 = vector.extract_strided_slice %62 {offsets = [0, 64], sizes = [8, 32], strides = [1, 1]} : vector<8x96xf32> to vector<8x32xf32>
    %81 = arith.mulf %70, %80 : vector<8x32xf32>
    %82 = arith.addf %79, %81 : vector<8x32xf32>
    %83 = math.tanh %82 : vector<8x32xf32>
    %cst_31 = arith.constant 1.000000e+00 : f32
    %84 = vector.broadcast %cst_31 : f32 to vector<8x32xf32>
    %85 = arith.subf %84, %78 : vector<8x32xf32>
    %86 = arith.mulf %85, %83 : vector<8x32xf32>
    %87 = arith.mulf %78, %53 : vector<8x32xf32>
    %88 = arith.addf %86, %87 : vector<8x32xf32>
    %89 = arith.index_cast %57 : i32 to index
    %c0_32 = arith.constant 0 : index
    %90 = vector.load %arg10[%89, %c0_32] : memref<32x32xf32, #tpu.memory_space<vmem>>, vector<8x32xf32>
    tpu.vector_store %arg10[%89, %c0_32], %88 {strides = array<i32>} : memref<32x32xf32, #tpu.memory_space<vmem>>, vector<8x32xf32>,
    %c2_i32 = arith.constant 2 : i32
    %c8_i32_33 = arith.constant 8 : i32
    %91 = arith.muli %c2_i32, %c8_i32_33 : i32
    %92 = tpu.assume_multiple %91, 8 : i32
    %93 = arith.index_cast %92 : i32 to index
    %c0_34 = arith.constant 0 : index
    %94 = vector.load %arg9[%93, %c0_34] : memref<32x96xf32, #tpu.memory_space<vmem>>, vector<8x96xf32>
    %cst_35 = arith.constant dense<0.000000e+00> : vector<8x96xf32>
    %95 = tpu.matmul %88, %17, %cst_35 {dimension_numbers = #tpu.dot_dimension_numbers<[1], [0], [0], [1], [0, 0, 1, 1], [], []>} : vector<8x32xf32>, vector<32x96xf32>, vector<8x96xf32> -> vector<8x96xf32>
    %96 = vector.broadcast %19 : vector<1x96xf32> to vector<8x96xf32>
    %97 = arith.addf %95, %96 : vector<8x96xf32>
    %98 = vector.extract_strided_slice %94 {offsets = [0, 0], sizes = [8, 32], strides = [1, 1]} : vector<8x96xf32> to vector<8x32xf32>
    %99 = vector.extract_strided_slice %97 {offsets = [0, 0], sizes = [8, 32], strides = [1, 1]} : vector<8x96xf32> to vector<8x32xf32>
    %100 = arith.addf %98, %99 : vector<8x32xf32>
    %101 = arith.negf %100 : vector<8x32xf32>
    %102 = math.exp %101 : vector<8x32xf32>
    %cst_36 = arith.constant 1.000000e+00 : f32
    %103 = vector.broadcast %cst_36 : f32 to vector<8x32xf32>
    %104 = arith.addf %103, %102 : vector<8x32xf32>
    %105 = arith.divf %103, %104 : vector<8x32xf32>
    %106 = vector.extract_strided_slice %94 {offsets = [0, 32], sizes = [8, 32], strides = [1, 1]} : vector<8x96xf32> to vector<8x32xf32>
    %107 = vector.extract_strided_slice %97 {offsets = [0, 32], sizes = [8, 32], strides = [1, 1]} : vector<8x96xf32> to vector<8x32xf32>
    %108 = arith.addf %106, %107 : vector<8x32xf32>
    %109 = arith.negf %108 : vector<8x32xf32>
    %110 = math.exp %109 : vector<8x32xf32>
    %cst_37 = arith.constant 1.000000e+00 : f32
    %111 = vector.broadcast %cst_37 : f32 to vector<8x32xf32>
    %112 = arith.addf %111, %110 : vector<8x32xf32>
    %113 = arith.divf %111, %112 : vector<8x32xf32>
    %114 = vector.extract_strided_slice %94 {offsets = [0, 64], sizes = [8, 32], strides = [1, 1]} : vector<8x96xf32> to vector<8x32xf32>
    %115 = vector.extract_strided_slice %97 {offsets = [0, 64], sizes = [8, 32], strides = [1, 1]} : vector<8x96xf32> to vector<8x32xf32>
    %116 = arith.mulf %105, %115 : vector<8x32xf32>
    %117 = arith.addf %114, %116 : vector<8x32xf32>
    %118 = math.tanh %117 : vector<8x32xf32>
    %cst_38 = arith.constant 1.000000e+00 : f32
    %119 = vector.broadcast %cst_38 : f32 to vector<8x32xf32>
    %120 = arith.subf %119, %113 : vector<8x32xf32>
    %121 = arith.mulf %120, %118 : vector<8x32xf32>
    %122 = arith.mulf %113, %88 : vector<8x32xf32>
    %123 = arith.addf %121, %122 : vector<8x32xf32>
    %124 = arith.index_cast %92 : i32 to index
    %c0_39 = arith.constant 0 : index
    %125 = vector.load %arg10[%124, %c0_39] : memref<32x32xf32, #tpu.memory_space<vmem>>, vector<8x32xf32>
    tpu.vector_store %arg10[%124, %c0_39], %123 {strides = array<i32>} : memref<32x32xf32, #tpu.memory_space<vmem>>, vector<8x32xf32>,
    %c3_i32 = arith.constant 3 : i32
    %c8_i32_40 = arith.constant 8 : i32
    %126 = arith.muli %c3_i32, %c8_i32_40 : i32
    %127 = tpu.assume_multiple %126, 8 : i32
    %128 = arith.index_cast %127 : i32 to index
    %c0_41 = arith.constant 0 : index
    %129 = vector.load %arg9[%128, %c0_41] : memref<32x96xf32, #tpu.memory_space<vmem>>, vector<8x96xf32>
    %cst_42 = arith.constant dense<0.000000e+00> : vector<8x96xf32>
    %130 = tpu.matmul %123, %17, %cst_42 {dimension_numbers = #tpu.dot_dimension_numbers<[1], [0], [0], [1], [0, 0, 1, 1], [], []>} : vector<8x32xf32>, vector<32x96xf32>, vector<8x96xf32> -> vector<8x96xf32>
    %131 = vector.broadcast %19 : vector<1x96xf32> to vector<8x96xf32>
    %132 = arith.addf %130, %131 : vector<8x96xf32>
    %133 = vector.extract_strided_slice %129 {offsets = [0, 0], sizes = [8, 32], strides = [1, 1]} : vector<8x96xf32> to vector<8x32xf32>
    %134 = vector.extract_strided_slice %132 {offsets = [0, 0], sizes = [8, 32], strides = [1, 1]} : vector<8x96xf32> to vector<8x32xf32>
    %135 = arith.addf %133, %134 : vector<8x32xf32>
    %136 = arith.negf %135 : vector<8x32xf32>
    %137 = math.exp %136 : vector<8x32xf32>
    %cst_43 = arith.constant 1.000000e+00 : f32
    %138 = vector.broadcast %cst_43 : f32 to vector<8x32xf32>
    %139 = arith.addf %138, %137 : vector<8x32xf32>
    %140 = arith.divf %138, %139 : vector<8x32xf32>
    %141 = vector.extract_strided_slice %129 {offsets = [0, 32], sizes = [8, 32], strides = [1, 1]} : vector<8x96xf32> to vector<8x32xf32>
    %142 = vector.extract_strided_slice %132 {offsets = [0, 32], sizes = [8, 32], strides = [1, 1]} : vector<8x96xf32> to vector<8x32xf32>
    %143 = arith.addf %141, %142 : vector<8x32xf32>
    %144 = arith.negf %143 : vector<8x32xf32>
    %145 = math.exp %144 : vector<8x32xf32>
    %cst_44 = arith.constant 1.000000e+00 : f32
    %146 = vector.broadcast %cst_44 : f32 to vector<8x32xf32>
    %147 = arith.addf %146, %145 : vector<8x32xf32>
    %148 = arith.divf %146, %147 : vector<8x32xf32>
    %149 = vector.extract_strided_slice %129 {offsets = [0, 64], sizes = [8, 32], strides = [1, 1]} : vector<8x96xf32> to vector<8x32xf32>
    %150 = vector.extract_strided_slice %132 {offsets = [0, 64], sizes = [8, 32], strides = [1, 1]} : vector<8x96xf32> to vector<8x32xf32>
    %151 = arith.mulf %140, %150 : vector<8x32xf32>
    %152 = arith.addf %149, %151 : vector<8x32xf32>
    %153 = math.tanh %152 : vector<8x32xf32>
    %cst_45 = arith.constant 1.000000e+00 : f32
    %154 = vector.broadcast %cst_45 : f32 to vector<8x32xf32>
    %155 = arith.subf %154, %148 : vector<8x32xf32>
    %156 = arith.mulf %155, %153 : vector<8x32xf32>
    %157 = arith.mulf %148, %123 : vector<8x32xf32>
    %158 = arith.addf %156, %157 : vector<8x32xf32>
    %159 = arith.index_cast %127 : i32 to index
    %c0_46 = arith.constant 0 : index
    %160 = vector.load %arg10[%159, %c0_46] : memref<32x32xf32, #tpu.memory_space<vmem>>, vector<8x32xf32>
    tpu.vector_store %arg10[%159, %c0_46], %158 {strides = array<i32>} : memref<32x32xf32, #tpu.memory_space<vmem>>, vector<8x32xf32>,
    %c4_i32 = arith.constant 4 : i32
    %c1_47 = arith.constant 1 : index
    %c0_48 = arith.constant 0 : index
    %c0_49 = arith.constant 0 : index
    %161 = vector.load %arg5[%c1_47, %c0_48, %c0_49] : memref<4x2x96xf32, #tpu.memory_space<vmem>>, vector<1x1x96xf32>
    %162 = vector.shape_cast %161 : vector<1x1x96xf32> to vector<1x96xf32>
    %c1_50 = arith.constant 1 : index
    %c0_51 = arith.constant 0 : index
    %c0_52 = arith.constant 0 : index
    %163 = vector.load %arg4[%c1_50, %c0_51, %c0_52] : memref<4x96x96xf32, #tpu.memory_space<vmem>>, vector<1x64x96xf32>
    %164 = vector.shape_cast %163 : vector<1x64x96xf32> to vector<64x96xf32>
    %cst_53 = arith.constant dense<0.000000e+00> : vector<32x96xf32>
    %165 = tpu.matmul %7, %164, %cst_53 {dimension_numbers = #tpu.dot_dimension_numbers<[1], [0], [0], [1], [0, 0, 1, 1], [], []>} : vector<32x64xf32>, vector<64x96xf32>, vector<32x96xf32> -> vector<32x96xf32>
    %166 = vector.broadcast %162 : vector<1x96xf32> to vector<32x96xf32>
    %167 = arith.addf %166, %165 : vector<32x96xf32>
    %c0_54 = arith.constant 0 : index
    %c0_55 = arith.constant 0 : index
    %168 = vector.load %arg9[%c0_54, %c0_55] : memref<32x96xf32, #tpu.memory_space<vmem>>, vector<32x96xf32>
    tpu.vector_store %arg9[%c0_54, %c0_55], %167 {strides = array<i32>} : memref<32x96xf32, #tpu.memory_space<vmem>>, vector<32x96xf32>,
    %c1_56 = arith.constant 1 : index
    %c64_57 = arith.constant 64 : index
    %c0_58 = arith.constant 0 : index
    %169 = vector.load %arg4[%c1_56, %c64_57, %c0_58] : memref<4x96x96xf32, #tpu.memory_space<vmem>>, vector<1x32x96xf32>
    %170 = vector.shape_cast %169 : vector<1x32x96xf32> to vector<32x96xf32>
    %c1_59 = arith.constant 1 : index
    %c1_60 = arith.constant 1 : index
    %c0_61 = arith.constant 0 : index
    %171 = vector.load %arg5[%c1_59, %c1_60, %c0_61] : memref<4x2x96xf32, #tpu.memory_space<vmem>>, vector<1x1x96xf32>
    %172 = vector.shape_cast %171 : vector<1x1x96xf32> to vector<1x96xf32>
    %cst_62 = arith.constant 0.000000e+00 : f32
    %173 = vector.broadcast %cst_62 : f32 to vector<8x32xf32>
    %c0_i32_63 = arith.constant 0 : i32
    %c3_i32_64 = arith.constant 3 : i32
    %174 = arith.subi %c3_i32_64, %c0_i32_63 : i32
    %c8_i32_65 = arith.constant 8 : i32
    %175 = arith.muli %174, %c8_i32_65 : i32
    %176 = tpu.assume_multiple %175, 8 : i32
    %177 = arith.index_cast %176 : i32 to index
    %c0_66 = arith.constant 0 : index
    %178 = vector.load %arg9[%177, %c0_66] : memref<32x96xf32, #tpu.memory_space<vmem>>, vector<8x96xf32>
    %cst_67 = arith.constant dense<0.000000e+00> : vector<8x96xf32>
    %179 = tpu.matmul %173, %170, %cst_67 {dimension_numbers = #tpu.dot_dimension_numbers<[1], [0], [0], [1], [0, 0, 1, 1], [], []>} : vector<8x32xf32>, vector<32x96xf32>, vector<8x96xf32> -> vector<8x96xf32>
    %180 = vector.broadcast %172 : vector<1x96xf32> to vector<8x96xf32>
    %181 = arith.addf %179, %180 : vector<8x96xf32>
    %182 = vector.extract_strided_slice %178 {offsets = [0, 0], sizes = [8, 32], strides = [1, 1]} : vector<8x96xf32> to vector<8x32xf32>
    %183 = vector.extract_strided_slice %181 {offsets = [0, 0], sizes = [8, 32], strides = [1, 1]} : vector<8x96xf32> to vector<8x32xf32>
    %184 = arith.addf %182, %183 : vector<8x32xf32>
    %185 = arith.negf %184 : vector<8x32xf32>
    %186 = math.exp %185 : vector<8x32xf32>
    %cst_68 = arith.constant 1.000000e+00 : f32
    %187 = vector.broadcast %cst_68 : f32 to vector<8x32xf32>
    %188 = arith.addf %187, %186 : vector<8x32xf32>
    %189 = arith.divf %187, %188 : vector<8x32xf32>
    %190 = vector.extract_strided_slice %178 {offsets = [0, 32], sizes = [8, 32], strides = [1, 1]} : vector<8x96xf32> to vector<8x32xf32>
    %191 = vector.extract_strided_slice %181 {offsets = [0, 32], sizes = [8, 32], strides = [1, 1]} : vector<8x96xf32> to vector<8x32xf32>
    %192 = arith.addf %190, %191 : vector<8x32xf32>
    %193 = arith.negf %192 : vector<8x32xf32>
    %194 = math.exp %193 : vector<8x32xf32>
    %cst_69 = arith.constant 1.000000e+00 : f32
    %195 = vector.broadcast %cst_69 : f32 to vector<8x32xf32>
    %196 = arith.addf %195, %194 : vector<8x32xf32>
    %197 = arith.divf %195, %196 : vector<8x32xf32>
    %198 = vector.extract_strided_slice %178 {offsets = [0, 64], sizes = [8, 32], strides = [1, 1]} : vector<8x96xf32> to vector<8x32xf32>
    %199 = vector.extract_strided_slice %181 {offsets = [0, 64], sizes = [8, 32], strides = [1, 1]} : vector<8x96xf32> to vector<8x32xf32>
    %200 = arith.mulf %189, %199 : vector<8x32xf32>
    %201 = arith.addf %198, %200 : vector<8x32xf32>
    %202 = math.tanh %201 : vector<8x32xf32>
    %cst_70 = arith.constant 1.000000e+00 : f32
    %203 = vector.broadcast %cst_70 : f32 to vector<8x32xf32>
    %204 = arith.subf %203, %197 : vector<8x32xf32>
    %205 = arith.mulf %204, %202 : vector<8x32xf32>
    %206 = arith.mulf %197, %173 : vector<8x32xf32>
    %207 = arith.addf %205, %206 : vector<8x32xf32>
    %208 = arith.index_cast %176 : i32 to index
    %c0_71 = arith.constant 0 : index
    %209 = vector.load %arg11[%208, %c0_71] : memref<32x32xf32, #tpu.memory_space<vmem>>, vector<8x32xf32>
    tpu.vector_store %arg11[%208, %c0_71], %207 {strides = array<i32>} : memref<32x32xf32, #tpu.memory_space<vmem>>, vector<8x32xf32>,
    %c1_i32_72 = arith.constant 1 : i32
    %c3_i32_73 = arith.constant 3 : i32
    %210 = arith.subi %c3_i32_73, %c1_i32_72 : i32
    %c8_i32_74 = arith.constant 8 : i32
    %211 = arith.muli %210, %c8_i32_74 : i32
    %212 = tpu.assume_multiple %211, 8 : i32
    %213 = arith.index_cast %212 : i32 to index
    %c0_75 = arith.constant 0 : index
    %214 = vector.load %arg9[%213, %c0_75] : memref<32x96xf32, #tpu.memory_space<vmem>>, vector<8x96xf32>
    %cst_76 = arith.constant dense<0.000000e+00> : vector<8x96xf32>
    %215 = tpu.matmul %207, %170, %cst_76 {dimension_numbers = #tpu.dot_dimension_numbers<[1], [0], [0], [1], [0, 0, 1, 1], [], []>} : vector<8x32xf32>, vector<32x96xf32>, vector<8x96xf32> -> vector<8x96xf32>
    %216 = vector.broadcast %172 : vector<1x96xf32> to vector<8x96xf32>
    %217 = arith.addf %215, %216 : vector<8x96xf32>
    %218 = vector.extract_strided_slice %214 {offsets = [0, 0], sizes = [8, 32], strides = [1, 1]} : vector<8x96xf32> to vector<8x32xf32>
    %219 = vector.extract_strided_slice %217 {offsets = [0, 0], sizes = [8, 32], strides = [1, 1]} : vector<8x96xf32> to vector<8x32xf32>
    %220 = arith.addf %218, %219 : vector<8x32xf32>
    %221 = arith.negf %220 : vector<8x32xf32>
    %222 = math.exp %221 : vector<8x32xf32>
    %cst_77 = arith.constant 1.000000e+00 : f32
    %223 = vector.broadcast %cst_77 : f32 to vector<8x32xf32>
    %224 = arith.addf %223, %222 : vector<8x32xf32>
    %225 = arith.divf %223, %224 : vector<8x32xf32>
    %226 = vector.extract_strided_slice %214 {offsets = [0, 32], sizes = [8, 32], strides = [1, 1]} : vector<8x96xf32> to vector<8x32xf32>
    %227 = vector.extract_strided_slice %217 {offsets = [0, 32], sizes = [8, 32], strides = [1, 1]} : vector<8x96xf32> to vector<8x32xf32>
    %228 = arith.addf %226, %227 : vector<8x32xf32>
    %229 = arith.negf %228 : vector<8x32xf32>
    %230 = math.exp %229 : vector<8x32xf32>
    %cst_78 = arith.constant 1.000000e+00 : f32
    %231 = vector.broadcast %cst_78 : f32 to vector<8x32xf32>
    %232 = arith.addf %231, %230 : vector<8x32xf32>
    %233 = arith.divf %231, %232 : vector<8x32xf32>
    %234 = vector.extract_strided_slice %214 {offsets = [0, 64], sizes = [8, 32], strides = [1, 1]} : vector<8x96xf32> to vector<8x32xf32>
    %235 = vector.extract_strided_slice %217 {offsets = [0, 64], sizes = [8, 32], strides = [1, 1]} : vector<8x96xf32> to vector<8x32xf32>
    %236 = arith.mulf %225, %235 : vector<8x32xf32>
    %237 = arith.addf %234, %236 : vector<8x32xf32>
    %238 = math.tanh %237 : vector<8x32xf32>
    %cst_79 = arith.constant 1.000000e+00 : f32
    %239 = vector.broadcast %cst_79 : f32 to vector<8x32xf32>
    %240 = arith.subf %239, %233 : vector<8x32xf32>
    %241 = arith.mulf %240, %238 : vector<8x32xf32>
    %242 = arith.mulf %233, %207 : vector<8x32xf32>
    %243 = arith.addf %241, %242 : vector<8x32xf32>
    %244 = arith.index_cast %212 : i32 to index
    %c0_80 = arith.constant 0 : index
    %245 = vector.load %arg11[%244, %c0_80] : memref<32x32xf32, #tpu.memory_space<vmem>>, vector<8x32xf32>
    tpu.vector_store %arg11[%244, %c0_80], %243 {strides = array<i32>} : memref<32x32xf32, #tpu.memory_space<vmem>>, vector<8x32xf32>,
    %c2_i32_81 = arith.constant 2 : i32
    %c3_i32_82 = arith.constant 3 : i32
    %246 = arith.subi %c3_i32_82, %c2_i32_81 : i32
    %c8_i32_83 = arith.constant 8 : i32
    %247 = arith.muli %246, %c8_i32_83 : i32
    %248 = tpu.assume_multiple %247, 8 : i32
    %249 = arith.index_cast %248 : i32 to index
    %c0_84 = arith.constant 0 : index
    %250 = vector.load %arg9[%249, %c0_84] : memref<32x96xf32, #tpu.memory_space<vmem>>, vector<8x96xf32>
    %cst_85 = arith.constant dense<0.000000e+00> : vector<8x96xf32>
    %251 = tpu.matmul %243, %170, %cst_85 {dimension_numbers = #tpu.dot_dimension_numbers<[1], [0], [0], [1], [0, 0, 1, 1], [], []>} : vector<8x32xf32>, vector<32x96xf32>, vector<8x96xf32> -> vector<8x96xf32>
    %252 = vector.broadcast %172 : vector<1x96xf32> to vector<8x96xf32>
    %253 = arith.addf %251, %252 : vector<8x96xf32>
    %254 = vector.extract_strided_slice %250 {offsets = [0, 0], sizes = [8, 32], strides = [1, 1]} : vector<8x96xf32> to vector<8x32xf32>
    %255 = vector.extract_strided_slice %253 {offsets = [0, 0], sizes = [8, 32], strides = [1, 1]} : vector<8x96xf32> to vector<8x32xf32>
    %256 = arith.addf %254, %255 : vector<8x32xf32>
    %257 = arith.negf %256 : vector<8x32xf32>
    %258 = math.exp %257 : vector<8x32xf32>
    %cst_86 = arith.constant 1.000000e+00 : f32
    %259 = vector.broadcast %cst_86 : f32 to vector<8x32xf32>
    %260 = arith.addf %259, %258 : vector<8x32xf32>
    %261 = arith.divf %259, %260 : vector<8x32xf32>
    %262 = vector.extract_strided_slice %250 {offsets = [0, 32], sizes = [8, 32], strides = [1, 1]} : vector<8x96xf32> to vector<8x32xf32>
    %263 = vector.extract_strided_slice %253 {offsets = [0, 32], sizes = [8, 32], strides = [1, 1]} : vector<8x96xf32> to vector<8x32xf32>
    %264 = arith.addf %262, %263 : vector<8x32xf32>
    %265 = arith.negf %264 : vector<8x32xf32>
    %266 = math.exp %265 : vector<8x32xf32>
    %cst_87 = arith.constant 1.000000e+00 : f32
    %267 = vector.broadcast %cst_87 : f32 to vector<8x32xf32>
    %268 = arith.addf %267, %266 : vector<8x32xf32>
    %269 = arith.divf %267, %268 : vector<8x32xf32>
    %270 = vector.extract_strided_slice %250 {offsets = [0, 64], sizes = [8, 32], strides = [1, 1]} : vector<8x96xf32> to vector<8x32xf32>
    %271 = vector.extract_strided_slice %253 {offsets = [0, 64], sizes = [8, 32], strides = [1, 1]} : vector<8x96xf32> to vector<8x32xf32>
    %272 = arith.mulf %261, %271 : vector<8x32xf32>
    %273 = arith.addf %270, %272 : vector<8x32xf32>
    %274 = math.tanh %273 : vector<8x32xf32>
    %cst_88 = arith.constant 1.000000e+00 : f32
    %275 = vector.broadcast %cst_88 : f32 to vector<8x32xf32>
    %276 = arith.subf %275, %269 : vector<8x32xf32>
    %277 = arith.mulf %276, %274 : vector<8x32xf32>
    %278 = arith.mulf %269, %243 : vector<8x32xf32>
    %279 = arith.addf %277, %278 : vector<8x32xf32>
    %280 = arith.index_cast %248 : i32 to index
    %c0_89 = arith.constant 0 : index
    %281 = vector.load %arg11[%280, %c0_89] : memref<32x32xf32, #tpu.memory_space<vmem>>, vector<8x32xf32>
    tpu.vector_store %arg11[%280, %c0_89], %279 {strides = array<i32>} : memref<32x32xf32, #tpu.memory_space<vmem>>, vector<8x32xf32>,
    %c3_i32_90 = arith.constant 3 : i32
    %c3_i32_91 = arith.constant 3 : i32
    %282 = arith.subi %c3_i32_91, %c3_i32_90 : i32
    %c8_i32_92 = arith.constant 8 : i32
    %283 = arith.muli %282, %c8_i32_92 : i32
    %284 = tpu.assume_multiple %283, 8 : i32
    %285 = arith.index_cast %284 : i32 to index
    %c0_93 = arith.constant 0 : index
    %286 = vector.load %arg9[%285, %c0_93] : memref<32x96xf32, #tpu.memory_space<vmem>>, vector<8x96xf32>
    %cst_94 = arith.constant dense<0.000000e+00> : vector<8x96xf32>
    %287 = tpu.matmul %279, %170, %cst_94 {dimension_numbers = #tpu.dot_dimension_numbers<[1], [0], [0], [1], [0, 0, 1, 1], [], []>} : vector<8x32xf32>, vector<32x96xf32>, vector<8x96xf32> -> vector<8x96xf32>
    %288 = vector.broadcast %172 : vector<1x96xf32> to vector<8x96xf32>
    %289 = arith.addf %287, %288 : vector<8x96xf32>
    %290 = vector.extract_strided_slice %286 {offsets = [0, 0], sizes = [8, 32], strides = [1, 1]} : vector<8x96xf32> to vector<8x32xf32>
    %291 = vector.extract_strided_slice %289 {offsets = [0, 0], sizes = [8, 32], strides = [1, 1]} : vector<8x96xf32> to vector<8x32xf32>
    %292 = arith.addf %290, %291 : vector<8x32xf32>
    %293 = arith.negf %292 : vector<8x32xf32>
    %294 = math.exp %293 : vector<8x32xf32>
    %cst_95 = arith.constant 1.000000e+00 : f32
    %295 = vector.broadcast %cst_95 : f32 to vector<8x32xf32>
    %296 = arith.addf %295, %294 : vector<8x32xf32>
    %297 = arith.divf %295, %296 : vector<8x32xf32>
    %298 = vector.extract_strided_slice %286 {offsets = [0, 32], sizes = [8, 32], strides = [1, 1]} : vector<8x96xf32> to vector<8x32xf32>
    %299 = vector.extract_strided_slice %289 {offsets = [0, 32], sizes = [8, 32], strides = [1, 1]} : vector<8x96xf32> to vector<8x32xf32>
    %300 = arith.addf %298, %299 : vector<8x32xf32>
    %301 = arith.negf %300 : vector<8x32xf32>
    %302 = math.exp %301 : vector<8x32xf32>
    %cst_96 = arith.constant 1.000000e+00 : f32
    %303 = vector.broadcast %cst_96 : f32 to vector<8x32xf32>
    %304 = arith.addf %303, %302 : vector<8x32xf32>
    %305 = arith.divf %303, %304 : vector<8x32xf32>
    %306 = vector.extract_strided_slice %286 {offsets = [0, 64], sizes = [8, 32], strides = [1, 1]} : vector<8x96xf32> to vector<8x32xf32>
    %307 = vector.extract_strided_slice %289 {offsets = [0, 64], sizes = [8, 32], strides = [1, 1]} : vector<8x96xf32> to vector<8x32xf32>
    %308 = arith.mulf %297, %307 : vector<8x32xf32>
    %309 = arith.addf %306, %308 : vector<8x32xf32>
    %310 = math.tanh %309 : vector<8x32xf32>
    %cst_97 = arith.constant 1.000000e+00 : f32
    %311 = vector.broadcast %cst_97 : f32 to vector<8x32xf32>
    %312 = arith.subf %311, %305 : vector<8x32xf32>
    %313 = arith.mulf %312, %310 : vector<8x32xf32>
    %314 = arith.mulf %305, %279 : vector<8x32xf32>
    %315 = arith.addf %313, %314 : vector<8x32xf32>
    %316 = arith.index_cast %284 : i32 to index
    %c0_98 = arith.constant 0 : index
    %317 = vector.load %arg11[%316, %c0_98] : memref<32x32xf32, #tpu.memory_space<vmem>>, vector<8x32xf32>
    tpu.vector_store %arg11[%316, %c0_98], %315 {strides = array<i32>} : memref<32x32xf32, #tpu.memory_space<vmem>>, vector<8x32xf32>,
    %c4_i32_99 = arith.constant 4 : i32
    %c0_100 = arith.constant 0 : index
    %c0_101 = arith.constant 0 : index
    %318 = vector.load %arg10[%c0_100, %c0_101] : memref<32x32xf32, #tpu.memory_space<vmem>>, vector<32x32xf32>
    %c0_102 = arith.constant 0 : index
    %c0_103 = arith.constant 0 : index
    %319 = vector.load %arg11[%c0_102, %c0_103] : memref<32x32xf32, #tpu.memory_space<vmem>>, vector<32x32xf32>
    %c2 = arith.constant 2 : index
    %c0_104 = arith.constant 0 : index
    %c0_105 = arith.constant 0 : index
    %320 = vector.load %arg5[%c2, %c0_104, %c0_105] : memref<4x2x96xf32, #tpu.memory_space<vmem>>, vector<1x1x96xf32>
    %321 = vector.shape_cast %320 : vector<1x1x96xf32> to vector<1x96xf32>
    %c2_106 = arith.constant 2 : index
    %c0_107 = arith.constant 0 : index
    %c0_108 = arith.constant 0 : index
    %322 = vector.load %arg4[%c2_106, %c0_107, %c0_108] : memref<4x96x96xf32, #tpu.memory_space<vmem>>, vector<1x32x96xf32>
    %323 = vector.shape_cast %322 : vector<1x32x96xf32> to vector<32x96xf32>
    %cst_109 = arith.constant dense<0.000000e+00> : vector<32x96xf32>
    %324 = tpu.matmul %318, %323, %cst_109 {dimension_numbers = #tpu.dot_dimension_numbers<[1], [0], [0], [1], [0, 0, 1, 1], [], []>} : vector<32x32xf32>, vector<32x96xf32>, vector<32x96xf32> -> vector<32x96xf32>
    %325 = vector.broadcast %321 : vector<1x96xf32> to vector<32x96xf32>
    %326 = arith.addf %325, %324 : vector<32x96xf32>
    %c2_110 = arith.constant 2 : index
    %c32 = arith.constant 32 : index
    %c0_111 = arith.constant 0 : index
    %327 = vector.load %arg4[%c2_110, %c32, %c0_111] : memref<4x96x96xf32, #tpu.memory_space<vmem>>, vector<1x32x96xf32>
    %328 = vector.shape_cast %327 : vector<1x32x96xf32> to vector<32x96xf32>
    %cst_112 = arith.constant dense<0.000000e+00> : vector<32x96xf32>
    %329 = tpu.matmul %319, %328, %cst_112 {dimension_numbers = #tpu.dot_dimension_numbers<[1], [0], [0], [1], [0, 0, 1, 1], [], []>} : vector<32x32xf32>, vector<32x96xf32>, vector<32x96xf32> -> vector<32x96xf32>
    %330 = arith.addf %326, %329 : vector<32x96xf32>
    %c0_113 = arith.constant 0 : index
    %c0_114 = arith.constant 0 : index
    %331 = vector.load %arg9[%c0_113, %c0_114] : memref<32x96xf32, #tpu.memory_space<vmem>>, vector<32x96xf32>
    tpu.vector_store %arg9[%c0_113, %c0_114], %330 {strides = array<i32>} : memref<32x96xf32, #tpu.memory_space<vmem>>, vector<32x96xf32>,
    %c2_115 = arith.constant 2 : index
    %c64_116 = arith.constant 64 : index
    %c0_117 = arith.constant 0 : index
    %332 = vector.load %arg4[%c2_115, %c64_116, %c0_117] : memref<4x96x96xf32, #tpu.memory_space<vmem>>, vector<1x32x96xf32>
    %333 = vector.shape_cast %332 : vector<1x32x96xf32> to vector<32x96xf32>
    %c2_118 = arith.constant 2 : index
    %c1_119 = arith.constant 1 : index
    %c0_120 = arith.constant 0 : index
    %334 = vector.load %arg5[%c2_118, %c1_119, %c0_120] : memref<4x2x96xf32, #tpu.memory_space<vmem>>, vector<1x1x96xf32>
    %335 = vector.shape_cast %334 : vector<1x1x96xf32> to vector<1x96xf32>
    %cst_121 = arith.constant 0.000000e+00 : f32
    %336 = vector.broadcast %cst_121 : f32 to vector<8x32xf32>
    %c0_i32_122 = arith.constant 0 : i32
    %c8_i32_123 = arith.constant 8 : i32
    %337 = arith.muli %c0_i32_122, %c8_i32_123 : i32
    %338 = tpu.assume_multiple %337, 8 : i32
    %339 = arith.index_cast %338 : i32 to index
    %c0_124 = arith.constant 0 : index
    %340 = vector.load %arg9[%339, %c0_124] : memref<32x96xf32, #tpu.memory_space<vmem>>, vector<8x96xf32>
    %cst_125 = arith.constant dense<0.000000e+00> : vector<8x96xf32>
    %341 = tpu.matmul %336, %333, %cst_125 {dimension_numbers = #tpu.dot_dimension_numbers<[1], [0], [0], [1], [0, 0, 1, 1], [], []>} : vector<8x32xf32>, vector<32x96xf32>, vector<8x96xf32> -> vector<8x96xf32>
    %342 = vector.broadcast %335 : vector<1x96xf32> to vector<8x96xf32>
    %343 = arith.addf %341, %342 : vector<8x96xf32>
    %344 = vector.extract_strided_slice %340 {offsets = [0, 0], sizes = [8, 32], strides = [1, 1]} : vector<8x96xf32> to vector<8x32xf32>
    %345 = vector.extract_strided_slice %343 {offsets = [0, 0], sizes = [8, 32], strides = [1, 1]} : vector<8x96xf32> to vector<8x32xf32>
    %346 = arith.addf %344, %345 : vector<8x32xf32>
    %347 = arith.negf %346 : vector<8x32xf32>
    %348 = math.exp %347 : vector<8x32xf32>
    %cst_126 = arith.constant 1.000000e+00 : f32
    %349 = vector.broadcast %cst_126 : f32 to vector<8x32xf32>
    %350 = arith.addf %349, %348 : vector<8x32xf32>
    %351 = arith.divf %349, %350 : vector<8x32xf32>
    %352 = vector.extract_strided_slice %340 {offsets = [0, 32], sizes = [8, 32], strides = [1, 1]} : vector<8x96xf32> to vector<8x32xf32>
    %353 = vector.extract_strided_slice %343 {offsets = [0, 32], sizes = [8, 32], strides = [1, 1]} : vector<8x96xf32> to vector<8x32xf32>
    %354 = arith.addf %352, %353 : vector<8x32xf32>
    %355 = arith.negf %354 : vector<8x32xf32>
    %356 = math.exp %355 : vector<8x32xf32>
    %cst_127 = arith.constant 1.000000e+00 : f32
    %357 = vector.broadcast %cst_127 : f32 to vector<8x32xf32>
    %358 = arith.addf %357, %356 : vector<8x32xf32>
    %359 = arith.divf %357, %358 : vector<8x32xf32>
    %360 = vector.extract_strided_slice %340 {offsets = [0, 64], sizes = [8, 32], strides = [1, 1]} : vector<8x96xf32> to vector<8x32xf32>
    %361 = vector.extract_strided_slice %343 {offsets = [0, 64], sizes = [8, 32], strides = [1, 1]} : vector<8x96xf32> to vector<8x32xf32>
    %362 = arith.mulf %351, %361 : vector<8x32xf32>
    %363 = arith.addf %360, %362 : vector<8x32xf32>
    %364 = math.tanh %363 : vector<8x32xf32>
    %cst_128 = arith.constant 1.000000e+00 : f32
    %365 = vector.broadcast %cst_128 : f32 to vector<8x32xf32>
    %366 = arith.subf %365, %359 : vector<8x32xf32>
    %367 = arith.mulf %366, %364 : vector<8x32xf32>
    %368 = arith.mulf %359, %336 : vector<8x32xf32>
    %369 = arith.addf %367, %368 : vector<8x32xf32>
    %370 = arith.index_cast %338 : i32 to index
    %c0_129 = arith.constant 0 : index
    %371 = vector.load %arg10[%370, %c0_129] : memref<32x32xf32, #tpu.memory_space<vmem>>, vector<8x32xf32>
    tpu.vector_store %arg10[%370, %c0_129], %369 {strides = array<i32>} : memref<32x32xf32, #tpu.memory_space<vmem>>, vector<8x32xf32>,
    %c1_i32_130 = arith.constant 1 : i32
    %c8_i32_131 = arith.constant 8 : i32
    %372 = arith.muli %c1_i32_130, %c8_i32_131 : i32
    %373 = tpu.assume_multiple %372, 8 : i32
    %374 = arith.index_cast %373 : i32 to index
    %c0_132 = arith.constant 0 : index
    %375 = vector.load %arg9[%374, %c0_132] : memref<32x96xf32, #tpu.memory_space<vmem>>, vector<8x96xf32>
    %cst_133 = arith.constant dense<0.000000e+00> : vector<8x96xf32>
    %376 = tpu.matmul %369, %333, %cst_133 {dimension_numbers = #tpu.dot_dimension_numbers<[1], [0], [0], [1], [0, 0, 1, 1], [], []>} : vector<8x32xf32>, vector<32x96xf32>, vector<8x96xf32> -> vector<8x96xf32>
    %377 = vector.broadcast %335 : vector<1x96xf32> to vector<8x96xf32>
    %378 = arith.addf %376, %377 : vector<8x96xf32>
    %379 = vector.extract_strided_slice %375 {offsets = [0, 0], sizes = [8, 32], strides = [1, 1]} : vector<8x96xf32> to vector<8x32xf32>
    %380 = vector.extract_strided_slice %378 {offsets = [0, 0], sizes = [8, 32], strides = [1, 1]} : vector<8x96xf32> to vector<8x32xf32>
    %381 = arith.addf %379, %380 : vector<8x32xf32>
    %382 = arith.negf %381 : vector<8x32xf32>
    %383 = math.exp %382 : vector<8x32xf32>
    %cst_134 = arith.constant 1.000000e+00 : f32
    %384 = vector.broadcast %cst_134 : f32 to vector<8x32xf32>
    %385 = arith.addf %384, %383 : vector<8x32xf32>
    %386 = arith.divf %384, %385 : vector<8x32xf32>
    %387 = vector.extract_strided_slice %375 {offsets = [0, 32], sizes = [8, 32], strides = [1, 1]} : vector<8x96xf32> to vector<8x32xf32>
    %388 = vector.extract_strided_slice %378 {offsets = [0, 32], sizes = [8, 32], strides = [1, 1]} : vector<8x96xf32> to vector<8x32xf32>
    %389 = arith.addf %387, %388 : vector<8x32xf32>
    %390 = arith.negf %389 : vector<8x32xf32>
    %391 = math.exp %390 : vector<8x32xf32>
    %cst_135 = arith.constant 1.000000e+00 : f32
    %392 = vector.broadcast %cst_135 : f32 to vector<8x32xf32>
    %393 = arith.addf %392, %391 : vector<8x32xf32>
    %394 = arith.divf %392, %393 : vector<8x32xf32>
    %395 = vector.extract_strided_slice %375 {offsets = [0, 64], sizes = [8, 32], strides = [1, 1]} : vector<8x96xf32> to vector<8x32xf32>
    %396 = vector.extract_strided_slice %378 {offsets = [0, 64], sizes = [8, 32], strides = [1, 1]} : vector<8x96xf32> to vector<8x32xf32>
    %397 = arith.mulf %386, %396 : vector<8x32xf32>
    %398 = arith.addf %395, %397 : vector<8x32xf32>
    %399 = math.tanh %398 : vector<8x32xf32>
    %cst_136 = arith.constant 1.000000e+00 : f32
    %400 = vector.broadcast %cst_136 : f32 to vector<8x32xf32>
    %401 = arith.subf %400, %394 : vector<8x32xf32>
    %402 = arith.mulf %401, %399 : vector<8x32xf32>
    %403 = arith.mulf %394, %369 : vector<8x32xf32>
    %404 = arith.addf %402, %403 : vector<8x32xf32>
    %405 = arith.index_cast %373 : i32 to index
    %c0_137 = arith.constant 0 : index
    %406 = vector.load %arg10[%405, %c0_137] : memref<32x32xf32, #tpu.memory_space<vmem>>, vector<8x32xf32>
    tpu.vector_store %arg10[%405, %c0_137], %404 {strides = array<i32>} : memref<32x32xf32, #tpu.memory_space<vmem>>, vector<8x32xf32>,
    %c2_i32_138 = arith.constant 2 : i32
    %c8_i32_139 = arith.constant 8 : i32
    %407 = arith.muli %c2_i32_138, %c8_i32_139 : i32
    %408 = tpu.assume_multiple %407, 8 : i32
    %409 = arith.index_cast %408 : i32 to index
    %c0_140 = arith.constant 0 : index
    %410 = vector.load %arg9[%409, %c0_140] : memref<32x96xf32, #tpu.memory_space<vmem>>, vector<8x96xf32>
    %cst_141 = arith.constant dense<0.000000e+00> : vector<8x96xf32>
    %411 = tpu.matmul %404, %333, %cst_141 {dimension_numbers = #tpu.dot_dimension_numbers<[1], [0], [0], [1], [0, 0, 1, 1], [], []>} : vector<8x32xf32>, vector<32x96xf32>, vector<8x96xf32> -> vector<8x96xf32>
    %412 = vector.broadcast %335 : vector<1x96xf32> to vector<8x96xf32>
    %413 = arith.addf %411, %412 : vector<8x96xf32>
    %414 = vector.extract_strided_slice %410 {offsets = [0, 0], sizes = [8, 32], strides = [1, 1]} : vector<8x96xf32> to vector<8x32xf32>
    %415 = vector.extract_strided_slice %413 {offsets = [0, 0], sizes = [8, 32], strides = [1, 1]} : vector<8x96xf32> to vector<8x32xf32>
    %416 = arith.addf %414, %415 : vector<8x32xf32>
    %417 = arith.negf %416 : vector<8x32xf32>
    %418 = math.exp %417 : vector<8x32xf32>
    %cst_142 = arith.constant 1.000000e+00 : f32
    %419 = vector.broadcast %cst_142 : f32 to vector<8x32xf32>
    %420 = arith.addf %419, %418 : vector<8x32xf32>
    %421 = arith.divf %419, %420 : vector<8x32xf32>
    %422 = vector.extract_strided_slice %410 {offsets = [0, 32], sizes = [8, 32], strides = [1, 1]} : vector<8x96xf32> to vector<8x32xf32>
    %423 = vector.extract_strided_slice %413 {offsets = [0, 32], sizes = [8, 32], strides = [1, 1]} : vector<8x96xf32> to vector<8x32xf32>
    %424 = arith.addf %422, %423 : vector<8x32xf32>
    %425 = arith.negf %424 : vector<8x32xf32>
    %426 = math.exp %425 : vector<8x32xf32>
    %cst_143 = arith.constant 1.000000e+00 : f32
    %427 = vector.broadcast %cst_143 : f32 to vector<8x32xf32>
    %428 = arith.addf %427, %426 : vector<8x32xf32>
    %429 = arith.divf %427, %428 : vector<8x32xf32>
    %430 = vector.extract_strided_slice %410 {offsets = [0, 64], sizes = [8, 32], strides = [1, 1]} : vector<8x96xf32> to vector<8x32xf32>
    %431 = vector.extract_strided_slice %413 {offsets = [0, 64], sizes = [8, 32], strides = [1, 1]} : vector<8x96xf32> to vector<8x32xf32>
    %432 = arith.mulf %421, %431 : vector<8x32xf32>
    %433 = arith.addf %430, %432 : vector<8x32xf32>
    %434 = math.tanh %433 : vector<8x32xf32>
    %cst_144 = arith.constant 1.000000e+00 : f32
    %435 = vector.broadcast %cst_144 : f32 to vector<8x32xf32>
    %436 = arith.subf %435, %429 : vector<8x32xf32>
    %437 = arith.mulf %436, %434 : vector<8x32xf32>
    %438 = arith.mulf %429, %404 : vector<8x32xf32>
    %439 = arith.addf %437, %438 : vector<8x32xf32>
    %440 = arith.index_cast %408 : i32 to index
    %c0_145 = arith.constant 0 : index
    %441 = vector.load %arg10[%440, %c0_145] : memref<32x32xf32, #tpu.memory_space<vmem>>, vector<8x32xf32>
    tpu.vector_store %arg10[%440, %c0_145], %439 {strides = array<i32>} : memref<32x32xf32, #tpu.memory_space<vmem>>, vector<8x32xf32>,
    %c3_i32_146 = arith.constant 3 : i32
    %c8_i32_147 = arith.constant 8 : i32
    %442 = arith.muli %c3_i32_146, %c8_i32_147 : i32
    %443 = tpu.assume_multiple %442, 8 : i32
    %444 = arith.index_cast %443 : i32 to index
    %c0_148 = arith.constant 0 : index
    %445 = vector.load %arg9[%444, %c0_148] : memref<32x96xf32, #tpu.memory_space<vmem>>, vector<8x96xf32>
    %cst_149 = arith.constant dense<0.000000e+00> : vector<8x96xf32>
    %446 = tpu.matmul %439, %333, %cst_149 {dimension_numbers = #tpu.dot_dimension_numbers<[1], [0], [0], [1], [0, 0, 1, 1], [], []>} : vector<8x32xf32>, vector<32x96xf32>, vector<8x96xf32> -> vector<8x96xf32>
    %447 = vector.broadcast %335 : vector<1x96xf32> to vector<8x96xf32>
    %448 = arith.addf %446, %447 : vector<8x96xf32>
    %449 = vector.extract_strided_slice %445 {offsets = [0, 0], sizes = [8, 32], strides = [1, 1]} : vector<8x96xf32> to vector<8x32xf32>
    %450 = vector.extract_strided_slice %448 {offsets = [0, 0], sizes = [8, 32], strides = [1, 1]} : vector<8x96xf32> to vector<8x32xf32>
    %451 = arith.addf %449, %450 : vector<8x32xf32>
    %452 = arith.negf %451 : vector<8x32xf32>
    %453 = math.exp %452 : vector<8x32xf32>
    %cst_150 = arith.constant 1.000000e+00 : f32
    %454 = vector.broadcast %cst_150 : f32 to vector<8x32xf32>
    %455 = arith.addf %454, %453 : vector<8x32xf32>
    %456 = arith.divf %454, %455 : vector<8x32xf32>
    %457 = vector.extract_strided_slice %445 {offsets = [0, 32], sizes = [8, 32], strides = [1, 1]} : vector<8x96xf32> to vector<8x32xf32>
    %458 = vector.extract_strided_slice %448 {offsets = [0, 32], sizes = [8, 32], strides = [1, 1]} : vector<8x96xf32> to vector<8x32xf32>
    %459 = arith.addf %457, %458 : vector<8x32xf32>
    %460 = arith.negf %459 : vector<8x32xf32>
    %461 = math.exp %460 : vector<8x32xf32>
    %cst_151 = arith.constant 1.000000e+00 : f32
    %462 = vector.broadcast %cst_151 : f32 to vector<8x32xf32>
    %463 = arith.addf %462, %461 : vector<8x32xf32>
    %464 = arith.divf %462, %463 : vector<8x32xf32>
    %465 = vector.extract_strided_slice %445 {offsets = [0, 64], sizes = [8, 32], strides = [1, 1]} : vector<8x96xf32> to vector<8x32xf32>
    %466 = vector.extract_strided_slice %448 {offsets = [0, 64], sizes = [8, 32], strides = [1, 1]} : vector<8x96xf32> to vector<8x32xf32>
    %467 = arith.mulf %456, %466 : vector<8x32xf32>
    %468 = arith.addf %465, %467 : vector<8x32xf32>
    %469 = math.tanh %468 : vector<8x32xf32>
    %cst_152 = arith.constant 1.000000e+00 : f32
    %470 = vector.broadcast %cst_152 : f32 to vector<8x32xf32>
    %471 = arith.subf %470, %464 : vector<8x32xf32>
    %472 = arith.mulf %471, %469 : vector<8x32xf32>
    %473 = arith.mulf %464, %439 : vector<8x32xf32>
    %474 = arith.addf %472, %473 : vector<8x32xf32>
    %475 = arith.index_cast %443 : i32 to index
    %c0_153 = arith.constant 0 : index
    %476 = vector.load %arg10[%475, %c0_153] : memref<32x32xf32, #tpu.memory_space<vmem>>, vector<8x32xf32>
    tpu.vector_store %arg10[%475, %c0_153], %474 {strides = array<i32>} : memref<32x32xf32, #tpu.memory_space<vmem>>, vector<8x32xf32>,
    %c4_i32_154 = arith.constant 4 : i32
    %c3 = arith.constant 3 : index
    %c0_155 = arith.constant 0 : index
    %c0_156 = arith.constant 0 : index
    %477 = vector.load %arg5[%c3, %c0_155, %c0_156] : memref<4x2x96xf32, #tpu.memory_space<vmem>>, vector<1x1x96xf32>
    %478 = vector.shape_cast %477 : vector<1x1x96xf32> to vector<1x96xf32>
    %c3_157 = arith.constant 3 : index
    %c0_158 = arith.constant 0 : index
    %c0_159 = arith.constant 0 : index
    %479 = vector.load %arg4[%c3_157, %c0_158, %c0_159] : memref<4x96x96xf32, #tpu.memory_space<vmem>>, vector<1x32x96xf32>
    %480 = vector.shape_cast %479 : vector<1x32x96xf32> to vector<32x96xf32>
    %cst_160 = arith.constant dense<0.000000e+00> : vector<32x96xf32>
    %481 = tpu.matmul %318, %480, %cst_160 {dimension_numbers = #tpu.dot_dimension_numbers<[1], [0], [0], [1], [0, 0, 1, 1], [], []>} : vector<32x32xf32>, vector<32x96xf32>, vector<32x96xf32> -> vector<32x96xf32>
    %482 = vector.broadcast %478 : vector<1x96xf32> to vector<32x96xf32>
    %483 = arith.addf %482, %481 : vector<32x96xf32>
    %c3_161 = arith.constant 3 : index
    %c32_162 = arith.constant 32 : index
    %c0_163 = arith.constant 0 : index
    %484 = vector.load %arg4[%c3_161, %c32_162, %c0_163] : memref<4x96x96xf32, #tpu.memory_space<vmem>>, vector<1x32x96xf32>
    %485 = vector.shape_cast %484 : vector<1x32x96xf32> to vector<32x96xf32>
    %cst_164 = arith.constant dense<0.000000e+00> : vector<32x96xf32>
    %486 = tpu.matmul %319, %485, %cst_164 {dimension_numbers = #tpu.dot_dimension_numbers<[1], [0], [0], [1], [0, 0, 1, 1], [], []>} : vector<32x32xf32>, vector<32x96xf32>, vector<32x96xf32> -> vector<32x96xf32>
    %487 = arith.addf %483, %486 : vector<32x96xf32>
    %c0_165 = arith.constant 0 : index
    %c0_166 = arith.constant 0 : index
    %488 = vector.load %arg9[%c0_165, %c0_166] : memref<32x96xf32, #tpu.memory_space<vmem>>, vector<32x96xf32>
    tpu.vector_store %arg9[%c0_165, %c0_166], %487 {strides = array<i32>} : memref<32x96xf32, #tpu.memory_space<vmem>>, vector<32x96xf32>,
    %c3_167 = arith.constant 3 : index
    %c64_168 = arith.constant 64 : index
    %c0_169 = arith.constant 0 : index
    %489 = vector.load %arg4[%c3_167, %c64_168, %c0_169] : memref<4x96x96xf32, #tpu.memory_space<vmem>>, vector<1x32x96xf32>
    %490 = vector.shape_cast %489 : vector<1x32x96xf32> to vector<32x96xf32>
    %c3_170 = arith.constant 3 : index
    %c1_171 = arith.constant 1 : index
    %c0_172 = arith.constant 0 : index
    %491 = vector.load %arg5[%c3_170, %c1_171, %c0_172] : memref<4x2x96xf32, #tpu.memory_space<vmem>>, vector<1x1x96xf32>
    %492 = vector.shape_cast %491 : vector<1x1x96xf32> to vector<1x96xf32>
    %cst_173 = arith.constant 0.000000e+00 : f32
    %493 = vector.broadcast %cst_173 : f32 to vector<8x32xf32>
    %c0_i32_174 = arith.constant 0 : i32
    %c3_i32_175 = arith.constant 3 : i32
    %494 = arith.subi %c3_i32_175, %c0_i32_174 : i32
    %c8_i32_176 = arith.constant 8 : i32
    %495 = arith.muli %494, %c8_i32_176 : i32
    %496 = tpu.assume_multiple %495, 8 : i32
    %497 = arith.index_cast %496 : i32 to index
    %c0_177 = arith.constant 0 : index
    %498 = vector.load %arg9[%497, %c0_177] : memref<32x96xf32, #tpu.memory_space<vmem>>, vector<8x96xf32>
    %cst_178 = arith.constant dense<0.000000e+00> : vector<8x96xf32>
    %499 = tpu.matmul %493, %490, %cst_178 {dimension_numbers = #tpu.dot_dimension_numbers<[1], [0], [0], [1], [0, 0, 1, 1], [], []>} : vector<8x32xf32>, vector<32x96xf32>, vector<8x96xf32> -> vector<8x96xf32>
    %500 = vector.broadcast %492 : vector<1x96xf32> to vector<8x96xf32>
    %501 = arith.addf %499, %500 : vector<8x96xf32>
    %502 = vector.extract_strided_slice %498 {offsets = [0, 0], sizes = [8, 32], strides = [1, 1]} : vector<8x96xf32> to vector<8x32xf32>
    %503 = vector.extract_strided_slice %501 {offsets = [0, 0], sizes = [8, 32], strides = [1, 1]} : vector<8x96xf32> to vector<8x32xf32>
    %504 = arith.addf %502, %503 : vector<8x32xf32>
    %505 = arith.negf %504 : vector<8x32xf32>
    %506 = math.exp %505 : vector<8x32xf32>
    %cst_179 = arith.constant 1.000000e+00 : f32
    %507 = vector.broadcast %cst_179 : f32 to vector<8x32xf32>
    %508 = arith.addf %507, %506 : vector<8x32xf32>
    %509 = arith.divf %507, %508 : vector<8x32xf32>
    %510 = vector.extract_strided_slice %498 {offsets = [0, 32], sizes = [8, 32], strides = [1, 1]} : vector<8x96xf32> to vector<8x32xf32>
    %511 = vector.extract_strided_slice %501 {offsets = [0, 32], sizes = [8, 32], strides = [1, 1]} : vector<8x96xf32> to vector<8x32xf32>
    %512 = arith.addf %510, %511 : vector<8x32xf32>
    %513 = arith.negf %512 : vector<8x32xf32>
    %514 = math.exp %513 : vector<8x32xf32>
    %cst_180 = arith.constant 1.000000e+00 : f32
    %515 = vector.broadcast %cst_180 : f32 to vector<8x32xf32>
    %516 = arith.addf %515, %514 : vector<8x32xf32>
    %517 = arith.divf %515, %516 : vector<8x32xf32>
    %518 = vector.extract_strided_slice %498 {offsets = [0, 64], sizes = [8, 32], strides = [1, 1]} : vector<8x96xf32> to vector<8x32xf32>
    %519 = vector.extract_strided_slice %501 {offsets = [0, 64], sizes = [8, 32], strides = [1, 1]} : vector<8x96xf32> to vector<8x32xf32>
    %520 = arith.mulf %509, %519 : vector<8x32xf32>
    %521 = arith.addf %518, %520 : vector<8x32xf32>
    %522 = math.tanh %521 : vector<8x32xf32>
    %cst_181 = arith.constant 1.000000e+00 : f32
    %523 = vector.broadcast %cst_181 : f32 to vector<8x32xf32>
    %524 = arith.subf %523, %517 : vector<8x32xf32>
    %525 = arith.mulf %524, %522 : vector<8x32xf32>
    %526 = arith.mulf %517, %493 : vector<8x32xf32>
    %527 = arith.addf %525, %526 : vector<8x32xf32>
    %528 = arith.index_cast %496 : i32 to index
    %c0_182 = arith.constant 0 : index
    %529 = vector.load %arg11[%528, %c0_182] : memref<32x32xf32, #tpu.memory_space<vmem>>, vector<8x32xf32>
    tpu.vector_store %arg11[%528, %c0_182], %527 {strides = array<i32>} : memref<32x32xf32, #tpu.memory_space<vmem>>, vector<8x32xf32>,
    %c1_i32_183 = arith.constant 1 : i32
    %c3_i32_184 = arith.constant 3 : i32
    %530 = arith.subi %c3_i32_184, %c1_i32_183 : i32
    %c8_i32_185 = arith.constant 8 : i32
    %531 = arith.muli %530, %c8_i32_185 : i32
    %532 = tpu.assume_multiple %531, 8 : i32
    %533 = arith.index_cast %532 : i32 to index
    %c0_186 = arith.constant 0 : index
    %534 = vector.load %arg9[%533, %c0_186] : memref<32x96xf32, #tpu.memory_space<vmem>>, vector<8x96xf32>
    %cst_187 = arith.constant dense<0.000000e+00> : vector<8x96xf32>
    %535 = tpu.matmul %527, %490, %cst_187 {dimension_numbers = #tpu.dot_dimension_numbers<[1], [0], [0], [1], [0, 0, 1, 1], [], []>} : vector<8x32xf32>, vector<32x96xf32>, vector<8x96xf32> -> vector<8x96xf32>
    %536 = vector.broadcast %492 : vector<1x96xf32> to vector<8x96xf32>
    %537 = arith.addf %535, %536 : vector<8x96xf32>
    %538 = vector.extract_strided_slice %534 {offsets = [0, 0], sizes = [8, 32], strides = [1, 1]} : vector<8x96xf32> to vector<8x32xf32>
    %539 = vector.extract_strided_slice %537 {offsets = [0, 0], sizes = [8, 32], strides = [1, 1]} : vector<8x96xf32> to vector<8x32xf32>
    %540 = arith.addf %538, %539 : vector<8x32xf32>
    %541 = arith.negf %540 : vector<8x32xf32>
    %542 = math.exp %541 : vector<8x32xf32>
    %cst_188 = arith.constant 1.000000e+00 : f32
    %543 = vector.broadcast %cst_188 : f32 to vector<8x32xf32>
    %544 = arith.addf %543, %542 : vector<8x32xf32>
    %545 = arith.divf %543, %544 : vector<8x32xf32>
    %546 = vector.extract_strided_slice %534 {offsets = [0, 32], sizes = [8, 32], strides = [1, 1]} : vector<8x96xf32> to vector<8x32xf32>
    %547 = vector.extract_strided_slice %537 {offsets = [0, 32], sizes = [8, 32], strides = [1, 1]} : vector<8x96xf32> to vector<8x32xf32>
    %548 = arith.addf %546, %547 : vector<8x32xf32>
    %549 = arith.negf %548 : vector<8x32xf32>
    %550 = math.exp %549 : vector<8x32xf32>
    %cst_189 = arith.constant 1.000000e+00 : f32
    %551 = vector.broadcast %cst_189 : f32 to vector<8x32xf32>
    %552 = arith.addf %551, %550 : vector<8x32xf32>
    %553 = arith.divf %551, %552 : vector<8x32xf32>
    %554 = vector.extract_strided_slice %534 {offsets = [0, 64], sizes = [8, 32], strides = [1, 1]} : vector<8x96xf32> to vector<8x32xf32>
    %555 = vector.extract_strided_slice %537 {offsets = [0, 64], sizes = [8, 32], strides = [1, 1]} : vector<8x96xf32> to vector<8x32xf32>
    %556 = arith.mulf %545, %555 : vector<8x32xf32>
    %557 = arith.addf %554, %556 : vector<8x32xf32>
    %558 = math.tanh %557 : vector<8x32xf32>
    %cst_190 = arith.constant 1.000000e+00 : f32
    %559 = vector.broadcast %cst_190 : f32 to vector<8x32xf32>
    %560 = arith.subf %559, %553 : vector<8x32xf32>
    %561 = arith.mulf %560, %558 : vector<8x32xf32>
    %562 = arith.mulf %553, %527 : vector<8x32xf32>
    %563 = arith.addf %561, %562 : vector<8x32xf32>
    %564 = arith.index_cast %532 : i32 to index
    %c0_191 = arith.constant 0 : index
    %565 = vector.load %arg11[%564, %c0_191] : memref<32x32xf32, #tpu.memory_space<vmem>>, vector<8x32xf32>
    tpu.vector_store %arg11[%564, %c0_191], %563 {strides = array<i32>} : memref<32x32xf32, #tpu.memory_space<vmem>>, vector<8x32xf32>,
    %c2_i32_192 = arith.constant 2 : i32
    %c3_i32_193 = arith.constant 3 : i32
    %566 = arith.subi %c3_i32_193, %c2_i32_192 : i32
    %c8_i32_194 = arith.constant 8 : i32
    %567 = arith.muli %566, %c8_i32_194 : i32
    %568 = tpu.assume_multiple %567, 8 : i32
    %569 = arith.index_cast %568 : i32 to index
    %c0_195 = arith.constant 0 : index
    %570 = vector.load %arg9[%569, %c0_195] : memref<32x96xf32, #tpu.memory_space<vmem>>, vector<8x96xf32>
    %cst_196 = arith.constant dense<0.000000e+00> : vector<8x96xf32>
    %571 = tpu.matmul %563, %490, %cst_196 {dimension_numbers = #tpu.dot_dimension_numbers<[1], [0], [0], [1], [0, 0, 1, 1], [], []>} : vector<8x32xf32>, vector<32x96xf32>, vector<8x96xf32> -> vector<8x96xf32>
    %572 = vector.broadcast %492 : vector<1x96xf32> to vector<8x96xf32>
    %573 = arith.addf %571, %572 : vector<8x96xf32>
    %574 = vector.extract_strided_slice %570 {offsets = [0, 0], sizes = [8, 32], strides = [1, 1]} : vector<8x96xf32> to vector<8x32xf32>
    %575 = vector.extract_strided_slice %573 {offsets = [0, 0], sizes = [8, 32], strides = [1, 1]} : vector<8x96xf32> to vector<8x32xf32>
    %576 = arith.addf %574, %575 : vector<8x32xf32>
    %577 = arith.negf %576 : vector<8x32xf32>
    %578 = math.exp %577 : vector<8x32xf32>
    %cst_197 = arith.constant 1.000000e+00 : f32
    %579 = vector.broadcast %cst_197 : f32 to vector<8x32xf32>
    %580 = arith.addf %579, %578 : vector<8x32xf32>
    %581 = arith.divf %579, %580 : vector<8x32xf32>
    %582 = vector.extract_strided_slice %570 {offsets = [0, 32], sizes = [8, 32], strides = [1, 1]} : vector<8x96xf32> to vector<8x32xf32>
    %583 = vector.extract_strided_slice %573 {offsets = [0, 32], sizes = [8, 32], strides = [1, 1]} : vector<8x96xf32> to vector<8x32xf32>
    %584 = arith.addf %582, %583 : vector<8x32xf32>
    %585 = arith.negf %584 : vector<8x32xf32>
    %586 = math.exp %585 : vector<8x32xf32>
    %cst_198 = arith.constant 1.000000e+00 : f32
    %587 = vector.broadcast %cst_198 : f32 to vector<8x32xf32>
    %588 = arith.addf %587, %586 : vector<8x32xf32>
    %589 = arith.divf %587, %588 : vector<8x32xf32>
    %590 = vector.extract_strided_slice %570 {offsets = [0, 64], sizes = [8, 32], strides = [1, 1]} : vector<8x96xf32> to vector<8x32xf32>
    %591 = vector.extract_strided_slice %573 {offsets = [0, 64], sizes = [8, 32], strides = [1, 1]} : vector<8x96xf32> to vector<8x32xf32>
    %592 = arith.mulf %581, %591 : vector<8x32xf32>
    %593 = arith.addf %590, %592 : vector<8x32xf32>
    %594 = math.tanh %593 : vector<8x32xf32>
    %cst_199 = arith.constant 1.000000e+00 : f32
    %595 = vector.broadcast %cst_199 : f32 to vector<8x32xf32>
    %596 = arith.subf %595, %589 : vector<8x32xf32>
    %597 = arith.mulf %596, %594 : vector<8x32xf32>
    %598 = arith.mulf %589, %563 : vector<8x32xf32>
    %599 = arith.addf %597, %598 : vector<8x32xf32>
    %600 = arith.index_cast %568 : i32 to index
    %c0_200 = arith.constant 0 : index
    %601 = vector.load %arg11[%600, %c0_200] : memref<32x32xf32, #tpu.memory_space<vmem>>, vector<8x32xf32>
    tpu.vector_store %arg11[%600, %c0_200], %599 {strides = array<i32>} : memref<32x32xf32, #tpu.memory_space<vmem>>, vector<8x32xf32>,
    %c3_i32_201 = arith.constant 3 : i32
    %c3_i32_202 = arith.constant 3 : i32
    %602 = arith.subi %c3_i32_202, %c3_i32_201 : i32
    %c8_i32_203 = arith.constant 8 : i32
    %603 = arith.muli %602, %c8_i32_203 : i32
    %604 = tpu.assume_multiple %603, 8 : i32
    %605 = arith.index_cast %604 : i32 to index
    %c0_204 = arith.constant 0 : index
    %606 = vector.load %arg9[%605, %c0_204] : memref<32x96xf32, #tpu.memory_space<vmem>>, vector<8x96xf32>
    %cst_205 = arith.constant dense<0.000000e+00> : vector<8x96xf32>
    %607 = tpu.matmul %599, %490, %cst_205 {dimension_numbers = #tpu.dot_dimension_numbers<[1], [0], [0], [1], [0, 0, 1, 1], [], []>} : vector<8x32xf32>, vector<32x96xf32>, vector<8x96xf32> -> vector<8x96xf32>
    %608 = vector.broadcast %492 : vector<1x96xf32> to vector<8x96xf32>
    %609 = arith.addf %607, %608 : vector<8x96xf32>
    %610 = vector.extract_strided_slice %606 {offsets = [0, 0], sizes = [8, 32], strides = [1, 1]} : vector<8x96xf32> to vector<8x32xf32>
    %611 = vector.extract_strided_slice %609 {offsets = [0, 0], sizes = [8, 32], strides = [1, 1]} : vector<8x96xf32> to vector<8x32xf32>
    %612 = arith.addf %610, %611 : vector<8x32xf32>
    %613 = arith.negf %612 : vector<8x32xf32>
    %614 = math.exp %613 : vector<8x32xf32>
    %cst_206 = arith.constant 1.000000e+00 : f32
    %615 = vector.broadcast %cst_206 : f32 to vector<8x32xf32>
    %616 = arith.addf %615, %614 : vector<8x32xf32>
    %617 = arith.divf %615, %616 : vector<8x32xf32>
    %618 = vector.extract_strided_slice %606 {offsets = [0, 32], sizes = [8, 32], strides = [1, 1]} : vector<8x96xf32> to vector<8x32xf32>
    %619 = vector.extract_strided_slice %609 {offsets = [0, 32], sizes = [8, 32], strides = [1, 1]} : vector<8x96xf32> to vector<8x32xf32>
    %620 = arith.addf %618, %619 : vector<8x32xf32>
    %621 = arith.negf %620 : vector<8x32xf32>
    %622 = math.exp %621 : vector<8x32xf32>
    %cst_207 = arith.constant 1.000000e+00 : f32
    %623 = vector.broadcast %cst_207 : f32 to vector<8x32xf32>
    %624 = arith.addf %623, %622 : vector<8x32xf32>
    %625 = arith.divf %623, %624 : vector<8x32xf32>
    %626 = vector.extract_strided_slice %606 {offsets = [0, 64], sizes = [8, 32], strides = [1, 1]} : vector<8x96xf32> to vector<8x32xf32>
    %627 = vector.extract_strided_slice %609 {offsets = [0, 64], sizes = [8, 32], strides = [1, 1]} : vector<8x96xf32> to vector<8x32xf32>
    %628 = arith.mulf %617, %627 : vector<8x32xf32>
    %629 = arith.addf %626, %628 : vector<8x32xf32>
    %630 = math.tanh %629 : vector<8x32xf32>
    %cst_208 = arith.constant 1.000000e+00 : f32
    %631 = vector.broadcast %cst_208 : f32 to vector<8x32xf32>
    %632 = arith.subf %631, %625 : vector<8x32xf32>
    %633 = arith.mulf %632, %630 : vector<8x32xf32>
    %634 = arith.mulf %625, %599 : vector<8x32xf32>
    %635 = arith.addf %633, %634 : vector<8x32xf32>
    %636 = arith.index_cast %604 : i32 to index
    %c0_209 = arith.constant 0 : index
    %637 = vector.load %arg11[%636, %c0_209] : memref<32x32xf32, #tpu.memory_space<vmem>>, vector<8x32xf32>
    tpu.vector_store %arg11[%636, %c0_209], %635 {strides = array<i32>} : memref<32x32xf32, #tpu.memory_space<vmem>>, vector<8x32xf32>,
    %c4_i32_210 = arith.constant 4 : i32
    %c0_211 = arith.constant 0 : index
    %c0_212 = arith.constant 0 : index
    %638 = vector.load %arg10[%c0_211, %c0_212] : memref<32x32xf32, #tpu.memory_space<vmem>>, vector<32x32xf32>
    %c0_213 = arith.constant 0 : index
    %c0_214 = arith.constant 0 : index
    %639 = vector.load %arg11[%c0_213, %c0_214] : memref<32x32xf32, #tpu.memory_space<vmem>>, vector<32x32xf32>
    %c0_215 = arith.constant 0 : index
    %c0_216 = arith.constant 0 : index
    %640 = vector.load %arg7[%c0_215, %c0_216] : memref<1x128xf32, #tpu.memory_space<vmem>>, vector<1x128xf32>
    %c0_217 = arith.constant 0 : index
    %c0_218 = arith.constant 0 : index
    %641 = vector.load %arg6[%c0_217, %c0_218] : memref<64x128xf32, #tpu.memory_space<vmem>>, vector<32x128xf32>
    %cst_219 = arith.constant dense<0.000000e+00> : vector<32x128xf32>
    %642 = tpu.matmul %638, %641, %cst_219 {dimension_numbers = #tpu.dot_dimension_numbers<[1], [0], [0], [1], [0, 0, 1, 1], [], []>} : vector<32x32xf32>, vector<32x128xf32>, vector<32x128xf32> -> vector<32x128xf32>
    %643 = vector.broadcast %640 : vector<1x128xf32> to vector<32x128xf32>
    %644 = arith.addf %643, %642 : vector<32x128xf32>
    %c32_220 = arith.constant 32 : index
    %c0_221 = arith.constant 0 : index
    %645 = vector.load %arg6[%c32_220, %c0_221] : memref<64x128xf32, #tpu.memory_space<vmem>>, vector<32x128xf32>
    %cst_222 = arith.constant dense<0.000000e+00> : vector<32x128xf32>
    %646 = tpu.matmul %639, %645, %cst_222 {dimension_numbers = #tpu.dot_dimension_numbers<[1], [0], [0], [1], [0, 0, 1, 1], [], []>} : vector<32x32xf32>, vector<32x128xf32>, vector<32x128xf32> -> vector<32x128xf32>
    %647 = arith.addf %644, %646 : vector<32x128xf32>
    %c0_223 = arith.constant 0 : index
    %c0_224 = arith.constant 0 : index
    %648 = vector.load %arg8[%c0_223, %c0_224] : memref<32x128xf32, #tpu.memory_space<vmem>>, vector<32x128xf32>
    tpu.vector_store %arg8[%c0_223, %c0_224], %647 {strides = array<i32>} : memref<32x128xf32, #tpu.memory_space<vmem>>, vector<32x128xf32>,
    return
  }
  func.func @transform_0(%arg0: i32) -> (i32, i32) {
    %c0_i32 = arith.constant 0 : i32
    %c0_i32_0 = arith.constant 0 : i32
    %c0_i32_1 = arith.constant 0 : i32
    return %c0_i32, %c0_i32_0 : i32, i32
  }
  func.func @transform_1(%arg0: i32) -> (i32, i32) {
    %c0_i32 = arith.constant 0 : i32
    %c0_i32_0 = arith.constant 0 : i32
    %c0_i32_1 = arith.constant 0 : i32
    return %c0_i32, %c0_i32_0 : i32, i32
  }
  func.func @transform_2(%arg0: i32) -> (i32, i32) {
    %c0_i32 = arith.constant 0 : i32
    %c0_i32_0 = arith.constant 0 : i32
    %c0_i32_1 = arith.constant 0 : i32
    return %c0_i32, %c0_i32_0 : i32, i32
  }
  func.func @transform_3(%arg0: i32) -> (i32, i32, i32) {
    %c0_i32 = arith.constant 0 : i32
    %c0_i32_0 = arith.constant 0 : i32
    %c0_i32_1 = arith.constant 0 : i32
    %c0_i32_2 = arith.constant 0 : i32
    return %c0_i32, %c0_i32_0, %c0_i32_1 : i32, i32, i32
  }
  func.func @transform_4(%arg0: i32) -> (i32, i32, i32) {
    %c0_i32 = arith.constant 0 : i32
    %c0_i32_0 = arith.constant 0 : i32
    %c0_i32_1 = arith.constant 0 : i32
    %c0_i32_2 = arith.constant 0 : i32
    return %c0_i32, %c0_i32_0, %c0_i32_1 : i32, i32, i32
  }
  func.func @transform_5(%arg0: i32) -> (i32, i32) {
    %c0_i32 = arith.constant 0 : i32
    %c0_i32_0 = arith.constant 0 : i32
    %c0_i32_1 = arith.constant 0 : i32
    return %c0_i32, %c0_i32_0 : i32, i32
  }
  func.func @transform_6(%arg0: i32) -> (i32, i32) {
    %c0_i32 = arith.constant 0 : i32
    %c0_i32_0 = arith.constant 0 : i32
    %c0_i32_1 = arith.constant 0 : i32
    return %c0_i32, %c0_i32_0 : i32, i32
  }
  func.func @transform_7(%arg0: i32) -> (i32, i32) {
    %c0_i32 = arith.constant 0 : i32
    %c0_i32_0 = arith.constant 0 : i32
    %c0_i32_1 = arith.constant 0 : i32
    return %c0_i32, %c0_i32_0 : i32, i32
  }
}

</mosaic_0001>

<llo_original>
// kernel: captcha_forward.3
$region0: #{captcha_forward.3}
  #allocation0 [shape = 'u32[]', space=smem, size = 0x4, offset = 0x4, fixed_abs, tag = 'smem constant byte address 0x4 - core index']
  #allocation1 [shape = 'u32[144,128]{1,0:T(1,128)}', space=vmem, size = 0x12000, scoped, tag = 'internal scratch']
  %s0 = inlined_call_operand.vmem [shape: f32[2,4,240,18], index: 0, kind: input, shape index: {}]
  %s1 = inlined_call_operand.vmem [shape: f32[18,128], index: 1, kind: input, shape index: {}]
  %s2 = inlined_call_operand.vmem [shape: f32[1,128], index: 2, kind: input, shape index: {}]
  %s3 = inlined_call_operand.vmem [shape: f32[2,240,128], index: 3, kind: output, shape index: {}]
  %s4 = sld [smem:[#allocation0]]
  $region45: #{captcha_forward.3} parent=0
    _
  %s6 = ssub.s32 1, %s4
  %s7 = scalar_select 0, %s6, %s4
  loop: start=0, step=1, limit=4
  $region2: #{captcha_forward.3} parent=0 // loop_pre_header
    _
  $region3: #{captcha_forward.3} parent=0 // loop_header
    %s9 = sphi 0, %s13
    %p10 = scmp.ge.s32.totalorder %s9, 4
    %s16 = sphi 0, %s28
    %s17 = sphi 0, %s24
    %s18 = sphi 0, %s16
    %s19 = sphi 0, %s17
    %s20 = sphi 0, %s18
    %s21 = sphi 0, %s19
    %s33 = sphi 0, %s35
    %s36 = sphi 0, %s33
    %s37 = sphi 0, %s36
    %s53 = sphi 0, %s37
    %s57 = sphi 0, %s57
    %s59 = sphi 0, %s57
    %s60 = sphi 0, %s59
    %s74 = sphi 0, %s60
    %s78 = sphi 0, %s78
    %s80 = sphi 0, %s78
    %s81 = sphi 0, %s80
    %s95 = sphi 0, %s81
    %s103 = sphi 0, %s105
    %s106 = sphi 0, %s103
    %s107 = sphi 0, %s106
    %s123 = sphi 0, %s107
  $region4: #{captcha_forward.3} parent=0 // loop_header_branch
    %12 = sbr.rel (%p10) target = $region8
  $region5: #{captcha_forward.3} parent=0 // loop_body
    %s14 = ssub.s32 %s9, 1
    %s15 = ssub.s32 %s9, 2
    %s22 = sadd.s32 1, %s17
    %p23 = scmp.ge.s32.totalorder %s22, 1
    %s24 = scalar_select %p23, 0, %s22
    %s25 = sadd.s32 1, %s16
    %s26 = scalar_select %p23, %s25, %s16
    %p27 = scmp.ge.s32.totalorder %s26, 2
    %s28 = scalar_select %p27, 0, %s26
    %s29 = ssub.s32 %s16, %s28
    %s30 = ssub.s32 %s17, %s24
    %s31 = sor.u32 %s29, %s30
    %p32 = scmp.eq.s32.totalorder %s31, 0
    %s34 = sadd.s32 %s33, 1
    %s35 = scalar_select %p32, %s33, %s34
    %p38 = pneg %p32
    %p39 = scmp.eq.s32.totalorder %s9, 1
    %p40 = por %p38, %p39
    %p41 = scmp.ne.s32.totalorder %s33, %s36
    %p42 = scmp.eq.s32.totalorder %s9, 0
    %p43 = por %p41, %p42
    %p44 = scmp.ne.s32.totalorder %s33, %s36
    %p45 = scmp.eq.s32.totalorder %s14, 1
    %p46 = por %p44, %p45
    %p47 = scmp.ne.s32.totalorder %s36, %s37
    %p48 = scmp.eq.s32.totalorder %s14, 0
    %p49 = por %p47, %p48
    %p50 = scmp.ne.s32.totalorder %s36, %s37
    %p51 = scmp.eq.s32.totalorder %s15, 1
    %p52 = por %p50, %p51
    %p54 = scmp.ne.s32.totalorder %s37, %s53
    %p55 = scmp.eq.s32.totalorder %s15, 0
    %p56 = por %p54, %p55
    %s58 = sadd.s32 %s57, 1
    %p61 = scmp.eq.s32.totalorder %s9, 1
    %p62 = scmp.ne.s32.totalorder %s57, %s59
    %p63 = scmp.eq.s32.totalorder %s9, 0
    %p64 = por %p62, %p63
    %p65 = scmp.ne.s32.totalorder %s57, %s59
    %p66 = scmp.eq.s32.totalorder %s14, 1
    %p67 = por %p65, %p66
    %p68 = scmp.ne.s32.totalorder %s59, %s60
    %p69 = scmp.eq.s32.totalorder %s14, 0
    %p70 = por %p68, %p69
    %p71 = scmp.ne.s32.totalorder %s59, %s60
    %p72 = scmp.eq.s32.totalorder %s15, 1
    %p73 = por %p71, %p72
    %p75 = scmp.ne.s32.totalorder %s60, %s74
    %p76 = scmp.eq.s32.totalorder %s15, 0
    %p77 = por %p75, %p76
    %s79 = sadd.s32 %s78, 1
    %p82 = scmp.eq.s32.totalorder %s9, 1
    %p83 = scmp.ne.s32.totalorder %s78, %s80
    %p84 = scmp.eq.s32.totalorder %s9, 0
    %p85 = por %p83, %p84
    %p86 = scmp.ne.s32.totalorder %s78, %s80
    %p87 = scmp.eq.s32.totalorder %s14, 1
    %p88 = por %p86, %p87
    %p89 = scmp.ne.s32.totalorder %s80, %s81
    %p90 = scmp.eq.s32.totalorder %s14, 0
    %p91 = por %p89, %p90
    %p92 = scmp.ne.s32.totalorder %s80, %s81
    %p93 = scmp.eq.s32.totalorder %s15, 1
    %p94 = por %p92, %p93
    %p96 = scmp.ne.s32.totalorder %s81, %s95
    %p97 = scmp.eq.s32.totalorder %s15, 0
    %p98 = por %p96, %p97
    %s99 = ssub.s32 %s16, %s28
    %s100 = ssub.s32 %s17, %s24
    %s101 = sor.u32 %s99, %s100
    %p102 = scmp.eq.s32.totalorder %s101, 0
    %s104 = sadd.s32 %s103, 1
    %s105 = scalar_select %p102, %s103, %s104
    %p108 = pneg %p102
    %p109 = scmp.eq.s32.totalorder %s9, 1
    %p110 = por %p108, %p109
    %p111 = scmp.ne.s32.totalorder %s103, %s106
    %p112 = scmp.eq.s32.totalorder %s9, 0
    %p113 = por %p111, %p112
    %p114 = scmp.ne.s32.totalorder %s103, %s106
    %p115 = scmp.eq.s32.totalorder %s14, 1
    %p116 = por %p114, %p115
    %p117 = scmp.ne.s32.totalorder %s106, %s107
    %p118 = scmp.eq.s32.totalorder %s14, 0
    %p119 = por %p117, %p118
    %p120 = scmp.ne.s32.totalorder %s106, %s107
    %p121 = scmp.eq.s32.totalorder %s15, 1
    %p122 = por %p120, %p121
    %p124 = scmp.ne.s32.totalorder %s107, %s123
    %p125 = scmp.eq.s32.totalorder %s15, 0
    %p126 = por %p124, %p125
    %p127 = scmp.le.s32.totalorder 1, %s9
    %p128 = scmp.lt.s32.totalorder %s9, 3
    %p129 = pnand %p127, %p128
    %p130 = pneg %p129
    // Predicated region
    $region9: #{captcha_forward.3} parent=5 // pred_check
      _
    $region10: #{captcha_forward.3} parent=5 // pred_check_branch
      %132 = sbr.rel (%p129) target = $region12
    $region11: #{captcha_forward.3} parent=5 // pred_region
      %s133 = ssub.s32 %s9, 1
      // Predicated region
      $region13: #{captcha_forward.3} parent=11 // pred_check
        %p134 = pneg %p70
      $region14: #{captcha_forward.3} parent=11 // pred_check_branch
        %136 = sbr.rel (%p134) target = $region16
      $region15: #{captcha_forward.3} parent=11 // pred_region
        _
      $region16: #{captcha_forward.3} parent=11 // pred_fallthru
        _
      // Predicated region
      $region17: #{captcha_forward.3} parent=11 // pred_check
        %p137 = pneg %p91
      $region18: #{captcha_forward.3} parent=11 // pred_check_branch
        %139 = sbr.rel (%p137) target = $region20
      $region19: #{captcha_forward.3} parent=11 // pred_region
        _
      $region20: #{captcha_forward.3} parent=11 // pred_fallthru
        _
    $region12: #{captcha_forward.3} parent=5 // pred_fallthru
      _
    %p140 = scmp.lt.s32.totalorder %s9, 2
    // Predicated region
    $region21: #{captcha_forward.3} parent=5 // pred_check
      %p141 = pneg %p140
    $region22: #{captcha_forward.3} parent=5 // pred_check_branch
      %143 = sbr.rel (%p141) target = $region24
    $region23: #{captcha_forward.3} parent=5 // pred_region
      // Predicated region
      $region25: #{captcha_forward.3} parent=23 // pred_check
        %p144 = pneg %p43
      $region26: #{captcha_forward.3} parent=23 // pred_check_branch
        %146 = sbr.rel (%p144) target = $region28
      $region27: #{captcha_forward.3} parent=23 // pred_region
        %s147 = smul.u32 30, %s17
        %p148 = scmp.lt.s32.totalorder %s16, 1
        %s149 = scalar_select %p148, %s16, 1
        %p150 = scmp.lt.s32.totalorder %s147, 29
        %s151 = scalar_select %p150, %s147, 29
        %s152 = smul.addr %s149, 120
        %s153 = sadd.s32 %s151, %s152
        %s154 = smul.addr %s153, 8
        %s155 = scalar_lea.vmem %s0, %s154
        %s156 = smul.u32 30, %s17
      $region28: #{captcha_forward.3} parent=23 // pred_fallthru
        _
    $region24: #{captcha_forward.3} parent=5 // pred_fallthru
      _
    %p157 = scmp.le.s32.totalorder 1, %s9
    %p158 = scmp.lt.s32.totalorder %s9, 3
    %p159 = pnand %p157, %p158
    %p160 = pneg %p159
    // Predicated region
    $region29: #{captcha_forward.3} parent=5 // pred_check
      _
    $region30: #{captcha_forward.3} parent=5 // pred_check_branch
      %162 = sbr.rel (%p159) target = $region32
    $region31: #{captcha_forward.3} parent=5 // pred_region
      %s163 = ssub.s32 %s9, 1
      %s164 = smul.u32 30, %s19
      %p165 = scmp.lt.s32.totalorder %s18, 1
      %s166 = scalar_select %p165, %s18, 1
      %p167 = scmp.lt.s32.totalorder %s164, 29
      %s168 = scalar_select %p167, %s164, 29
      %s169 = smul.addr %s166, 120
      %s170 = sadd.s32 %s168, %s169
      %s171 = smul.addr %s170, 8
      %s172 = scalar_lea.vmem %s0, %s171
      %p173 = pneg %p49
      %p174 = pneg %p46
      %p175 = pneg %p70
      %p176 = pneg %p67
      %p177 = pneg %p91
      %p178 = pneg %p88
      %p179 = pneg %p119
      %p180 = pneg %p116
      %s181 = smul.u32 30, %s19
      %p182 = scmp.lt.s32.totalorder %s18, 1
      %s183 = scalar_select %p182, %s18, 1
      %p184 = scmp.lt.s32.totalorder %s181, 29
      %s185 = scalar_select %p184, %s181, 29
      %s186 = smul.addr %s183, 30
      %s187 = sadd.s32 %s185, %s186
      %s188 = smul.addr %s187, 8
      %s189 = scalar_lea.vmem %s3, %s188
      %s190 = smul.u32 30, %s19
      %p191 = scmp.lt.s32.totalorder %s18, 1
      %s192 = scalar_select %p191, %s18, 1
      %p193 = scmp.lt.s32.totalorder %s190, 29
      %s194 = scalar_select %p193, %s190, 29
      %s195 = smul.addr %s192, 120
      %s196 = sadd.s32 %s194, %s195
      %s197 = smul.addr %s196, 8
      %s198 = scalar_lea.vmem %s0, %s197
      %s199 = smul.u32 30, %s19
      %s200 = smul.u32 30, %s19
      %p201 = scmp.lt.s32.totalorder %s18, 1
      %s202 = scalar_select %p201, %s18, 1
      %p203 = scmp.lt.s32.totalorder %s200, 29
      %s204 = scalar_select %p203, %s200, 29
      %s205 = smul.addr %s202, 30
      %s206 = sadd.s32 %s204, %s205
      %s207 = smul.addr %s206, 8
      %s208 = scalar_lea.vmem %s3, %s207
      %s209 = smul.u32 30, %s19
      %v210 = vld [vmem:[%s1] sm:$0xff]
      %v211 = vld [vmem:[%s1 + $0x8] sm:$0xff]
      %v212 = vld [vmem:[%s1 + $0x10] sm:$0x3]
      %v213 = vld [vmem:[%s198] sm:$0xff]
      %v214 = vld [vmem:[%s198 + $0x8] sm:$0xff]
      %v215 = vld [vmem:[%s198 + $0x10] sm:$0xff]
      %v216 = vld [vmem:[%s198 + $0x18] sm:$0xff]
      %v217 = vld [vmem:[%s198 + $0x20] sm:$0xff]
      %v218 = vld [vmem:[%s198 + $0x28] sm:$0xff]
      %v219 = vld [vmem:[%s198 + $0x30] sm:$0xff]
      %v220 = vld [vmem:[%s198 + $0x38] sm:$0xff]
      %v221 = vld [vmem:[%s198 + $0x40] sm:$0xff]
      %v222 = vld [vmem:[%s198 + $0x48] sm:$0xff]
      %v223 = vld [vmem:[%s198 + $0x50] sm:$0xff]
      %v224 = vld [vmem:[%s198 + $0x58] sm:$0xff]
      %v225 = vld [vmem:[%s198 + $0x60] sm:$0xff]
      %v226 = vld [vmem:[%s198 + $0x68] sm:$0xff]
      %v227 = vld [vmem:[%s198 + $0x70] sm:$0xff]
      %v228 = vld [vmem:[%s198 + $0x78] sm:$0xff]
      %v229 = vld [vmem:[%s198 + $0x80] sm:$0xff]
      %v230 = vld [vmem:[%s198 + $0x88] sm:$0xff]
      %v231 = vld [vmem:[%s198 + $0x90] sm:$0xff]
      %v232 = vld [vmem:[%s198 + $0x98] sm:$0xff]
      %v233 = vld [vmem:[%s198 + $0xa0] sm:$0xff]
      %v234 = vld [vmem:[%s198 + $0xa8] sm:$0xff]
      %v235 = vld [vmem:[%s198 + $0xb0] sm:$0xff]
      %v236 = vld [vmem:[%s198 + $0xb8] sm:$0xff]
      %v237 = vld [vmem:[%s198 + $0xc0] sm:$0xff]
      %v238 = vld [vmem:[%s198 + $0xc8] sm:$0xff]
      %v239 = vld [vmem:[%s198 + $0xd0] sm:$0xff]
      %v240 = vld [vmem:[%s198 + $0xd8] sm:$0xff]
      %v241 = vld [vmem:[%s198 + $0xe0] sm:$0xff]
      %v242 = vld [vmem:[%s198 + $0xe8] sm:$0xff]
      %vm243 = vcmask 146432
      %v245 = vsel %vm243, %v213, 0
      %v248 = vsel %vm243, %v214, 0
      %v251 = vsel %vm243, %v215, 0
      %v254 = vsel %vm243, %v216, 0
      %v257 = vsel %vm243, %v217, 0
      %v260 = vsel %vm243, %v218, 0
      %v263 = vsel %vm243, %v219, 0
      %v266 = vsel %vm243, %v220, 0
      %v269 = vsel %vm243, %v221, 0
      %v272 = vsel %vm243, %v222, 0
      %v275 = vsel %vm243, %v223, 0
      %v278 = vsel %vm243, %v224, 0
      %v281 = vsel %vm243, %v225, 0
      %v284 = vsel %vm243, %v226, 0
      %v287 = vsel %vm243, %v227, 0
      %v290 = vsel %vm243, %v228, 0
      %v293 = vsel %vm243, %v229, 0
      %v296 = vsel %vm243, %v230, 0
      %v299 = vsel %vm243, %v231, 0
      %v302 = vsel %vm243, %v232, 0
      %v305 = vsel %vm243, %v233, 0
      %v308 = vsel %vm243, %v234, 0
      %v311 = vsel %vm243, %v235, 0
      %v314 = vsel %vm243, %v236, 0
      %v317 = vsel %vm243, %v237, 0
      %v320 = vsel %vm243, %v238, 0
      %v323 = vsel %vm243, %v239, 0
      %v326 = vsel %vm243, %v240, 0
      %v329 = vsel %vm243, %v241, 0
      %v332 = vsel %vm243, %v242, 0
      %vm334 = vcmask 1041408
      %v336 = vsel %vm334, %v212, 0
      %338 = vmatprep.subr.mxu0 0.0
      %339 = vmatpush1.msra.mxu0 0.0
      %340 = vmatprep.subr.mxu0 0.0
      %341 = vmatpush1.msra.mxu0 0.0
      %342 = vmatprep.subr.mxu0 0.0
      %343 = vmatpush1.msra.mxu0 0.0
      %344 = vmatprep.subr.mxu0 0.0
      %345 = vmatpush1.msra.mxu0 0.0
      %346 = vmatprep.subr.mxu0 0.0
      %347 = vmatpush1.msra.mxu0 0.0
      %348 = vmatprep.subr.mxu0 0.0
      %349 = vmatpush1.msra.mxu0 0.0
      %350 = vmatprep.subr.mxu0 0.0
      %351 = vmatpush1.msra.mxu0 0.0
      %352 = vmatprep.subr.mxu0 0.0
      %353 = vmatpush1.msra.mxu0 0.0
      %354 = vmatprep.subr.mxu0 0.0
      %355 = vmatpush1.msra.mxu0 0.0
      %356 = vmatprep.subr.mxu0 0.0
      %357 = vmatpush1.msra.mxu0 0.0
      %358 = vmatprep.subr.mxu0 0.0
      %359 = vmatpush1.msra.mxu0 0.0
      %360 = vmatprep.subr.mxu0 0.0
      %361 = vmatpush1.msra.mxu0 0.0
      %362 = vmatprep.subr.mxu0 0.0
      %363 = vmatpush1.msra.mxu0 0.0
      %364 = vmatprep.subr.mxu0 0.0
      %365 = vmatpush1.msra.mxu0 %v336
      %366 = vmatprep.subr.mxu0 0.0
      %367 = vmatpush1.msra.mxu0 %v211
      %368 = vmatprep.subr.mxu0 0.0
      %369 = vmatpush1.msra.mxu0 %v210
      %370 = vmatprep.subr.mxu0 0.0
      %371 = vmatpush2.msra.mxu0 0.0
      %372 = vmatprep.subr.mxu0 0.0
      %373 = vmatpush2.msra.mxu0 0.0
      %374 = vmatprep.subr.mxu0 0.0
      %375 = vmatpush2.msra.mxu0 0.0
      %376 = vmatprep.subr.mxu0 0.0
      %377 = vmatpush2.msra.mxu0 0.0
      %378 = vmatprep.subr.mxu0 0.0
      %379 = vmatpush2.msra.mxu0 0.0
      %380 = vmatprep.subr.mxu0 0.0
      %381 = vmatpush2.msra.mxu0 0.0
      %382 = vmatprep.subr.mxu0 0.0
      %383 = vmatpush2.msra.mxu0 0.0
      %384 = vmatprep.subr.mxu0 0.0
      %385 = vmatpush2.msra.mxu0 0.0
      %386 = vmatprep.subr.mxu0 0.0
      %387 = vmatpush2.msra.mxu0 0.0
      %388 = vmatprep.subr.mxu0 0.0
      %389 = vmatpush2.msra.mxu0 0.0
      %390 = vmatprep.subr.mxu0 0.0
      %391 = vmatpush2.msra.mxu0 0.0
      %392 = vmatprep.subr.mxu0 0.0
      %393 = vmatpush2.msra.mxu0 0.0
      %394 = vmatprep.subr.mxu0 0.0
      %395 = vmatpush2.msra.mxu0 0.0
      %396 = vmatprep.subr.mxu0 0.0
      %397 = vmatpush2.msra.mxu0 0.0
      %398 = vmatprep.subr.mxu0 0.0
      %399 = vmatpush2.msra.mxu0 0.0
      %400 = vmatprep.subr.mxu0 0.0
      %401 = vmatpush2.msra.mxu0 0.0
      %402 = vmatprep.mubr.f32.mxu0 0.0
      %403 = vmatmul.mubr.f32.gmra.mxu0 %v245
      %v404 = vpop.f32.mrf.mxu0
      %v405 = vadd.f32 0.0, %v404
      %v406 = vpop.f32.mrf.mxu0
      %407 = vmatprep.mubr.f32.mxu0 0.0
      %408 = vmatmul.mubr.f32.gmra.mxu0 %v248
      %v409 = vpop.f32.mrf.mxu0
      %v410 = vadd.f32 0.0, %v409
      %v411 = vpop.f32.mrf.mxu0
      %412 = vmatprep.mubr.f32.mxu0 0.0
      %413 = vmatmul.mubr.f32.gmra.mxu0 %v251
      %v414 = vpop.f32.mrf.mxu0
      %v415 = vadd.f32 0.0, %v414
      %v416 = vpop.f32.mrf.mxu0
      %417 = vmatprep.mubr.f32.mxu0 0.0
      %418 = vmatmul.mubr.f32.gmra.mxu0 %v254
      %v419 = vpop.f32.mrf.mxu0
      %v420 = vadd.f32 0.0, %v419
      %v421 = vpop.f32.mrf.mxu0
      %422 = vmatprep.mubr.f32.mxu0 0.0
      %423 = vmatmul.mubr.f32.gmra.mxu0 %v257
      %v424 = vpop.f32.mrf.mxu0
      %v425 = vadd.f32 0.0, %v424
      %v426 = vpop.f32.mrf.mxu0
      %427 = vmatprep.mubr.f32.mxu0 0.0
      %428 = vmatmul.mubr.f32.gmra.mxu0 %v260
      %v429 = vpop.f32.mrf.mxu0
      %v430 = vadd.f32 0.0, %v429
      %v431 = vpop.f32.mrf.mxu0
      %432 = vmatprep.mubr.f32.mxu0 0.0
      %433 = vmatmul.mubr.f32.gmra.mxu0 %v263
      %v434 = vpop.f32.mrf.mxu0
      %v435 = vadd.f32 0.0, %v434
      %v436 = vpop.f32.mrf.mxu0
      %437 = vmatprep.mubr.f32.mxu0 0.0
      %438 = vmatmul.mubr.f32.gmra.mxu0 %v266
      %v439 = vpop.f32.mrf.mxu0
      %v440 = vadd.f32 0.0, %v439
      %v441 = vpop.f32.mrf.mxu0
      %442 = vmatprep.mubr.f32.mxu0 0.0
      %443 = vmatmul.mubr.f32.gmra.mxu0 %v269
      %v444 = vpop.f32.mrf.mxu0
      %v445 = vadd.f32 0.0, %v444
      %v446 = vpop.f32.mrf.mxu0
      %447 = vmatprep.mubr.f32.mxu0 0.0
      %448 = vmatmul.mubr.f32.gmra.mxu0 %v272
      %v449 = vpop.f32.mrf.mxu0
      %v450 = vadd.f32 0.0, %v449
      %v451 = vpop.f32.mrf.mxu0
      %452 = vmatprep.mubr.f32.mxu0 0.0
      %453 = vmatmul.mubr.f32.gmra.mxu0 %v275
      %v454 = vpop.f32.mrf.mxu0
      %v455 = vadd.f32 0.0, %v454
      %v456 = vpop.f32.mrf.mxu0
      %457 = vmatprep.mubr.f32.mxu0 0.0
      %458 = vmatmul.mubr.f32.gmra.mxu0 %v278
      %v459 = vpop.f32.mrf.mxu0
      %v460 = vadd.f32 0.0, %v459
      %v461 = vpop.f32.mrf.mxu0
      %462 = vmatprep.mubr.f32.mxu0 0.0
      %463 = vmatmul.mubr.f32.gmra.mxu0 %v281
      %v464 = vpop.f32.mrf.mxu0
      %v465 = vadd.f32 0.0, %v464
      %v466 = vpop.f32.mrf.mxu0
      %467 = vmatprep.mubr.f32.mxu0 0.0
      %468 = vmatmul.mubr.f32.gmra.mxu0 %v284
      %v469 = vpop.f32.mrf.mxu0
      %v470 = vadd.f32 0.0, %v469
      %v471 = vpop.f32.mrf.mxu0
      %472 = vmatprep.mubr.f32.mxu0 0.0
      %473 = vmatmul.mubr.f32.gmra.mxu0 %v287
      %v474 = vpop.f32.mrf.mxu0
      %v475 = vadd.f32 0.0, %v474
      %v476 = vpop.f32.mrf.mxu0
      %477 = vmatprep.mubr.f32.mxu0 0.0
      %478 = vmatmul.mubr.f32.gmra.mxu0 %v290
      %v479 = vpop.f32.mrf.mxu0
      %v480 = vadd.f32 0.0, %v479
      %v481 = vpop.f32.mrf.mxu0
      %482 = vmatprep.mubr.f32.mxu0 0.0
      %483 = vmatmul.mubr.f32.gmra.mxu0 %v293
      %v484 = vpop.f32.mrf.mxu0
      %v485 = vadd.f32 0.0, %v484
      %v486 = vpop.f32.mrf.mxu0
      %487 = vmatprep.mubr.f32.mxu0 0.0
      %488 = vmatmul.mubr.f32.gmra.mxu0 %v296
      %v489 = vpop.f32.mrf.mxu0
      %v490 = vadd.f32 0.0, %v489
      %v491 = vpop.f32.mrf.mxu0
      %492 = vmatprep.mubr.f32.mxu0 0.0
      %493 = vmatmul.mubr.f32.gmra.mxu0 %v299
      %v494 = vpop.f32.mrf.mxu0
      %v495 = vadd.f32 0.0, %v494
      %v496 = vpop.f32.mrf.mxu0
      %497 = vmatprep.mubr.f32.mxu0 0.0
      %498 = vmatmul.mubr.f32.gmra.mxu0 %v302
      %v499 = vpop.f32.mrf.mxu0
      %v500 = vadd.f32 0.0, %v499
      %v501 = vpop.f32.mrf.mxu0
      %502 = vmatprep.mubr.f32.mxu0 0.0
      %503 = vmatmul.mubr.f32.gmra.mxu0 %v305
      %v504 = vpop.f32.mrf.mxu0
      %v505 = vadd.f32 0.0, %v504
      %v506 = vpop.f32.mrf.mxu0
      %507 = vmatprep.mubr.f32.mxu0 0.0
      %508 = vmatmul.mubr.f32.gmra.mxu0 %v308
      %v509 = vpop.f32.mrf.mxu0
      %v510 = vadd.f32 0.0, %v509
      %v511 = vpop.f32.mrf.mxu0
      %512 = vmatprep.mubr.f32.mxu0 0.0
      %513 = vmatmul.mubr.f32.gmra.mxu0 %v311
      %v514 = vpop.f32.mrf.mxu0
      %v515 = vadd.f32 0.0, %v514
      %v516 = vpop.f32.mrf.mxu0
      %517 = vmatprep.mubr.f32.mxu0 0.0
      %518 = vmatmul.mubr.f32.gmra.mxu0 %v314
      %v519 = vpop.f32.mrf.mxu0
      %v520 = vadd.f32 0.0, %v519
      %v521 = vpop.f32.mrf.mxu0
      %522 = vmatprep.mubr.f32.mxu0 0.0
      %523 = vmatmul.mubr.f32.gmra.mxu0 %v317
      %v524 = vpop.f32.mrf.mxu0
      %v525 = vadd.f32 0.0, %v524
      %v526 = vpop.f32.mrf.mxu0
      %527 = vmatprep.mubr.f32.mxu0 0.0
      %528 = vmatmul.mubr.f32.gmra.mxu0 %v320
      %v529 = vpop.f32.mrf.mxu0
      %v530 = vadd.f32 0.0, %v529
      %v531 = vpop.f32.mrf.mxu0
      %532 = vmatprep.mubr.f32.mxu0 0.0
      %533 = vmatmul.mubr.f32.gmra.mxu0 %v323
      %v534 = vpop.f32.mrf.mxu0
      %v535 = vadd.f32 0.0, %v534
      %v536 = vpop.f32.mrf.mxu0
      %537 = vmatprep.mubr.f32.mxu0 0.0
      %538 = vmatmul.mubr.f32.gmra.mxu0 %v326
      %v539 = vpop.f32.mrf.mxu0
      %v540 = vadd.f32 0.0, %v539
      %v541 = vpop.f32.mrf.mxu0
      %542 = vmatprep.mubr.f32.mxu0 0.0
      %543 = vmatmul.mubr.f32.gmra.mxu0 %v329
      %v544 = vpop.f32.mrf.mxu0
      %v545 = vadd.f32 0.0, %v544
      %v546 = vpop.f32.mrf.mxu0
      %547 = vmatprep.mubr.f32.mxu0 0.0
      %548 = vmatmul.mubr.f32.gmra.mxu0 %v332
      %v549 = vpop.f32.mrf.mxu0
      %v550 = vadd.f32 0.0, %v549
      %v551 = vpop.f32.mrf.mxu0
      %552 = vdwg.mxu0
      %s553 = scalar_lea.vmem %s198, 240
      %v554 = vld [vmem:[%s553] sm:$0xff]
      %v555 = vld [vmem:[%s553 + $0x8] sm:$0xff]
      %v556 = vld [vmem:[%s553 + $0x10] sm:$0xff]
      %v557 = vld [vmem:[%s553 + $0x18] sm:$0xff]
      %v558 = vld [vmem:[%s553 + $0x20] sm:$0xff]
      %v559 = vld [vmem:[%s553 + $0x28] sm:$0xff]
      %v560 = vld [vmem:[%s553 + $0x30] sm:$0xff]
      %v561 = vld [vmem:[%s553 + $0x38] sm:$0xff]
      %v562 = vld [vmem:[%s553 + $0x40] sm:$0xff]
      %v563 = vld [vmem:[%s553 + $0x48] sm:$0xff]
      %v564 = vld [vmem:[%s553 + $0x50] sm:$0xff]
      %v565 = vld [vmem:[%s553 + $0x58] sm:$0xff]
      %v566 = vld [vmem:[%s553 + $0x60] sm:$0xff]
      %v567 = vld [vmem:[%s553 + $0x68] sm:$0xff]
      %v568 = vld [vmem:[%s553 + $0x70] sm:$0xff]
      %v569 = vld [vmem:[%s553 + $0x78] sm:$0xff]
      %v570 = vld [vmem:[%s553 + $0x80] sm:$0xff]
      %v571 = vld [vmem:[%s553 + $0x88] sm:$0xff]
      %v572 = vld [vmem:[%s553 + $0x90] sm:$0xff]
      %v573 = vld [vmem:[%s553 + $0x98] sm:$0xff]
      %v574 = vld [vmem:[%s553 + $0xa0] sm:$0xff]
      %v575 = vld [vmem:[%s553 + $0xa8] sm:$0xff]
      %v576 = vld [vmem:[%s553 + $0xb0] sm:$0xff]
      %v577 = vld [vmem:[%s553 + $0xb8] sm:$0xff]
      %v578 = vld [vmem:[%s553 + $0xc0] sm:$0xff]
      %v579 = vld [vmem:[%s553 + $0xc8] sm:$0xff]
      %v580 = vld [vmem:[%s553 + $0xd0] sm:$0xff]
      %v581 = vld [vmem:[%s553 + $0xd8] sm:$0xff]
      %v582 = vld [vmem:[%s553 + $0xe0] sm:$0xff]
      %v583 = vld [vmem:[%s553 + $0xe8] sm:$0xff]
      %v585 = vsel %vm243, %v554, 0
      %v588 = vsel %vm243, %v555, 0
      %v591 = vsel %vm243, %v556, 0
      %v594 = vsel %vm243, %v557, 0
      %v597 = vsel %vm243, %v558, 0
      %v600 = vsel %vm243, %v559, 0
      %v603 = vsel %vm243, %v560, 0
      %v606 = vsel %vm243, %v561, 0
      %v609 = vsel %vm243, %v562, 0
      %v612 = vsel %vm243, %v563, 0
      %v615 = vsel %vm243, %v564, 0
      %v618 = vsel %vm243, %v565, 0
      %v621 = vsel %vm243, %v566, 0
      %v624 = vsel %vm243, %v567, 0
      %v627 = vsel %vm243, %v568, 0
      %v630 = vsel %vm243, %v569, 0
      %v633 = vsel %vm243, %v570, 0
      %v636 = vsel %vm243, %v571, 0
      %v639 = vsel %vm243, %v572, 0
      %v642 = vsel %vm243, %v573, 0
      %v645 = vsel %vm243, %v574, 0
      %v648 = vsel %vm243, %v575, 0
      %v651 = vsel %vm243, %v576, 0
      %v654 = vsel %vm243, %v577, 0
      %v657 = vsel %vm243, %v578, 0
      %v660 = vsel %vm243, %v579, 0
      %v663 = vsel %vm243, %v580, 0
      %v666 = vsel %vm243, %v581, 0
      %v669 = vsel %vm243, %v582, 0
      %v672 = vsel %vm243, %v583, 0
      %674 = vmatprep.subr.mxu0 0.0
      %675 = vmatpush1.msra.mxu0 0.0
      %676 = vmatprep.subr.mxu0 0.0
      %677 = vmatpush1.msra.mxu0 0.0
      %678 = vmatprep.subr.mxu0 0.0
      %679 = vmatpush1.msra.mxu0 0.0
      %680 = vmatprep.subr.mxu0 0.0
      %681 = vmatpush1.msra.mxu0 0.0
      %682 = vmatprep.subr.mxu0 0.0
      %683 = vmatpush1.msra.mxu0 0.0
      %684 = vmatprep.subr.mxu0 0.0
      %685 = vmatpush1.msra.mxu0 0.0
      %686 = vmatprep.subr.mxu0 0.0
      %687 = vmatpush1.msra.mxu0 0.0
      %688 = vmatprep.subr.mxu0 0.0
      %689 = vmatpush1.msra.mxu0 0.0
      %690 = vmatprep.subr.mxu0 0.0
      %691 = vmatpush1.msra.mxu0 0.0
      %692 = vmatprep.subr.mxu0 0.0
      %693 = vmatpush1.msra.mxu0 0.0
      %694 = vmatprep.subr.mxu0 0.0
      %695 = vmatpush1.msra.mxu0 0.0
      %696 = vmatprep.subr.mxu0 0.0
      %697 = vmatpush1.msra.mxu0 0.0
      %698 = vmatprep.subr.mxu0 0.0
      %699 = vmatpush1.msra.mxu0 0.0
      %700 = vmatprep.subr.mxu0 0.0
      %701 = vmatpush1.msra.mxu0 %v336
      %702 = vmatprep.subr.mxu0 0.0
      %703 = vmatpush1.msra.mxu0 %v211
      %704 = vmatprep.subr.mxu0 0.0
      %705 = vmatpush1.msra.mxu0 %v210
      %706 = vmatprep.subr.mxu0 0.0
      %707 = vmatpush2.msra.mxu0 0.0
      %708 = vmatprep.subr.mxu0 0.0
      %709 = vmatpush2.msra.mxu0 0.0
      %710 = vmatprep.subr.mxu0 0.0
      %711 = vmatpush2.msra.mxu0 0.0
      %712 = vmatprep.subr.mxu0 0.0
      %713 = vmatpush2.msra.mxu0 0.0
      %714 = vmatprep.subr.mxu0 0.0
      %715 = vmatpush2.msra.mxu0 0.0
      %716 = vmatprep.subr.mxu0 0.0
      %717 = vmatpush2.msra.mxu0 0.0
      %718 = vmatprep.subr.mxu0 0.0
      %719 = vmatpush2.msra.mxu0 0.0
      %720 = vmatprep.subr.mxu0 0.0
      %721 = vmatpush2.msra.mxu0 0.0
      %722 = vmatprep.subr.mxu0 0.0
      %723 = vmatpush2.msra.mxu0 0.0
      %724 = vmatprep.subr.mxu0 0.0
      %725 = vmatpush2.msra.mxu0 0.0
      %726 = vmatprep.subr.mxu0 0.0
      %727 = vmatpush2.msra.mxu0 0.0
      %728 = vmatprep.subr.mxu0 0.0
      %729 = vmatpush2.msra.mxu0 0.0
      %730 = vmatprep.subr.mxu0 0.0
      %731 = vmatpush2.msra.mxu0 0.0
      %732 = vmatprep.subr.mxu0 0.0
      %733 = vmatpush2.msra.mxu0 0.0
      %734 = vmatprep.subr.mxu0 0.0
      %735 = vmatpush2.msra.mxu0 0.0
      %736 = vmatprep.subr.mxu0 0.0
      %737 = vmatpush2.msra.mxu0 0.0
      %738 = vmatprep.mubr.f32.mxu0 0.0
      %739 = vmatmul.mubr.f32.gmra.mxu0 %v585
      %v740 = vpop.f32.mrf.mxu0
      %v741 = vadd.f32 0.0, %v740
      %v742 = vpop.f32.mrf.mxu0
      %743 = vmatprep.mubr.f32.mxu0 0.0
      %744 = vmatmul.mubr.f32.gmra.mxu0 %v588
      %v745 = vpop.f32.mrf.mxu0
      %v746 = vadd.f32 0.0, %v745
      %v747 = vpop.f32.mrf.mxu0
      %748 = vmatprep.mubr.f32.mxu0 0.0
      %749 = vmatmul.mubr.f32.gmra.mxu0 %v591
      %v750 = vpop.f32.mrf.mxu0
      %v751 = vadd.f32 0.0, %v750
      %v752 = vpop.f32.mrf.mxu0
      %753 = vmatprep.mubr.f32.mxu0 0.0
      %754 = vmatmul.mubr.f32.gmra.mxu0 %v594
      %v755 = vpop.f32.mrf.mxu0
      %v756 = vadd.f32 0.0, %v755
      %v757 = vpop.f32.mrf.mxu0
      %758 = vmatprep.mubr.f32.mxu0 0.0
      %759 = vmatmul.mubr.f32.gmra.mxu0 %v597
      %v760 = vpop.f32.mrf.mxu0
      %v761 = vadd.f32 0.0, %v760
      %v762 = vpop.f32.mrf.mxu0
      %763 = vmatprep.mubr.f32.mxu0 0.0
      %764 = vmatmul.mubr.f32.gmra.mxu0 %v600
      %v765 = vpop.f32.mrf.mxu0
      %v766 = vadd.f32 0.0, %v765
      %v767 = vpop.f32.mrf.mxu0
      %768 = vmatprep.mubr.f32.mxu0 0.0
      %769 = vmatmul.mubr.f32.gmra.mxu0 %v603
      %v770 = vpop.f32.mrf.mxu0
      %v771 = vadd.f32 0.0, %v770
      %v772 = vpop.f32.mrf.mxu0
      %773 = vmatprep.mubr.f32.mxu0 0.0
      %774 = vmatmul.mubr.f32.gmra.mxu0 %v606
      %v775 = vpop.f32.mrf.mxu0
      %v776 = vadd.f32 0.0, %v775
      %v777 = vpop.f32.mrf.mxu0
      %778 = vmatprep.mubr.f32.mxu0 0.0
      %779 = vmatmul.mubr.f32.gmra.mxu0 %v609
      %v780 = vpop.f32.mrf.mxu0
      %v781 = vadd.f32 0.0, %v780
      %v782 = vpop.f32.mrf.mxu0
      %783 = vmatprep.mubr.f32.mxu0 0.0
      %784 = vmatmul.mubr.f32.gmra.mxu0 %v612
      %v785 = vpop.f32.mrf.mxu0
      %v786 = vadd.f32 0.0, %v785
      %v787 = vpop.f32.mrf.mxu0
      %788 = vmatprep.mubr.f32.mxu0 0.0
      %789 = vmatmul.mubr.f32.gmra.mxu0 %v615
      %v790 = vpop.f32.mrf.mxu0
      %v791 = vadd.f32 0.0, %v790
      %v792 = vpop.f32.mrf.mxu0
      %793 = vmatprep.mubr.f32.mxu0 0.0
      %794 = vmatmul.mubr.f32.gmra.mxu0 %v618
      %v795 = vpop.f32.mrf.mxu0
      %v796 = vadd.f32 0.0, %v795
      %v797 = vpop.f32.mrf.mxu0
      %798 = vmatprep.mubr.f32.mxu0 0.0
      %799 = vmatmul.mubr.f32.gmra.mxu0 %v621
      %v800 = vpop.f32.mrf.mxu0
      %v801 = vadd.f32 0.0, %v800
      %v802 = vpop.f32.mrf.mxu0
      %803 = vmatprep.mubr.f32.mxu0 0.0
      %804 = vmatmul.mubr.f32.gmra.mxu0 %v624
      %v805 = vpop.f32.mrf.mxu0
      %v806 = vadd.f32 0.0, %v805
      %v807 = vpop.f32.mrf.mxu0
      %808 = vmatprep.mubr.f32.mxu0 0.0
      %809 = vmatmul.mubr.f32.gmra.mxu0 %v627
      %v810 = vpop.f32.mrf.mxu0
      %v811 = vadd.f32 0.0, %v810
      %v812 = vpop.f32.mrf.mxu0
      %813 = vmatprep.mubr.f32.mxu0 0.0
      %814 = vmatmul.mubr.f32.gmra.mxu0 %v630
      %v815 = vpop.f32.mrf.mxu0
      %v816 = vadd.f32 0.0, %v815
      %v817 = vpop.f32.mrf.mxu0
      %818 = vmatprep.mubr.f32.mxu0 0.0
      %819 = vmatmul.mubr.f32.gmra.mxu0 %v633
      %v820 = vpop.f32.mrf.mxu0
      %v821 = vadd.f32 0.0, %v820
      %v822 = vpop.f32.mrf.mxu0
      %823 = vmatprep.mubr.f32.mxu0 0.0
      %824 = vmatmul.mubr.f32.gmra.mxu0 %v636
      %v825 = vpop.f32.mrf.mxu0
      %v826 = vadd.f32 0.0, %v825
      %v827 = vpop.f32.mrf.mxu0
      %828 = vmatprep.mubr.f32.mxu0 0.0
      %829 = vmatmul.mubr.f32.gmra.mxu0 %v639
      %v830 = vpop.f32.mrf.mxu0
      %v831 = vadd.f32 0.0, %v830
      %v832 = vpop.f32.mrf.mxu0
      %833 = vmatprep.mubr.f32.mxu0 0.0
      %834 = vmatmul.mubr.f32.gmra.mxu0 %v642
      %v835 = vpop.f32.mrf.mxu0
      %v836 = vadd.f32 0.0, %v835
      %v837 = vpop.f32.mrf.mxu0
      %838 = vmatprep.mubr.f32.mxu0 0.0
      %839 = vmatmul.mubr.f32.gmra.mxu0 %v645
      %v840 = vpop.f32.mrf.mxu0
      %v841 = vadd.f32 0.0, %v840
      %v842 = vpop.f32.mrf.mxu0
      %843 = vmatprep.mubr.f32.mxu0 0.0
      %844 = vmatmul.mubr.f32.gmra.mxu0 %v648
      %v845 = vpop.f32.mrf.mxu0
      %v846 = vadd.f32 0.0, %v845
      %v847 = vpop.f32.mrf.mxu0
      %848 = vmatprep.mubr.f32.mxu0 0.0
      %849 = vmatmul.mubr.f32.gmra.mxu0 %v651
      %v850 = vpop.f32.mrf.mxu0
      %v851 = vadd.f32 0.0, %v850
      %v852 = vpop.f32.mrf.mxu0
      %853 = vmatprep.mubr.f32.mxu0 0.0
      %854 = vmatmul.mubr.f32.gmra.mxu0 %v654
      %v855 = vpop.f32.mrf.mxu0
      %v856 = vadd.f32 0.0, %v855
      %v857 = vpop.f32.mrf.mxu0
      %858 = vmatprep.mubr.f32.mxu0 0.0
      %859 = vmatmul.mubr.f32.gmra.mxu0 %v657
      %v860 = vpop.f32.mrf.mxu0
      %v861 = vadd.f32 0.0, %v860
      %v862 = vpop.f32.mrf.mxu0
      %863 = vmatprep.mubr.f32.mxu0 0.0
      %864 = vmatmul.mubr.f32.gmra.mxu0 %v660
      %v865 = vpop.f32.mrf.mxu0
      %v866 = vadd.f32 0.0, %v865
      %v867 = vpop.f32.mrf.mxu0
      %868 = vmatprep.mubr.f32.mxu0 0.0
      %869 = vmatmul.mubr.f32.gmra.mxu0 %v663
      %v870 = vpop.f32.mrf.mxu0
      %v871 = vadd.f32 0.0, %v870
      %v872 = vpop.f32.mrf.mxu0
      %873 = vmatprep.mubr.f32.mxu0 0.0
      %874 = vmatmul.mubr.f32.gmra.mxu0 %v666
      %v875 = vpop.f32.mrf.mxu0
      %v876 = vadd.f32 0.0, %v875
      %v877 = vpop.f32.mrf.mxu0
      %878 = vmatprep.mubr.f32.mxu0 0.0
      %879 = vmatmul.mubr.f32.gmra.mxu0 %v669
      %v880 = vpop.f32.mrf.mxu0
      %v881 = vadd.f32 0.0, %v880
      %v882 = vpop.f32.mrf.mxu0
      %883 = vmatprep.mubr.f32.mxu0 0.0
      %884 = vmatmul.mubr.f32.gmra.mxu0 %v672
      %v885 = vpop.f32.mrf.mxu0
      %v886 = vadd.f32 0.0, %v885
      %v887 = vpop.f32.mrf.mxu0
      %888 = vdwg.mxu0
      %v889 = vmax.f32 %v405, %v741
      %v890 = vmax.f32 %v410, %v746
      %v891 = vmax.f32 %v415, %v751
      %v892 = vmax.f32 %v420, %v756
      %v893 = vmax.f32 %v425, %v761
      %v894 = vmax.f32 %v430, %v766
      %v895 = vmax.f32 %v435, %v771
      %v896 = vmax.f32 %v440, %v776
      %v897 = vmax.f32 %v445, %v781
      %v898 = vmax.f32 %v450, %v786
      %v899 = vmax.f32 %v455, %v791
      %v900 = vmax.f32 %v460, %v796
      %v901 = vmax.f32 %v465, %v801
      %v902 = vmax.f32 %v470, %v806
      %v903 = vmax.f32 %v475, %v811
      %v904 = vmax.f32 %v480, %v816
      %v905 = vmax.f32 %v485, %v821
      %v906 = vmax.f32 %v490, %v826
      %v907 = vmax.f32 %v495, %v831
      %v908 = vmax.f32 %v500, %v836
      %v909 = vmax.f32 %v505, %v841
      %v910 = vmax.f32 %v510, %v846
      %v911 = vmax.f32 %v515, %v851
      %v912 = vmax.f32 %v520, %v856
      %v913 = vmax.f32 %v525, %v861
      %v914 = vmax.f32 %v530, %v866
      %v915 = vmax.f32 %v535, %v871
      %v916 = vmax.f32 %v540, %v876
      %v917 = vmax.f32 %v545, %v881
      %v918 = vmax.f32 %v550, %v886
      %s919 = scalar_lea.vmem %s198, 480
      %v920 = vld [vmem:[%s919] sm:$0xff]
      %v921 = vld [vmem:[%s919 + $0x8] sm:$0xff]
      %v922 = vld [vmem:[%s919 + $0x10] sm:$0xff]
      %v923 = vld [vmem:[%s919 + $0x18] sm:$0xff]
      %v924 = vld [vmem:[%s919 + $0x20] sm:$0xff]
      %v925 = vld [vmem:[%s919 + $0x28] sm:$0xff]
      %v926 = vld [vmem:[%s919 + $0x30] sm:$0xff]
      %v927 = vld [vmem:[%s919 + $0x38] sm:$0xff]
      %v928 = vld [vmem:[%s919 + $0x40] sm:$0xff]
      %v929 = vld [vmem:[%s919 + $0x48] sm:$0xff]
      %v930 = vld [vmem:[%s919 + $0x50] sm:$0xff]
      %v931 = vld [vmem:[%s919 + $0x58] sm:$0xff]
      %v932 = vld [vmem:[%s919 + $0x60] sm:$0xff]
      %v933 = vld [vmem:[%s919 + $0x68] sm:$0xff]
      %v934 = vld [vmem:[%s919 + $0x70] sm:$0xff]
      %v935 = vld [vmem:[%s919 + $0x78] sm:$0xff]
      %v936 = vld [vmem:[%s919 + $0x80] sm:$0xff]
      %v937 = vld [vmem:[%s919 + $0x88] sm:$0xff]
      %v938 = vld [vmem:[%s919 + $0x90] sm:$0xff]
      %v939 = vld [vmem:[%s919 + $0x98] sm:$0xff]
      %v940 = vld [vmem:[%s919 + $0xa0] sm:$0xff]
      %v941 = vld [vmem:[%s919 + $0xa8] sm:$0xff]
      %v942 = vld [vmem:[%s919 + $0xb0] sm:$0xff]
      %v943 = vld [vmem:[%s919 + $0xb8] sm:$0xff]
      %v944 = vld [vmem:[%s919 + $0xc0] sm:$0xff]
      %v945 = vld [vmem:[%s919 + $0xc8] sm:$0xff]
      %v946 = vld [vmem:[%s919 + $0xd0] sm:$0xff]
      %v947 = vld [vmem:[%s919 + $0xd8] sm:$0xff]
      %v948 = vld [vmem:[%s919 + $0xe0] sm:$0xff]
      %v949 = vld [vmem:[%s919 + $0xe8] sm:$0xff]
      %v951 = vsel %vm243, %v920, 0
      %v954 = vsel %vm243, %v921, 0
      %v957 = vsel %vm243, %v922, 0
      %v960 = vsel %vm243, %v923, 0
      %v963 = vsel %vm243, %v924, 0
      %v966 = vsel %vm243, %v925, 0
      %v969 = vsel %vm243, %v926, 0
      %v972 = vsel %vm243, %v927, 0
      %v975 = vsel %vm243, %v928, 0
      %v978 = vsel %vm243, %v929, 0
      %v981 = vsel %vm243, %v930, 0
      %v984 = vsel %vm243, %v931, 0
      %v987 = vsel %vm243, %v932, 0
      %v990 = vsel %vm243, %v933, 0
      %v993 = vsel %vm243, %v934, 0
      %v996 = vsel %vm243, %v935, 0
      %v999 = vsel %vm243, %v936, 0
      %v1002 = vsel %vm243, %v937, 0
      %v1005 = vsel %vm243, %v938, 0
      %v1008 = vsel %vm243, %v939, 0
      %v1011 = vsel %vm243, %v940, 0
      %v1014 = vsel %vm243, %v941, 0
      %v1017 = vsel %vm243, %v942, 0
      %v1020 = vsel %vm243, %v943, 0
      %v1023 = vsel %vm243, %v944, 0
      %v1026 = vsel %vm243, %v945, 0
      %v1029 = vsel %vm243, %v946, 0
      %v1032 = vsel %vm243, %v947, 0
      %v1035 = vsel %vm243, %v948, 0
      %v1038 = vsel %vm243, %v949, 0
      %1040 = vmatprep.subr.mxu0 0.0
      %1041 = vmatpush1.msra.mxu0 0.0
      %1042 = vmatprep.subr.mxu0 0.0
      %1043 = vmatpush1.msra.mxu0 0.0
      %1044 = vmatprep.subr.mxu0 0.0
      %1045 = vmatpush1.msra.mxu0 0.0
      %1046 = vmatprep.subr.mxu0 0.0
      %1047 = vmatpush1.msra.mxu0 0.0
      %1048 = vmatprep.subr.mxu0 0.0
      %1049 = vmatpush1.msra.mxu0 0.0
      %1050 = vmatprep.subr.mxu0 0.0
      %1051 = vmatpush1.msra.mxu0 0.0
      %1052 = vmatprep.subr.mxu0 0.0
      %1053 = vmatpush1.msra.mxu0 0.0
      %1054 = vmatprep.subr.mxu0 0.0
      %1055 = vmatpush1.msra.mxu0 0.0
      %1056 = vmatprep.subr.mxu0 0.0
      %1057 = vmatpush1.msra.mxu0 0.0
      %1058 = vmatprep.subr.mxu0 0.0
      %1059 = vmatpush1.msra.mxu0 0.0
      %1060 = vmatprep.subr.mxu0 0.0
      %1061 = vmatpush1.msra.mxu0 0.0
      %1062 = vmatprep.subr.mxu0 0.0
      %1063 = vmatpush1.msra.mxu0 0.0
      %1064 = vmatprep.subr.mxu0 0.0
      %1065 = vmatpush1.msra.mxu0 0.0
      %1066 = vmatprep.subr.mxu0 0.0
      %1067 = vmatpush1.msra.mxu0 %v336
      %1068 = vmatprep.subr.mxu0 0.0
      %1069 = vmatpush1.msra.mxu0 %v211
      %1070 = vmatprep.subr.mxu0 0.0
      %1071 = vmatpush1.msra.mxu0 %v210
      %1072 = vmatprep.subr.mxu0 0.0
      %1073 = vmatpush2.msra.mxu0 0.0
      %1074 = vmatprep.subr.mxu0 0.0
      %1075 = vmatpush2.msra.mxu0 0.0
      %1076 = vmatprep.subr.mxu0 0.0
      %1077 = vmatpush2.msra.mxu0 0.0
      %1078 = vmatprep.subr.mxu0 0.0
      %1079 = vmatpush2.msra.mxu0 0.0
      %1080 = vmatprep.subr.mxu0 0.0
      %1081 = vmatpush2.msra.mxu0 0.0
      %1082 = vmatprep.subr.mxu0 0.0
      %1083 = vmatpush2.msra.mxu0 0.0
      %1084 = vmatprep.subr.mxu0 0.0
      %1085 = vmatpush2.msra.mxu0 0.0
      %1086 = vmatprep.subr.mxu0 0.0
      %1087 = vmatpush2.msra.mxu0 0.0
      %1088 = vmatprep.subr.mxu0 0.0
      %1089 = vmatpush2.msra.mxu0 0.0
      %1090 = vmatprep.subr.mxu0 0.0
      %1091 = vmatpush2.msra.mxu0 0.0
      %1092 = vmatprep.subr.mxu0 0.0
      %1093 = vmatpush2.msra.mxu0 0.0
      %1094 = vmatprep.subr.mxu0 0.0
      %1095 = vmatpush2.msra.mxu0 0.0
      %1096 = vmatprep.subr.mxu0 0.0
      %1097 = vmatpush2.msra.mxu0 0.0
      %1098 = vmatprep.subr.mxu0 0.0
      %1099 = vmatpush2.msra.mxu0 0.0
      %1100 = vmatprep.subr.mxu0 0.0
      %1101 = vmatpush2.msra.mxu0 0.0
      %1102 = vmatprep.subr.mxu0 0.0
      %1103 = vmatpush2.msra.mxu0 0.0
      %1104 = vmatprep.mubr.f32.mxu0 0.0
      %1105 = vmatmul.mubr.f32.gmra.mxu0 %v951
      %v1106 = vpop.f32.mrf.mxu0
      %v1107 = vadd.f32 0.0, %v1106
      %v1108 = vpop.f32.mrf.mxu0
      %1109 = vmatprep.mubr.f32.mxu0 0.0
      %1110 = vmatmul.mubr.f32.gmra.mxu0 %v954
      %v1111 = vpop.f32.mrf.mxu0
      %v1112 = vadd.f32 0.0, %v1111
      %v1113 = vpop.f32.mrf.mxu0
      %1114 = vmatprep.mubr.f32.mxu0 0.0
      %1115 = vmatmul.mubr.f32.gmra.mxu0 %v957
      %v1116 = vpop.f32.mrf.mxu0
      %v1117 = vadd.f32 0.0, %v1116
      %v1118 = vpop.f32.mrf.mxu0
      %1119 = vmatprep.mubr.f32.mxu0 0.0
      %1120 = vmatmul.mubr.f32.gmra.mxu0 %v960
      %v1121 = vpop.f32.mrf.mxu0
      %v1122 = vadd.f32 0.0, %v1121
      %v1123 = vpop.f32.mrf.mxu0
      %1124 = vmatprep.mubr.f32.mxu0 0.0
      %1125 = vmatmul.mubr.f32.gmra.mxu0 %v963
      %v1126 = vpop.f32.mrf.mxu0
      %v1127 = vadd.f32 0.0, %v1126
      %v1128 = vpop.f32.mrf.mxu0
      %1129 = vmatprep.mubr.f32.mxu0 0.0
      %1130 = vmatmul.mubr.f32.gmra.mxu0 %v966
      %v1131 = vpop.f32.mrf.mxu0
      %v1132 = vadd.f32 0.0, %v1131
      %v1133 = vpop.f32.mrf.mxu0
      %1134 = vmatprep.mubr.f32.mxu0 0.0
      %1135 = vmatmul.mubr.f32.gmra.mxu0 %v969
      %v1136 = vpop.f32.mrf.mxu0
      %v1137 = vadd.f32 0.0, %v1136
      %v1138 = vpop.f32.mrf.mxu0
      %1139 = vmatprep.mubr.f32.mxu0 0.0
      %1140 = vmatmul.mubr.f32.gmra.mxu0 %v972
      %v1141 = vpop.f32.mrf.mxu0
      %v1142 = vadd.f32 0.0, %v1141
      %v1143 = vpop.f32.mrf.mxu0
      %1144 = vmatprep.mubr.f32.mxu0 0.0
      %1145 = vmatmul.mubr.f32.gmra.mxu0 %v975
      %v1146 = vpop.f32.mrf.mxu0
      %v1147 = vadd.f32 0.0, %v1146
      %v1148 = vpop.f32.mrf.mxu0
      %1149 = vmatprep.mubr.f32.mxu0 0.0
      %1150 = vmatmul.mubr.f32.gmra.mxu0 %v978
      %v1151 = vpop.f32.mrf.mxu0
      %v1152 = vadd.f32 0.0, %v1151
      %v1153 = vpop.f32.mrf.mxu0
      %1154 = vmatprep.mubr.f32.mxu0 0.0
      %1155 = vmatmul.mubr.f32.gmra.mxu0 %v981
      %v1156 = vpop.f32.mrf.mxu0
      %v1157 = vadd.f32 0.0, %v1156
      %v1158 = vpop.f32.mrf.mxu0
      %1159 = vmatprep.mubr.f32.mxu0 0.0
      %1160 = vmatmul.mubr.f32.gmra.mxu0 %v984
      %v1161 = vpop.f32.mrf.mxu0
      %v1162 = vadd.f32 0.0, %v1161
      %v1163 = vpop.f32.mrf.mxu0
      %1164 = vmatprep.mubr.f32.mxu0 0.0
      %1165 = vmatmul.mubr.f32.gmra.mxu0 %v987
      %v1166 = vpop.f32.mrf.mxu0
      %v1167 = vadd.f32 0.0, %v1166
      %v1168 = vpop.f32.mrf.mxu0
      %1169 = vmatprep.mubr.f32.mxu0 0.0
      %1170 = vmatmul.mubr.f32.gmra.mxu0 %v990
      %v1171 = vpop.f32.mrf.mxu0
      %v1172 = vadd.f32 0.0, %v1171
      %v1173 = vpop.f32.mrf.mxu0
      %1174 = vmatprep.mubr.f32.mxu0 0.0
      %1175 = vmatmul.mubr.f32.gmra.mxu0 %v993
      %v1176 = vpop.f32.mrf.mxu0
      %v1177 = vadd.f32 0.0, %v1176
      %v1178 = vpop.f32.mrf.mxu0
      %1179 = vmatprep.mubr.f32.mxu0 0.0
      %1180 = vmatmul.mubr.f32.gmra.mxu0 %v996
      %v1181 = vpop.f32.mrf.mxu0
      %v1182 = vadd.f32 0.0, %v1181
      %v1183 = vpop.f32.mrf.mxu0
      %1184 = vmatprep.mubr.f32.mxu0 0.0
      %1185 = vmatmul.mubr.f32.gmra.mxu0 %v999
      %v1186 = vpop.f32.mrf.mxu0
      %v1187 = vadd.f32 0.0, %v1186
      %v1188 = vpop.f32.mrf.mxu0
      %1189 = vmatprep.mubr.f32.mxu0 0.0
      %1190 = vmatmul.mubr.f32.gmra.mxu0 %v1002
      %v1191 = vpop.f32.mrf.mxu0
      %v1192 = vadd.f32 0.0, %v1191
      %v1193 = vpop.f32.mrf.mxu0
      %1194 = vmatprep.mubr.f32.mxu0 0.0
      %1195 = vmatmul.mubr.f32.gmra.mxu0 %v1005
      %v1196 = vpop.f32.mrf.mxu0
      %v1197 = vadd.f32 0.0, %v1196
      %v1198 = vpop.f32.mrf.mxu0
      %1199 = vmatprep.mubr.f32.mxu0 0.0
      %1200 = vmatmul.mubr.f32.gmra.mxu0 %v1008
      %v1201 = vpop.f32.mrf.mxu0
      %v1202 = vadd.f32 0.0, %v1201
      %v1203 = vpop.f32.mrf.mxu0
      %1204 = vmatprep.mubr.f32.mxu0 0.0
      %1205 = vmatmul.mubr.f32.gmra.mxu0 %v1011
      %v1206 = vpop.f32.mrf.mxu0
      %v1207 = vadd.f32 0.0, %v1206
      %v1208 = vpop.f32.mrf.mxu0
      %1209 = vmatprep.mubr.f32.mxu0 0.0
      %1210 = vmatmul.mubr.f32.gmra.mxu0 %v1014
      %v1211 = vpop.f32.mrf.mxu0
      %v1212 = vadd.f32 0.0, %v1211
      %v1213 = vpop.f32.mrf.mxu0
      %1214 = vmatprep.mubr.f32.mxu0 0.0
      %1215 = vmatmul.mubr.f32.gmra.mxu0 %v1017
      %v1216 = vpop.f32.mrf.mxu0
      %v1217 = vadd.f32 0.0, %v1216
      %v1218 = vpop.f32.mrf.mxu0
      %1219 = vmatprep.mubr.f32.mxu0 0.0
      %1220 = vmatmul.mubr.f32.gmra.mxu0 %v1020
      %v1221 = vpop.f32.mrf.mxu0
      %v1222 = vadd.f32 0.0, %v1221
      %v1223 = vpop.f32.mrf.mxu0
      %1224 = vmatprep.mubr.f32.mxu0 0.0
      %1225 = vmatmul.mubr.f32.gmra.mxu0 %v1023
      %v1226 = vpop.f32.mrf.mxu0
      %v1227 = vadd.f32 0.0, %v1226
      %v1228 = vpop.f32.mrf.mxu0
      %1229 = vmatprep.mubr.f32.mxu0 0.0
      %1230 = vmatmul.mubr.f32.gmra.mxu0 %v1026
      %v1231 = vpop.f32.mrf.mxu0
      %v1232 = vadd.f32 0.0, %v1231
      %v1233 = vpop.f32.mrf.mxu0
      %1234 = vmatprep.mubr.f32.mxu0 0.0
      %1235 = vmatmul.mubr.f32.gmra.mxu0 %v1029
      %v1236 = vpop.f32.mrf.mxu0
      %v1237 = vadd.f32 0.0, %v1236
      %v1238 = vpop.f32.mrf.mxu0
      %1239 = vmatprep.mubr.f32.mxu0 0.0
      %1240 = vmatmul.mubr.f32.gmra.mxu0 %v1032
      %v1241 = vpop.f32.mrf.mxu0
      %v1242 = vadd.f32 0.0, %v1241
      %v1243 = vpop.f32.mrf.mxu0
      %1244 = vmatprep.mubr.f32.mxu0 0.0
      %1245 = vmatmul.mubr.f32.gmra.mxu0 %v1035
      %v1246 = vpop.f32.mrf.mxu0
      %v1247 = vadd.f32 0.0, %v1246
      %v1248 = vpop.f32.mrf.mxu0
      %1249 = vmatprep.mubr.f32.mxu0 0.0
      %1250 = vmatmul.mubr.f32.gmra.mxu0 %v1038
      %v1251 = vpop.f32.mrf.mxu0
      %v1252 = vadd.f32 0.0, %v1251
      %v1253 = vpop.f32.mrf.mxu0
      %1254 = vdwg.mxu0
      %v1255 = vmax.f32 %v889, %v1107
      %v1256 = vmax.f32 %v890, %v1112
      %v1257 = vmax.f32 %v891, %v1117
      %v1258 = vmax.f32 %v892, %v1122
      %v1259 = vmax.f32 %v893, %v1127
      %v1260 = vmax.f32 %v894, %v1132
      %v1261 = vmax.f32 %v895, %v1137
      %v1262 = vmax.f32 %v896, %v1142
      %v1263 = vmax.f32 %v897, %v1147
      %v1264 = vmax.f32 %v898, %v1152
      %v1265 = vmax.f32 %v899, %v1157
      %v1266 = vmax.f32 %v900, %v1162
      %v1267 = vmax.f32 %v901, %v1167
      %v1268 = vmax.f32 %v902, %v1172
      %v1269 = vmax.f32 %v903, %v1177
      %v1270 = vmax.f32 %v904, %v1182
      %v1271 = vmax.f32 %v905, %v1187
      %v1272 = vmax.f32 %v906, %v1192
      %v1273 = vmax.f32 %v907, %v1197
      %v1274 = vmax.f32 %v908, %v1202
      %v1275 = vmax.f32 %v909, %v1207
      %v1276 = vmax.f32 %v910, %v1212
      %v1277 = vmax.f32 %v911, %v1217
      %v1278 = vmax.f32 %v912, %v1222
      %v1279 = vmax.f32 %v913, %v1227
      %v1280 = vmax.f32 %v914, %v1232
      %v1281 = vmax.f32 %v915, %v1237
      %v1282 = vmax.f32 %v916, %v1242
      %v1283 = vmax.f32 %v917, %v1247
      %v1284 = vmax.f32 %v918, %v1252
      %s1285 = scalar_lea.vmem %s198, 720
      %v1286 = vld [vmem:[%s1285] sm:$0xff]
      %v1287 = vld [vmem:[%s1285 + $0x8] sm:$0xff]
      %v1288 = vld [vmem:[%s1285 + $0x10] sm:$0xff]
      %v1289 = vld [vmem:[%s1285 + $0x18] sm:$0xff]
      %v1290 = vld [vmem:[%s1285 + $0x20] sm:$0xff]
      %v1291 = vld [vmem:[%s1285 + $0x28] sm:$0xff]
      %v1292 = vld [vmem:[%s1285 + $0x30] sm:$0xff]
      %v1293 = vld [vmem:[%s1285 + $0x38] sm:$0xff]
      %v1294 = vld [vmem:[%s1285 + $0x40] sm:$0xff]
      %v1295 = vld [vmem:[%s1285 + $0x48] sm:$0xff]
      %v1296 = vld [vmem:[%s1285 + $0x50] sm:$0xff]
      %v1297 = vld [vmem:[%s1285 + $0x58] sm:$0xff]
      %v1298 = vld [vmem:[%s1285 + $0x60] sm:$0xff]
      %v1299 = vld [vmem:[%s1285 + $0x68] sm:$0xff]
      %v1300 = vld [vmem:[%s1285 + $0x70] sm:$0xff]
      %v1301 = vld [vmem:[%s1285 + $0x78] sm:$0xff]
      %v1302 = vld [vmem:[%s1285 + $0x80] sm:$0xff]
      %v1303 = vld [vmem:[%s1285 + $0x88] sm:$0xff]
      %v1304 = vld [vmem:[%s1285 + $0x90] sm:$0xff]
      %v1305 = vld [vmem:[%s1285 + $0x98] sm:$0xff]
      %v1306 = vld [vmem:[%s1285 + $0xa0] sm:$0xff]
      %v1307 = vld [vmem:[%s1285 + $0xa8] sm:$0xff]
      %v1308 = vld [vmem:[%s1285 + $0xb0] sm:$0xff]
      %v1309 = vld [vmem:[%s1285 + $0xb8] sm:$0xff]
      %v1310 = vld [vmem:[%s1285 + $0xc0] sm:$0xff]
      %v1311 = vld [vmem:[%s1285 + $0xc8] sm:$0xff]
      %v1312 = vld [vmem:[%s1285 + $0xd0] sm:$0xff]
      %v1313 = vld [vmem:[%s1285 + $0xd8] sm:$0xff]
      %v1314 = vld [vmem:[%s1285 + $0xe0] sm:$0xff]
      %v1315 = vld [vmem:[%s1285 + $0xe8] sm:$0xff]
      %v1317 = vsel %vm243, %v1286, 0
      %v1320 = vsel %vm243, %v1287, 0
      %v1323 = vsel %vm243, %v1288, 0
      %v1326 = vsel %vm243, %v1289, 0
      %v1329 = vsel %vm243, %v1290, 0
      %v1332 = vsel %vm243, %v1291, 0
      %v1335 = vsel %vm243, %v1292, 0
      %v1338 = vsel %vm243, %v1293, 0
      %v1341 = vsel %vm243, %v1294, 0
      %v1344 = vsel %vm243, %v1295, 0
      %v1347 = vsel %vm243, %v1296, 0
      %v1350 = vsel %vm243, %v1297, 0
      %v1353 = vsel %vm243, %v1298, 0
      %v1356 = vsel %vm243, %v1299, 0
      %v1359 = vsel %vm243, %v1300, 0
      %v1362 = vsel %vm243, %v1301, 0
      %v1365 = vsel %vm243, %v1302, 0
      %v1368 = vsel %vm243, %v1303, 0
      %v1371 = vsel %vm243, %v1304, 0
      %v1374 = vsel %vm243, %v1305, 0
      %v1377 = vsel %vm243, %v1306, 0
      %v1380 = vsel %vm243, %v1307, 0
      %v1383 = vsel %vm243, %v1308, 0
      %v1386 = vsel %vm243, %v1309, 0
      %v1389 = vsel %vm243, %v1310, 0
      %v1392 = vsel %vm243, %v1311, 0
      %v1395 = vsel %vm243, %v1312, 0
      %v1398 = vsel %vm243, %v1313, 0
      %v1401 = vsel %vm243, %v1314, 0
      %v1404 = vsel %vm243, %v1315, 0
      %1406 = vmatprep.subr.mxu0 0.0
      %1407 = vmatpush1.msra.mxu0 0.0
      %1408 = vmatprep.subr.mxu0 0.0
      %1409 = vmatpush1.msra.mxu0 0.0
      %1410 = vmatprep.subr.mxu0 0.0
      %1411 = vmatpush1.msra.mxu0 0.0
      %1412 = vmatprep.subr.mxu0 0.0
      %1413 = vmatpush1.msra.mxu0 0.0
      %1414 = vmatprep.subr.mxu0 0.0
      %1415 = vmatpush1.msra.mxu0 0.0
      %1416 = vmatprep.subr.mxu0 0.0
      %1417 = vmatpush1.msra.mxu0 0.0
      %1418 = vmatprep.subr.mxu0 0.0
      %1419 = vmatpush1.msra.mxu0 0.0
      %1420 = vmatprep.subr.mxu0 0.0
      %1421 = vmatpush1.msra.mxu0 0.0
      %1422 = vmatprep.subr.mxu0 0.0
      %1423 = vmatpush1.msra.mxu0 0.0
      %1424 = vmatprep.subr.mxu0 0.0
      %1425 = vmatpush1.msra.mxu0 0.0
      %1426 = vmatprep.subr.mxu0 0.0
      %1427 = vmatpush1.msra.mxu0 0.0
      %1428 = vmatprep.subr.mxu0 0.0
      %1429 = vmatpush1.msra.mxu0 0.0
      %1430 = vmatprep.subr.mxu0 0.0
      %1431 = vmatpush1.msra.mxu0 0.0
      %1432 = vmatprep.subr.mxu0 0.0
      %1433 = vmatpush1.msra.mxu0 %v336
      %1434 = vmatprep.subr.mxu0 0.0
      %1435 = vmatpush1.msra.mxu0 %v211
      %1436 = vmatprep.subr.mxu0 0.0
      %1437 = vmatpush1.msra.mxu0 %v210
      %1438 = vmatprep.subr.mxu0 0.0
      %1439 = vmatpush2.msra.mxu0 0.0
      %1440 = vmatprep.subr.mxu0 0.0
      %1441 = vmatpush2.msra.mxu0 0.0
      %1442 = vmatprep.subr.mxu0 0.0
      %1443 = vmatpush2.msra.mxu0 0.0
      %1444 = vmatprep.subr.mxu0 0.0
      %1445 = vmatpush2.msra.mxu0 0.0
      %1446 = vmatprep.subr.mxu0 0.0
      %1447 = vmatpush2.msra.mxu0 0.0
      %1448 = vmatprep.subr.mxu0 0.0
      %1449 = vmatpush2.msra.mxu0 0.0
      %1450 = vmatprep.subr.mxu0 0.0
      %1451 = vmatpush2.msra.mxu0 0.0
      %1452 = vmatprep.subr.mxu0 0.0
      %1453 = vmatpush2.msra.mxu0 0.0
      %1454 = vmatprep.subr.mxu0 0.0
      %1455 = vmatpush2.msra.mxu0 0.0
      %1456 = vmatprep.subr.mxu0 0.0
      %1457 = vmatpush2.msra.mxu0 0.0
      %1458 = vmatprep.subr.mxu0 0.0
      %1459 = vmatpush2.msra.mxu0 0.0
      %1460 = vmatprep.subr.mxu0 0.0
      %1461 = vmatpush2.msra.mxu0 0.0
      %1462 = vmatprep.subr.mxu0 0.0
      %1463 = vmatpush2.msra.mxu0 0.0
      %1464 = vmatprep.subr.mxu0 0.0
      %1465 = vmatpush2.msra.mxu0 0.0
      %1466 = vmatprep.subr.mxu0 0.0
      %1467 = vmatpush2.msra.mxu0 0.0
      %1468 = vmatprep.subr.mxu0 0.0
      %1469 = vmatpush2.msra.mxu0 0.0
      %1470 = vmatprep.mubr.f32.mxu0 0.0
      %1471 = vmatmul.mubr.f32.gmra.mxu0 %v1317
      %v1472 = vpop.f32.mrf.mxu0
      %v1473 = vadd.f32 0.0, %v1472
      %v1474 = vpop.f32.mrf.mxu0
      %1475 = vmatprep.mubr.f32.mxu0 0.0
      %1476 = vmatmul.mubr.f32.gmra.mxu0 %v1320
      %v1477 = vpop.f32.mrf.mxu0
      %v1478 = vadd.f32 0.0, %v1477
      %v1479 = vpop.f32.mrf.mxu0
      %1480 = vmatprep.mubr.f32.mxu0 0.0
      %1481 = vmatmul.mubr.f32.gmra.mxu0 %v1323
      %v1482 = vpop.f32.mrf.mxu0
      %v1483 = vadd.f32 0.0, %v1482
      %v1484 = vpop.f32.mrf.mxu0
      %1485 = vmatprep.mubr.f32.mxu0 0.0
      %1486 = vmatmul.mubr.f32.gmra.mxu0 %v1326
      %v1487 = vpop.f32.mrf.mxu0
      %v1488 = vadd.f32 0.0, %v1487
      %v1489 = vpop.f32.mrf.mxu0
      %1490 = vmatprep.mubr.f32.mxu0 0.0
      %1491 = vmatmul.mubr.f32.gmra.mxu0 %v1329
      %v1492 = vpop.f32.mrf.mxu0
      %v1493 = vadd.f32 0.0, %v1492
      %v1494 = vpop.f32.mrf.mxu0
      %1495 = vmatprep.mubr.f32.mxu0 0.0
      %1496 = vmatmul.mubr.f32.gmra.mxu0 %v1332
      %v1497 = vpop.f32.mrf.mxu0
      %v1498 = vadd.f32 0.0, %v1497
      %v1499 = vpop.f32.mrf.mxu0
      %1500 = vmatprep.mubr.f32.mxu0 0.0
      %1501 = vmatmul.mubr.f32.gmra.mxu0 %v1335
      %v1502 = vpop.f32.mrf.mxu0
      %v1503 = vadd.f32 0.0, %v1502
      %v1504 = vpop.f32.mrf.mxu0
      %1505 = vmatprep.mubr.f32.mxu0 0.0
      %1506 = vmatmul.mubr.f32.gmra.mxu0 %v1338
      %v1507 = vpop.f32.mrf.mxu0
      %v1508 = vadd.f32 0.0, %v1507
      %v1509 = vpop.f32.mrf.mxu0
      %1510 = vmatprep.mubr.f32.mxu0 0.0
      %1511 = vmatmul.mubr.f32.gmra.mxu0 %v1341
      %v1512 = vpop.f32.mrf.mxu0
      %v1513 = vadd.f32 0.0, %v1512
      %v1514 = vpop.f32.mrf.mxu0
      %1515 = vmatprep.mubr.f32.mxu0 0.0
      %1516 = vmatmul.mubr.f32.gmra.mxu0 %v1344
      %v1517 = vpop.f32.mrf.mxu0
      %v1518 = vadd.f32 0.0, %v1517
      %v1519 = vpop.f32.mrf.mxu0
      %1520 = vmatprep.mubr.f32.mxu0 0.0
      %1521 = vmatmul.mubr.f32.gmra.mxu0 %v1347
      %v1522 = vpop.f32.mrf.mxu0
      %v1523 = vadd.f32 0.0, %v1522
      %v1524 = vpop.f32.mrf.mxu0
      %1525 = vmatprep.mubr.f32.mxu0 0.0
      %1526 = vmatmul.mubr.f32.gmra.mxu0 %v1350
      %v1527 = vpop.f32.mrf.mxu0
      %v1528 = vadd.f32 0.0, %v1527
      %v1529 = vpop.f32.mrf.mxu0
      %1530 = vmatprep.mubr.f32.mxu0 0.0
      %1531 = vmatmul.mubr.f32.gmra.mxu0 %v1353
      %v1532 = vpop.f32.mrf.mxu0
      %v1533 = vadd.f32 0.0, %v1532
      %v1534 = vpop.f32.mrf.mxu0
      %1535 = vmatprep.mubr.f32.mxu0 0.0
      %1536 = vmatmul.mubr.f32.gmra.mxu0 %v1356
      %v1537 = vpop.f32.mrf.mxu0
      %v1538 = vadd.f32 0.0, %v1537
      %v1539 = vpop.f32.mrf.mxu0
      %1540 = vmatprep.mubr.f32.mxu0 0.0
      %1541 = vmatmul.mubr.f32.gmra.mxu0 %v1359
      %v1542 = vpop.f32.mrf.mxu0
      %v1543 = vadd.f32 0.0, %v1542
      %v1544 = vpop.f32.mrf.mxu0
      %1545 = vmatprep.mubr.f32.mxu0 0.0
      %1546 = vmatmul.mubr.f32.gmra.mxu0 %v1362
      %v1547 = vpop.f32.mrf.mxu0
      %v1548 = vadd.f32 0.0, %v1547
      %v1549 = vpop.f32.mrf.mxu0
      %1550 = vmatprep.mubr.f32.mxu0 0.0
      %1551 = vmatmul.mubr.f32.gmra.mxu0 %v1365
      %v1552 = vpop.f32.mrf.mxu0
      %v1553 = vadd.f32 0.0, %v1552
      %v1554 = vpop.f32.mrf.mxu0
      %1555 = vmatprep.mubr.f32.mxu0 0.0
      %1556 = vmatmul.mubr.f32.gmra.mxu0 %v1368
      %v1557 = vpop.f32.mrf.mxu0
      %v1558 = vadd.f32 0.0, %v1557
      %v1559 = vpop.f32.mrf.mxu0
      %1560 = vmatprep.mubr.f32.mxu0 0.0
      %1561 = vmatmul.mubr.f32.gmra.mxu0 %v1371
      %v1562 = vpop.f32.mrf.mxu0
      %v1563 = vadd.f32 0.0, %v1562
      %v1564 = vpop.f32.mrf.mxu0
      %1565 = vmatprep.mubr.f32.mxu0 0.0
      %1566 = vmatmul.mubr.f32.gmra.mxu0 %v1374
      %v1567 = vpop.f32.mrf.mxu0
      %v1568 = vadd.f32 0.0, %v1567
      %v1569 = vpop.f32.mrf.mxu0
      %1570 = vmatprep.mubr.f32.mxu0 0.0
      %1571 = vmatmul.mubr.f32.gmra.mxu0 %v1377
      %v1572 = vpop.f32.mrf.mxu0
      %v1573 = vadd.f32 0.0, %v1572
      %v1574 = vpop.f32.mrf.mxu0
      %1575 = vmatprep.mubr.f32.mxu0 0.0
      %1576 = vmatmul.mubr.f32.gmra.mxu0 %v1380
      %v1577 = vpop.f32.mrf.mxu0
      %v1578 = vadd.f32 0.0, %v1577
      %v1579 = vpop.f32.mrf.mxu0
      %1580 = vmatprep.mubr.f32.mxu0 0.0
      %1581 = vmatmul.mubr.f32.gmra.mxu0 %v1383
      %v1582 = vpop.f32.mrf.mxu0
      %v1583 = vadd.f32 0.0, %v1582
      %v1584 = vpop.f32.mrf.mxu0
      %1585 = vmatprep.mubr.f32.mxu0 0.0
      %1586 = vmatmul.mubr.f32.gmra.mxu0 %v1386
      %v1587 = vpop.f32.mrf.mxu0
      %v1588 = vadd.f32 0.0, %v1587
      %v1589 = vpop.f32.mrf.mxu0
      %1590 = vmatprep.mubr.f32.mxu0 0.0
      %1591 = vmatmul.mubr.f32.gmra.mxu0 %v1389
      %v1592 = vpop.f32.mrf.mxu0
      %v1593 = vadd.f32 0.0, %v1592
      %v1594 = vpop.f32.mrf.mxu0
      %1595 = vmatprep.mubr.f32.mxu0 0.0
      %1596 = vmatmul.mubr.f32.gmra.mxu0 %v1392
      %v1597 = vpop.f32.mrf.mxu0
      %v1598 = vadd.f32 0.0, %v1597
      %v1599 = vpop.f32.mrf.mxu0
      %1600 = vmatprep.mubr.f32.mxu0 0.0
      %1601 = vmatmul.mubr.f32.gmra.mxu0 %v1395
      %v1602 = vpop.f32.mrf.mxu0
      %v1603 = vadd.f32 0.0, %v1602
      %v1604 = vpop.f32.mrf.mxu0
      %1605 = vmatprep.mubr.f32.mxu0 0.0
      %1606 = vmatmul.mubr.f32.gmra.mxu0 %v1398
      %v1607 = vpop.f32.mrf.mxu0
      %v1608 = vadd.f32 0.0, %v1607
      %v1609 = vpop.f32.mrf.mxu0
      %1610 = vmatprep.mubr.f32.mxu0 0.0
      %1611 = vmatmul.mubr.f32.gmra.mxu0 %v1401
      %v1612 = vpop.f32.mrf.mxu0
      %v1613 = vadd.f32 0.0, %v1612
      %v1614 = vpop.f32.mrf.mxu0
      %1615 = vmatprep.mubr.f32.mxu0 0.0
      %1616 = vmatmul.mubr.f32.gmra.mxu0 %v1404
      %v1617 = vpop.f32.mrf.mxu0
      %v1618 = vadd.f32 0.0, %v1617
      %v1619 = vpop.f32.mrf.mxu0
      %1620 = vdwg.mxu0
      %v1621 = vmax.f32 %v1255, %v1473
      %v1622 = vmax.f32 %v1256, %v1478
      %v1623 = vmax.f32 %v1257, %v1483
      %v1624 = vmax.f32 %v1258, %v1488
      %v1625 = vmax.f32 %v1259, %v1493
      %v1626 = vmax.f32 %v1260, %v1498
      %v1627 = vmax.f32 %v1261, %v1503
      %v1628 = vmax.f32 %v1262, %v1508
      %v1629 = vmax.f32 %v1263, %v1513
      %v1630 = vmax.f32 %v1264, %v1518
      %v1631 = vmax.f32 %v1265, %v1523
      %v1632 = vmax.f32 %v1266, %v1528
      %v1633 = vmax.f32 %v1267, %v1533
      %v1634 = vmax.f32 %v1268, %v1538
      %v1635 = vmax.f32 %v1269, %v1543
      %v1636 = vmax.f32 %v1270, %v1548
      %v1637 = vmax.f32 %v1271, %v1553
      %v1638 = vmax.f32 %v1272, %v1558
      %v1639 = vmax.f32 %v1273, %v1563
      %v1640 = vmax.f32 %v1274, %v1568
      %v1641 = vmax.f32 %v1275, %v1573
      %v1642 = vmax.f32 %v1276, %v1578
      %v1643 = vmax.f32 %v1277, %v1583
      %v1644 = vmax.f32 %v1278, %v1588
      %v1645 = vmax.f32 %v1279, %v1593
      %v1646 = vmax.f32 %v1280, %v1598
      %v1647 = vmax.f32 %v1281, %v1603
      %v1648 = vmax.f32 %v1282, %v1608
      %v1649 = vmax.f32 %v1283, %v1613
      %v1650 = vmax.f32 %v1284, %v1618
      %v1651 = vld [vmem:[%s2] sm:$0x1]
      %v1653 = vlaneseq
      %v1654 = vshrl.u32 %v1653, 7
      %v1655 = vsub.s32 0, %v1654
      %v1656 = vrot.slane %v1651, %v1655
      %v1658 = vadd.f32 %v1621, %v1656
      %v1659 = vadd.f32 %v1622, %v1656
      %v1660 = vadd.f32 %v1623, %v1656
      %v1661 = vadd.f32 %v1624, %v1656
      %v1662 = vadd.f32 %v1625, %v1656
      %v1663 = vadd.f32 %v1626, %v1656
      %v1664 = vadd.f32 %v1627, %v1656
      %v1665 = vadd.f32 %v1628, %v1656
      %v1666 = vadd.f32 %v1629, %v1656
      %v1667 = vadd.f32 %v1630, %v1656
      %v1668 = vadd.f32 %v1631, %v1656
      %v1669 = vadd.f32 %v1632, %v1656
      %v1670 = vadd.f32 %v1633, %v1656
      %v1671 = vadd.f32 %v1634, %v1656
      %v1672 = vadd.f32 %v1635, %v1656
      %v1673 = vadd.f32 %v1636, %v1656
      %v1674 = vadd.f32 %v1637, %v1656
      %v1675 = vadd.f32 %v1638, %v1656
      %v1676 = vadd.f32 %v1639, %v1656
      %v1677 = vadd.f32 %v1640, %v1656
      %v1678 = vadd.f32 %v1641, %v1656
      %v1679 = vadd.f32 %v1642, %v1656
      %v1680 = vadd.f32 %v1643, %v1656
      %v1681 = vadd.f32 %v1644, %v1656
      %v1682 = vadd.f32 %v1645, %v1656
      %v1683 = vadd.f32 %v1646, %v1656
      %v1684 = vadd.f32 %v1647, %v1656
      %v1685 = vadd.f32 %v1648, %v1656
      %v1686 = vadd.f32 %v1649, %v1656
      %v1687 = vadd.f32 %v1650, %v1656
      %v1688 = vmax.f32 %v1658, 0.0
      %v1689 = vmax.f32 %v1659, 0.0
      %v1690 = vmax.f32 %v1660, 0.0
      %v1691 = vmax.f32 %v1661, 0.0
      %v1692 = vmax.f32 %v1662, 0.0
      %v1693 = vmax.f32 %v1663, 0.0
      %v1694 = vmax.f32 %v1664, 0.0
      %v1695 = vmax.f32 %v1665, 0.0
      %v1696 = vmax.f32 %v1666, 0.0
      %v1697 = vmax.f32 %v1667, 0.0
      %v1698 = vmax.f32 %v1668, 0.0
      %v1699 = vmax.f32 %v1669, 0.0
      %v1700 = vmax.f32 %v1670, 0.0
      %v1701 = vmax.f32 %v1671, 0.0
      %v1702 = vmax.f32 %v1672, 0.0
      %v1703 = vmax.f32 %v1673, 0.0
      %v1704 = vmax.f32 %v1674, 0.0
      %v1705 = vmax.f32 %v1675, 0.0
      %v1706 = vmax.f32 %v1676, 0.0
      %v1707 = vmax.f32 %v1677, 0.0
      %v1708 = vmax.f32 %v1678, 0.0
      %v1709 = vmax.f32 %v1679, 0.0
      %v1710 = vmax.f32 %v1680, 0.0
      %v1711 = vmax.f32 %v1681, 0.0
      %v1712 = vmax.f32 %v1682, 0.0
      %v1713 = vmax.f32 %v1683, 0.0
      %v1714 = vmax.f32 %v1684, 0.0
      %v1715 = vmax.f32 %v1685, 0.0
      %v1716 = vmax.f32 %v1686, 0.0
      %v1717 = vmax.f32 %v1687, 0.0
      %1718 = vst [vmem:[%s208] sm:$0xff] %v1688
      %1719 = vst [vmem:[%s208 + $0x8] sm:$0xff] %v1689
      %1720 = vst [vmem:[%s208 + $0x10] sm:$0xff] %v1690
      %1721 = vst [vmem:[%s208 + $0x18] sm:$0xff] %v1691
      %1722 = vst [vmem:[%s208 + $0x20] sm:$0xff] %v1692
      %1723 = vst [vmem:[%s208 + $0x28] sm:$0xff] %v1693
      %1724 = vst [vmem:[%s208 + $0x30] sm:$0xff] %v1694
      %1725 = vst [vmem:[%s208 + $0x38] sm:$0xff] %v1695
      %1726 = vst [vmem:[%s208 + $0x40] sm:$0xff] %v1696
      %1727 = vst [vmem:[%s208 + $0x48] sm:$0xff] %v1697
      %1728 = vst [vmem:[%s208 + $0x50] sm:$0xff] %v1698
      %1729 = vst [vmem:[%s208 + $0x58] sm:$0xff] %v1699
      %1730 = vst [vmem:[%s208 + $0x60] sm:$0xff] %v1700
      %1731 = vst [vmem:[%s208 + $0x68] sm:$0xff] %v1701
      %1732 = vst [vmem:[%s208 + $0x70] sm:$0xff] %v1702
      %1733 = vst [vmem:[%s208 + $0x78] sm:$0xff] %v1703
      %1734 = vst [vmem:[%s208 + $0x80] sm:$0xff] %v1704
      %1735 = vst [vmem:[%s208 + $0x88] sm:$0xff] %v1705
      %1736 = vst [vmem:[%s208 + $0x90] sm:$0xff] %v1706
      %1737 = vst [vmem:[%s208 + $0x98] sm:$0xff] %v1707
      %1738 = vst [vmem:[%s208 + $0xa0] sm:$0xff] %v1708
      %1739 = vst [vmem:[%s208 + $0xa8] sm:$0xff] %v1709
      %1740 = vst [vmem:[%s208 + $0xb0] sm:$0xff] %v1710
      %1741 = vst [vmem:[%s208 + $0xb8] sm:$0xff] %v1711
      %1742 = vst [vmem:[%s208 + $0xc0] sm:$0xff] %v1712
      %1743 = vst [vmem:[%s208 + $0xc8] sm:$0xff] %v1713
      %1744 = vst [vmem:[%s208 + $0xd0] sm:$0xff] %v1714
      %1745 = vst [vmem:[%s208 + $0xd8] sm:$0xff] %v1715
      %1746 = vst [vmem:[%s208 + $0xe0] sm:$0xff] %v1716
      %1747 = vst [vmem:[%s208 + $0xe8] sm:$0xff] %v1717
      %s1748 = smul.u32 30, %s19
      %p1749 = scmp.lt.s32.totalorder %s18, 1
      %s1750 = scalar_select %p1749, %s18, 1
      %p1751 = scmp.lt.s32.totalorder %s1748, 29
      %s1752 = scalar_select %p1751, %s1748, 29
      %s1753 = smul.addr %s1750, 30
      %s1754 = sadd.s32 %s1752, %s1753
      %s1755 = smul.addr %s1754, 8
      %s1756 = scalar_lea.vmem %s3, %s1755
      // Predicated region
      $region33: #{captcha_forward.3} parent=31 // pred_check
        %p1757 = pneg %p116
      $region34: #{captcha_forward.3} parent=31 // pred_check_branch
        %1759 = sbr.rel (%p1757) target = $region36
      $region35: #{captcha_forward.3} parent=31 // pred_region
        %s1760 = smul.u32 30, %s19
      $region36: #{captcha_forward.3} parent=31 // pred_fallthru
        _
    $region32: #{captcha_forward.3} parent=5 // pred_fallthru
      _
    %p1761 = scmp.le.s32.totalorder 2, %s9
    // Predicated region
    $region37: #{captcha_forward.3} parent=5 // pred_check
      %p1762 = pneg %p1761
    $region38: #{captcha_forward.3} parent=5 // pred_check_branch
      %1764 = sbr.rel (%p1762) target = $region40
    $region39: #{captcha_forward.3} parent=5 // pred_region
      %s1765 = ssub.s32 %s9, 2
      // Predicated region
      $region41: #{captcha_forward.3} parent=39 // pred_check
        %p1766 = pneg %p122
      $region42: #{captcha_forward.3} parent=39 // pred_check_branch
        %1768 = sbr.rel (%p1766) target = $region44
      $region43: #{captcha_forward.3} parent=39 // pred_region
        %s1769 = smul.u32 30, %s21
        %p1770 = scmp.lt.s32.totalorder %s20, 1
        %s1771 = scalar_select %p1770, %s20, 1
        %p1772 = scmp.lt.s32.totalorder %s1769, 29
        %s1773 = scalar_select %p1772, %s1769, 29
        %s1774 = smul.addr %s1771, 30
        %s1775 = sadd.s32 %s1773, %s1774
        %s1776 = smul.addr %s1775, 8
        %s1777 = scalar_lea.vmem %s3, %s1776
      $region44: #{captcha_forward.3} parent=39 // pred_fallthru
        _
    $region40: #{captcha_forward.3} parent=5 // pred_fallthru
      _
  $region6: #{captcha_forward.3} parent=0 // loop_footer
    %s13 = sadd.s32 1, %s9
  $region7: #{captcha_forward.3} parent=0 // loop_footer_branch
    %8 = sbr.rel target = $region3
  $region8: #{captcha_forward.3} parent=0 // loop_exit
    _

// kernel: captcha_forward.4
$region0: #{captcha_forward.4}
  #allocation0 [shape = 'u32[]', space=smem, size = 0x4, offset = 0x4, fixed_abs, tag = 'smem constant byte address 0x4 - core index']
  #allocation1 [shape = 'u32[144,128]{1,0:T(1,128)}', space=vmem, size = 0x12000, scoped, tag = 'internal scratch']
  %s0 = inlined_call_operand.vmem [shape: f32[2,4,40,2304], index: 0, kind: input, shape index: {}]
  %s1 = inlined_call_operand.vmem [shape: f32[2304,64], index: 1, kind: input, shape index: {}]
  %s2 = inlined_call_operand.vmem [shape: f32[1,64], index: 2, kind: input, shape index: {}]
  %s3 = inlined_call_operand.vmem [shape: f32[2,40,64], index: 3, kind: output, shape index: {}]
  %s4 = sld [smem:[#allocation0]]
  $region45: #{captcha_forward.4} parent=0
    _
  %s6 = ssub.s32 1, %s4
  %s7 = scalar_select 0, %s6, %s4
  loop: start=0, step=1, limit=4
  $region2: #{captcha_forward.4} parent=0 // loop_pre_header
    _
  $region3: #{captcha_forward.4} parent=0 // loop_header
    %s9 = sphi 0, %s13
    %p10 = scmp.ge.s32.totalorder %s9, 4
    %s16 = sphi 0, %s28
    %s17 = sphi 0, %s24
    %s18 = sphi 0, %s16
    %s19 = sphi 0, %s17
    %s20 = sphi 0, %s18
    %s21 = sphi 0, %s19
    %s33 = sphi 0, %s35
    %s36 = sphi 0, %s33
    %s37 = sphi 0, %s36
    %s53 = sphi 0, %s37
    %s57 = sphi 0, %s57
    %s59 = sphi 0, %s57
    %s60 = sphi 0, %s59
    %s74 = sphi 0, %s60
    %s78 = sphi 0, %s78
    %s80 = sphi 0, %s78
    %s81 = sphi 0, %s80
    %s95 = sphi 0, %s81
    %s103 = sphi 0, %s105
    %s106 = sphi 0, %s103
    %s107 = sphi 0, %s106
    %s123 = sphi 0, %s107
  $region4: #{captcha_forward.4} parent=0 // loop_header_branch
    %12 = sbr.rel (%p10) target = $region8
  $region5: #{captcha_forward.4} parent=0 // loop_body
    %s14 = ssub.s32 %s9, 1
    %s15 = ssub.s32 %s9, 2
    %s22 = sadd.s32 1, %s17
    %p23 = scmp.ge.s32.totalorder %s22, 1
    %s24 = scalar_select %p23, 0, %s22
    %s25 = sadd.s32 1, %s16
    %s26 = scalar_select %p23, %s25, %s16
    %p27 = scmp.ge.s32.totalorder %s26, 2
    %s28 = scalar_select %p27, 0, %s26
    %s29 = ssub.s32 %s16, %s28
    %s30 = ssub.s32 %s17, %s24
    %s31 = sor.u32 %s29, %s30
    %p32 = scmp.eq.s32.totalorder %s31, 0
    %s34 = sadd.s32 %s33, 1
    %s35 = scalar_select %p32, %s33, %s34
    %p38 = pneg %p32
    %p39 = scmp.eq.s32.totalorder %s9, 1
    %p40 = por %p38, %p39
    %p41 = scmp.ne.s32.totalorder %s33, %s36
    %p42 = scmp.eq.s32.totalorder %s9, 0
    %p43 = por %p41, %p42
    %p44 = scmp.ne.s32.totalorder %s33, %s36
    %p45 = scmp.eq.s32.totalorder %s14, 1
    %p46 = por %p44, %p45
    %p47 = scmp.ne.s32.totalorder %s36, %s37
    %p48 = scmp.eq.s32.totalorder %s14, 0
    %p49 = por %p47, %p48
    %p50 = scmp.ne.s32.totalorder %s36, %s37
    %p51 = scmp.eq.s32.totalorder %s15, 1
    %p52 = por %p50, %p51
    %p54 = scmp.ne.s32.totalorder %s37, %s53
    %p55 = scmp.eq.s32.totalorder %s15, 0
    %p56 = por %p54, %p55
    %s58 = sadd.s32 %s57, 1
    %p61 = scmp.eq.s32.totalorder %s9, 1
    %p62 = scmp.ne.s32.totalorder %s57, %s59
    %p63 = scmp.eq.s32.totalorder %s9, 0
    %p64 = por %p62, %p63
    %p65 = scmp.ne.s32.totalorder %s57, %s59
    %p66 = scmp.eq.s32.totalorder %s14, 1
    %p67 = por %p65, %p66
    %p68 = scmp.ne.s32.totalorder %s59, %s60
    %p69 = scmp.eq.s32.totalorder %s14, 0
    %p70 = por %p68, %p69
    %p71 = scmp.ne.s32.totalorder %s59, %s60
    %p72 = scmp.eq.s32.totalorder %s15, 1
    %p73 = por %p71, %p72
    %p75 = scmp.ne.s32.totalorder %s60, %s74
    %p76 = scmp.eq.s32.totalorder %s15, 0
    %p77 = por %p75, %p76
    %s79 = sadd.s32 %s78, 1
    %p82 = scmp.eq.s32.totalorder %s9, 1
    %p83 = scmp.ne.s32.totalorder %s78, %s80
    %p84 = scmp.eq.s32.totalorder %s9, 0
    %p85 = por %p83, %p84
    %p86 = scmp.ne.s32.totalorder %s78, %s80
    %p87 = scmp.eq.s32.totalorder %s14, 1
    %p88 = por %p86, %p87
    %p89 = scmp.ne.s32.totalorder %s80, %s81
    %p90 = scmp.eq.s32.totalorder %s14, 0
    %p91 = por %p89, %p90
    %p92 = scmp.ne.s32.totalorder %s80, %s81
    %p93 = scmp.eq.s32.totalorder %s15, 1
    %p94 = por %p92, %p93
    %p96 = scmp.ne.s32.totalorder %s81, %s95
    %p97 = scmp.eq.s32.totalorder %s15, 0
    %p98 = por %p96, %p97
    %s99 = ssub.s32 %s16, %s28
    %s100 = ssub.s32 %s17, %s24
    %s101 = sor.u32 %s99, %s100
    %p102 = scmp.eq.s32.totalorder %s101, 0
    %s104 = sadd.s32 %s103, 1
    %s105 = scalar_select %p102, %s103, %s104
    %p108 = pneg %p102
    %p109 = scmp.eq.s32.totalorder %s9, 1
    %p110 = por %p108, %p109
    %p111 = scmp.ne.s32.totalorder %s103, %s106
    %p112 = scmp.eq.s32.totalorder %s9, 0
    %p113 = por %p111, %p112
    %p114 = scmp.ne.s32.totalorder %s103, %s106
    %p115 = scmp.eq.s32.totalorder %s14, 1
    %p116 = por %p114, %p115
    %p117 = scmp.ne.s32.totalorder %s106, %s107
    %p118 = scmp.eq.s32.totalorder %s14, 0
    %p119 = por %p117, %p118
    %p120 = scmp.ne.s32.totalorder %s106, %s107
    %p121 = scmp.eq.s32.totalorder %s15, 1
    %p122 = por %p120, %p121
    %p124 = scmp.ne.s32.totalorder %s107, %s123
    %p125 = scmp.eq.s32.totalorder %s15, 0
    %p126 = por %p124, %p125
    %p127 = scmp.le.s32.totalorder 1, %s9
    %p128 = scmp.lt.s32.totalorder %s9, 3
    %p129 = pnand %p127, %p128
    %p130 = pneg %p129
    // Predicated region
    $region9: #{captcha_forward.4} parent=5 // pred_check
      _
    $region10: #{captcha_forward.4} parent=5 // pred_check_branch
      %132 = sbr.rel (%p129) target = $region12
    $region11: #{captcha_forward.4} parent=5 // pred_region
      %s133 = ssub.s32 %s9, 1
      // Predicated region
      $region13: #{captcha_forward.4} parent=11 // pred_check
        %p134 = pneg %p70
      $region14: #{captcha_forward.4} parent=11 // pred_check_branch
        %136 = sbr.rel (%p134) target = $region16
      $region15: #{captcha_forward.4} parent=11 // pred_region
        _
      $region16: #{captcha_forward.4} parent=11 // pred_fallthru
        _
      // Predicated region
      $region17: #{captcha_forward.4} parent=11 // pred_check
        %p137 = pneg %p91
      $region18: #{captcha_forward.4} parent=11 // pred_check_branch
        %139 = sbr.rel (%p137) target = $region20
      $region19: #{captcha_forward.4} parent=11 // pred_region
        _
      $region20: #{captcha_forward.4} parent=11 // pred_fallthru
        _
    $region12: #{captcha_forward.4} parent=5 // pred_fallthru
      _
    %p140 = scmp.lt.s32.totalorder %s9, 2
    // Predicated region
    $region21: #{captcha_forward.4} parent=5 // pred_check
      %p141 = pneg %p140
    $region22: #{captcha_forward.4} parent=5 // pred_check_branch
      %143 = sbr.rel (%p141) target = $region24
    $region23: #{captcha_forward.4} parent=5 // pred_region
      // Predicated region
      $region25: #{captcha_forward.4} parent=23 // pred_check
        %p144 = pneg %p43
      $region26: #{captcha_forward.4} parent=23 // pred_check_branch
        %146 = sbr.rel (%p144) target = $region28
      $region27: #{captcha_forward.4} parent=23 // pred_region
        %s147 = smul.u32 5, %s17
        %p148 = scmp.lt.s32.totalorder %s16, 1
        %s149 = scalar_select %p148, %s16, 1
        %p150 = scmp.lt.s32.totalorder %s147, 4
        %s151 = scalar_select %p150, %s147, 4
        %s152 = smul.addr %s151, 18
        %s153 = smul.addr %s149, 360
        %s154 = sadd.s32 %s152, %s153
        %s155 = smul.addr %s154, 8
        %s156 = scalar_lea.vmem %s0, %s155
        %s157 = smul.u32 5, %s17
      $region28: #{captcha_forward.4} parent=23 // pred_fallthru
        _
    $region24: #{captcha_forward.4} parent=5 // pred_fallthru
      _
    %p158 = scmp.le.s32.totalorder 1, %s9
    %p159 = scmp.lt.s32.totalorder %s9, 3
    %p160 = pnand %p158, %p159
    %p161 = pneg %p160
    // Predicated region
    $region29: #{captcha_forward.4} parent=5 // pred_check
      _
    $region30: #{captcha_forward.4} parent=5 // pred_check_branch
      %163 = sbr.rel (%p160) target = $region32
    $region31: #{captcha_forward.4} parent=5 // pred_region
      %s164 = ssub.s32 %s9, 1
      %s165 = smul.u32 5, %s19
      %p166 = scmp.lt.s32.totalorder %s18, 1
      %s167 = scalar_select %p166, %s18, 1
      %p168 = scmp.lt.s32.totalorder %s165, 4
      %s169 = scalar_select %p168, %s165, 4
      %s170 = smul.addr %s169, 18
      %s171 = smul.addr %s167, 360
      %s172 = sadd.s32 %s170, %s171
      %s173 = smul.addr %s172, 8
      %s174 = scalar_lea.vmem %s0, %s173
      %p175 = pneg %p49
      %p176 = pneg %p46
      %p177 = pneg %p70
      %p178 = pneg %p67
      %p179 = pneg %p91
      %p180 = pneg %p88
      %p181 = pneg %p119
      %p182 = pneg %p116
      %s183 = smul.u32 5, %s19
      %p184 = scmp.lt.s32.totalorder %s18, 1
      %s185 = scalar_select %p184, %s18, 1
      %p186 = scmp.lt.s32.totalorder %s183, 4
      %s187 = scalar_select %p186, %s183, 4
      %s188 = smul.addr %s185, 5
      %s189 = sadd.s32 %s187, %s188
      %s190 = smul.addr %s189, 8
      %s191 = scalar_lea.vmem %s3, %s190
      %s192 = smul.u32 5, %s19
      %p193 = scmp.lt.s32.totalorder %s18, 1
      %s194 = scalar_select %p193, %s18, 1
      %p195 = scmp.lt.s32.totalorder %s192, 4
      %s196 = scalar_select %p195, %s192, 4
      %s197 = smul.addr %s196, 18
      %s198 = smul.addr %s194, 360
      %s199 = sadd.s32 %s197, %s198
      %s200 = smul.addr %s199, 8
      %s201 = scalar_lea.vmem %s0, %s200
      %s202 = smul.u32 5, %s19
      %s203 = smul.u32 5, %s19
      %p204 = scmp.lt.s32.totalorder %s18, 1
      %s205 = scalar_select %p204, %s18, 1
      %p206 = scmp.lt.s32.totalorder %s203, 4
      %s207 = scalar_select %p206, %s203, 4
      %s208 = smul.addr %s205, 5
      %s209 = sadd.s32 %s207, %s208
      %s210 = smul.addr %s209, 8
      %s211 = scalar_lea.vmem %s3, %s210
      %s212 = smul.u32 5, %s19
      %v213 = vld [vmem:[%s1] sm:$0xff]
      %v214 = vld [vmem:[%s1 + $0x8] sm:$0xff]
      %v215 = vld [vmem:[%s1 + $0x10] sm:$0xff]
      %v216 = vld [vmem:[%s1 + $0x18] sm:$0xff]
      %v217 = vld [vmem:[%s1 + $0x20] sm:$0xff]
      %v218 = vld [vmem:[%s1 + $0x28] sm:$0xff]
      %v219 = vld [vmem:[%s1 + $0x30] sm:$0xff]
      %v220 = vld [vmem:[%s1 + $0x38] sm:$0xff]
      %v221 = vld [vmem:[%s1 + $0x40] sm:$0xff]
      %v222 = vld [vmem:[%s1 + $0x48] sm:$0xff]
      %v223 = vld [vmem:[%s1 + $0x50] sm:$0xff]
      %v224 = vld [vmem:[%s1 + $0x58] sm:$0xff]
      %v225 = vld [vmem:[%s1 + $0x60] sm:$0xff]
      %v226 = vld [vmem:[%s1 + $0x68] sm:$0xff]
      %v227 = vld [vmem:[%s1 + $0x70] sm:$0xff]
      %v228 = vld [vmem:[%s1 + $0x78] sm:$0xff]
      %v229 = vld [vmem:[%s1 + $0x80] sm:$0xff]
      %v230 = vld [vmem:[%s1 + $0x88] sm:$0xff]
      %v231 = vld [vmem:[%s1 + $0x90] sm:$0xff]
      %v232 = vld [vmem:[%s1 + $0x98] sm:$0xff]
      %v233 = vld [vmem:[%s1 + $0xa0] sm:$0xff]
      %v234 = vld [vmem:[%s1 + $0xa8] sm:$0xff]
      %v235 = vld [vmem:[%s1 + $0xb0] sm:$0xff]
      %v236 = vld [vmem:[%s1 + $0xb8] sm:$0xff]
      %v237 = vld [vmem:[%s1 + $0xc0] sm:$0xff]
      %v238 = vld [vmem:[%s1 + $0xc8] sm:$0xff]
      %v239 = vld [vmem:[%s1 + $0xd0] sm:$0xff]
      %v240 = vld [vmem:[%s1 + $0xd8] sm:$0xff]
      %v241 = vld [vmem:[%s1 + $0xe0] sm:$0xff]
      %v242 = vld [vmem:[%s1 + $0xe8] sm:$0xff]
      %v243 = vld [vmem:[%s1 + $0xf0] sm:$0xff]
      %v244 = vld [vmem:[%s1 + $0xf8] sm:$0xff]
      %v245 = vld [vmem:[%s1 + $0x100] sm:$0xff]
      %v246 = vld [vmem:[%s1 + $0x108] sm:$0xff]
      %v247 = vld [vmem:[%s1 + $0x110] sm:$0xff]
      %v248 = vld [vmem:[%s1 + $0x118] sm:$0xff]
      %v249 = vld [vmem:[%s1 + $0x120] sm:$0xff]
      %v250 = vld [vmem:[%s1 + $0x128] sm:$0xff]
      %v251 = vld [vmem:[%s1 + $0x130] sm:$0xff]
      %v252 = vld [vmem:[%s1 + $0x138] sm:$0xff]
      %v253 = vld [vmem:[%s1 + $0x140] sm:$0xff]
      %v254 = vld [vmem:[%s1 + $0x148] sm:$0xff]
      %v255 = vld [vmem:[%s1 + $0x150] sm:$0xff]
      %v256 = vld [vmem:[%s1 + $0x158] sm:$0xff]
      %v257 = vld [vmem:[%s1 + $0x160] sm:$0xff]
      %v258 = vld [vmem:[%s1 + $0x168] sm:$0xff]
      %v259 = vld [vmem:[%s1 + $0x170] sm:$0xff]
      %v260 = vld [vmem:[%s1 + $0x178] sm:$0xff]
      %v261 = vld [vmem:[%s1 + $0x180] sm:$0xff]
      %v262 = vld [vmem:[%s1 + $0x188] sm:$0xff]
      %v263 = vld [vmem:[%s1 + $0x190] sm:$0xff]
      %v264 = vld [vmem:[%s1 + $0x198] sm:$0xff]
      %v265 = vld [vmem:[%s1 + $0x1a0] sm:$0xff]
      %v266 = vld [vmem:[%s1 + $0x1a8] sm:$0xff]
      %v267 = vld [vmem:[%s1 + $0x1b0] sm:$0xff]
      %v268 = vld [vmem:[%s1 + $0x1b8] sm:$0xff]
      %v269 = vld [vmem:[%s1 + $0x1c0] sm:$0xff]
      %v270 = vld [vmem:[%s1 + $0x1c8] sm:$0xff]
      %v271 = vld [vmem:[%s1 + $0x1d0] sm:$0xff]
      %v272 = vld [vmem:[%s1 + $0x1d8] sm:$0xff]
      %v273 = vld [vmem:[%s1 + $0x1e0] sm:$0xff]
      %v274 = vld [vmem:[%s1 + $0x1e8] sm:$0xff]
      %v275 = vld [vmem:[%s1 + $0x1f0] sm:$0xff]
      %v276 = vld [vmem:[%s1 + $0x1f8] sm:$0xff]
      %v277 = vld [vmem:[%s1 + $0x200] sm:$0xff]
      %v278 = vld [vmem:[%s1 + $0x208] sm:$0xff]
      %v279 = vld [vmem:[%s1 + $0x210] sm:$0xff]
      %v280 = vld [vmem:[%s1 + $0x218] sm:$0xff]
      %v281 = vld [vmem:[%s1 + $0x220] sm:$0xff]
      %v282 = vld [vmem:[%s1 + $0x228] sm:$0xff]
      %v283 = vld [vmem:[%s1 + $0x230] sm:$0xff]
      %v284 = vld [vmem:[%s1 + $0x238] sm:$0xff]
      %v285 = vld [vmem:[%s1 + $0x240] sm:$0xff]
      %v286 = vld [vmem:[%s1 + $0x248] sm:$0xff]
      %v287 = vld [vmem:[%s1 + $0x250] sm:$0xff]
      %v288 = vld [vmem:[%s1 + $0x258] sm:$0xff]
      %v289 = vld [vmem:[%s1 + $0x260] sm:$0xff]
      %v290 = vld [vmem:[%s1 + $0x268] sm:$0xff]
      %v291 = vld [vmem:[%s1 + $0x270] sm:$0xff]
      %v292 = vld [vmem:[%s1 + $0x278] sm:$0xff]
      %v293 = vld [vmem:[%s1 + $0x280] sm:$0xff]
      %v294 = vld [vmem:[%s1 + $0x288] sm:$0xff]
      %v295 = vld [vmem:[%s1 + $0x290] sm:$0xff]
      %v296 = vld [vmem:[%s1 + $0x298] sm:$0xff]
      %v297 = vld [vmem:[%s1 + $0x2a0] sm:$0xff]
      %v298 = vld [vmem:[%s1 + $0x2a8] sm:$0xff]
      %v299 = vld [vmem:[%s1 + $0x2b0] sm:$0xff]
      %v300 = vld [vmem:[%s1 + $0x2b8] sm:$0xff]
      %v301 = vld [vmem:[%s1 + $0x2c0] sm:$0xff]
      %v302 = vld [vmem:[%s1 + $0x2c8] sm:$0xff]
      %v303 = vld [vmem:[%s1 + $0x2d0] sm:$0xff]
      %v304 = vld [vmem:[%s1 + $0x2d8] sm:$0xff]
      %v305 = vld [vmem:[%s1 + $0x2e0] sm:$0xff]
      %v306 = vld [vmem:[%s1 + $0x2e8] sm:$0xff]
      %v307 = vld [vmem:[%s1 + $0x2f0] sm:$0xff]
      %v308 = vld [vmem:[%s1 + $0x2f8] sm:$0xff]
      %v309 = vld [vmem:[%s1 + $0x300] sm:$0xff]
      %v310 = vld [vmem:[%s1 + $0x308] sm:$0xff]
      %v311 = vld [vmem:[%s1 + $0x310] sm:$0xff]
      %v312 = vld [vmem:[%s1 + $0x318] sm:$0xff]
      %v313 = vld [vmem:[%s1 + $0x320] sm:$0xff]
      %v314 = vld [vmem:[%s1 + $0x328] sm:$0xff]
      %v315 = vld [vmem:[%s1 + $0x330] sm:$0xff]
      %v316 = vld [vmem:[%s1 + $0x338] sm:$0xff]
      %v317 = vld [vmem:[%s1 + $0x340] sm:$0xff]
      %v318 = vld [vmem:[%s1 + $0x348] sm:$0xff]
      %v319 = vld [vmem:[%s1 + $0x350] sm:$0xff]
      %v320 = vld [vmem:[%s1 + $0x358] sm:$0xff]
      %v321 = vld [vmem:[%s1 + $0x360] sm:$0xff]
      %v322 = vld [vmem:[%s1 + $0x368] sm:$0xff]
      %v323 = vld [vmem:[%s1 + $0x370] sm:$0xff]
      %v324 = vld [vmem:[%s1 + $0x378] sm:$0xff]
      %v325 = vld [vmem:[%s1 + $0x380] sm:$0xff]
      %v326 = vld [vmem:[%s1 + $0x388] sm:$0xff]
      %v327 = vld [vmem:[%s1 + $0x390] sm:$0xff]
      %v328 = vld [vmem:[%s1 + $0x398] sm:$0xff]
      %v329 = vld [vmem:[%s1 + $0x3a0] sm:$0xff]
      %v330 = vld [vmem:[%s1 + $0x3a8] sm:$0xff]
      %v331 = vld [vmem:[%s1 + $0x3b0] sm:$0xff]
      %v332 = vld [vmem:[%s1 + $0x3b8] sm:$0xff]
      %v333 = vld [vmem:[%s1 + $0x3c0] sm:$0xff]
      %v334 = vld [vmem:[%s1 + $0x3c8] sm:$0xff]
      %v335 = vld [vmem:[%s1 + $0x3d0] sm:$0xff]
      %v336 = vld [vmem:[%s1 + $0x3d8] sm:$0xff]
      %v337 = vld [vmem:[%s1 + $0x3e0] sm:$0xff]
      %v338 = vld [vmem:[%s1 + $0x3e8] sm:$0xff]
      %v339 = vld [vmem:[%s1 + $0x3f0] sm:$0xff]
      %v340 = vld [vmem:[%s1 + $0x3f8] sm:$0xff]
      %v341 = vld [vmem:[%s1 + $0x400] sm:$0xff]
      %v342 = vld [vmem:[%s1 + $0x408] sm:$0xff]
      %v343 = vld [vmem:[%s1 + $0x410] sm:$0xff]
      %v344 = vld [vmem:[%s1 + $0x418] sm:$0xff]
      %v345 = vld [vmem:[%s1 + $0x420] sm:$0xff]
      %v346 = vld [vmem:[%s1 + $0x428] sm:$0xff]
      %v347 = vld [vmem:[%s1 + $0x430] sm:$0xff]
      %v348 = vld [vmem:[%s1 + $0x438] sm:$0xff]
      %v349 = vld [vmem:[%s1 + $0x440] sm:$0xff]
      %v350 = vld [vmem:[%s1 + $0x448] sm:$0xff]
      %v351 = vld [vmem:[%s1 + $0x450] sm:$0xff]
      %v352 = vld [vmem:[%s1 + $0x458] sm:$0xff]
      %v353 = vld [vmem:[%s1 + $0x460] sm:$0xff]
      %v354 = vld [vmem:[%s1 + $0x468] sm:$0xff]
      %v355 = vld [vmem:[%s1 + $0x470] sm:$0xff]
      %v356 = vld [vmem:[%s1 + $0x478] sm:$0xff]
      %v357 = vld [vmem:[%s1 + $0x480] sm:$0xff]
      %v358 = vld [vmem:[%s1 + $0x488] sm:$0xff]
      %v359 = vld [vmem:[%s1 + $0x490] sm:$0xff]
      %v360 = vld [vmem:[%s1 + $0x498] sm:$0xff]
      %v361 = vld [vmem:[%s1 + $0x4a0] sm:$0xff]
      %v362 = vld [vmem:[%s1 + $0x4a8] sm:$0xff]
      %v363 = vld [vmem:[%s1 + $0x4b0] sm:$0xff]
      %v364 = vld [vmem:[%s1 + $0x4b8] sm:$0xff]
      %v365 = vld [vmem:[%s1 + $0x4c0] sm:$0xff]
      %v366 = vld [vmem:[%s1 + $0x4c8] sm:$0xff]
      %v367 = vld [vmem:[%s1 + $0x4d0] sm:$0xff]
      %v368 = vld [vmem:[%s1 + $0x4d8] sm:$0xff]
      %v369 = vld [vmem:[%s1 + $0x4e0] sm:$0xff]
      %v370 = vld [vmem:[%s1 + $0x4e8] sm:$0xff]
      %v371 = vld [vmem:[%s1 + $0x4f0] sm:$0xff]
      %v372 = vld [vmem:[%s1 + $0x4f8] sm:$0xff]
      %v373 = vld [vmem:[%s1 + $0x500] sm:$0xff]
      %v374 = vld [vmem:[%s1 + $0x508] sm:$0xff]
      %v375 = vld [vmem:[%s1 + $0x510] sm:$0xff]
      %v376 = vld [vmem:[%s1 + $0x518] sm:$0xff]
      %v377 = vld [vmem:[%s1 + $0x520] sm:$0xff]
      %v378 = vld [vmem:[%s1 + $0x528] sm:$0xff]
      %v379 = vld [vmem:[%s1 + $0x530] sm:$0xff]
      %v380 = vld [vmem:[%s1 + $0x538] sm:$0xff]
      %v381 = vld [vmem:[%s1 + $0x540] sm:$0xff]
      %v382 = vld [vmem:[%s1 + $0x548] sm:$0xff]
      %v383 = vld [vmem:[%s1 + $0x550] sm:$0xff]
      %v384 = vld [vmem:[%s1 + $0x558] sm:$0xff]
      %v385 = vld [vmem:[%s1 + $0x560] sm:$0xff]
      %v386 = vld [vmem:[%s1 + $0x568] sm:$0xff]
      %v387 = vld [vmem:[%s1 + $0x570] sm:$0xff]
      %v388 = vld [vmem:[%s1 + $0x578] sm:$0xff]
      %v389 = vld [vmem:[%s1 + $0x580] sm:$0xff]
      %v390 = vld [vmem:[%s1 + $0x588] sm:$0xff]
      %v391 = vld [vmem:[%s1 + $0x590] sm:$0xff]
      %v392 = vld [vmem:[%s1 + $0x598] sm:$0xff]
      %v393 = vld [vmem:[%s1 + $0x5a0] sm:$0xff]
      %v394 = vld [vmem:[%s1 + $0x5a8] sm:$0xff]
      %v395 = vld [vmem:[%s1 + $0x5b0] sm:$0xff]
      %v396 = vld [vmem:[%s1 + $0x5b8] sm:$0xff]
      %v397 = vld [vmem:[%s1 + $0x5c0] sm:$0xff]
      %v398 = vld [vmem:[%s1 + $0x5c8] sm:$0xff]
      %v399 = vld [vmem:[%s1 + $0x5d0] sm:$0xff]
      %v400 = vld [vmem:[%s1 + $0x5d8] sm:$0xff]
      %v401 = vld [vmem:[%s1 + $0x5e0] sm:$0xff]
      %v402 = vld [vmem:[%s1 + $0x5e8] sm:$0xff]
      %v403 = vld [vmem:[%s1 + $0x5f0] sm:$0xff]
      %v404 = vld [vmem:[%s1 + $0x5f8] sm:$0xff]
      %v405 = vld [vmem:[%s1 + $0x600] sm:$0xff]
      %v406 = vld [vmem:[%s1 + $0x608] sm:$0xff]
      %v407 = vld [vmem:[%s1 + $0x610] sm:$0xff]
      %v408 = vld [vmem:[%s1 + $0x618] sm:$0xff]
      %v409 = vld [vmem:[%s1 + $0x620] sm:$0xff]
      %v410 = vld [vmem:[%s1 + $0x628] sm:$0xff]
      %v411 = vld [vmem:[%s1 + $0x630] sm:$0xff]
      %v412 = vld [vmem:[%s1 + $0x638] sm:$0xff]
      %v413 = vld [vmem:[%s1 + $0x640] sm:$0xff]
      %v414 = vld [vmem:[%s1 + $0x648] sm:$0xff]
      %v415 = vld [vmem:[%s1 + $0x650] sm:$0xff]
      %v416 = vld [vmem:[%s1 + $0x658] sm:$0xff]
      %v417 = vld [vmem:[%s1 + $0x660] sm:$0xff]
      %v418 = vld [vmem:[%s1 + $0x668] sm:$0xff]
      %v419 = vld [vmem:[%s1 + $0x670] sm:$0xff]
      %v420 = vld [vmem:[%s1 + $0x678] sm:$0xff]
      %v421 = vld [vmem:[%s1 + $0x680] sm:$0xff]
      %v422 = vld [vmem:[%s1 + $0x688] sm:$0xff]
      %v423 = vld [vmem:[%s1 + $0x690] sm:$0xff]
      %v424 = vld [vmem:[%s1 + $0x698] sm:$0xff]
      %v425 = vld [vmem:[%s1 + $0x6a0] sm:$0xff]
      %v426 = vld [vmem:[%s1 + $0x6a8] sm:$0xff]
      %v427 = vld [vmem:[%s1 + $0x6b0] sm:$0xff]
      %v428 = vld [vmem:[%s1 + $0x6b8] sm:$0xff]
      %v429 = vld [vmem:[%s1 + $0x6c0] sm:$0xff]
      %v430 = vld [vmem:[%s1 + $0x6c8] sm:$0xff]
      %v431 = vld [vmem:[%s1 + $0x6d0] sm:$0xff]
      %v432 = vld [vmem:[%s1 + $0x6d8] sm:$0xff]
      %v433 = vld [vmem:[%s1 + $0x6e0] sm:$0xff]
      %v434 = vld [vmem:[%s1 + $0x6e8] sm:$0xff]
      %v435 = vld [vmem:[%s1 + $0x6f0] sm:$0xff]
      %v436 = vld [vmem:[%s1 + $0x6f8] sm:$0xff]
      %v437 = vld [vmem:[%s1 + $0x700] sm:$0xff]
      %v438 = vld [vmem:[%s1 + $0x708] sm:$0xff]
      %v439 = vld [vmem:[%s1 + $0x710] sm:$0xff]
      %v440 = vld [vmem:[%s1 + $0x718] sm:$0xff]
      %v441 = vld [vmem:[%s1 + $0x720] sm:$0xff]
      %v442 = vld [vmem:[%s1 + $0x728] sm:$0xff]
      %v443 = vld [vmem:[%s1 + $0x730] sm:$0xff]
      %v444 = vld [vmem:[%s1 + $0x738] sm:$0xff]
      %v445 = vld [vmem:[%s1 + $0x740] sm:$0xff]
      %v446 = vld [vmem:[%s1 + $0x748] sm:$0xff]
      %v447 = vld [vmem:[%s1 + $0x750] sm:$0xff]
      %v448 = vld [vmem:[%s1 + $0x758] sm:$0xff]
      %v449 = vld [vmem:[%s1 + $0x760] sm:$0xff]
      %v450 = vld [vmem:[%s1 + $0x768] sm:$0xff]
      %v451 = vld [vmem:[%s1 + $0x770] sm:$0xff]
      %v452 = vld [vmem:[%s1 + $0x778] sm:$0xff]
      %v453 = vld [vmem:[%s1 + $0x780] sm:$0xff]
      %v454 = vld [vmem:[%s1 + $0x788] sm:$0xff]
      %v455 = vld [vmem:[%s1 + $0x790] sm:$0xff]
      %v456 = vld [vmem:[%s1 + $0x798] sm:$0xff]
      %v457 = vld [vmem:[%s1 + $0x7a0] sm:$0xff]
      %v458 = vld [vmem:[%s1 + $0x7a8] sm:$0xff]
      %v459 = vld [vmem:[%s1 + $0x7b0] sm:$0xff]
      %v460 = vld [vmem:[%s1 + $0x7b8] sm:$0xff]
      %v461 = vld [vmem:[%s1 + $0x7c0] sm:$0xff]
      %v462 = vld [vmem:[%s1 + $0x7c8] sm:$0xff]
      %v463 = vld [vmem:[%s1 + $0x7d0] sm:$0xff]
      %v464 = vld [vmem:[%s1 + $0x7d8] sm:$0xff]
      %v465 = vld [vmem:[%s1 + $0x7e0] sm:$0xff]
      %v466 = vld [vmem:[%s1 + $0x7e8] sm:$0xff]
      %v467 = vld [vmem:[%s1 + $0x7f0] sm:$0xff]
      %v468 = vld [vmem:[%s1 + $0x7f8] sm:$0xff]
      %v469 = vld [vmem:[%s1 + $0x800] sm:$0xff]
      %v470 = vld [vmem:[%s1 + $0x808] sm:$0xff]
      %v471 = vld [vmem:[%s1 + $0x810] sm:$0xff]
      %v472 = vld [vmem:[%s1 + $0x818] sm:$0xff]
      %v473 = vld [vmem:[%s1 + $0x820] sm:$0xff]
      %v474 = vld [vmem:[%s1 + $0x828] sm:$0xff]
      %v475 = vld [vmem:[%s1 + $0x830] sm:$0xff]
      %v476 = vld [vmem:[%s1 + $0x838] sm:$0xff]
      %v477 = vld [vmem:[%s1 + $0x840] sm:$0xff]
      %v478 = vld [vmem:[%s1 + $0x848] sm:$0xff]
      %v479 = vld [vmem:[%s1 + $0x850] sm:$0xff]
      %v480 = vld [vmem:[%s1 + $0x858] sm:$0xff]
      %v481 = vld [vmem:[%s1 + $0x860] sm:$0xff]
      %v482 = vld [vmem:[%s1 + $0x868] sm:$0xff]
      %v483 = vld [vmem:[%s1 + $0x870] sm:$0xff]
      %v484 = vld [vmem:[%s1 + $0x878] sm:$0xff]
      %v485 = vld [vmem:[%s1 + $0x880] sm:$0xff]
      %v486 = vld [vmem:[%s1 + $0x888] sm:$0xff]
      %v487 = vld [vmem:[%s1 + $0x890] sm:$0xff]
      %v488 = vld [vmem:[%s1 + $0x898] sm:$0xff]
      %v489 = vld [vmem:[%s1 + $0x8a0] sm:$0xff]
      %v490 = vld [vmem:[%s1 + $0x8a8] sm:$0xff]
      %v491 = vld [vmem:[%s1 + $0x8b0] sm:$0xff]
      %v492 = vld [vmem:[%s1 + $0x8b8] sm:$0xff]
      %v493 = vld [vmem:[%s1 + $0x8c0] sm:$0xff]
      %v494 = vld [vmem:[%s1 + $0x8c8] sm:$0xff]
      %v495 = vld [vmem:[%s1 + $0x8d0] sm:$0xff]
      %v496 = vld [vmem:[%s1 + $0x8d8] sm:$0xff]
      %v497 = vld [vmem:[%s1 + $0x8e0] sm:$0xff]
      %v498 = vld [vmem:[%s1 + $0x8e8] sm:$0xff]
      %v499 = vld [vmem:[%s1 + $0x8f0] sm:$0xff]
      %v500 = vld [vmem:[%s1 + $0x8f8] sm:$0xff]
      %v501 = vld [vmem:[%s201] sm:$0xff]
      %v502 = vld [vmem:[%s201 + $0x8] sm:$0xff]
      %v503 = vld [vmem:[%s201 + $0x10] sm:$0xff]
      %v504 = vld [vmem:[%s201 + $0x18] sm:$0xff]
      %v505 = vld [vmem:[%s201 + $0x20] sm:$0xff]
      %v506 = vld [vmem:[%s201 + $0x28] sm:$0xff]
      %v507 = vld [vmem:[%s201 + $0x30] sm:$0xff]
      %v508 = vld [vmem:[%s201 + $0x38] sm:$0xff]
      %v509 = vld [vmem:[%s201 + $0x40] sm:$0xff]
      %v510 = vld [vmem:[%s201 + $0x48] sm:$0xff]
      %v511 = vld [vmem:[%s201 + $0x50] sm:$0xff]
      %v512 = vld [vmem:[%s201 + $0x58] sm:$0xff]
      %v513 = vld [vmem:[%s201 + $0x60] sm:$0xff]
      %v514 = vld [vmem:[%s201 + $0x68] sm:$0xff]
      %v515 = vld [vmem:[%s201 + $0x70] sm:$0xff]
      %v516 = vld [vmem:[%s201 + $0x78] sm:$0xff]
      %v517 = vld [vmem:[%s201 + $0x80] sm:$0xff]
      %v518 = vld [vmem:[%s201 + $0x88] sm:$0xff]
      %v519 = vld [vmem:[%s201 + $0x90] sm:$0xff]
      %v520 = vld [vmem:[%s201 + $0x98] sm:$0xff]
      %v521 = vld [vmem:[%s201 + $0xa0] sm:$0xff]
      %v522 = vld [vmem:[%s201 + $0xa8] sm:$0xff]
      %v523 = vld [vmem:[%s201 + $0xb0] sm:$0xff]
      %v524 = vld [vmem:[%s201 + $0xb8] sm:$0xff]
      %v525 = vld [vmem:[%s201 + $0xc0] sm:$0xff]
      %v526 = vld [vmem:[%s201 + $0xc8] sm:$0xff]
      %v527 = vld [vmem:[%s201 + $0xd0] sm:$0xff]
      %v528 = vld [vmem:[%s201 + $0xd8] sm:$0xff]
      %v529 = vld [vmem:[%s201 + $0xe0] sm:$0xff]
      %v530 = vld [vmem:[%s201 + $0xe8] sm:$0xff]
      %v531 = vld [vmem:[%s201 + $0xf0] sm:$0xff]
      %v532 = vld [vmem:[%s201 + $0xf8] sm:$0xff]
      %v533 = vld [vmem:[%s201 + $0x100] sm:$0xff]
      %v534 = vld [vmem:[%s201 + $0x108] sm:$0xff]
      %v535 = vld [vmem:[%s201 + $0x110] sm:$0xff]
      %v536 = vld [vmem:[%s201 + $0x118] sm:$0xff]
      %v537 = vld [vmem:[%s201 + $0x120] sm:$0xff]
      %v538 = vld [vmem:[%s201 + $0x128] sm:$0xff]
      %v539 = vld [vmem:[%s201 + $0x130] sm:$0xff]
      %v540 = vld [vmem:[%s201 + $0x138] sm:$0xff]
      %v541 = vld [vmem:[%s201 + $0x140] sm:$0xff]
      %v542 = vld [vmem:[%s201 + $0x148] sm:$0xff]
      %v543 = vld [vmem:[%s201 + $0x150] sm:$0xff]
      %v544 = vld [vmem:[%s201 + $0x158] sm:$0xff]
      %v545 = vld [vmem:[%s201 + $0x160] sm:$0xff]
      %v546 = vld [vmem:[%s201 + $0x168] sm:$0xff]
      %v547 = vld [vmem:[%s201 + $0x170] sm:$0xff]
      %v548 = vld [vmem:[%s201 + $0x178] sm:$0xff]
      %v549 = vld [vmem:[%s201 + $0x180] sm:$0xff]
      %v550 = vld [vmem:[%s201 + $0x188] sm:$0xff]
      %v551 = vld [vmem:[%s201 + $0x190] sm:$0xff]
      %v552 = vld [vmem:[%s201 + $0x198] sm:$0xff]
      %v553 = vld [vmem:[%s201 + $0x1a0] sm:$0xff]
      %v554 = vld [vmem:[%s201 + $0x1a8] sm:$0xff]
      %v555 = vld [vmem:[%s201 + $0x1b0] sm:$0xff]
      %v556 = vld [vmem:[%s201 + $0x1b8] sm:$0xff]
      %v557 = vld [vmem:[%s201 + $0x1c0] sm:$0xff]
      %v558 = vld [vmem:[%s201 + $0x1c8] sm:$0xff]
      %v559 = vld [vmem:[%s201 + $0x1d0] sm:$0xff]
      %v560 = vld [vmem:[%s201 + $0x1d8] sm:$0xff]
      %v561 = vld [vmem:[%s201 + $0x1e0] sm:$0xff]
      %v562 = vld [vmem:[%s201 + $0x1e8] sm:$0xff]
      %v563 = vld [vmem:[%s201 + $0x1f0] sm:$0xff]
      %v564 = vld [vmem:[%s201 + $0x1f8] sm:$0xff]
      %v565 = vld [vmem:[%s201 + $0x200] sm:$0xff]
      %v566 = vld [vmem:[%s201 + $0x208] sm:$0xff]
      %v567 = vld [vmem:[%s201 + $0x210] sm:$0xff]
      %v568 = vld [vmem:[%s201 + $0x218] sm:$0xff]
      %v569 = vld [vmem:[%s201 + $0x220] sm:$0xff]
      %v570 = vld [vmem:[%s201 + $0x228] sm:$0xff]
      %v571 = vld [vmem:[%s201 + $0x230] sm:$0xff]
      %v572 = vld [vmem:[%s201 + $0x238] sm:$0xff]
      %v573 = vld [vmem:[%s201 + $0x240] sm:$0xff]
      %v574 = vld [vmem:[%s201 + $0x248] sm:$0xff]
      %v575 = vld [vmem:[%s201 + $0x250] sm:$0xff]
      %v576 = vld [vmem:[%s201 + $0x258] sm:$0xff]
      %v577 = vld [vmem:[%s201 + $0x260] sm:$0xff]
      %v578 = vld [vmem:[%s201 + $0x268] sm:$0xff]
      %v579 = vld [vmem:[%s201 + $0x270] sm:$0xff]
      %v580 = vld [vmem:[%s201 + $0x278] sm:$0xff]
      %v581 = vld [vmem:[%s201 + $0x280] sm:$0xff]
      %v582 = vld [vmem:[%s201 + $0x288] sm:$0xff]
      %v583 = vld [vmem:[%s201 + $0x290] sm:$0xff]
      %v584 = vld [vmem:[%s201 + $0x298] sm:$0xff]
      %v585 = vld [vmem:[%s201 + $0x2a0] sm:$0xff]
      %v586 = vld [vmem:[%s201 + $0x2a8] sm:$0xff]
      %v587 = vld [vmem:[%s201 + $0x2b0] sm:$0xff]
      %v588 = vld [vmem:[%s201 + $0x2b8] sm:$0xff]
      %v589 = vld [vmem:[%s201 + $0x2c0] sm:$0xff]
      %v590 = vld [vmem:[%s201 + $0x2c8] sm:$0xff]
      %591 = vmatprep.subr.mxu0 0.0
      %592 = vmatpush1.msra.mxu0 %v228
      %593 = vmatprep.subr.mxu0 0.0
      %594 = vmatpush1.msra.mxu0 %v227
      %595 = vmatprep.subr.mxu0 0.0
      %596 = vmatpush1.msra.mxu0 %v226
      %597 = vmatprep.subr.mxu0 0.0
      %598 = vmatpush1.msra.mxu0 %v225
      %599 = vmatprep.subr.mxu0 0.0
      %600 = vmatpush1.msra.mxu0 %v224
      %601 = vmatprep.subr.mxu0 0.0
      %602 = vmatpush1.msra.mxu0 %v223
      %603 = vmatprep.subr.mxu0 0.0
      %604 = vmatpush1.msra.mxu0 %v222
      %605 = vmatprep.subr.mxu0 0.0
      %606 = vmatpush1.msra.mxu0 %v221
      %607 = vmatprep.subr.mxu0 0.0
      %608 = vmatpush1.msra.mxu0 %v220
      %609 = vmatprep.subr.mxu0 0.0
      %610 = vmatpush1.msra.mxu0 %v219
      %611 = vmatprep.subr.mxu0 0.0
      %612 = vmatpush1.msra.mxu0 %v218
      %613 = vmatprep.subr.mxu0 0.0
      %614 = vmatpush1.msra.mxu0 %v217
      %615 = vmatprep.subr.mxu0 0.0
      %616 = vmatpush1.msra.mxu0 %v216
      %617 = vmatprep.subr.mxu0 0.0
      %618 = vmatpush1.msra.mxu0 %v215
      %619 = vmatprep.subr.mxu0 0.0
      %620 = vmatpush1.msra.mxu0 %v214
      %621 = vmatprep.subr.mxu0 0.0
      %622 = vmatpush1.msra.mxu0 %v213
      %623 = vmatprep.subr.mxu0 0.0
      %624 = vmatpush2.msra.mxu0 %v244
      %625 = vmatprep.subr.mxu0 0.0
      %626 = vmatpush2.msra.mxu0 %v243
      %627 = vmatprep.subr.mxu0 0.0
      %628 = vmatpush2.msra.mxu0 %v242
      %629 = vmatprep.subr.mxu0 0.0
      %630 = vmatpush2.msra.mxu0 %v241
      %631 = vmatprep.subr.mxu0 0.0
      %632 = vmatpush2.msra.mxu0 %v240
      %633 = vmatprep.subr.mxu0 0.0
      %634 = vmatpush2.msra.mxu0 %v239
      %635 = vmatprep.subr.mxu0 0.0
      %636 = vmatpush2.msra.mxu0 %v238
      %637 = vmatprep.subr.mxu0 0.0
      %638 = vmatpush2.msra.mxu0 %v237
      %639 = vmatprep.subr.mxu0 0.0
      %640 = vmatpush2.msra.mxu0 %v236
      %641 = vmatprep.subr.mxu0 0.0
      %642 = vmatpush2.msra.mxu0 %v235
      %643 = vmatprep.subr.mxu0 0.0
      %644 = vmatpush2.msra.mxu0 %v234
      %645 = vmatprep.subr.mxu0 0.0
      %646 = vmatpush2.msra.mxu0 %v233
      %647 = vmatprep.subr.mxu0 0.0
      %648 = vmatpush2.msra.mxu0 %v232
      %649 = vmatprep.subr.mxu0 0.0
      %650 = vmatpush2.msra.mxu0 %v231
      %651 = vmatprep.subr.mxu0 0.0
      %652 = vmatpush2.msra.mxu0 %v230
      %653 = vmatprep.subr.mxu0 0.0
      %654 = vmatpush2.msra.mxu0 %v229
      %655 = vmatprep.mubr.f32.mxu0 %v502
      %656 = vmatmul.mubr.f32.gmra.mxu0 %v501
      %v657 = vpop.f32.mrf.mxu0
      %v658 = vadd.f32 0.0, %v657
      %v659 = vpop.f32.mrf.mxu0
      %660 = vmatprep.mubr.f32.mxu0 %v520
      %661 = vmatmul.mubr.f32.gmra.mxu0 %v519
      %v662 = vpop.f32.mrf.mxu0
      %v663 = vadd.f32 0.0, %v662
      %v664 = vpop.f32.mrf.mxu0
      %665 = vmatprep.mubr.f32.mxu0 %v538
      %666 = vmatmul.mubr.f32.gmra.mxu0 %v537
      %v667 = vpop.f32.mrf.mxu0
      %v668 = vadd.f32 0.0, %v667
      %v669 = vpop.f32.mrf.mxu0
      %670 = vmatprep.mubr.f32.mxu0 %v556
      %671 = vmatmul.mubr.f32.gmra.mxu0 %v555
      %v672 = vpop.f32.mrf.mxu0
      %v673 = vadd.f32 0.0, %v672
      %v674 = vpop.f32.mrf.mxu0
      %675 = vmatprep.mubr.f32.mxu0 %v574
      %676 = vmatmul.mubr.f32.gmra.mxu0 %v573
      %v677 = vpop.f32.mrf.mxu0
      %v678 = vadd.f32 0.0, %v677
      %v679 = vpop.f32.mrf.mxu0
      %680 = vdwg.mxu0
      %681 = vmatprep.subr.mxu0 0.0
      %682 = vmatpush1.msra.mxu0 %v260
      %683 = vmatprep.subr.mxu0 0.0
      %684 = vmatpush1.msra.mxu0 %v259
      %685 = vmatprep.subr.mxu0 0.0
      %686 = vmatpush1.msra.mxu0 %v258
      %687 = vmatprep.subr.mxu0 0.0
      %688 = vmatpush1.msra.mxu0 %v257
      %689 = vmatprep.subr.mxu0 0.0
      %690 = vmatpush1.msra.mxu0 %v256
      %691 = vmatprep.subr.mxu0 0.0
      %692 = vmatpush1.msra.mxu0 %v255
      %693 = vmatprep.subr.mxu0 0.0
      %694 = vmatpush1.msra.mxu0 %v254
      %695 = vmatprep.subr.mxu0 0.0
      %696 = vmatpush1.msra.mxu0 %v253
      %697 = vmatprep.subr.mxu0 0.0
      %698 = vmatpush1.msra.mxu0 %v252
      %699 = vmatprep.subr.mxu0 0.0
      %700 = vmatpush1.msra.mxu0 %v251
      %701 = vmatprep.subr.mxu0 0.0
      %702 = vmatpush1.msra.mxu0 %v250
      %703 = vmatprep.subr.mxu0 0.0
      %704 = vmatpush1.msra.mxu0 %v249
      %705 = vmatprep.subr.mxu0 0.0
      %706 = vmatpush1.msra.mxu0 %v248
      %707 = vmatprep.subr.mxu0 0.0
      %708 = vmatpush1.msra.mxu0 %v247
      %709 = vmatprep.subr.mxu0 0.0
      %710 = vmatpush1.msra.mxu0 %v246
      %711 = vmatprep.subr.mxu0 0.0
      %712 = vmatpush1.msra.mxu0 %v245
      %713 = vmatprep.subr.mxu0 0.0
      %714 = vmatpush2.msra.mxu0 %v276
      %715 = vmatprep.subr.mxu0 0.0
      %716 = vmatpush2.msra.mxu0 %v275
      %717 = vmatprep.subr.mxu0 0.0
      %718 = vmatpush2.msra.mxu0 %v274
      %719 = vmatprep.subr.mxu0 0.0
      %720 = vmatpush2.msra.mxu0 %v273
      %721 = vmatprep.subr.mxu0 0.0
      %722 = vmatpush2.msra.mxu0 %v272
      %723 = vmatprep.subr.mxu0 0.0
      %724 = vmatpush2.msra.mxu0 %v271
      %725 = vmatprep.subr.mxu0 0.0
      %726 = vmatpush2.msra.mxu0 %v270
      %727 = vmatprep.subr.mxu0 0.0
      %728 = vmatpush2.msra.mxu0 %v269
      %729 = vmatprep.subr.mxu0 0.0
      %730 = vmatpush2.msra.mxu0 %v268
      %731 = vmatprep.subr.mxu0 0.0
      %732 = vmatpush2.msra.mxu0 %v267
      %733 = vmatprep.subr.mxu0 0.0
      %734 = vmatpush2.msra.mxu0 %v266
      %735 = vmatprep.subr.mxu0 0.0
      %736 = vmatpush2.msra.mxu0 %v265
      %737 = vmatprep.subr.mxu0 0.0
      %738 = vmatpush2.msra.mxu0 %v264
      %739 = vmatprep.subr.mxu0 0.0
      %740 = vmatpush2.msra.mxu0 %v263
      %741 = vmatprep.subr.mxu0 0.0
      %742 = vmatpush2.msra.mxu0 %v262
      %743 = vmatprep.subr.mxu0 0.0
      %744 = vmatpush2.msra.mxu0 %v261
      %745 = vmatprep.mubr.f32.mxu0 %v504
      %746 = vmatmul.mubr.f32.gmra.mxu0 %v503
      %v747 = vpop.f32.mrf.mxu0
      %v748 = vadd.f32 %v658, %v747
      %v749 = vpop.f32.mrf.mxu0
      %750 = vmatprep.mubr.f32.mxu0 %v522
      %751 = vmatmul.mubr.f32.gmra.mxu0 %v521
      %v752 = vpop.f32.mrf.mxu0
      %v753 = vadd.f32 %v663, %v752
      %v754 = vpop.f32.mrf.mxu0
      %755 = vmatprep.mubr.f32.mxu0 %v540
      %756 = vmatmul.mubr.f32.gmra.mxu0 %v539
      %v757 = vpop.f32.mrf.mxu0
      %v758 = vadd.f32 %v668, %v757
      %v759 = vpop.f32.mrf.mxu0
      %760 = vmatprep.mubr.f32.mxu0 %v558
      %761 = vmatmul.mubr.f32.gmra.mxu0 %v557
      %v762 = vpop.f32.mrf.mxu0
      %v763 = vadd.f32 %v673, %v762
      %v764 = vpop.f32.mrf.mxu0
      %765 = vmatprep.mubr.f32.mxu0 %v576
      %766 = vmatmul.mubr.f32.gmra.mxu0 %v575
      %v767 = vpop.f32.mrf.mxu0
      %v768 = vadd.f32 %v678, %v767
      %v769 = vpop.f32.mrf.mxu0
      %770 = vdwg.mxu0
      %771 = vmatprep.subr.mxu0 0.0
      %772 = vmatpush1.msra.mxu0 %v292
      %773 = vmatprep.subr.mxu0 0.0
      %774 = vmatpush1.msra.mxu0 %v291
      %775 = vmatprep.subr.mxu0 0.0
      %776 = vmatpush1.msra.mxu0 %v290
      %777 = vmatprep.subr.mxu0 0.0
      %778 = vmatpush1.msra.mxu0 %v289
      %779 = vmatprep.subr.mxu0 0.0
      %780 = vmatpush1.msra.mxu0 %v288
      %781 = vmatprep.subr.mxu0 0.0
      %782 = vmatpush1.msra.mxu0 %v287
      %783 = vmatprep.subr.mxu0 0.0
      %784 = vmatpush1.msra.mxu0 %v286
      %785 = vmatprep.subr.mxu0 0.0
      %786 = vmatpush1.msra.mxu0 %v285
      %787 = vmatprep.subr.mxu0 0.0
      %788 = vmatpush1.msra.mxu0 %v284
      %789 = vmatprep.subr.mxu0 0.0
      %790 = vmatpush1.msra.mxu0 %v283
      %791 = vmatprep.subr.mxu0 0.0
      %792 = vmatpush1.msra.mxu0 %v282
      %793 = vmatprep.subr.mxu0 0.0
      %794 = vmatpush1.msra.mxu0 %v281
      %795 = vmatprep.subr.mxu0 0.0
      %796 = vmatpush1.msra.mxu0 %v280
      %797 = vmatprep.subr.mxu0 0.0
      %798 = vmatpush1.msra.mxu0 %v279
      %799 = vmatprep.subr.mxu0 0.0
      %800 = vmatpush1.msra.mxu0 %v278
      %801 = vmatprep.subr.mxu0 0.0
      %802 = vmatpush1.msra.mxu0 %v277
      %803 = vmatprep.subr.mxu0 0.0
      %804 = vmatpush2.msra.mxu0 %v308
      %805 = vmatprep.subr.mxu0 0.0
      %806 = vmatpush2.msra.mxu0 %v307
      %807 = vmatprep.subr.mxu0 0.0
      %808 = vmatpush2.msra.mxu0 %v306
      %809 = vmatprep.subr.mxu0 0.0
      %810 = vmatpush2.msra.mxu0 %v305
      %811 = vmatprep.subr.mxu0 0.0
      %812 = vmatpush2.msra.mxu0 %v304
      %813 = vmatprep.subr.mxu0 0.0
      %814 = vmatpush2.msra.mxu0 %v303
      %815 = vmatprep.subr.mxu0 0.0
      %816 = vmatpush2.msra.mxu0 %v302
      %817 = vmatprep.subr.mxu0 0.0
      %818 = vmatpush2.msra.mxu0 %v301
      %819 = vmatprep.subr.mxu0 0.0
      %820 = vmatpush2.msra.mxu0 %v300
      %821 = vmatprep.subr.mxu0 0.0
      %822 = vmatpush2.msra.mxu0 %v299
      %823 = vmatprep.subr.mxu0 0.0
      %824 = vmatpush2.msra.mxu0 %v298
      %825 = vmatprep.subr.mxu0 0.0
      %826 = vmatpush2.msra.mxu0 %v297
      %827 = vmatprep.subr.mxu0 0.0
      %828 = vmatpush2.msra.mxu0 %v296
      %829 = vmatprep.subr.mxu0 0.0
      %830 = vmatpush2.msra.mxu0 %v295
      %831 = vmatprep.subr.mxu0 0.0
      %832 = vmatpush2.msra.mxu0 %v294
      %833 = vmatprep.subr.mxu0 0.0
      %834 = vmatpush2.msra.mxu0 %v293
      %835 = vmatprep.mubr.f32.mxu0 %v506
      %836 = vmatmul.mubr.f32.gmra.mxu0 %v505
      %v837 = vpop.f32.mrf.mxu0
      %v838 = vadd.f32 %v748, %v837
      %v839 = vpop.f32.mrf.mxu0
      %840 = vmatprep.mubr.f32.mxu0 %v524
      %841 = vmatmul.mubr.f32.gmra.mxu0 %v523
      %v842 = vpop.f32.mrf.mxu0
      %v843 = vadd.f32 %v753, %v842
      %v844 = vpop.f32.mrf.mxu0
      %845 = vmatprep.mubr.f32.mxu0 %v542
      %846 = vmatmul.mubr.f32.gmra.mxu0 %v541
      %v847 = vpop.f32.mrf.mxu0
      %v848 = vadd.f32 %v758, %v847
      %v849 = vpop.f32.mrf.mxu0
      %850 = vmatprep.mubr.f32.mxu0 %v560
      %851 = vmatmul.mubr.f32.gmra.mxu0 %v559
      %v852 = vpop.f32.mrf.mxu0
      %v853 = vadd.f32 %v763, %v852
      %v854 = vpop.f32.mrf.mxu0
      %855 = vmatprep.mubr.f32.mxu0 %v578
      %856 = vmatmul.mubr.f32.gmra.mxu0 %v577
      %v857 = vpop.f32.mrf.mxu0
      %v858 = vadd.f32 %v768, %v857
      %v859 = vpop.f32.mrf.mxu0
      %860 = vdwg.mxu0
      %861 = vmatprep.subr.mxu0 0.0
      %862 = vmatpush1.msra.mxu0 %v324
      %863 = vmatprep.subr.mxu0 0.0
      %864 = vmatpush1.msra.mxu0 %v323
      %865 = vmatprep.subr.mxu0 0.0
      %866 = vmatpush1.msra.mxu0 %v322
      %867 = vmatprep.subr.mxu0 0.0
      %868 = vmatpush1.msra.mxu0 %v321
      %869 = vmatprep.subr.mxu0 0.0
      %870 = vmatpush1.msra.mxu0 %v320
      %871 = vmatprep.subr.mxu0 0.0
      %872 = vmatpush1.msra.mxu0 %v319
      %873 = vmatprep.subr.mxu0 0.0
      %874 = vmatpush1.msra.mxu0 %v318
      %875 = vmatprep.subr.mxu0 0.0
      %876 = vmatpush1.msra.mxu0 %v317
      %877 = vmatprep.subr.mxu0 0.0
      %878 = vmatpush1.msra.mxu0 %v316
      %879 = vmatprep.subr.mxu0 0.0
      %880 = vmatpush1.msra.mxu0 %v315
      %881 = vmatprep.subr.mxu0 0.0
      %882 = vmatpush1.msra.mxu0 %v314
      %883 = vmatprep.subr.mxu0 0.0
      %884 = vmatpush1.msra.mxu0 %v313
      %885 = vmatprep.subr.mxu0 0.0
      %886 = vmatpush1.msra.mxu0 %v312
      %887 = vmatprep.subr.mxu0 0.0
      %888 = vmatpush1.msra.mxu0 %v311
      %889 = vmatprep.subr.mxu0 0.0
      %890 = vmatpush1.msra.mxu0 %v310
      %891 = vmatprep.subr.mxu0 0.0
      %892 = vmatpush1.msra.mxu0 %v309
      %893 = vmatprep.subr.mxu0 0.0
      %894 = vmatpush2.msra.mxu0 %v340
      %895 = vmatprep.subr.mxu0 0.0
      %896 = vmatpush2.msra.mxu0 %v339
      %897 = vmatprep.subr.mxu0 0.0
      %898 = vmatpush2.msra.mxu0 %v338
      %899 = vmatprep.subr.mxu0 0.0
      %900 = vmatpush2.msra.mxu0 %v337
      %901 = vmatprep.subr.mxu0 0.0
      %902 = vmatpush2.msra.mxu0 %v336
      %903 = vmatprep.subr.mxu0 0.0
      %904 = vmatpush2.msra.mxu0 %v335
      %905 = vmatprep.subr.mxu0 0.0
      %906 = vmatpush2.msra.mxu0 %v334
      %907 = vmatprep.subr.mxu0 0.0
      %908 = vmatpush2.msra.mxu0 %v333
      %909 = vmatprep.subr.mxu0 0.0
      %910 = vmatpush2.msra.mxu0 %v332
      %911 = vmatprep.subr.mxu0 0.0
      %912 = vmatpush2.msra.mxu0 %v331
      %913 = vmatprep.subr.mxu0 0.0
      %914 = vmatpush2.msra.mxu0 %v330
      %915 = vmatprep.subr.mxu0 0.0
      %916 = vmatpush2.msra.mxu0 %v329
      %917 = vmatprep.subr.mxu0 0.0
      %918 = vmatpush2.msra.mxu0 %v328
      %919 = vmatprep.subr.mxu0 0.0
      %920 = vmatpush2.msra.mxu0 %v327
      %921 = vmatprep.subr.mxu0 0.0
      %922 = vmatpush2.msra.mxu0 %v326
      %923 = vmatprep.subr.mxu0 0.0
      %924 = vmatpush2.msra.mxu0 %v325
      %925 = vmatprep.mubr.f32.mxu0 %v508
      %926 = vmatmul.mubr.f32.gmra.mxu0 %v507
      %v927 = vpop.f32.mrf.mxu0
      %v928 = vadd.f32 %v838, %v927
      %v929 = vpop.f32.mrf.mxu0
      %930 = vmatprep.mubr.f32.mxu0 %v526
      %931 = vmatmul.mubr.f32.gmra.mxu0 %v525
      %v932 = vpop.f32.mrf.mxu0
      %v933 = vadd.f32 %v843, %v932
      %v934 = vpop.f32.mrf.mxu0
      %935 = vmatprep.mubr.f32.mxu0 %v544
      %936 = vmatmul.mubr.f32.gmra.mxu0 %v543
      %v937 = vpop.f32.mrf.mxu0
      %v938 = vadd.f32 %v848, %v937
      %v939 = vpop.f32.mrf.mxu0
      %940 = vmatprep.mubr.f32.mxu0 %v562
      %941 = vmatmul.mubr.f32.gmra.mxu0 %v561
      %v942 = vpop.f32.mrf.mxu0
      %v943 = vadd.f32 %v853, %v942
      %v944 = vpop.f32.mrf.mxu0
      %945 = vmatprep.mubr.f32.mxu0 %v580
      %946 = vmatmul.mubr.f32.gmra.mxu0 %v579
      %v947 = vpop.f32.mrf.mxu0
      %v948 = vadd.f32 %v858, %v947
      %v949 = vpop.f32.mrf.mxu0
      %950 = vdwg.mxu0
      %951 = vmatprep.subr.mxu0 0.0
      %952 = vmatpush1.msra.mxu0 %v356
      %953 = vmatprep.subr.mxu0 0.0
      %954 = vmatpush1.msra.mxu0 %v355
      %955 = vmatprep.subr.mxu0 0.0
      %956 = vmatpush1.msra.mxu0 %v354
      %957 = vmatprep.subr.mxu0 0.0
      %958 = vmatpush1.msra.mxu0 %v353
      %959 = vmatprep.subr.mxu0 0.0
      %960 = vmatpush1.msra.mxu0 %v352
      %961 = vmatprep.subr.mxu0 0.0
      %962 = vmatpush1.msra.mxu0 %v351
      %963 = vmatprep.subr.mxu0 0.0
      %964 = vmatpush1.msra.mxu0 %v350
      %965 = vmatprep.subr.mxu0 0.0
      %966 = vmatpush1.msra.mxu0 %v349
      %967 = vmatprep.subr.mxu0 0.0
      %968 = vmatpush1.msra.mxu0 %v348
      %969 = vmatprep.subr.mxu0 0.0
      %970 = vmatpush1.msra.mxu0 %v347
      %971 = vmatprep.subr.mxu0 0.0
      %972 = vmatpush1.msra.mxu0 %v346
      %973 = vmatprep.subr.mxu0 0.0
      %974 = vmatpush1.msra.mxu0 %v345
      %975 = vmatprep.subr.mxu0 0.0
      %976 = vmatpush1.msra.mxu0 %v344
      %977 = vmatprep.subr.mxu0 0.0
      %978 = vmatpush1.msra.mxu0 %v343
      %979 = vmatprep.subr.mxu0 0.0
      %980 = vmatpush1.msra.mxu0 %v342
      %981 = vmatprep.subr.mxu0 0.0
      %982 = vmatpush1.msra.mxu0 %v341
      %983 = vmatprep.subr.mxu0 0.0
      %984 = vmatpush2.msra.mxu0 %v372
      %985 = vmatprep.subr.mxu0 0.0
      %986 = vmatpush2.msra.mxu0 %v371
      %987 = vmatprep.subr.mxu0 0.0
      %988 = vmatpush2.msra.mxu0 %v370
      %989 = vmatprep.subr.mxu0 0.0
      %990 = vmatpush2.msra.mxu0 %v369
      %991 = vmatprep.subr.mxu0 0.0
      %992 = vmatpush2.msra.mxu0 %v368
      %993 = vmatprep.subr.mxu0 0.0
      %994 = vmatpush2.msra.mxu0 %v367
      %995 = vmatprep.subr.mxu0 0.0
      %996 = vmatpush2.msra.mxu0 %v366
      %997 = vmatprep.subr.mxu0 0.0
      %998 = vmatpush2.msra.mxu0 %v365
      %999 = vmatprep.subr.mxu0 0.0
      %1000 = vmatpush2.msra.mxu0 %v364
      %1001 = vmatprep.subr.mxu0 0.0
      %1002 = vmatpush2.msra.mxu0 %v363
      %1003 = vmatprep.subr.mxu0 0.0
      %1004 = vmatpush2.msra.mxu0 %v362
      %1005 = vmatprep.subr.mxu0 0.0
      %1006 = vmatpush2.msra.mxu0 %v361
      %1007 = vmatprep.subr.mxu0 0.0
      %1008 = vmatpush2.msra.mxu0 %v360
      %1009 = vmatprep.subr.mxu0 0.0
      %1010 = vmatpush2.msra.mxu0 %v359
      %1011 = vmatprep.subr.mxu0 0.0
      %1012 = vmatpush2.msra.mxu0 %v358
      %1013 = vmatprep.subr.mxu0 0.0
      %1014 = vmatpush2.msra.mxu0 %v357
      %1015 = vmatprep.mubr.f32.mxu0 %v510
      %1016 = vmatmul.mubr.f32.gmra.mxu0 %v509
      %v1017 = vpop.f32.mrf.mxu0
      %v1018 = vadd.f32 %v928, %v1017
      %v1019 = vpop.f32.mrf.mxu0
      %1020 = vmatprep.mubr.f32.mxu0 %v528
      %1021 = vmatmul.mubr.f32.gmra.mxu0 %v527
      %v1022 = vpop.f32.mrf.mxu0
      %v1023 = vadd.f32 %v933, %v1022
      %v1024 = vpop.f32.mrf.mxu0
      %1025 = vmatprep.mubr.f32.mxu0 %v546
      %1026 = vmatmul.mubr.f32.gmra.mxu0 %v545
      %v1027 = vpop.f32.mrf.mxu0
      %v1028 = vadd.f32 %v938, %v1027
      %v1029 = vpop.f32.mrf.mxu0
      %1030 = vmatprep.mubr.f32.mxu0 %v564
      %1031 = vmatmul.mubr.f32.gmra.mxu0 %v563
      %v1032 = vpop.f32.mrf.mxu0
      %v1033 = vadd.f32 %v943, %v1032
      %v1034 = vpop.f32.mrf.mxu0
      %1035 = vmatprep.mubr.f32.mxu0 %v582
      %1036 = vmatmul.mubr.f32.gmra.mxu0 %v581
      %v1037 = vpop.f32.mrf.mxu0
      %v1038 = vadd.f32 %v948, %v1037
      %v1039 = vpop.f32.mrf.mxu0
      %1040 = vdwg.mxu0
      %1041 = vmatprep.subr.mxu0 0.0
      %1042 = vmatpush1.msra.mxu0 %v388
      %1043 = vmatprep.subr.mxu0 0.0
      %1044 = vmatpush1.msra.mxu0 %v387
      %1045 = vmatprep.subr.mxu0 0.0
      %1046 = vmatpush1.msra.mxu0 %v386
      %1047 = vmatprep.subr.mxu0 0.0
      %1048 = vmatpush1.msra.mxu0 %v385
      %1049 = vmatprep.subr.mxu0 0.0
      %1050 = vmatpush1.msra.mxu0 %v384
      %1051 = vmatprep.subr.mxu0 0.0
      %1052 = vmatpush1.msra.mxu0 %v383
      %1053 = vmatprep.subr.mxu0 0.0
      %1054 = vmatpush1.msra.mxu0 %v382
      %1055 = vmatprep.subr.mxu0 0.0
      %1056 = vmatpush1.msra.mxu0 %v381
      %1057 = vmatprep.subr.mxu0 0.0
      %1058 = vmatpush1.msra.mxu0 %v380
      %1059 = vmatprep.subr.mxu0 0.0
      %1060 = vmatpush1.msra.mxu0 %v379
      %1061 = vmatprep.subr.mxu0 0.0
      %1062 = vmatpush1.msra.mxu0 %v378
      %1063 = vmatprep.subr.mxu0 0.0
      %1064 = vmatpush1.msra.mxu0 %v377
      %1065 = vmatprep.subr.mxu0 0.0
      %1066 = vmatpush1.msra.mxu0 %v376
      %1067 = vmatprep.subr.mxu0 0.0
      %1068 = vmatpush1.msra.mxu0 %v375
      %1069 = vmatprep.subr.mxu0 0.0
      %1070 = vmatpush1.msra.mxu0 %v374
      %1071 = vmatprep.subr.mxu0 0.0
      %1072 = vmatpush1.msra.mxu0 %v373
      %1073 = vmatprep.subr.mxu0 0.0
      %1074 = vmatpush2.msra.mxu0 %v404
      %1075 = vmatprep.subr.mxu0 0.0
      %1076 = vmatpush2.msra.mxu0 %v403
      %1077 = vmatprep.subr.mxu0 0.0
      %1078 = vmatpush2.msra.mxu0 %v402
      %1079 = vmatprep.subr.mxu0 0.0
      %1080 = vmatpush2.msra.mxu0 %v401
      %1081 = vmatprep.subr.mxu0 0.0
      %1082 = vmatpush2.msra.mxu0 %v400
      %1083 = vmatprep.subr.mxu0 0.0
      %1084 = vmatpush2.msra.mxu0 %v399
      %1085 = vmatprep.subr.mxu0 0.0
      %1086 = vmatpush2.msra.mxu0 %v398
      %1087 = vmatprep.subr.mxu0 0.0
      %1088 = vmatpush2.msra.mxu0 %v397
      %1089 = vmatprep.subr.mxu0 0.0
      %1090 = vmatpush2.msra.mxu0 %v396
      %1091 = vmatprep.subr.mxu0 0.0
      %1092 = vmatpush2.msra.mxu0 %v395
      %1093 = vmatprep.subr.mxu0 0.0
      %1094 = vmatpush2.msra.mxu0 %v394
      %1095 = vmatprep.subr.mxu0 0.0
      %1096 = vmatpush2.msra.mxu0 %v393
      %1097 = vmatprep.subr.mxu0 0.0
      %1098 = vmatpush2.msra.mxu0 %v392
      %1099 = vmatprep.subr.mxu0 0.0
      %1100 = vmatpush2.msra.mxu0 %v391
      %1101 = vmatprep.subr.mxu0 0.0
      %1102 = vmatpush2.msra.mxu0 %v390
      %1103 = vmatprep.subr.mxu0 0.0
      %1104 = vmatpush2.msra.mxu0 %v389
      %1105 = vmatprep.mubr.f32.mxu0 %v512
      %1106 = vmatmul.mubr.f32.gmra.mxu0 %v511
      %v1107 = vpop.f32.mrf.mxu0
      %v1108 = vadd.f32 %v1018, %v1107
      %v1109 = vpop.f32.mrf.mxu0
      %1110 = vmatprep.mubr.f32.mxu0 %v530
      %1111 = vmatmul.mubr.f32.gmra.mxu0 %v529
      %v1112 = vpop.f32.mrf.mxu0
      %v1113 = vadd.f32 %v1023, %v1112
      %v1114 = vpop.f32.mrf.mxu0
      %1115 = vmatprep.mubr.f32.mxu0 %v548
      %1116 = vmatmul.mubr.f32.gmra.mxu0 %v547
      %v1117 = vpop.f32.mrf.mxu0
      %v1118 = vadd.f32 %v1028, %v1117
      %v1119 = vpop.f32.mrf.mxu0
      %1120 = vmatprep.mubr.f32.mxu0 %v566
      %1121 = vmatmul.mubr.f32.gmra.mxu0 %v565
      %v1122 = vpop.f32.mrf.mxu0
      %v1123 = vadd.f32 %v1033, %v1122
      %v1124 = vpop.f32.mrf.mxu0
      %1125 = vmatprep.mubr.f32.mxu0 %v584
      %1126 = vmatmul.mubr.f32.gmra.mxu0 %v583
      %v1127 = vpop.f32.mrf.mxu0
      %v1128 = vadd.f32 %v1038, %v1127
      %v1129 = vpop.f32.mrf.mxu0
      %1130 = vdwg.mxu0
      %1131 = vmatprep.subr.mxu0 0.0
      %1132 = vmatpush1.msra.mxu0 %v420
      %1133 = vmatprep.subr.mxu0 0.0
      %1134 = vmatpush1.msra.mxu0 %v419
      %1135 = vmatprep.subr.mxu0 0.0
      %1136 = vmatpush1.msra.mxu0 %v418
      %1137 = vmatprep.subr.mxu0 0.0
      %1138 = vmatpush1.msra.mxu0 %v417
      %1139 = vmatprep.subr.mxu0 0.0
      %1140 = vmatpush1.msra.mxu0 %v416
      %1141 = vmatprep.subr.mxu0 0.0
      %1142 = vmatpush1.msra.mxu0 %v415
      %1143 = vmatprep.subr.mxu0 0.0
      %1144 = vmatpush1.msra.mxu0 %v414
      %1145 = vmatprep.subr.mxu0 0.0
      %1146 = vmatpush1.msra.mxu0 %v413
      %1147 = vmatprep.subr.mxu0 0.0
      %1148 = vmatpush1.msra.mxu0 %v412
      %1149 = vmatprep.subr.mxu0 0.0
      %1150 = vmatpush1.msra.mxu0 %v411
      %1151 = vmatprep.subr.mxu0 0.0
      %1152 = vmatpush1.msra.mxu0 %v410
      %1153 = vmatprep.subr.mxu0 0.0
      %1154 = vmatpush1.msra.mxu0 %v409
      %1155 = vmatprep.subr.mxu0 0.0
      %1156 = vmatpush1.msra.mxu0 %v408
      %1157 = vmatprep.subr.mxu0 0.0
      %1158 = vmatpush1.msra.mxu0 %v407
      %1159 = vmatprep.subr.mxu0 0.0
      %1160 = vmatpush1.msra.mxu0 %v406
      %1161 = vmatprep.subr.mxu0 0.0
      %1162 = vmatpush1.msra.mxu0 %v405
      %1163 = vmatprep.subr.mxu0 0.0
      %1164 = vmatpush2.msra.mxu0 %v436
      %1165 = vmatprep.subr.mxu0 0.0
      %1166 = vmatpush2.msra.mxu0 %v435
      %1167 = vmatprep.subr.mxu0 0.0
      %1168 = vmatpush2.msra.mxu0 %v434
      %1169 = vmatprep.subr.mxu0 0.0
      %1170 = vmatpush2.msra.mxu0 %v433
      %1171 = vmatprep.subr.mxu0 0.0
      %1172 = vmatpush2.msra.mxu0 %v432
      %1173 = vmatprep.subr.mxu0 0.0
      %1174 = vmatpush2.msra.mxu0 %v431
      %1175 = vmatprep.subr.mxu0 0.0
      %1176 = vmatpush2.msra.mxu0 %v430
      %1177 = vmatprep.subr.mxu0 0.0
      %1178 = vmatpush2.msra.mxu0 %v429
      %1179 = vmatprep.subr.mxu0 0.0
      %1180 = vmatpush2.msra.mxu0 %v428
      %1181 = vmatprep.subr.mxu0 0.0
      %1182 = vmatpush2.msra.mxu0 %v427
      %1183 = vmatprep.subr.mxu0 0.0
      %1184 = vmatpush2.msra.mxu0 %v426
      %1185 = vmatprep.subr.mxu0 0.0
      %1186 = vmatpush2.msra.mxu0 %v425
      %1187 = vmatprep.subr.mxu0 0.0
      %1188 = vmatpush2.msra.mxu0 %v424
      %1189 = vmatprep.subr.mxu0 0.0
      %1190 = vmatpush2.msra.mxu0 %v423
      %1191 = vmatprep.subr.mxu0 0.0
      %1192 = vmatpush2.msra.mxu0 %v422
      %1193 = vmatprep.subr.mxu0 0.0
      %1194 = vmatpush2.msra.mxu0 %v421
      %1195 = vmatprep.mubr.f32.mxu0 %v514
      %1196 = vmatmul.mubr.f32.gmra.mxu0 %v513
      %v1197 = vpop.f32.mrf.mxu0
      %v1198 = vadd.f32 %v1108, %v1197
      %v1199 = vpop.f32.mrf.mxu0
      %1200 = vmatprep.mubr.f32.mxu0 %v532
      %1201 = vmatmul.mubr.f32.gmra.mxu0 %v531
      %v1202 = vpop.f32.mrf.mxu0
      %v1203 = vadd.f32 %v1113, %v1202
      %v1204 = vpop.f32.mrf.mxu0
      %1205 = vmatprep.mubr.f32.mxu0 %v550
      %1206 = vmatmul.mubr.f32.gmra.mxu0 %v549
      %v1207 = vpop.f32.mrf.mxu0
      %v1208 = vadd.f32 %v1118, %v1207
      %v1209 = vpop.f32.mrf.mxu0
      %1210 = vmatprep.mubr.f32.mxu0 %v568
      %1211 = vmatmul.mubr.f32.gmra.mxu0 %v567
      %v1212 = vpop.f32.mrf.mxu0
      %v1213 = vadd.f32 %v1123, %v1212
      %v1214 = vpop.f32.mrf.mxu0
      %1215 = vmatprep.mubr.f32.mxu0 %v586
      %1216 = vmatmul.mubr.f32.gmra.mxu0 %v585
      %v1217 = vpop.f32.mrf.mxu0
      %v1218 = vadd.f32 %v1128, %v1217
      %v1219 = vpop.f32.mrf.mxu0
      %1220 = vdwg.mxu0
      %1221 = vmatprep.subr.mxu0 0.0
      %1222 = vmatpush1.msra.mxu0 %v452
      %1223 = vmatprep.subr.mxu0 0.0
      %1224 = vmatpush1.msra.mxu0 %v451
      %1225 = vmatprep.subr.mxu0 0.0
      %1226 = vmatpush1.msra.mxu0 %v450
      %1227 = vmatprep.subr.mxu0 0.0
      %1228 = vmatpush1.msra.mxu0 %v449
      %1229 = vmatprep.subr.mxu0 0.0
      %1230 = vmatpush1.msra.mxu0 %v448
      %1231 = vmatprep.subr.mxu0 0.0
      %1232 = vmatpush1.msra.mxu0 %v447
      %1233 = vmatprep.subr.mxu0 0.0
      %1234 = vmatpush1.msra.mxu0 %v446
      %1235 = vmatprep.subr.mxu0 0.0
      %1236 = vmatpush1.msra.mxu0 %v445
      %1237 = vmatprep.subr.mxu0 0.0
      %1238 = vmatpush1.msra.mxu0 %v444
      %1239 = vmatprep.subr.mxu0 0.0
      %1240 = vmatpush1.msra.mxu0 %v443
      %1241 = vmatprep.subr.mxu0 0.0
      %1242 = vmatpush1.msra.mxu0 %v442
      %1243 = vmatprep.subr.mxu0 0.0
      %1244 = vmatpush1.msra.mxu0 %v441
      %1245 = vmatprep.subr.mxu0 0.0
      %1246 = vmatpush1.msra.mxu0 %v440
      %1247 = vmatprep.subr.mxu0 0.0
      %1248 = vmatpush1.msra.mxu0 %v439
      %1249 = vmatprep.subr.mxu0 0.0
      %1250 = vmatpush1.msra.mxu0 %v438
      %1251 = vmatprep.subr.mxu0 0.0
      %1252 = vmatpush1.msra.mxu0 %v437
      %1253 = vmatprep.subr.mxu0 0.0
      %1254 = vmatpush2.msra.mxu0 %v468
      %1255 = vmatprep.subr.mxu0 0.0
      %1256 = vmatpush2.msra.mxu0 %v467
      %1257 = vmatprep.subr.mxu0 0.0
      %1258 = vmatpush2.msra.mxu0 %v466
      %1259 = vmatprep.subr.mxu0 0.0
      %1260 = vmatpush2.msra.mxu0 %v465
      %1261 = vmatprep.subr.mxu0 0.0
      %1262 = vmatpush2.msra.mxu0 %v464
      %1263 = vmatprep.subr.mxu0 0.0
      %1264 = vmatpush2.msra.mxu0 %v463
      %1265 = vmatprep.subr.mxu0 0.0
      %1266 = vmatpush2.msra.mxu0 %v462
      %1267 = vmatprep.subr.mxu0 0.0
      %1268 = vmatpush2.msra.mxu0 %v461
      %1269 = vmatprep.subr.mxu0 0.0
      %1270 = vmatpush2.msra.mxu0 %v460
      %1271 = vmatprep.subr.mxu0 0.0
      %1272 = vmatpush2.msra.mxu0 %v459
      %1273 = vmatprep.subr.mxu0 0.0
      %1274 = vmatpush2.msra.mxu0 %v458
      %1275 = vmatprep.subr.mxu0 0.0
      %1276 = vmatpush2.msra.mxu0 %v457
      %1277 = vmatprep.subr.mxu0 0.0
      %1278 = vmatpush2.msra.mxu0 %v456
      %1279 = vmatprep.subr.mxu0 0.0
      %1280 = vmatpush2.msra.mxu0 %v455
      %1281 = vmatprep.subr.mxu0 0.0
      %1282 = vmatpush2.msra.mxu0 %v454
      %1283 = vmatprep.subr.mxu0 0.0
      %1284 = vmatpush2.msra.mxu0 %v453
      %1285 = vmatprep.mubr.f32.mxu0 %v516
      %1286 = vmatmul.mubr.f32.gmra.mxu0 %v515
      %v1287 = vpop.f32.mrf.mxu0
      %v1288 = vadd.f32 %v1198, %v1287
      %v1289 = vpop.f32.mrf.mxu0
      %1290 = vmatprep.mubr.f32.mxu0 %v534
      %1291 = vmatmul.mubr.f32.gmra.mxu0 %v533
      %v1292 = vpop.f32.mrf.mxu0
      %v1293 = vadd.f32 %v1203, %v1292
      %v1294 = vpop.f32.mrf.mxu0
      %1295 = vmatprep.mubr.f32.mxu0 %v552
      %1296 = vmatmul.mubr.f32.gmra.mxu0 %v551
      %v1297 = vpop.f32.mrf.mxu0
      %v1298 = vadd.f32 %v1208, %v1297
      %v1299 = vpop.f32.mrf.mxu0
      %1300 = vmatprep.mubr.f32.mxu0 %v570
      %1301 = vmatmul.mubr.f32.gmra.mxu0 %v569
      %v1302 = vpop.f32.mrf.mxu0
      %v1303 = vadd.f32 %v1213, %v1302
      %v1304 = vpop.f32.mrf.mxu0
      %1305 = vmatprep.mubr.f32.mxu0 %v588
      %1306 = vmatmul.mubr.f32.gmra.mxu0 %v587
      %v1307 = vpop.f32.mrf.mxu0
      %v1308 = vadd.f32 %v1218, %v1307
      %v1309 = vpop.f32.mrf.mxu0
      %1310 = vdwg.mxu0
      %1311 = vmatprep.subr.mxu0 0.0
      %1312 = vmatpush1.msra.mxu0 %v484
      %1313 = vmatprep.subr.mxu0 0.0
      %1314 = vmatpush1.msra.mxu0 %v483
      %1315 = vmatprep.subr.mxu0 0.0
      %1316 = vmatpush1.msra.mxu0 %v482
      %1317 = vmatprep.subr.mxu0 0.0
      %1318 = vmatpush1.msra.mxu0 %v481
      %1319 = vmatprep.subr.mxu0 0.0
      %1320 = vmatpush1.msra.mxu0 %v480
      %1321 = vmatprep.subr.mxu0 0.0
      %1322 = vmatpush1.msra.mxu0 %v479
      %1323 = vmatprep.subr.mxu0 0.0
      %1324 = vmatpush1.msra.mxu0 %v478
      %1325 = vmatprep.subr.mxu0 0.0
      %1326 = vmatpush1.msra.mxu0 %v477
      %1327 = vmatprep.subr.mxu0 0.0
      %1328 = vmatpush1.msra.mxu0 %v476
      %1329 = vmatprep.subr.mxu0 0.0
      %1330 = vmatpush1.msra.mxu0 %v475
      %1331 = vmatprep.subr.mxu0 0.0
      %1332 = vmatpush1.msra.mxu0 %v474
      %1333 = vmatprep.subr.mxu0 0.0
      %1334 = vmatpush1.msra.mxu0 %v473
      %1335 = vmatprep.subr.mxu0 0.0
      %1336 = vmatpush1.msra.mxu0 %v472
      %1337 = vmatprep.subr.mxu0 0.0
      %1338 = vmatpush1.msra.mxu0 %v471
      %1339 = vmatprep.subr.mxu0 0.0
      %1340 = vmatpush1.msra.mxu0 %v470
      %1341 = vmatprep.subr.mxu0 0.0
      %1342 = vmatpush1.msra.mxu0 %v469
      %1343 = vmatprep.subr.mxu0 0.0
      %1344 = vmatpush2.msra.mxu0 %v500
      %1345 = vmatprep.subr.mxu0 0.0
      %1346 = vmatpush2.msra.mxu0 %v499
      %1347 = vmatprep.subr.mxu0 0.0
      %1348 = vmatpush2.msra.mxu0 %v498
      %1349 = vmatprep.subr.mxu0 0.0
      %1350 = vmatpush2.msra.mxu0 %v497
      %1351 = vmatprep.subr.mxu0 0.0
      %1352 = vmatpush2.msra.mxu0 %v496
      %1353 = vmatprep.subr.mxu0 0.0
      %1354 = vmatpush2.msra.mxu0 %v495
      %1355 = vmatprep.subr.mxu0 0.0
      %1356 = vmatpush2.msra.mxu0 %v494
      %1357 = vmatprep.subr.mxu0 0.0
      %1358 = vmatpush2.msra.mxu0 %v493
      %1359 = vmatprep.subr.mxu0 0.0
      %1360 = vmatpush2.msra.mxu0 %v492
      %1361 = vmatprep.subr.mxu0 0.0
      %1362 = vmatpush2.msra.mxu0 %v491
      %1363 = vmatprep.subr.mxu0 0.0
      %1364 = vmatpush2.msra.mxu0 %v490
      %1365 = vmatprep.subr.mxu0 0.0
      %1366 = vmatpush2.msra.mxu0 %v489
      %1367 = vmatprep.subr.mxu0 0.0
      %1368 = vmatpush2.msra.mxu0 %v488
      %1369 = vmatprep.subr.mxu0 0.0
      %1370 = vmatpush2.msra.mxu0 %v487
      %1371 = vmatprep.subr.mxu0 0.0
      %1372 = vmatpush2.msra.mxu0 %v486
      %1373 = vmatprep.subr.mxu0 0.0
      %1374 = vmatpush2.msra.mxu0 %v485
      %1375 = vmatprep.mubr.f32.mxu0 %v518
      %1376 = vmatmul.mubr.f32.gmra.mxu0 %v517
      %v1377 = vpop.f32.mrf.mxu0
      %v1378 = vadd.f32 %v1288, %v1377
      %v1379 = vpop.f32.mrf.mxu0
      %1380 = vmatprep.mubr.f32.mxu0 %v536
      %1381 = vmatmul.mubr.f32.gmra.mxu0 %v535
      %v1382 = vpop.f32.mrf.mxu0
      %v1383 = vadd.f32 %v1293, %v1382
      %v1384 = vpop.f32.mrf.mxu0
      %1385 = vmatprep.mubr.f32.mxu0 %v554
      %1386 = vmatmul.mubr.f32.gmra.mxu0 %v553
      %v1387 = vpop.f32.mrf.mxu0
      %v1388 = vadd.f32 %v1298, %v1387
      %v1389 = vpop.f32.mrf.mxu0
      %1390 = vmatprep.mubr.f32.mxu0 %v572
      %1391 = vmatmul.mubr.f32.gmra.mxu0 %v571
      %v1392 = vpop.f32.mrf.mxu0
      %v1393 = vadd.f32 %v1303, %v1392
      %v1394 = vpop.f32.mrf.mxu0
      %1395 = vmatprep.mubr.f32.mxu0 %v590
      %1396 = vmatmul.mubr.f32.gmra.mxu0 %v589
      %v1397 = vpop.f32.mrf.mxu0
      %v1398 = vadd.f32 %v1308, %v1397
      %v1399 = vpop.f32.mrf.mxu0
      %1400 = vdwg.mxu0
      %s1401 = scalar_lea.vmem %s201, 720
      %v1402 = vld [vmem:[%s1401] sm:$0xff]
      %v1403 = vld [vmem:[%s1401 + $0x8] sm:$0xff]
      %v1404 = vld [vmem:[%s1401 + $0x10] sm:$0xff]
      %v1405 = vld [vmem:[%s1401 + $0x18] sm:$0xff]
      %v1406 = vld [vmem:[%s1401 + $0x20] sm:$0xff]
      %v1407 = vld [vmem:[%s1401 + $0x28] sm:$0xff]
      %v1408 = vld [vmem:[%s1401 + $0x30] sm:$0xff]
      %v1409 = vld [vmem:[%s1401 + $0x38] sm:$0xff]
      %v1410 = vld [vmem:[%s1401 + $0x40] sm:$0xff]
      %v1411 = vld [vmem:[%s1401 + $0x48] sm:$0xff]
      %v1412 = vld [vmem:[%s1401 + $0x50] sm:$0xff]
      %v1413 = vld [vmem:[%s1401 + $0x58] sm:$0xff]
      %v1414 = vld [vmem:[%s1401 + $0x60] sm:$0xff]
      %v1415 = vld [vmem:[%s1401 + $0x68] sm:$0xff]
      %v1416 = vld [vmem:[%s1401 + $0x70] sm:$0xff]
      %v1417 = vld [vmem:[%s1401 + $0x78] sm:$0xff]
      %v1418 = vld [vmem:[%s1401 + $0x80] sm:$0xff]
      %v1419 = vld [vmem:[%s1401 + $0x88] sm:$0xff]
      %v1420 = vld [vmem:[%s1401 + $0x90] sm:$0xff]
      %v1421 = vld [vmem:[%s1401 + $0x98] sm:$0xff]
      %v1422 = vld [vmem:[%s1401 + $0xa0] sm:$0xff]
      %v1423 = vld [vmem:[%s1401 + $0xa8] sm:$0xff]
      %v1424 = vld [vmem:[%s1401 + $0xb0] sm:$0xff]
      %v1425 = vld [vmem:[%s1401 + $0xb8] sm:$0xff]
      %v1426 = vld [vmem:[%s1401 + $0xc0] sm:$0xff]
      %v1427 = vld [vmem:[%s1401 + $0xc8] sm:$0xff]
      %v1428 = vld [vmem:[%s1401 + $0xd0] sm:$0xff]
      %v1429 = vld [vmem:[%s1401 + $0xd8] sm:$0xff]
      %v1430 = vld [vmem:[%s1401 + $0xe0] sm:$0xff]
      %v1431 = vld [vmem:[%s1401 + $0xe8] sm:$0xff]
      %v1432 = vld [vmem:[%s1401 + $0xf0] sm:$0xff]
      %v1433 = vld [vmem:[%s1401 + $0xf8] sm:$0xff]
      %v1434 = vld [vmem:[%s1401 + $0x100] sm:$0xff]
      %v1435 = vld [vmem:[%s1401 + $0x108] sm:$0xff]
      %v1436 = vld [vmem:[%s1401 + $0x110] sm:$0xff]
      %v1437 = vld [vmem:[%s1401 + $0x118] sm:$0xff]
      %v1438 = vld [vmem:[%s1401 + $0x120] sm:$0xff]
      %v1439 = vld [vmem:[%s1401 + $0x128] sm:$0xff]
      %v1440 = vld [vmem:[%s1401 + $0x130] sm:$0xff]
      %v1441 = vld [vmem:[%s1401 + $0x138] sm:$0xff]
      %v1442 = vld [vmem:[%s1401 + $0x140] sm:$0xff]
      %v1443 = vld [vmem:[%s1401 + $0x148] sm:$0xff]
      %v1444 = vld [vmem:[%s1401 + $0x150] sm:$0xff]
      %v1445 = vld [vmem:[%s1401 + $0x158] sm:$0xff]
      %v1446 = vld [vmem:[%s1401 + $0x160] sm:$0xff]
      %v1447 = vld [vmem:[%s1401 + $0x168] sm:$0xff]
      %v1448 = vld [vmem:[%s1401 + $0x170] sm:$0xff]
      %v1449 = vld [vmem:[%s1401 + $0x178] sm:$0xff]
      %v1450 = vld [vmem:[%s1401 + $0x180] sm:$0xff]
      %v1451 = vld [vmem:[%s1401 + $0x188] sm:$0xff]
      %v1452 = vld [vmem:[%s1401 + $0x190] sm:$0xff]
      %v1453 = vld [vmem:[%s1401 + $0x198] sm:$0xff]
      %v1454 = vld [vmem:[%s1401 + $0x1a0] sm:$0xff]
      %v1455 = vld [vmem:[%s1401 + $0x1a8] sm:$0xff]
      %v1456 = vld [vmem:[%s1401 + $0x1b0] sm:$0xff]
      %v1457 = vld [vmem:[%s1401 + $0x1b8] sm:$0xff]
      %v1458 = vld [vmem:[%s1401 + $0x1c0] sm:$0xff]
      %v1459 = vld [vmem:[%s1401 + $0x1c8] sm:$0xff]
      %v1460 = vld [vmem:[%s1401 + $0x1d0] sm:$0xff]
      %v1461 = vld [vmem:[%s1401 + $0x1d8] sm:$0xff]
      %v1462 = vld [vmem:[%s1401 + $0x1e0] sm:$0xff]
      %v1463 = vld [vmem:[%s1401 + $0x1e8] sm:$0xff]
      %v1464 = vld [vmem:[%s1401 + $0x1f0] sm:$0xff]
      %v1465 = vld [vmem:[%s1401 + $0x1f8] sm:$0xff]
      %v1466 = vld [vmem:[%s1401 + $0x200] sm:$0xff]
      %v1467 = vld [vmem:[%s1401 + $0x208] sm:$0xff]
      %v1468 = vld [vmem:[%s1401 + $0x210] sm:$0xff]
      %v1469 = vld [vmem:[%s1401 + $0x218] sm:$0xff]
      %v1470 = vld [vmem:[%s1401 + $0x220] sm:$0xff]
      %v1471 = vld [vmem:[%s1401 + $0x228] sm:$0xff]
      %v1472 = vld [vmem:[%s1401 + $0x230] sm:$0xff]
      %v1473 = vld [vmem:[%s1401 + $0x238] sm:$0xff]
      %v1474 = vld [vmem:[%s1401 + $0x240] sm:$0xff]
      %v1475 = vld [vmem:[%s1401 + $0x248] sm:$0xff]
      %v1476 = vld [vmem:[%s1401 + $0x250] sm:$0xff]
      %v1477 = vld [vmem:[%s1401 + $0x258] sm:$0xff]
      %v1478 = vld [vmem:[%s1401 + $0x260] sm:$0xff]
      %v1479 = vld [vmem:[%s1401 + $0x268] sm:$0xff]
      %v1480 = vld [vmem:[%s1401 + $0x270] sm:$0xff]
      %v1481 = vld [vmem:[%s1401 + $0x278] sm:$0xff]
      %v1482 = vld [vmem:[%s1401 + $0x280] sm:$0xff]
      %v1483 = vld [vmem:[%s1401 + $0x288] sm:$0xff]
      %v1484 = vld [vmem:[%s1401 + $0x290] sm:$0xff]
      %v1485 = vld [vmem:[%s1401 + $0x298] sm:$0xff]
      %v1486 = vld [vmem:[%s1401 + $0x2a0] sm:$0xff]
      %v1487 = vld [vmem:[%s1401 + $0x2a8] sm:$0xff]
      %v1488 = vld [vmem:[%s1401 + $0x2b0] sm:$0xff]
      %v1489 = vld [vmem:[%s1401 + $0x2b8] sm:$0xff]
      %v1490 = vld [vmem:[%s1401 + $0x2c0] sm:$0xff]
      %v1491 = vld [vmem:[%s1401 + $0x2c8] sm:$0xff]
      %1492 = vmatprep.subr.mxu0 0.0
      %1493 = vmatpush1.msra.mxu0 %v228
      %1494 = vmatprep.subr.mxu0 0.0
      %1495 = vmatpush1.msra.mxu0 %v227
      %1496 = vmatprep.subr.mxu0 0.0
      %1497 = vmatpush1.msra.mxu0 %v226
      %1498 = vmatprep.subr.mxu0 0.0
      %1499 = vmatpush1.msra.mxu0 %v225
      %1500 = vmatprep.subr.mxu0 0.0
      %1501 = vmatpush1.msra.mxu0 %v224
      %1502 = vmatprep.subr.mxu0 0.0
      %1503 = vmatpush1.msra.mxu0 %v223
      %1504 = vmatprep.subr.mxu0 0.0
      %1505 = vmatpush1.msra.mxu0 %v222
      %1506 = vmatprep.subr.mxu0 0.0
      %1507 = vmatpush1.msra.mxu0 %v221
      %1508 = vmatprep.subr.mxu0 0.0
      %1509 = vmatpush1.msra.mxu0 %v220
      %1510 = vmatprep.subr.mxu0 0.0
      %1511 = vmatpush1.msra.mxu0 %v219
      %1512 = vmatprep.subr.mxu0 0.0
      %1513 = vmatpush1.msra.mxu0 %v218
      %1514 = vmatprep.subr.mxu0 0.0
      %1515 = vmatpush1.msra.mxu0 %v217
      %1516 = vmatprep.subr.mxu0 0.0
      %1517 = vmatpush1.msra.mxu0 %v216
      %1518 = vmatprep.subr.mxu0 0.0
      %1519 = vmatpush1.msra.mxu0 %v215
      %1520 = vmatprep.subr.mxu0 0.0
      %1521 = vmatpush1.msra.mxu0 %v214
      %1522 = vmatprep.subr.mxu0 0.0
      %1523 = vmatpush1.msra.mxu0 %v213
      %1524 = vmatprep.subr.mxu0 0.0
      %1525 = vmatpush2.msra.mxu0 %v244
      %1526 = vmatprep.subr.mxu0 0.0
      %1527 = vmatpush2.msra.mxu0 %v243
      %1528 = vmatprep.subr.mxu0 0.0
      %1529 = vmatpush2.msra.mxu0 %v242
      %1530 = vmatprep.subr.mxu0 0.0
      %1531 = vmatpush2.msra.mxu0 %v241
      %1532 = vmatprep.subr.mxu0 0.0
      %1533 = vmatpush2.msra.mxu0 %v240
      %1534 = vmatprep.subr.mxu0 0.0
      %1535 = vmatpush2.msra.mxu0 %v239
      %1536 = vmatprep.subr.mxu0 0.0
      %1537 = vmatpush2.msra.mxu0 %v238
      %1538 = vmatprep.subr.mxu0 0.0
      %1539 = vmatpush2.msra.mxu0 %v237
      %1540 = vmatprep.subr.mxu0 0.0
      %1541 = vmatpush2.msra.mxu0 %v236
      %1542 = vmatprep.subr.mxu0 0.0
      %1543 = vmatpush2.msra.mxu0 %v235
      %1544 = vmatprep.subr.mxu0 0.0
      %1545 = vmatpush2.msra.mxu0 %v234
      %1546 = vmatprep.subr.mxu0 0.0
      %1547 = vmatpush2.msra.mxu0 %v233
      %1548 = vmatprep.subr.mxu0 0.0
      %1549 = vmatpush2.msra.mxu0 %v232
      %1550 = vmatprep.subr.mxu0 0.0
      %1551 = vmatpush2.msra.mxu0 %v231
      %1552 = vmatprep.subr.mxu0 0.0
      %1553 = vmatpush2.msra.mxu0 %v230
      %1554 = vmatprep.subr.mxu0 0.0
      %1555 = vmatpush2.msra.mxu0 %v229
      %1556 = vmatprep.mubr.f32.mxu0 %v1403
      %1557 = vmatmul.mubr.f32.gmra.mxu0 %v1402
      %v1558 = vpop.f32.mrf.mxu0
      %v1559 = vadd.f32 0.0, %v1558
      %v1560 = vpop.f32.mrf.mxu0
      %1561 = vmatprep.mubr.f32.mxu0 %v1421
      %1562 = vmatmul.mubr.f32.gmra.mxu0 %v1420
      %v1563 = vpop.f32.mrf.mxu0
      %v1564 = vadd.f32 0.0, %v1563
      %v1565 = vpop.f32.mrf.mxu0
      %1566 = vmatprep.mubr.f32.mxu0 %v1439
      %1567 = vmatmul.mubr.f32.gmra.mxu0 %v1438
      %v1568 = vpop.f32.mrf.mxu0
      %v1569 = vadd.f32 0.0, %v1568
      %v1570 = vpop.f32.mrf.mxu0
      %1571 = vmatprep.mubr.f32.mxu0 %v1457
      %1572 = vmatmul.mubr.f32.gmra.mxu0 %v1456
      %v1573 = vpop.f32.mrf.mxu0
      %v1574 = vadd.f32 0.0, %v1573
      %v1575 = vpop.f32.mrf.mxu0
      %1576 = vmatprep.mubr.f32.mxu0 %v1475
      %1577 = vmatmul.mubr.f32.gmra.mxu0 %v1474
      %v1578 = vpop.f32.mrf.mxu0
      %v1579 = vadd.f32 0.0, %v1578
      %v1580 = vpop.f32.mrf.mxu0
      %1581 = vdwg.mxu0
      %1582 = vmatprep.subr.mxu0 0.0
      %1583 = vmatpush1.msra.mxu0 %v260
      %1584 = vmatprep.subr.mxu0 0.0
      %1585 = vmatpush1.msra.mxu0 %v259
      %1586 = vmatprep.subr.mxu0 0.0
      %1587 = vmatpush1.msra.mxu0 %v258
      %1588 = vmatprep.subr.mxu0 0.0
      %1589 = vmatpush1.msra.mxu0 %v257
      %1590 = vmatprep.subr.mxu0 0.0
      %1591 = vmatpush1.msra.mxu0 %v256
      %1592 = vmatprep.subr.mxu0 0.0
      %1593 = vmatpush1.msra.mxu0 %v255
      %1594 = vmatprep.subr.mxu0 0.0
      %1595 = vmatpush1.msra.mxu0 %v254
      %1596 = vmatprep.subr.mxu0 0.0
      %1597 = vmatpush1.msra.mxu0 %v253
      %1598 = vmatprep.subr.mxu0 0.0
      %1599 = vmatpush1.msra.mxu0 %v252
      %1600 = vmatprep.subr.mxu0 0.0
      %1601 = vmatpush1.msra.mxu0 %v251
      %1602 = vmatprep.subr.mxu0 0.0
      %1603 = vmatpush1.msra.mxu0 %v250
      %1604 = vmatprep.subr.mxu0 0.0
      %1605 = vmatpush1.msra.mxu0 %v249
      %1606 = vmatprep.subr.mxu0 0.0
      %1607 = vmatpush1.msra.mxu0 %v248
      %1608 = vmatprep.subr.mxu0 0.0
      %1609 = vmatpush1.msra.mxu0 %v247
      %1610 = vmatprep.subr.mxu0 0.0
      %1611 = vmatpush1.msra.mxu0 %v246
      %1612 = vmatprep.subr.mxu0 0.0
      %1613 = vmatpush1.msra.mxu0 %v245
      %1614 = vmatprep.subr.mxu0 0.0
      %1615 = vmatpush2.msra.mxu0 %v276
      %1616 = vmatprep.subr.mxu0 0.0
      %1617 = vmatpush2.msra.mxu0 %v275
      %1618 = vmatprep.subr.mxu0 0.0
      %1619 = vmatpush2.msra.mxu0 %v274
      %1620 = vmatprep.subr.mxu0 0.0
      %1621 = vmatpush2.msra.mxu0 %v273
      %1622 = vmatprep.subr.mxu0 0.0
      %1623 = vmatpush2.msra.mxu0 %v272
      %1624 = vmatprep.subr.mxu0 0.0
      %1625 = vmatpush2.msra.mxu0 %v271
      %1626 = vmatprep.subr.mxu0 0.0
      %1627 = vmatpush2.msra.mxu0 %v270
      %1628 = vmatprep.subr.mxu0 0.0
      %1629 = vmatpush2.msra.mxu0 %v269
      %1630 = vmatprep.subr.mxu0 0.0
      %1631 = vmatpush2.msra.mxu0 %v268
      %1632 = vmatprep.subr.mxu0 0.0
      %1633 = vmatpush2.msra.mxu0 %v267
      %1634 = vmatprep.subr.mxu0 0.0
      %1635 = vmatpush2.msra.mxu0 %v266
      %1636 = vmatprep.subr.mxu0 0.0
      %1637 = vmatpush2.msra.mxu0 %v265
      %1638 = vmatprep.subr.mxu0 0.0
      %1639 = vmatpush2.msra.mxu0 %v264
      %1640 = vmatprep.subr.mxu0 0.0
      %1641 = vmatpush2.msra.mxu0 %v263
      %1642 = vmatprep.subr.mxu0 0.0
      %1643 = vmatpush2.msra.mxu0 %v262
      %1644 = vmatprep.subr.mxu0 0.0
      %1645 = vmatpush2.msra.mxu0 %v261
      %1646 = vmatprep.mubr.f32.mxu0 %v1405
      %1647 = vmatmul.mubr.f32.gmra.mxu0 %v1404
      %v1648 = vpop.f32.mrf.mxu0
      %v1649 = vadd.f32 %v1559, %v1648
      %v1650 = vpop.f32.mrf.mxu0
      %1651 = vmatprep.mubr.f32.mxu0 %v1423
      %1652 = vmatmul.mubr.f32.gmra.mxu0 %v1422
      %v1653 = vpop.f32.mrf.mxu0
      %v1654 = vadd.f32 %v1564, %v1653
      %v1655 = vpop.f32.mrf.mxu0
      %1656 = vmatprep.mubr.f32.mxu0 %v1441
      %1657 = vmatmul.mubr.f32.gmra.mxu0 %v1440
      %v1658 = vpop.f32.mrf.mxu0
      %v1659 = vadd.f32 %v1569, %v1658
      %v1660 = vpop.f32.mrf.mxu0
      %1661 = vmatprep.mubr.f32.mxu0 %v1459
      %1662 = vmatmul.mubr.f32.gmra.mxu0 %v1458
      %v1663 = vpop.f32.mrf.mxu0
      %v1664 = vadd.f32 %v1574, %v1663
      %v1665 = vpop.f32.mrf.mxu0
      %1666 = vmatprep.mubr.f32.mxu0 %v1477
      %1667 = vmatmul.mubr.f32.gmra.mxu0 %v1476
      %v1668 = vpop.f32.mrf.mxu0
      %v1669 = vadd.f32 %v1579, %v1668
      %v1670 = vpop.f32.mrf.mxu0
      %1671 = vdwg.mxu0
      %1672 = vmatprep.subr.mxu0 0.0
      %1673 = vmatpush1.msra.mxu0 %v292
      %1674 = vmatprep.subr.mxu0 0.0
      %1675 = vmatpush1.msra.mxu0 %v291
      %1676 = vmatprep.subr.mxu0 0.0
      %1677 = vmatpush1.msra.mxu0 %v290
      %1678 = vmatprep.subr.mxu0 0.0
      %1679 = vmatpush1.msra.mxu0 %v289
      %1680 = vmatprep.subr.mxu0 0.0
      %1681 = vmatpush1.msra.mxu0 %v288
      %1682 = vmatprep.subr.mxu0 0.0
      %1683 = vmatpush1.msra.mxu0 %v287
      %1684 = vmatprep.subr.mxu0 0.0
      %1685 = vmatpush1.msra.mxu0 %v286
      %1686 = vmatprep.subr.mxu0 0.0
      %1687 = vmatpush1.msra.mxu0 %v285
      %1688 = vmatprep.subr.mxu0 0.0
      %1689 = vmatpush1.msra.mxu0 %v284
      %1690 = vmatprep.subr.mxu0 0.0
      %1691 = vmatpush1.msra.mxu0 %v283
      %1692 = vmatprep.subr.mxu0 0.0
      %1693 = vmatpush1.msra.mxu0 %v282
      %1694 = vmatprep.subr.mxu0 0.0
      %1695 = vmatpush1.msra.mxu0 %v281
      %1696 = vmatprep.subr.mxu0 0.0
      %1697 = vmatpush1.msra.mxu0 %v280
      %1698 = vmatprep.subr.mxu0 0.0
      %1699 = vmatpush1.msra.mxu0 %v279
      %1700 = vmatprep.subr.mxu0 0.0
      %1701 = vmatpush1.msra.mxu0 %v278
      %1702 = vmatprep.subr.mxu0 0.0
      %1703 = vmatpush1.msra.mxu0 %v277
      %1704 = vmatprep.subr.mxu0 0.0
      %1705 = vmatpush2.msra.mxu0 %v308
      %1706 = vmatprep.subr.mxu0 0.0
      %1707 = vmatpush2.msra.mxu0 %v307
      %1708 = vmatprep.subr.mxu0 0.0
      %1709 = vmatpush2.msra.mxu0 %v306
      %1710 = vmatprep.subr.mxu0 0.0
      %1711 = vmatpush2.msra.mxu0 %v305
      %1712 = vmatprep.subr.mxu0 0.0
      %1713 = vmatpush2.msra.mxu0 %v304
      %1714 = vmatprep.subr.mxu0 0.0
      %1715 = vmatpush2.msra.mxu0 %v303
      %1716 = vmatprep.subr.mxu0 0.0
      %1717 = vmatpush2.msra.mxu0 %v302
      %1718 = vmatprep.subr.mxu0 0.0
      %1719 = vmatpush2.msra.mxu0 %v301
      %1720 = vmatprep.subr.mxu0 0.0
      %1721 = vmatpush2.msra.mxu0 %v300
      %1722 = vmatprep.subr.mxu0 0.0
      %1723 = vmatpush2.msra.mxu0 %v299
      %1724 = vmatprep.subr.mxu0 0.0
      %1725 = vmatpush2.msra.mxu0 %v298
      %1726 = vmatprep.subr.mxu0 0.0
      %1727 = vmatpush2.msra.mxu0 %v297
      %1728 = vmatprep.subr.mxu0 0.0
      %1729 = vmatpush2.msra.mxu0 %v296
      %1730 = vmatprep.subr.mxu0 0.0
      %1731 = vmatpush2.msra.mxu0 %v295
      %1732 = vmatprep.subr.mxu0 0.0
      %1733 = vmatpush2.msra.mxu0 %v294
      %1734 = vmatprep.subr.mxu0 0.0
      %1735 = vmatpush2.msra.mxu0 %v293
      %1736 = vmatprep.mubr.f32.mxu0 %v1407
      %1737 = vmatmul.mubr.f32.gmra.mxu0 %v1406
      %v1738 = vpop.f32.mrf.mxu0
      %v1739 = vadd.f32 %v1649, %v1738
      %v1740 = vpop.f32.mrf.mxu0
      %1741 = vmatprep.mubr.f32.mxu0 %v1425
      %1742 = vmatmul.mubr.f32.gmra.mxu0 %v1424
      %v1743 = vpop.f32.mrf.mxu0
      %v1744 = vadd.f32 %v1654, %v1743
      %v1745 = vpop.f32.mrf.mxu0
      %1746 = vmatprep.mubr.f32.mxu0 %v1443
      %1747 = vmatmul.mubr.f32.gmra.mxu0 %v1442
      %v1748 = vpop.f32.mrf.mxu0
      %v1749 = vadd.f32 %v1659, %v1748
      %v1750 = vpop.f32.mrf.mxu0
      %1751 = vmatprep.mubr.f32.mxu0 %v1461
      %1752 = vmatmul.mubr.f32.gmra.mxu0 %v1460
      %v1753 = vpop.f32.mrf.mxu0
      %v1754 = vadd.f32 %v1664, %v1753
      %v1755 = vpop.f32.mrf.mxu0
      %1756 = vmatprep.mubr.f32.mxu0 %v1479
      %1757 = vmatmul.mubr.f32.gmra.mxu0 %v1478
      %v1758 = vpop.f32.mrf.mxu0
      %v1759 = vadd.f32 %v1669, %v1758
      %v1760 = vpop.f32.mrf.mxu0
      %1761 = vdwg.mxu0
      %1762 = vmatprep.subr.mxu0 0.0
      %1763 = vmatpush1.msra.mxu0 %v324
      %1764 = vmatprep.subr.mxu0 0.0
      %1765 = vmatpush1.msra.mxu0 %v323
      %1766 = vmatprep.subr.mxu0 0.0
      %1767 = vmatpush1.msra.mxu0 %v322
      %1768 = vmatprep.subr.mxu0 0.0
      %1769 = vmatpush1.msra.mxu0 %v321
      %1770 = vmatprep.subr.mxu0 0.0
      %1771 = vmatpush1.msra.mxu0 %v320
      %1772 = vmatprep.subr.mxu0 0.0
      %1773 = vmatpush1.msra.mxu0 %v319
      %1774 = vmatprep.subr.mxu0 0.0
      %1775 = vmatpush1.msra.mxu0 %v318
      %1776 = vmatprep.subr.mxu0 0.0
      %1777 = vmatpush1.msra.mxu0 %v317
      %1778 = vmatprep.subr.mxu0 0.0
      %1779 = vmatpush1.msra.mxu0 %v316
      %1780 = vmatprep.subr.mxu0 0.0
      %1781 = vmatpush1.msra.mxu0 %v315
      %1782 = vmatprep.subr.mxu0 0.0
      %1783 = vmatpush1.msra.mxu0 %v314
      %1784 = vmatprep.subr.mxu0 0.0
      %1785 = vmatpush1.msra.mxu0 %v313
      %1786 = vmatprep.subr.mxu0 0.0
      %1787 = vmatpush1.msra.mxu0 %v312
      %1788 = vmatprep.subr.mxu0 0.0
      %1789 = vmatpush1.msra.mxu0 %v311
      %1790 = vmatprep.subr.mxu0 0.0
      %1791 = vmatpush1.msra.mxu0 %v310
      %1792 = vmatprep.subr.mxu0 0.0
      %1793 = vmatpush1.msra.mxu0 %v309
      %1794 = vmatprep.subr.mxu0 0.0
      %1795 = vmatpush2.msra.mxu0 %v340
      %1796 = vmatprep.subr.mxu0 0.0
      %1797 = vmatpush2.msra.mxu0 %v339
      %1798 = vmatprep.subr.mxu0 0.0
      %1799 = vmatpush2.msra.mxu0 %v338
      %1800 = vmatprep.subr.mxu0 0.0
      %1801 = vmatpush2.msra.mxu0 %v337
      %1802 = vmatprep.subr.mxu0 0.0
      %1803 = vmatpush2.msra.mxu0 %v336
      %1804 = vmatprep.subr.mxu0 0.0
      %1805 = vmatpush2.msra.mxu0 %v335
      %1806 = vmatprep.subr.mxu0 0.0
      %1807 = vmatpush2.msra.mxu0 %v334
      %1808 = vmatprep.subr.mxu0 0.0
      %1809 = vmatpush2.msra.mxu0 %v333
      %1810 = vmatprep.subr.mxu0 0.0
      %1811 = vmatpush2.msra.mxu0 %v332
      %1812 = vmatprep.subr.mxu0 0.0
      %1813 = vmatpush2.msra.mxu0 %v331
      %1814 = vmatprep.subr.mxu0 0.0
      %1815 = vmatpush2.msra.mxu0 %v330
      %1816 = vmatprep.subr.mxu0 0.0
      %1817 = vmatpush2.msra.mxu0 %v329
      %1818 = vmatprep.subr.mxu0 0.0
      %1819 = vmatpush2.msra.mxu0 %v328
      %1820 = vmatprep.subr.mxu0 0.0
      %1821 = vmatpush2.msra.mxu0 %v327
      %1822 = vmatprep.subr.mxu0 0.0
      %1823 = vmatpush2.msra.mxu0 %v326
      %1824 = vmatprep.subr.mxu0 0.0
      %1825 = vmatpush2.msra.mxu0 %v325
      %1826 = vmatprep.mubr.f32.mxu0 %v1409
      %1827 = vmatmul.mubr.f32.gmra.mxu0 %v1408
      %v1828 = vpop.f32.mrf.mxu0
      %v1829 = vadd.f32 %v1739, %v1828
      %v1830 = vpop.f32.mrf.mxu0
      %1831 = vmatprep.mubr.f32.mxu0 %v1427
      %1832 = vmatmul.mubr.f32.gmra.mxu0 %v1426
      %v1833 = vpop.f32.mrf.mxu0
      %v1834 = vadd.f32 %v1744, %v1833
      %v1835 = vpop.f32.mrf.mxu0
      %1836 = vmatprep.mubr.f32.mxu0 %v1445
      %1837 = vmatmul.mubr.f32.gmra.mxu0 %v1444
      %v1838 = vpop.f32.mrf.mxu0
      %v1839 = vadd.f32 %v1749, %v1838
      %v1840 = vpop.f32.mrf.mxu0
      %1841 = vmatprep.mubr.f32.mxu0 %v1463
      %1842 = vmatmul.mubr.f32.gmra.mxu0 %v1462
      %v1843 = vpop.f32.mrf.mxu0
      %v1844 = vadd.f32 %v1754, %v1843
      %v1845 = vpop.f32.mrf.mxu0
      %1846 = vmatprep.mubr.f32.mxu0 %v1481
      %1847 = vmatmul.mubr.f32.gmra.mxu0 %v1480
      %v1848 = vpop.f32.mrf.mxu0
      %v1849 = vadd.f32 %v1759, %v1848
      %v1850 = vpop.f32.mrf.mxu0
      %1851 = vdwg.mxu0
      %1852 = vmatprep.subr.mxu0 0.0
      %1853 = vmatpush1.msra.mxu0 %v356
      %1854 = vmatprep.subr.mxu0 0.0
      %1855 = vmatpush1.msra.mxu0 %v355
      %1856 = vmatprep.subr.mxu0 0.0
      %1857 = vmatpush1.msra.mxu0 %v354
      %1858 = vmatprep.subr.mxu0 0.0
      %1859 = vmatpush1.msra.mxu0 %v353
      %1860 = vmatprep.subr.mxu0 0.0
      %1861 = vmatpush1.msra.mxu0 %v352
      %1862 = vmatprep.subr.mxu0 0.0
      %1863 = vmatpush1.msra.mxu0 %v351
      %1864 = vmatprep.subr.mxu0 0.0
      %1865 = vmatpush1.msra.mxu0 %v350
      %1866 = vmatprep.subr.mxu0 0.0
      %1867 = vmatpush1.msra.mxu0 %v349
      %1868 = vmatprep.subr.mxu0 0.0
      %1869 = vmatpush1.msra.mxu0 %v348
      %1870 = vmatprep.subr.mxu0 0.0
      %1871 = vmatpush1.msra.mxu0 %v347
      %1872 = vmatprep.subr.mxu0 0.0
      %1873 = vmatpush1.msra.mxu0 %v346
      %1874 = vmatprep.subr.mxu0 0.0
      %1875 = vmatpush1.msra.mxu0 %v345
      %1876 = vmatprep.subr.mxu0 0.0
      %1877 = vmatpush1.msra.mxu0 %v344
      %1878 = vmatprep.subr.mxu0 0.0
      %1879 = vmatpush1.msra.mxu0 %v343
      %1880 = vmatprep.subr.mxu0 0.0
      %1881 = vmatpush1.msra.mxu0 %v342
      %1882 = vmatprep.subr.mxu0 0.0
      %1883 = vmatpush1.msra.mxu0 %v341
      %1884 = vmatprep.subr.mxu0 0.0
      %1885 = vmatpush2.msra.mxu0 %v372
      %1886 = vmatprep.subr.mxu0 0.0
      %1887 = vmatpush2.msra.mxu0 %v371
      %1888 = vmatprep.subr.mxu0 0.0
      %1889 = vmatpush2.msra.mxu0 %v370
      %1890 = vmatprep.subr.mxu0 0.0
      %1891 = vmatpush2.msra.mxu0 %v369
      %1892 = vmatprep.subr.mxu0 0.0
      %1893 = vmatpush2.msra.mxu0 %v368
      %1894 = vmatprep.subr.mxu0 0.0
      %1895 = vmatpush2.msra.mxu0 %v367
      %1896 = vmatprep.subr.mxu0 0.0
      %1897 = vmatpush2.msra.mxu0 %v366
      %1898 = vmatprep.subr.mxu0 0.0
      %1899 = vmatpush2.msra.mxu0 %v365
      %1900 = vmatprep.subr.mxu0 0.0
      %1901 = vmatpush2.msra.mxu0 %v364
      %1902 = vmatprep.subr.mxu0 0.0
      %1903 = vmatpush2.msra.mxu0 %v363
      %1904 = vmatprep.subr.mxu0 0.0
      %1905 = vmatpush2.msra.mxu0 %v362
      %1906 = vmatprep.subr.mxu0 0.0
      %1907 = vmatpush2.msra.mxu0 %v361
      %1908 = vmatprep.subr.mxu0 0.0
      %1909 = vmatpush2.msra.mxu0 %v360
      %1910 = vmatprep.subr.mxu0 0.0
      %1911 = vmatpush2.msra.mxu0 %v359
      %1912 = vmatprep.subr.mxu0 0.0
      %1913 = vmatpush2.msra.mxu0 %v358
      %1914 = vmatprep.subr.mxu0 0.0
      %1915 = vmatpush2.msra.mxu0 %v357
      %1916 = vmatprep.mubr.f32.mxu0 %v1411
      %1917 = vmatmul.mubr.f32.gmra.mxu0 %v1410
      %v1918 = vpop.f32.mrf.mxu0
      %v1919 = vadd.f32 %v1829, %v1918
      %v1920 = vpop.f32.mrf.mxu0
      %1921 = vmatprep.mubr.f32.mxu0 %v1429
      %1922 = vmatmul.mubr.f32.gmra.mxu0 %v1428
      %v1923 = vpop.f32.mrf.mxu0
      %v1924 = vadd.f32 %v1834, %v1923
      %v1925 = vpop.f32.mrf.mxu0
      %1926 = vmatprep.mubr.f32.mxu0 %v1447
      %1927 = vmatmul.mubr.f32.gmra.mxu0 %v1446
      %v1928 = vpop.f32.mrf.mxu0
      %v1929 = vadd.f32 %v1839, %v1928
      %v1930 = vpop.f32.mrf.mxu0
      %1931 = vmatprep.mubr.f32.mxu0 %v1465
      %1932 = vmatmul.mubr.f32.gmra.mxu0 %v1464
      %v1933 = vpop.f32.mrf.mxu0
      %v1934 = vadd.f32 %v1844, %v1933
      %v1935 = vpop.f32.mrf.mxu0
      %1936 = vmatprep.mubr.f32.mxu0 %v1483
      %1937 = vmatmul.mubr.f32.gmra.mxu0 %v1482
      %v1938 = vpop.f32.mrf.mxu0
      %v1939 = vadd.f32 %v1849, %v1938
      %v1940 = vpop.f32.mrf.mxu0
      %1941 = vdwg.mxu0
      %1942 = vmatprep.subr.mxu0 0.0
      %1943 = vmatpush1.msra.mxu0 %v388
      %1944 = vmatprep.subr.mxu0 0.0
      %1945 = vmatpush1.msra.mxu0 %v387
      %1946 = vmatprep.subr.mxu0 0.0
      %1947 = vmatpush1.msra.mxu0 %v386
      %1948 = vmatprep.subr.mxu0 0.0
      %1949 = vmatpush1.msra.mxu0 %v385
      %1950 = vmatprep.subr.mxu0 0.0
      %1951 = vmatpush1.msra.mxu0 %v384
      %1952 = vmatprep.subr.mxu0 0.0
      %1953 = vmatpush1.msra.mxu0 %v383
      %1954 = vmatprep.subr.mxu0 0.0
      %1955 = vmatpush1.msra.mxu0 %v382
      %1956 = vmatprep.subr.mxu0 0.0
      %1957 = vmatpush1.msra.mxu0 %v381
      %1958 = vmatprep.subr.mxu0 0.0
      %1959 = vmatpush1.msra.mxu0 %v380
      %1960 = vmatprep.subr.mxu0 0.0
      %1961 = vmatpush1.msra.mxu0 %v379
      %1962 = vmatprep.subr.mxu0 0.0
      %1963 = vmatpush1.msra.mxu0 %v378
      %1964 = vmatprep.subr.mxu0 0.0
      %1965 = vmatpush1.msra.mxu0 %v377
      %1966 = vmatprep.subr.mxu0 0.0
      %1967 = vmatpush1.msra.mxu0 %v376
      %1968 = vmatprep.subr.mxu0 0.0
      %1969 = vmatpush1.msra.mxu0 %v375
      %1970 = vmatprep.subr.mxu0 0.0
      %1971 = vmatpush1.msra.mxu0 %v374
      %1972 = vmatprep.subr.mxu0 0.0
      %1973 = vmatpush1.msra.mxu0 %v373
      %1974 = vmatprep.subr.mxu0 0.0
      %1975 = vmatpush2.msra.mxu0 %v404
      %1976 = vmatprep.subr.mxu0 0.0
      %1977 = vmatpush2.msra.mxu0 %v403
      %1978 = vmatprep.subr.mxu0 0.0
      %1979 = vmatpush2.msra.mxu0 %v402
      %1980 = vmatprep.subr.mxu0 0.0
      %1981 = vmatpush2.msra.mxu0 %v401
      %1982 = vmatprep.subr.mxu0 0.0
      %1983 = vmatpush2.msra.mxu0 %v400
      %1984 = vmatprep.subr.mxu0 0.0
      %1985 = vmatpush2.msra.mxu0 %v399
      %1986 = vmatprep.subr.mxu0 0.0
      %1987 = vmatpush2.msra.mxu0 %v398
      %1988 = vmatprep.subr.mxu0 0.0
      %1989 = vmatpush2.msra.mxu0 %v397
      %1990 = vmatprep.subr.mxu0 0.0
      %1991 = vmatpush2.msra.mxu0 %v396
      %1992 = vmatprep.subr.mxu0 0.0
      %1993 = vmatpush2.msra.mxu0 %v395
      %1994 = vmatprep.subr.mxu0 0.0
      %1995 = vmatpush2.msra.mxu0 %v394
      %1996 = vmatprep.subr.mxu0 0.0
      %1997 = vmatpush2.msra.mxu0 %v393
      %1998 = vmatprep.subr.mxu0 0.0
      %1999 = vmatpush2.msra.mxu0 %v392
      %2000 = vmatprep.subr.mxu0 0.0
      %2001 = vmatpush2.msra.mxu0 %v391
      %2002 = vmatprep.subr.mxu0 0.0
      %2003 = vmatpush2.msra.mxu0 %v390
      %2004 = vmatprep.subr.mxu0 0.0
      %2005 = vmatpush2.msra.mxu0 %v389
      %2006 = vmatprep.mubr.f32.mxu0 %v1413
      %2007 = vmatmul.mubr.f32.gmra.mxu0 %v1412
      %v2008 = vpop.f32.mrf.mxu0
      %v2009 = vadd.f32 %v1919, %v2008
      %v2010 = vpop.f32.mrf.mxu0
      %2011 = vmatprep.mubr.f32.mxu0 %v1431
      %2012 = vmatmul.mubr.f32.gmra.mxu0 %v1430
      %v2013 = vpop.f32.mrf.mxu0
      %v2014 = vadd.f32 %v1924, %v2013
      %v2015 = vpop.f32.mrf.mxu0
      %2016 = vmatprep.mubr.f32.mxu0 %v1449
      %2017 = vmatmul.mubr.f32.gmra.mxu0 %v1448
      %v2018 = vpop.f32.mrf.mxu0
      %v2019 = vadd.f32 %v1929, %v2018
      %v2020 = vpop.f32.mrf.mxu0
      %2021 = vmatprep.mubr.f32.mxu0 %v1467
      %2022 = vmatmul.mubr.f32.gmra.mxu0 %v1466
      %v2023 = vpop.f32.mrf.mxu0
      %v2024 = vadd.f32 %v1934, %v2023
      %v2025 = vpop.f32.mrf.mxu0
      %2026 = vmatprep.mubr.f32.mxu0 %v1485
      %2027 = vmatmul.mubr.f32.gmra.mxu0 %v1484
      %v2028 = vpop.f32.mrf.mxu0
      %v2029 = vadd.f32 %v1939, %v2028
      %v2030 = vpop.f32.mrf.mxu0
      %2031 = vdwg.mxu0
      %2032 = vmatprep.subr.mxu0 0.0
      %2033 = vmatpush1.msra.mxu0 %v420
      %2034 = vmatprep.subr.mxu0 0.0
      %2035 = vmatpush1.msra.mxu0 %v419
      %2036 = vmatprep.subr.mxu0 0.0
      %2037 = vmatpush1.msra.mxu0 %v418
      %2038 = vmatprep.subr.mxu0 0.0
      %2039 = vmatpush1.msra.mxu0 %v417
      %2040 = vmatprep.subr.mxu0 0.0
      %2041 = vmatpush1.msra.mxu0 %v416
      %2042 = vmatprep.subr.mxu0 0.0
      %2043 = vmatpush1.msra.mxu0 %v415
      %2044 = vmatprep.subr.mxu0 0.0
      %2045 = vmatpush1.msra.mxu0 %v414
      %2046 = vmatprep.subr.mxu0 0.0
      %2047 = vmatpush1.msra.mxu0 %v413
      %2048 = vmatprep.subr.mxu0 0.0
      %2049 = vmatpush1.msra.mxu0 %v412
      %2050 = vmatprep.subr.mxu0 0.0
      %2051 = vmatpush1.msra.mxu0 %v411
      %2052 = vmatprep.subr.mxu0 0.0
      %2053 = vmatpush1.msra.mxu0 %v410
      %2054 = vmatprep.subr.mxu0 0.0
      %2055 = vmatpush1.msra.mxu0 %v409
      %2056 = vmatprep.subr.mxu0 0.0
      %2057 = vmatpush1.msra.mxu0 %v408
      %2058 = vmatprep.subr.mxu0 0.0
      %2059 = vmatpush1.msra.mxu0 %v407
      %2060 = vmatprep.subr.mxu0 0.0
      %2061 = vmatpush1.msra.mxu0 %v406
      %2062 = vmatprep.subr.mxu0 0.0
      %2063 = vmatpush1.msra.mxu0 %v405
      %2064 = vmatprep.subr.mxu0 0.0
      %2065 = vmatpush2.msra.mxu0 %v436
      %2066 = vmatprep.subr.mxu0 0.0
      %2067 = vmatpush2.msra.mxu0 %v435
      %2068 = vmatprep.subr.mxu0 0.0
      %2069 = vmatpush2.msra.mxu0 %v434
      %2070 = vmatprep.subr.mxu0 0.0
      %2071 = vmatpush2.msra.mxu0 %v433
      %2072 = vmatprep.subr.mxu0 0.0
      %2073 = vmatpush2.msra.mxu0 %v432
      %2074 = vmatprep.subr.mxu0 0.0
      %2075 = vmatpush2.msra.mxu0 %v431
      %2076 = vmatprep.subr.mxu0 0.0
      %2077 = vmatpush2.msra.mxu0 %v430
      %2078 = vmatprep.subr.mxu0 0.0
      %2079 = vmatpush2.msra.mxu0 %v429
      %2080 = vmatprep.subr.mxu0 0.0
      %2081 = vmatpush2.msra.mxu0 %v428
      %2082 = vmatprep.subr.mxu0 0.0
      %2083 = vmatpush2.msra.mxu0 %v427
      %2084 = vmatprep.subr.mxu0 0.0
      %2085 = vmatpush2.msra.mxu0 %v426
      %2086 = vmatprep.subr.mxu0 0.0
      %2087 = vmatpush2.msra.mxu0 %v425
      %2088 = vmatprep.subr.mxu0 0.0
      %2089 = vmatpush2.msra.mxu0 %v424
      %2090 = vmatprep.subr.mxu0 0.0
      %2091 = vmatpush2.msra.mxu0 %v423
      %2092 = vmatprep.subr.mxu0 0.0
      %2093 = vmatpush2.msra.mxu0 %v422
      %2094 = vmatprep.subr.mxu0 0.0
      %2095 = vmatpush2.msra.mxu0 %v421
      %2096 = vmatprep.mubr.f32.mxu0 %v1415
      %2097 = vmatmul.mubr.f32.gmra.mxu0 %v1414
      %v2098 = vpop.f32.mrf.mxu0
      %v2099 = vadd.f32 %v2009, %v2098
      %v2100 = vpop.f32.mrf.mxu0
      %2101 = vmatprep.mubr.f32.mxu0 %v1433
      %2102 = vmatmul.mubr.f32.gmra.mxu0 %v1432
      %v2103 = vpop.f32.mrf.mxu0
      %v2104 = vadd.f32 %v2014, %v2103
      %v2105 = vpop.f32.mrf.mxu0
      %2106 = vmatprep.mubr.f32.mxu0 %v1451
      %2107 = vmatmul.mubr.f32.gmra.mxu0 %v1450
      %v2108 = vpop.f32.mrf.mxu0
      %v2109 = vadd.f32 %v2019, %v2108
      %v2110 = vpop.f32.mrf.mxu0
      %2111 = vmatprep.mubr.f32.mxu0 %v1469
      %2112 = vmatmul.mubr.f32.gmra.mxu0 %v1468
      %v2113 = vpop.f32.mrf.mxu0
      %v2114 = vadd.f32 %v2024, %v2113
      %v2115 = vpop.f32.mrf.mxu0
      %2116 = vmatprep.mubr.f32.mxu0 %v1487
      %2117 = vmatmul.mubr.f32.gmra.mxu0 %v1486
      %v2118 = vpop.f32.mrf.mxu0
      %v2119 = vadd.f32 %v2029, %v2118
      %v2120 = vpop.f32.mrf.mxu0
      %2121 = vdwg.mxu0
      %2122 = vmatprep.subr.mxu0 0.0
      %2123 = vmatpush1.msra.mxu0 %v452
      %2124 = vmatprep.subr.mxu0 0.0
      %2125 = vmatpush1.msra.mxu0 %v451
      %2126 = vmatprep.subr.mxu0 0.0
      %2127 = vmatpush1.msra.mxu0 %v450
      %2128 = vmatprep.subr.mxu0 0.0
      %2129 = vmatpush1.msra.mxu0 %v449
      %2130 = vmatprep.subr.mxu0 0.0
      %2131 = vmatpush1.msra.mxu0 %v448
      %2132 = vmatprep.subr.mxu0 0.0
      %2133 = vmatpush1.msra.mxu0 %v447
      %2134 = vmatprep.subr.mxu0 0.0
      %2135 = vmatpush1.msra.mxu0 %v446
      %2136 = vmatprep.subr.mxu0 0.0
      %2137 = vmatpush1.msra.mxu0 %v445
      %2138 = vmatprep.subr.mxu0 0.0
      %2139 = vmatpush1.msra.mxu0 %v444
      %2140 = vmatprep.subr.mxu0 0.0
      %2141 = vmatpush1.msra.mxu0 %v443
      %2142 = vmatprep.subr.mxu0 0.0
      %2143 = vmatpush1.msra.mxu0 %v442
      %2144 = vmatprep.subr.mxu0 0.0
      %2145 = vmatpush1.msra.mxu0 %v441
      %2146 = vmatprep.subr.mxu0 0.0
      %2147 = vmatpush1.msra.mxu0 %v440
      %2148 = vmatprep.subr.mxu0 0.0
      %2149 = vmatpush1.msra.mxu0 %v439
      %2150 = vmatprep.subr.mxu0 0.0
      %2151 = vmatpush1.msra.mxu0 %v438
      %2152 = vmatprep.subr.mxu0 0.0
      %2153 = vmatpush1.msra.mxu0 %v437
      %2154 = vmatprep.subr.mxu0 0.0
      %2155 = vmatpush2.msra.mxu0 %v468
      %2156 = vmatprep.subr.mxu0 0.0
      %2157 = vmatpush2.msra.mxu0 %v467
      %2158 = vmatprep.subr.mxu0 0.0
      %2159 = vmatpush2.msra.mxu0 %v466
      %2160 = vmatprep.subr.mxu0 0.0
      %2161 = vmatpush2.msra.mxu0 %v465
      %2162 = vmatprep.subr.mxu0 0.0
      %2163 = vmatpush2.msra.mxu0 %v464
      %2164 = vmatprep.subr.mxu0 0.0
      %2165 = vmatpush2.msra.mxu0 %v463
      %2166 = vmatprep.subr.mxu0 0.0
      %2167 = vmatpush2.msra.mxu0 %v462
      %2168 = vmatprep.subr.mxu0 0.0
      %2169 = vmatpush2.msra.mxu0 %v461
      %2170 = vmatprep.subr.mxu0 0.0
      %2171 = vmatpush2.msra.mxu0 %v460
      %2172 = vmatprep.subr.mxu0 0.0
      %2173 = vmatpush2.msra.mxu0 %v459
      %2174 = vmatprep.subr.mxu0 0.0
      %2175 = vmatpush2.msra.mxu0 %v458
      %2176 = vmatprep.subr.mxu0 0.0
      %2177 = vmatpush2.msra.mxu0 %v457
      %2178 = vmatprep.subr.mxu0 0.0
      %2179 = vmatpush2.msra.mxu0 %v456
      %2180 = vmatprep.subr.mxu0 0.0
      %2181 = vmatpush2.msra.mxu0 %v455
      %2182 = vmatprep.subr.mxu0 0.0
      %2183 = vmatpush2.msra.mxu0 %v454
      %2184 = vmatprep.subr.mxu0 0.0
      %2185 = vmatpush2.msra.mxu0 %v453
      %2186 = vmatprep.mubr.f32.mxu0 %v1417
      %2187 = vmatmul.mubr.f32.gmra.mxu0 %v1416
      %v2188 = vpop.f32.mrf.mxu0
      %v2189 = vadd.f32 %v2099, %v2188
      %v2190 = vpop.f32.mrf.mxu0
      %2191 = vmatprep.mubr.f32.mxu0 %v1435
      %2192 = vmatmul.mubr.f32.gmra.mxu0 %v1434
      %v2193 = vpop.f32.mrf.mxu0
      %v2194 = vadd.f32 %v2104, %v2193
      %v2195 = vpop.f32.mrf.mxu0
      %2196 = vmatprep.mubr.f32.mxu0 %v1453
      %2197 = vmatmul.mubr.f32.gmra.mxu0 %v1452
      %v2198 = vpop.f32.mrf.mxu0
      %v2199 = vadd.f32 %v2109, %v2198
      %v2200 = vpop.f32.mrf.mxu0
      %2201 = vmatprep.mubr.f32.mxu0 %v1471
      %2202 = vmatmul.mubr.f32.gmra.mxu0 %v1470
      %v2203 = vpop.f32.mrf.mxu0
      %v2204 = vadd.f32 %v2114, %v2203
      %v2205 = vpop.f32.mrf.mxu0
      %2206 = vmatprep.mubr.f32.mxu0 %v1489
      %2207 = vmatmul.mubr.f32.gmra.mxu0 %v1488
      %v2208 = vpop.f32.mrf.mxu0
      %v2209 = vadd.f32 %v2119, %v2208
      %v2210 = vpop.f32.mrf.mxu0
      %2211 = vdwg.mxu0
      %2212 = vmatprep.subr.mxu0 0.0
      %2213 = vmatpush1.msra.mxu0 %v484
      %2214 = vmatprep.subr.mxu0 0.0
      %2215 = vmatpush1.msra.mxu0 %v483
      %2216 = vmatprep.subr.mxu0 0.0
      %2217 = vmatpush1.msra.mxu0 %v482
      %2218 = vmatprep.subr.mxu0 0.0
      %2219 = vmatpush1.msra.mxu0 %v481
      %2220 = vmatprep.subr.mxu0 0.0
      %2221 = vmatpush1.msra.mxu0 %v480
      %2222 = vmatprep.subr.mxu0 0.0
      %2223 = vmatpush1.msra.mxu0 %v479
      %2224 = vmatprep.subr.mxu0 0.0
      %2225 = vmatpush1.msra.mxu0 %v478
      %2226 = vmatprep.subr.mxu0 0.0
      %2227 = vmatpush1.msra.mxu0 %v477
      %2228 = vmatprep.subr.mxu0 0.0
      %2229 = vmatpush1.msra.mxu0 %v476
      %2230 = vmatprep.subr.mxu0 0.0
      %2231 = vmatpush1.msra.mxu0 %v475
      %2232 = vmatprep.subr.mxu0 0.0
      %2233 = vmatpush1.msra.mxu0 %v474
      %2234 = vmatprep.subr.mxu0 0.0
      %2235 = vmatpush1.msra.mxu0 %v473
      %2236 = vmatprep.subr.mxu0 0.0
      %2237 = vmatpush1.msra.mxu0 %v472
      %2238 = vmatprep.subr.mxu0 0.0
      %2239 = vmatpush1.msra.mxu0 %v471
      %2240 = vmatprep.subr.mxu0 0.0
      %2241 = vmatpush1.msra.mxu0 %v470
      %2242 = vmatprep.subr.mxu0 0.0
      %2243 = vmatpush1.msra.mxu0 %v469
      %2244 = vmatprep.subr.mxu0 0.0
      %2245 = vmatpush2.msra.mxu0 %v500
      %2246 = vmatprep.subr.mxu0 0.0
      %2247 = vmatpush2.msra.mxu0 %v499
      %2248 = vmatprep.subr.mxu0 0.0
      %2249 = vmatpush2.msra.mxu0 %v498
      %2250 = vmatprep.subr.mxu0 0.0
      %2251 = vmatpush2.msra.mxu0 %v497
      %2252 = vmatprep.subr.mxu0 0.0
      %2253 = vmatpush2.msra.mxu0 %v496
      %2254 = vmatprep.subr.mxu0 0.0
      %2255 = vmatpush2.msra.mxu0 %v495
      %2256 = vmatprep.subr.mxu0 0.0
      %2257 = vmatpush2.msra.mxu0 %v494
      %2258 = vmatprep.subr.mxu0 0.0
      %2259 = vmatpush2.msra.mxu0 %v493
      %2260 = vmatprep.subr.mxu0 0.0
      %2261 = vmatpush2.msra.mxu0 %v492
      %2262 = vmatprep.subr.mxu0 0.0
      %2263 = vmatpush2.msra.mxu0 %v491
      %2264 = vmatprep.subr.mxu0 0.0
      %2265 = vmatpush2.msra.mxu0 %v490
      %2266 = vmatprep.subr.mxu0 0.0
      %2267 = vmatpush2.msra.mxu0 %v489
      %2268 = vmatprep.subr.mxu0 0.0
      %2269 = vmatpush2.msra.mxu0 %v488
      %2270 = vmatprep.subr.mxu0 0.0
      %2271 = vmatpush2.msra.mxu0 %v487
      %2272 = vmatprep.subr.mxu0 0.0
      %2273 = vmatpush2.msra.mxu0 %v486
      %2274 = vmatprep.subr.mxu0 0.0
      %2275 = vmatpush2.msra.mxu0 %v485
      %2276 = vmatprep.mubr.f32.mxu0 %v1419
      %2277 = vmatmul.mubr.f32.gmra.mxu0 %v1418
      %v2278 = vpop.f32.mrf.mxu0
      %v2279 = vadd.f32 %v2189, %v2278
      %v2280 = vpop.f32.mrf.mxu0
      %2281 = vmatprep.mubr.f32.mxu0 %v1437
      %2282 = vmatmul.mubr.f32.gmra.mxu0 %v1436
      %v2283 = vpop.f32.mrf.mxu0
      %v2284 = vadd.f32 %v2194, %v2283
      %v2285 = vpop.f32.mrf.mxu0
      %2286 = vmatprep.mubr.f32.mxu0 %v1455
      %2287 = vmatmul.mubr.f32.gmra.mxu0 %v1454
      %v2288 = vpop.f32.mrf.mxu0
      %v2289 = vadd.f32 %v2199, %v2288
      %v2290 = vpop.f32.mrf.mxu0
      %2291 = vmatprep.mubr.f32.mxu0 %v1473
      %2292 = vmatmul.mubr.f32.gmra.mxu0 %v1472
      %v2293 = vpop.f32.mrf.mxu0
      %v2294 = vadd.f32 %v2204, %v2293
      %v2295 = vpop.f32.mrf.mxu0
      %2296 = vmatprep.mubr.f32.mxu0 %v1491
      %2297 = vmatmul.mubr.f32.gmra.mxu0 %v1490
      %v2298 = vpop.f32.mrf.mxu0
      %v2299 = vadd.f32 %v2209, %v2298
      %v2300 = vpop.f32.mrf.mxu0
      %2301 = vdwg.mxu0
      %v2302 = vmax.f32 %v1378, %v2279
      %v2303 = vmax.f32 %v1383, %v2284
      %v2304 = vmax.f32 %v1388, %v2289
      %v2305 = vmax.f32 %v1393, %v2294
      %v2306 = vmax.f32 %v1398, %v2299
      %s2307 = scalar_lea.vmem %s201, 1440
      %v2308 = vld [vmem:[%s2307] sm:$0xff]
      %v2309 = vld [vmem:[%s2307 + $0x8] sm:$0xff]
      %v2310 = vld [vmem:[%s2307 + $0x10] sm:$0xff]
      %v2311 = vld [vmem:[%s2307 + $0x18] sm:$0xff]
      %v2312 = vld [vmem:[%s2307 + $0x20] sm:$0xff]
      %v2313 = vld [vmem:[%s2307 + $0x28] sm:$0xff]
      %v2314 = vld [vmem:[%s2307 + $0x30] sm:$0xff]
      %v2315 = vld [vmem:[%s2307 + $0x38] sm:$0xff]
      %v2316 = vld [vmem:[%s2307 + $0x40] sm:$0xff]
      %v2317 = vld [vmem:[%s2307 + $0x48] sm:$0xff]
      %v2318 = vld [vmem:[%s2307 + $0x50] sm:$0xff]
      %v2319 = vld [vmem:[%s2307 + $0x58] sm:$0xff]
      %v2320 = vld [vmem:[%s2307 + $0x60] sm:$0xff]
      %v2321 = vld [vmem:[%s2307 + $0x68] sm:$0xff]
      %v2322 = vld [vmem:[%s2307 + $0x70] sm:$0xff]
      %v2323 = vld [vmem:[%s2307 + $0x78] sm:$0xff]
      %v2324 = vld [vmem:[%s2307 + $0x80] sm:$0xff]
      %v2325 = vld [vmem:[%s2307 + $0x88] sm:$0xff]
      %v2326 = vld [vmem:[%s2307 + $0x90] sm:$0xff]
      %v2327 = vld [vmem:[%s2307 + $0x98] sm:$0xff]
      %v2328 = vld [vmem:[%s2307 + $0xa0] sm:$0xff]
      %v2329 = vld [vmem:[%s2307 + $0xa8] sm:$0xff]
      %v2330 = vld [vmem:[%s2307 + $0xb0] sm:$0xff]
      %v2331 = vld [vmem:[%s2307 + $0xb8] sm:$0xff]
      %v2332 = vld [vmem:[%s2307 + $0xc0] sm:$0xff]
      %v2333 = vld [vmem:[%s2307 + $0xc8] sm:$0xff]
      %v2334 = vld [vmem:[%s2307 + $0xd0] sm:$0xff]
      %v2335 = vld [vmem:[%s2307 + $0xd8] sm:$0xff]
      %v2336 = vld [vmem:[%s2307 + $0xe0] sm:$0xff]
      %v2337 = vld [vmem:[%s2307 + $0xe8] sm:$0xff]
      %v2338 = vld [vmem:[%s2307 + $0xf0] sm:$0xff]
      %v2339 = vld [vmem:[%s2307 + $0xf8] sm:$0xff]
      %v2340 = vld [vmem:[%s2307 + $0x100] sm:$0xff]
      %v2341 = vld [vmem:[%s2307 + $0x108] sm:$0xff]
      %v2342 = vld [vmem:[%s2307 + $0x110] sm:$0xff]
      %v2343 = vld [vmem:[%s2307 + $0x118] sm:$0xff]
      %v2344 = vld [vmem:[%s2307 + $0x120] sm:$0xff]
      %v2345 = vld [vmem:[%s2307 + $0x128] sm:$0xff]
      %v2346 = vld [vmem:[%s2307 + $0x130] sm:$0xff]
      %v2347 = vld [vmem:[%s2307 + $0x138] sm:$0xff]
      %v2348 = vld [vmem:[%s2307 + $0x140] sm:$0xff]
      %v2349 = vld [vmem:[%s2307 + $0x148] sm:$0xff]
      %v2350 = vld [vmem:[%s2307 + $0x150] sm:$0xff]
      %v2351 = vld [vmem:[%s2307 + $0x158] sm:$0xff]
      %v2352 = vld [vmem:[%s2307 + $0x160] sm:$0xff]
      %v2353 = vld [vmem:[%s2307 + $0x168] sm:$0xff]
      %v2354 = vld [vmem:[%s2307 + $0x170] sm:$0xff]
      %v2355 = vld [vmem:[%s2307 + $0x178] sm:$0xff]
      %v2356 = vld [vmem:[%s2307 + $0x180] sm:$0xff]
      %v2357 = vld [vmem:[%s2307 + $0x188] sm:$0xff]
      %v2358 = vld [vmem:[%s2307 + $0x190] sm:$0xff]
      %v2359 = vld [vmem:[%s2307 + $0x198] sm:$0xff]
      %v2360 = vld [vmem:[%s2307 + $0x1a0] sm:$0xff]
      %v2361 = vld [vmem:[%s2307 + $0x1a8] sm:$0xff]
      %v2362 = vld [vmem:[%s2307 + $0x1b0] sm:$0xff]
      %v2363 = vld [vmem:[%s2307 + $0x1b8] sm:$0xff]
      %v2364 = vld [vmem:[%s2307 + $0x1c0] sm:$0xff]
      %v2365 = vld [vmem:[%s2307 + $0x1c8] sm:$0xff]
      %v2366 = vld [vmem:[%s2307 + $0x1d0] sm:$0xff]
      %v2367 = vld [vmem:[%s2307 + $0x1d8] sm:$0xff]
      %v2368 = vld [vmem:[%s2307 + $0x1e0] sm:$0xff]
      %v2369 = vld [vmem:[%s2307 + $0x1e8] sm:$0xff]
      %v2370 = vld [vmem:[%s2307 + $0x1f0] sm:$0xff]
      %v2371 = vld [vmem:[%s2307 + $0x1f8] sm:$0xff]
      %v2372 = vld [vmem:[%s2307 + $0x200] sm:$0xff]
      %v2373 = vld [vmem:[%s2307 + $0x208] sm:$0xff]
      %v2374 = vld [vmem:[%s2307 + $0x210] sm:$0xff]
      %v2375 = vld [vmem:[%s2307 + $0x218] sm:$0xff]
      %v2376 = vld [vmem:[%s2307 + $0x220] sm:$0xff]
      %v2377 = vld [vmem:[%s2307 + $0x228] sm:$0xff]
      %v2378 = vld [vmem:[%s2307 + $0x230] sm:$0xff]
      %v2379 = vld [vmem:[%s2307 + $0x238] sm:$0xff]
      %v2380 = vld [vmem:[%s2307 + $0x240] sm:$0xff]
      %v2381 = vld [vmem:[%s2307 + $0x248] sm:$0xff]
      %v2382 = vld [vmem:[%s2307 + $0x250] sm:$0xff]
      %v2383 = vld [vmem:[%s2307 + $0x258] sm:$0xff]
      %v2384 = vld [vmem:[%s2307 + $0x260] sm:$0xff]
      %v2385 = vld [vmem:[%s2307 + $0x268] sm:$0xff]
      %v2386 = vld [vmem:[%s2307 + $0x270] sm:$0xff]
      %v2387 = vld [vmem:[%s2307 + $0x278] sm:$0xff]
      %v2388 = vld [vmem:[%s2307 + $0x280] sm:$0xff]
      %v2389 = vld [vmem:[%s2307 + $0x288] sm:$0xff]
      %v2390 = vld [vmem:[%s2307 + $0x290] sm:$0xff]
      %v2391 = vld [vmem:[%s2307 + $0x298] sm:$0xff]
      %v2392 = vld [vmem:[%s2307 + $0x2a0] sm:$0xff]
      %v2393 = vld [vmem:[%s2307 + $0x2a8] sm:$0xff]
      %v2394 = vld [vmem:[%s2307 + $0x2b0] sm:$0xff]
      %v2395 = vld [vmem:[%s2307 + $0x2b8] sm:$0xff]
      %v2396 = vld [vmem:[%s2307 + $0x2c0] sm:$0xff]
      %v2397 = vld [vmem:[%s2307 + $0x2c8] sm:$0xff]
      %2398 = vmatprep.subr.mxu0 0.0
      %2399 = vmatpush1.msra.mxu0 %v228
      %2400 = vmatprep.subr.mxu0 0.0
      %2401 = vmatpush1.msra.mxu0 %v227
      %2402 = vmatprep.subr.mxu0 0.0
      %2403 = vmatpush1.msra.mxu0 %v226
      %2404 = vmatprep.subr.mxu0 0.0
      %2405 = vmatpush1.msra.mxu0 %v225
      %2406 = vmatprep.subr.mxu0 0.0
      %2407 = vmatpush1.msra.mxu0 %v224
      %2408 = vmatprep.subr.mxu0 0.0
      %2409 = vmatpush1.msra.mxu0 %v223
      %2410 = vmatprep.subr.mxu0 0.0
      %2411 = vmatpush1.msra.mxu0 %v222
      %2412 = vmatprep.subr.mxu0 0.0
      %2413 = vmatpush1.msra.mxu0 %v221
      %2414 = vmatprep.subr.mxu0 0.0
      %2415 = vmatpush1.msra.mxu0 %v220
      %2416 = vmatprep.subr.mxu0 0.0
      %2417 = vmatpush1.msra.mxu0 %v219
      %2418 = vmatprep.subr.mxu0 0.0
      %2419 = vmatpush1.msra.mxu0 %v218
      %2420 = vmatprep.subr.mxu0 0.0
      %2421 = vmatpush1.msra.mxu0 %v217
      %2422 = vmatprep.subr.mxu0 0.0
      %2423 = vmatpush1.msra.mxu0 %v216
      %2424 = vmatprep.subr.mxu0 0.0
      %2425 = vmatpush1.msra.mxu0 %v215
      %2426 = vmatprep.subr.mxu0 0.0
      %2427 = vmatpush1.msra.mxu0 %v214
      %2428 = vmatprep.subr.mxu0 0.0
      %2429 = vmatpush1.msra.mxu0 %v213
      %2430 = vmatprep.subr.mxu0 0.0
      %2431 = vmatpush2.msra.mxu0 %v244
      %2432 = vmatprep.subr.mxu0 0.0
      %2433 = vmatpush2.msra.mxu0 %v243
      %2434 = vmatprep.subr.mxu0 0.0
      %2435 = vmatpush2.msra.mxu0 %v242
      %2436 = vmatprep.subr.mxu0 0.0
      %2437 = vmatpush2.msra.mxu0 %v241
      %2438 = vmatprep.subr.mxu0 0.0
      %2439 = vmatpush2.msra.mxu0 %v240
      %2440 = vmatprep.subr.mxu0 0.0
      %2441 = vmatpush2.msra.mxu0 %v239
      %2442 = vmatprep.subr.mxu0 0.0
      %2443 = vmatpush2.msra.mxu0 %v238
      %2444 = vmatprep.subr.mxu0 0.0
      %2445 = vmatpush2.msra.mxu0 %v237
      %2446 = vmatprep.subr.mxu0 0.0
      %2447 = vmatpush2.msra.mxu0 %v236
      %2448 = vmatprep.subr.mxu0 0.0
      %2449 = vmatpush2.msra.mxu0 %v235
      %2450 = vmatprep.subr.mxu0 0.0
      %2451 = vmatpush2.msra.mxu0 %v234
      %2452 = vmatprep.subr.mxu0 0.0
      %2453 = vmatpush2.msra.mxu0 %v233
      %2454 = vmatprep.subr.mxu0 0.0
      %2455 = vmatpush2.msra.mxu0 %v232
      %2456 = vmatprep.subr.mxu0 0.0
      %2457 = vmatpush2.msra.mxu0 %v231
      %2458 = vmatprep.subr.mxu0 0.0
      %2459 = vmatpush2.msra.mxu0 %v230
      %2460 = vmatprep.subr.mxu0 0.0
      %2461 = vmatpush2.msra.mxu0 %v229
      %2462 = vmatprep.mubr.f32.mxu0 %v2309
      %2463 = vmatmul.mubr.f32.gmra.mxu0 %v2308
      %v2464 = vpop.f32.mrf.mxu0
      %v2465 = vadd.f32 0.0, %v2464
      %v2466 = vpop.f32.mrf.mxu0
      %2467 = vmatprep.mubr.f32.mxu0 %v2327
      %2468 = vmatmul.mubr.f32.gmra.mxu0 %v2326
      %v2469 = vpop.f32.mrf.mxu0
      %v2470 = vadd.f32 0.0, %v2469
      %v2471 = vpop.f32.mrf.mxu0
      %2472 = vmatprep.mubr.f32.mxu0 %v2345
      %2473 = vmatmul.mubr.f32.gmra.mxu0 %v2344
      %v2474 = vpop.f32.mrf.mxu0
      %v2475 = vadd.f32 0.0, %v2474
      %v2476 = vpop.f32.mrf.mxu0
      %2477 = vmatprep.mubr.f32.mxu0 %v2363
      %2478 = vmatmul.mubr.f32.gmra.mxu0 %v2362
      %v2479 = vpop.f32.mrf.mxu0
      %v2480 = vadd.f32 0.0, %v2479
      %v2481 = vpop.f32.mrf.mxu0
      %2482 = vmatprep.mubr.f32.mxu0 %v2381
      %2483 = vmatmul.mubr.f32.gmra.mxu0 %v2380
      %v2484 = vpop.f32.mrf.mxu0
      %v2485 = vadd.f32 0.0, %v2484
      %v2486 = vpop.f32.mrf.mxu0
      %2487 = vdwg.mxu0
      %2488 = vmatprep.subr.mxu0 0.0
      %2489 = vmatpush1.msra.mxu0 %v260
      %2490 = vmatprep.subr.mxu0 0.0
      %2491 = vmatpush1.msra.mxu0 %v259
      %2492 = vmatprep.subr.mxu0 0.0
      %2493 = vmatpush1.msra.mxu0 %v258
      %2494 = vmatprep.subr.mxu0 0.0
      %2495 = vmatpush1.msra.mxu0 %v257
      %2496 = vmatprep.subr.mxu0 0.0
      %2497 = vmatpush1.msra.mxu0 %v256
      %2498 = vmatprep.subr.mxu0 0.0
      %2499 = vmatpush1.msra.mxu0 %v255
      %2500 = vmatprep.subr.mxu0 0.0
      %2501 = vmatpush1.msra.mxu0 %v254
      %2502 = vmatprep.subr.mxu0 0.0
      %2503 = vmatpush1.msra.mxu0 %v253
      %2504 = vmatprep.subr.mxu0 0.0
      %2505 = vmatpush1.msra.mxu0 %v252
      %2506 = vmatprep.subr.mxu0 0.0
      %2507 = vmatpush1.msra.mxu0 %v251
      %2508 = vmatprep.subr.mxu0 0.0
      %2509 = vmatpush1.msra.mxu0 %v250
      %2510 = vmatprep.subr.mxu0 0.0
      %2511 = vmatpush1.msra.mxu0 %v249
      %2512 = vmatprep.subr.mxu0 0.0
      %2513 = vmatpush1.msra.mxu0 %v248
      %2514 = vmatprep.subr.mxu0 0.0
      %2515 = vmatpush1.msra.mxu0 %v247
      %2516 = vmatprep.subr.mxu0 0.0
      %2517 = vmatpush1.msra.mxu0 %v246
      %2518 = vmatprep.subr.mxu0 0.0
      %2519 = vmatpush1.msra.mxu0 %v245
      %2520 = vmatprep.subr.mxu0 0.0
      %2521 = vmatpush2.msra.mxu0 %v276
      %2522 = vmatprep.subr.mxu0 0.0
      %2523 = vmatpush2.msra.mxu0 %v275
      %2524 = vmatprep.subr.mxu0 0.0
      %2525 = vmatpush2.msra.mxu0 %v274
      %2526 = vmatprep.subr.mxu0 0.0
      %2527 = vmatpush2.msra.mxu0 %v273
      %2528 = vmatprep.subr.mxu0 0.0
      %2529 = vmatpush2.msra.mxu0 %v272
      %2530 = vmatprep.subr.mxu0 0.0
      %2531 = vmatpush2.msra.mxu0 %v271
      %2532 = vmatprep.subr.mxu0 0.0
      %2533 = vmatpush2.msra.mxu0 %v270
      %2534 = vmatprep.subr.mxu0 0.0
      %2535 = vmatpush2.msra.mxu0 %v269
      %2536 = vmatprep.subr.mxu0 0.0
      %2537 = vmatpush2.msra.mxu0 %v268
      %2538 = vmatprep.subr.mxu0 0.0
      %2539 = vmatpush2.msra.mxu0 %v267
      %2540 = vmatprep.subr.mxu0 0.0
      %2541 = vmatpush2.msra.mxu0 %v266
      %2542 = vmatprep.subr.mxu0 0.0
      %2543 = vmatpush2.msra.mxu0 %v265
      %2544 = vmatprep.subr.mxu0 0.0
      %2545 = vmatpush2.msra.mxu0 %v264
      %2546 = vmatprep.subr.mxu0 0.0
      %2547 = vmatpush2.msra.mxu0 %v263
      %2548 = vmatprep.subr.mxu0 0.0
      %2549 = vmatpush2.msra.mxu0 %v262
      %2550 = vmatprep.subr.mxu0 0.0
      %2551 = vmatpush2.msra.mxu0 %v261
      %2552 = vmatprep.mubr.f32.mxu0 %v2311
      %2553 = vmatmul.mubr.f32.gmra.mxu0 %v2310
      %v2554 = vpop.f32.mrf.mxu0
      %v2555 = vadd.f32 %v2465, %v2554
      %v2556 = vpop.f32.mrf.mxu0
      %2557 = vmatprep.mubr.f32.mxu0 %v2329
      %2558 = vmatmul.mubr.f32.gmra.mxu0 %v2328
      %v2559 = vpop.f32.mrf.mxu0
      %v2560 = vadd.f32 %v2470, %v2559
      %v2561 = vpop.f32.mrf.mxu0
      %2562 = vmatprep.mubr.f32.mxu0 %v2347
      %2563 = vmatmul.mubr.f32.gmra.mxu0 %v2346
      %v2564 = vpop.f32.mrf.mxu0
      %v2565 = vadd.f32 %v2475, %v2564
      %v2566 = vpop.f32.mrf.mxu0
      %2567 = vmatprep.mubr.f32.mxu0 %v2365
      %2568 = vmatmul.mubr.f32.gmra.mxu0 %v2364
      %v2569 = vpop.f32.mrf.mxu0
      %v2570 = vadd.f32 %v2480, %v2569
      %v2571 = vpop.f32.mrf.mxu0
      %2572 = vmatprep.mubr.f32.mxu0 %v2383
      %2573 = vmatmul.mubr.f32.gmra.mxu0 %v2382
      %v2574 = vpop.f32.mrf.mxu0
      %v2575 = vadd.f32 %v2485, %v2574
      %v2576 = vpop.f32.mrf.mxu0
      %2577 = vdwg.mxu0
      %2578 = vmatprep.subr.mxu0 0.0
      %2579 = vmatpush1.msra.mxu0 %v292
      %2580 = vmatprep.subr.mxu0 0.0
      %2581 = vmatpush1.msra.mxu0 %v291
      %2582 = vmatprep.subr.mxu0 0.0
      %2583 = vmatpush1.msra.mxu0 %v290
      %2584 = vmatprep.subr.mxu0 0.0
      %2585 = vmatpush1.msra.mxu0 %v289
      %2586 = vmatprep.subr.mxu0 0.0
      %2587 = vmatpush1.msra.mxu0 %v288
      %2588 = vmatprep.subr.mxu0 0.0
      %2589 = vmatpush1.msra.mxu0 %v287
      %2590 = vmatprep.subr.mxu0 0.0
      %2591 = vmatpush1.msra.mxu0 %v286
      %2592 = vmatprep.subr.mxu0 0.0
      %2593 = vmatpush1.msra.mxu0 %v285
      %2594 = vmatprep.subr.mxu0 0.0
      %2595 = vmatpush1.msra.mxu0 %v284
      %2596 = vmatprep.subr.mxu0 0.0
      %2597 = vmatpush1.msra.mxu0 %v283
      %2598 = vmatprep.subr.mxu0 0.0
      %2599 = vmatpush1.msra.mxu0 %v282
      %2600 = vmatprep.subr.mxu0 0.0
      %2601 = vmatpush1.msra.mxu0 %v281
      %2602 = vmatprep.subr.mxu0 0.0
      %2603 = vmatpush1.msra.mxu0 %v280
      %2604 = vmatprep.subr.mxu0 0.0
      %2605 = vmatpush1.msra.mxu0 %v279
      %2606 = vmatprep.subr.mxu0 0.0
      %2607 = vmatpush1.msra.mxu0 %v278
      %2608 = vmatprep.subr.mxu0 0.0
      %2609 = vmatpush1.msra.mxu0 %v277
      %2610 = vmatprep.subr.mxu0 0.0
      %2611 = vmatpush2.msra.mxu0 %v308
      %2612 = vmatprep.subr.mxu0 0.0
      %2613 = vmatpush2.msra.mxu0 %v307
      %2614 = vmatprep.subr.mxu0 0.0
      %2615 = vmatpush2.msra.mxu0 %v306
      %2616 = vmatprep.subr.mxu0 0.0
      %2617 = vmatpush2.msra.mxu0 %v305
      %2618 = vmatprep.subr.mxu0 0.0
      %2619 = vmatpush2.msra.mxu0 %v304
      %2620 = vmatprep.subr.mxu0 0.0
      %2621 = vmatpush2.msra.mxu0 %v303
      %2622 = vmatprep.subr.mxu0 0.0
      %2623 = vmatpush2.msra.mxu0 %v302
      %2624 = vmatprep.subr.mxu0 0.0
      %2625 = vmatpush2.msra.mxu0 %v301
      %2626 = vmatprep.subr.mxu0 0.0
      %2627 = vmatpush2.msra.mxu0 %v300
      %2628 = vmatprep.subr.mxu0 0.0
      %2629 = vmatpush2.msra.mxu0 %v299
      %2630 = vmatprep.subr.mxu0 0.0
      %2631 = vmatpush2.msra.mxu0 %v298
      %2632 = vmatprep.subr.mxu0 0.0
      %2633 = vmatpush2.msra.mxu0 %v297
      %2634 = vmatprep.subr.mxu0 0.0
      %2635 = vmatpush2.msra.mxu0 %v296
      %2636 = vmatprep.subr.mxu0 0.0
      %2637 = vmatpush2.msra.mxu0 %v295
      %2638 = vmatprep.subr.mxu0 0.0
      %2639 = vmatpush2.msra.mxu0 %v294
      %2640 = vmatprep.subr.mxu0 0.0
      %2641 = vmatpush2.msra.mxu0 %v293
      %2642 = vmatprep.mubr.f32.mxu0 %v2313
      %2643 = vmatmul.mubr.f32.gmra.mxu0 %v2312
      %v2644 = vpop.f32.mrf.mxu0
      %v2645 = vadd.f32 %v2555, %v2644
      %v2646 = vpop.f32.mrf.mxu0
      %2647 = vmatprep.mubr.f32.mxu0 %v2331
      %2648 = vmatmul.mubr.f32.gmra.mxu0 %v2330
      %v2649 = vpop.f32.mrf.mxu0
      %v2650 = vadd.f32 %v2560, %v2649
      %v2651 = vpop.f32.mrf.mxu0
      %2652 = vmatprep.mubr.f32.mxu0 %v2349
      %2653 = vmatmul.mubr.f32.gmra.mxu0 %v2348
      %v2654 = vpop.f32.mrf.mxu0
      %v2655 = vadd.f32 %v2565, %v2654
      %v2656 = vpop.f32.mrf.mxu0
      %2657 = vmatprep.mubr.f32.mxu0 %v2367
      %2658 = vmatmul.mubr.f32.gmra.mxu0 %v2366
      %v2659 = vpop.f32.mrf.mxu0
      %v2660 = vadd.f32 %v2570, %v2659
      %v2661 = vpop.f32.mrf.mxu0
      %2662 = vmatprep.mubr.f32.mxu0 %v2385
      %2663 = vmatmul.mubr.f32.gmra.mxu0 %v2384
      %v2664 = vpop.f32.mrf.mxu0
      %v2665 = vadd.f32 %v2575, %v2664
      %v2666 = vpop.f32.mrf.mxu0
      %2667 = vdwg.mxu0
      %2668 = vmatprep.subr.mxu0 0.0
      %2669 = vmatpush1.msra.mxu0 %v324
      %2670 = vmatprep.subr.mxu0 0.0
      %2671 = vmatpush1.msra.mxu0 %v323
      %2672 = vmatprep.subr.mxu0 0.0
      %2673 = vmatpush1.msra.mxu0 %v322
      %2674 = vmatprep.subr.mxu0 0.0
      %2675 = vmatpush1.msra.mxu0 %v321
      %2676 = vmatprep.subr.mxu0 0.0
      %2677 = vmatpush1.msra.mxu0 %v320
      %2678 = vmatprep.subr.mxu0 0.0
      %2679 = vmatpush1.msra.mxu0 %v319
      %2680 = vmatprep.subr.mxu0 0.0
      %2681 = vmatpush1.msra.mxu0 %v318
      %2682 = vmatprep.subr.mxu0 0.0
      %2683 = vmatpush1.msra.mxu0 %v317
      %2684 = vmatprep.subr.mxu0 0.0
      %2685 = vmatpush1.msra.mxu0 %v316
      %2686 = vmatprep.subr.mxu0 0.0
      %2687 = vmatpush1.msra.mxu0 %v315
      %2688 = vmatprep.subr.mxu0 0.0
      %2689 = vmatpush1.msra.mxu0 %v314
      %2690 = vmatprep.subr.mxu0 0.0
      %2691 = vmatpush1.msra.mxu0 %v313
      %2692 = vmatprep.subr.mxu0 0.0
      %2693 = vmatpush1.msra.mxu0 %v312
      %2694 = vmatprep.subr.mxu0 0.0
      %2695 = vmatpush1.msra.mxu0 %v311
      %2696 = vmatprep.subr.mxu0 0.0
      %2697 = vmatpush1.msra.mxu0 %v310
      %2698 = vmatprep.subr.mxu0 0.0
      %2699 = vmatpush1.msra.mxu0 %v309
      %2700 = vmatprep.subr.mxu0 0.0
      %2701 = vmatpush2.msra.mxu0 %v340
      %2702 = vmatprep.subr.mxu0 0.0
      %2703 = vmatpush2.msra.mxu0 %v339
      %2704 = vmatprep.subr.mxu0 0.0
      %2705 = vmatpush2.msra.mxu0 %v338
      %2706 = vmatprep.subr.mxu0 0.0
      %2707 = vmatpush2.msra.mxu0 %v337
      %2708 = vmatprep.subr.mxu0 0.0
      %2709 = vmatpush2.msra.mxu0 %v336
      %2710 = vmatprep.subr.mxu0 0.0
      %2711 = vmatpush2.msra.mxu0 %v335
      %2712 = vmatprep.subr.mxu0 0.0
      %2713 = vmatpush2.msra.mxu0 %v334
      %2714 = vmatprep.subr.mxu0 0.0
      %2715 = vmatpush2.msra.mxu0 %v333
      %2716 = vmatprep.subr.mxu0 0.0
      %2717 = vmatpush2.msra.mxu0 %v332
      %2718 = vmatprep.subr.mxu0 0.0
      %2719 = vmatpush2.msra.mxu0 %v331
      %2720 = vmatprep.subr.mxu0 0.0
      %2721 = vmatpush2.msra.mxu0 %v330
      %2722 = vmatprep.subr.mxu0 0.0
      %2723 = vmatpush2.msra.mxu0 %v329
      %2724 = vmatprep.subr.mxu0 0.0
      %2725 = vmatpush2.msra.mxu0 %v328
      %2726 = vmatprep.subr.mxu0 0.0
      %2727 = vmatpush2.msra.mxu0 %v327
      %2728 = vmatprep.subr.mxu0 0.0
      %2729 = vmatpush2.msra.mxu0 %v326
      %2730 = vmatprep.subr.mxu0 0.0
      %2731 = vmatpush2.msra.mxu0 %v325
      %2732 = vmatprep.mubr.f32.mxu0 %v2315
      %2733 = vmatmul.mubr.f32.gmra.mxu0 %v2314
      %v2734 = vpop.f32.mrf.mxu0
      %v2735 = vadd.f32 %v2645, %v2734
      %v2736 = vpop.f32.mrf.mxu0
      %2737 = vmatprep.mubr.f32.mxu0 %v2333
      %2738 = vmatmul.mubr.f32.gmra.mxu0 %v2332
      %v2739 = vpop.f32.mrf.mxu0
      %v2740 = vadd.f32 %v2650, %v2739
      %v2741 = vpop.f32.mrf.mxu0
      %2742 = vmatprep.mubr.f32.mxu0 %v2351
      %2743 = vmatmul.mubr.f32.gmra.mxu0 %v2350
      %v2744 = vpop.f32.mrf.mxu0
      %v2745 = vadd.f32 %v2655, %v2744
      %v2746 = vpop.f32.mrf.mxu0
      %2747 = vmatprep.mubr.f32.mxu0 %v2369
      %2748 = vmatmul.mubr.f32.gmra.mxu0 %v2368
      %v2749 = vpop.f32.mrf.mxu0
      %v2750 = vadd.f32 %v2660, %v2749
      %v2751 = vpop.f32.mrf.mxu0
      %2752 = vmatprep.mubr.f32.mxu0 %v2387
      %2753 = vmatmul.mubr.f32.gmra.mxu0 %v2386
      %v2754 = vpop.f32.mrf.mxu0
      %v2755 = vadd.f32 %v2665, %v2754
      %v2756 = vpop.f32.mrf.mxu0
      %2757 = vdwg.mxu0
      %2758 = vmatprep.subr.mxu0 0.0
      %2759 = vmatpush1.msra.mxu0 %v356
      %2760 = vmatprep.subr.mxu0 0.0
      %2761 = vmatpush1.msra.mxu0 %v355
      %2762 = vmatprep.subr.mxu0 0.0
      %2763 = vmatpush1.msra.mxu0 %v354
      %2764 = vmatprep.subr.mxu0 0.0
      %2765 = vmatpush1.msra.mxu0 %v353
      %2766 = vmatprep.subr.mxu0 0.0
      %2767 = vmatpush1.msra.mxu0 %v352
      %2768 = vmatprep.subr.mxu0 0.0
      %2769 = vmatpush1.msra.mxu0 %v351
      %2770 = vmatprep.subr.mxu0 0.0
      %2771 = vmatpush1.msra.mxu0 %v350
      %2772 = vmatprep.subr.mxu0 0.0
      %2773 = vmatpush1.msra.mxu0 %v349
      %2774 = vmatprep.subr.mxu0 0.0
      %2775 = vmatpush1.msra.mxu0 %v348
      %2776 = vmatprep.subr.mxu0 0.0
      %2777 = vmatpush1.msra.mxu0 %v347
      %2778 = vmatprep.subr.mxu0 0.0
      %2779 = vmatpush1.msra.mxu0 %v346
      %2780 = vmatprep.subr.mxu0 0.0
      %2781 = vmatpush1.msra.mxu0 %v345
      %2782 = vmatprep.subr.mxu0 0.0
      %2783 = vmatpush1.msra.mxu0 %v344
      %2784 = vmatprep.subr.mxu0 0.0
      %2785 = vmatpush1.msra.mxu0 %v343
      %2786 = vmatprep.subr.mxu0 0.0
      %2787 = vmatpush1.msra.mxu0 %v342
      %2788 = vmatprep.subr.mxu0 0.0
      %2789 = vmatpush1.msra.mxu0 %v341
      %2790 = vmatprep.subr.mxu0 0.0
      %2791 = vmatpush2.msra.mxu0 %v372
      %2792 = vmatprep.subr.mxu0 0.0
      %2793 = vmatpush2.msra.mxu0 %v371
      %2794 = vmatprep.subr.mxu0 0.0
      %2795 = vmatpush2.msra.mxu0 %v370
      %2796 = vmatprep.subr.mxu0 0.0
      %2797 = vmatpush2.msra.mxu0 %v369
      %2798 = vmatprep.subr.mxu0 0.0
      %2799 = vmatpush2.msra.mxu0 %v368
      %2800 = vmatprep.subr.mxu0 0.0
      %2801 = vmatpush2.msra.mxu0 %v367
      %2802 = vmatprep.subr.mxu0 0.0
      %2803 = vmatpush2.msra.mxu0 %v366
      %2804 = vmatprep.subr.mxu0 0.0
      %2805 = vmatpush2.msra.mxu0 %v365
      %2806 = vmatprep.subr.mxu0 0.0
      %2807 = vmatpush2.msra.mxu0 %v364
      %2808 = vmatprep.subr.mxu0 0.0
      %2809 = vmatpush2.msra.mxu0 %v363
      %2810 = vmatprep.subr.mxu0 0.0
      %2811 = vmatpush2.msra.mxu0 %v362
      %2812 = vmatprep.subr.mxu0 0.0
      %2813 = vmatpush2.msra.mxu0 %v361
      %2814 = vmatprep.subr.mxu0 0.0
      %2815 = vmatpush2.msra.mxu0 %v360
      %2816 = vmatprep.subr.mxu0 0.0
      %2817 = vmatpush2.msra.mxu0 %v359
      %2818 = vmatprep.subr.mxu0 0.0
      %2819 = vmatpush2.msra.mxu0 %v358
      %2820 = vmatprep.subr.mxu0 0.0
      %2821 = vmatpush2.msra.mxu0 %v357
      %2822 = vmatprep.mubr.f32.mxu0 %v2317
      %2823 = vmatmul.mubr.f32.gmra.mxu0 %v2316
      %v2824 = vpop.f32.mrf.mxu0
      %v2825 = vadd.f32 %v2735, %v2824
      %v2826 = vpop.f32.mrf.mxu0
      %2827 = vmatprep.mubr.f32.mxu0 %v2335
      %2828 = vmatmul.mubr.f32.gmra.mxu0 %v2334
      %v2829 = vpop.f32.mrf.mxu0
      %v2830 = vadd.f32 %v2740, %v2829
      %v2831 = vpop.f32.mrf.mxu0
      %2832 = vmatprep.mubr.f32.mxu0 %v2353
      %2833 = vmatmul.mubr.f32.gmra.mxu0 %v2352
      %v2834 = vpop.f32.mrf.mxu0
      %v2835 = vadd.f32 %v2745, %v2834
      %v2836 = vpop.f32.mrf.mxu0
      %2837 = vmatprep.mubr.f32.mxu0 %v2371
      %2838 = vmatmul.mubr.f32.gmra.mxu0 %v2370
      %v2839 = vpop.f32.mrf.mxu0
      %v2840 = vadd.f32 %v2750, %v2839
      %v2841 = vpop.f32.mrf.mxu0
      %2842 = vmatprep.mubr.f32.mxu0 %v2389
      %2843 = vmatmul.mubr.f32.gmra.mxu0 %v2388
      %v2844 = vpop.f32.mrf.mxu0
      %v2845 = vadd.f32 %v2755, %v2844
      %v2846 = vpop.f32.mrf.mxu0
      %2847 = vdwg.mxu0
      %2848 = vmatprep.subr.mxu0 0.0
      %2849 = vmatpush1.msra.mxu0 %v388
      %2850 = vmatprep.subr.mxu0 0.0
      %2851 = vmatpush1.msra.mxu0 %v387
      %2852 = vmatprep.subr.mxu0 0.0
      %2853 = vmatpush1.msra.mxu0 %v386
      %2854 = vmatprep.subr.mxu0 0.0
      %2855 = vmatpush1.msra.mxu0 %v385
      %2856 = vmatprep.subr.mxu0 0.0
      %2857 = vmatpush1.msra.mxu0 %v384
      %2858 = vmatprep.subr.mxu0 0.0
      %2859 = vmatpush1.msra.mxu0 %v383
      %2860 = vmatprep.subr.mxu0 0.0
      %2861 = vmatpush1.msra.mxu0 %v382
      %2862 = vmatprep.subr.mxu0 0.0
      %2863 = vmatpush1.msra.mxu0 %v381
      %2864 = vmatprep.subr.mxu0 0.0
      %2865 = vmatpush1.msra.mxu0 %v380
      %2866 = vmatprep.subr.mxu0 0.0
      %2867 = vmatpush1.msra.mxu0 %v379
      %2868 = vmatprep.subr.mxu0 0.0
      %2869 = vmatpush1.msra.mxu0 %v378
      %2870 = vmatprep.subr.mxu0 0.0
      %2871 = vmatpush1.msra.mxu0 %v377
      %2872 = vmatprep.subr.mxu0 0.0
      %2873 = vmatpush1.msra.mxu0 %v376
      %2874 = vmatprep.subr.mxu0 0.0
      %2875 = vmatpush1.msra.mxu0 %v375
      %2876 = vmatprep.subr.mxu0 0.0
      %2877 = vmatpush1.msra.mxu0 %v374
      %2878 = vmatprep.subr.mxu0 0.0
      %2879 = vmatpush1.msra.mxu0 %v373
      %2880 = vmatprep.subr.mxu0 0.0
      %2881 = vmatpush2.msra.mxu0 %v404
      %2882 = vmatprep.subr.mxu0 0.0
      %2883 = vmatpush2.msra.mxu0 %v403
      %2884 = vmatprep.subr.mxu0 0.0
      %2885 = vmatpush2.msra.mxu0 %v402
      %2886 = vmatprep.subr.mxu0 0.0
      %2887 = vmatpush2.msra.mxu0 %v401
      %2888 = vmatprep.subr.mxu0 0.0
      %2889 = vmatpush2.msra.mxu0 %v400
      %2890 = vmatprep.subr.mxu0 0.0
      %2891 = vmatpush2.msra.mxu0 %v399
      %2892 = vmatprep.subr.mxu0 0.0
      %2893 = vmatpush2.msra.mxu0 %v398
      %2894 = vmatprep.subr.mxu0 0.0
      %2895 = vmatpush2.msra.mxu0 %v397
      %2896 = vmatprep.subr.mxu0 0.0
      %2897 = vmatpush2.msra.mxu0 %v396
      %2898 = vmatprep.subr.mxu0 0.0
      %2899 = vmatpush2.msra.mxu0 %v395
      %2900 = vmatprep.subr.mxu0 0.0
      %2901 = vmatpush2.msra.mxu0 %v394
      %2902 = vmatprep.subr.mxu0 0.0
      %2903 = vmatpush2.msra.mxu0 %v393
      %2904 = vmatprep.subr.mxu0 0.0
      %2905 = vmatpush2.msra.mxu0 %v392
      %2906 = vmatprep.subr.mxu0 0.0
      %2907 = vmatpush2.msra.mxu0 %v391
      %2908 = vmatprep.subr.mxu0 0.0
      %2909 = vmatpush2.msra.mxu0 %v390
      %2910 = vmatprep.subr.mxu0 0.0
      %2911 = vmatpush2.msra.mxu0 %v389
      %2912 = vmatprep.mubr.f32.mxu0 %v2319
      %2913 = vmatmul.mubr.f32.gmra.mxu0 %v2318
      %v2914 = vpop.f32.mrf.mxu0
      %v2915 = vadd.f32 %v2825, %v2914
      %v2916 = vpop.f32.mrf.mxu0
      %2917 = vmatprep.mubr.f32.mxu0 %v2337
      %2918 = vmatmul.mubr.f32.gmra.mxu0 %v2336
      %v2919 = vpop.f32.mrf.mxu0
      %v2920 = vadd.f32 %v2830, %v2919
      %v2921 = vpop.f32.mrf.mxu0
      %2922 = vmatprep.mubr.f32.mxu0 %v2355
      %2923 = vmatmul.mubr.f32.gmra.mxu0 %v2354
      %v2924 = vpop.f32.mrf.mxu0
      %v2925 = vadd.f32 %v2835, %v2924
      %v2926 = vpop.f32.mrf.mxu0
      %2927 = vmatprep.mubr.f32.mxu0 %v2373
      %2928 = vmatmul.mubr.f32.gmra.mxu0 %v2372
      %v2929 = vpop.f32.mrf.mxu0
      %v2930 = vadd.f32 %v2840, %v2929
      %v2931 = vpop.f32.mrf.mxu0
      %2932 = vmatprep.mubr.f32.mxu0 %v2391
      %2933 = vmatmul.mubr.f32.gmra.mxu0 %v2390
      %v2934 = vpop.f32.mrf.mxu0
      %v2935 = vadd.f32 %v2845, %v2934
      %v2936 = vpop.f32.mrf.mxu0
      %2937 = vdwg.mxu0
      %2938 = vmatprep.subr.mxu0 0.0
      %2939 = vmatpush1.msra.mxu0 %v420
      %2940 = vmatprep.subr.mxu0 0.0
      %2941 = vmatpush1.msra.mxu0 %v419
      %2942 = vmatprep.subr.mxu0 0.0
      %2943 = vmatpush1.msra.mxu0 %v418
      %2944 = vmatprep.subr.mxu0 0.0
      %2945 = vmatpush1.msra.mxu0 %v417
      %2946 = vmatprep.subr.mxu0 0.0
      %2947 = vmatpush1.msra.mxu0 %v416
      %2948 = vmatprep.subr.mxu0 0.0
      %2949 = vmatpush1.msra.mxu0 %v415
      %2950 = vmatprep.subr.mxu0 0.0
      %2951 = vmatpush1.msra.mxu0 %v414
      %2952 = vmatprep.subr.mxu0 0.0
      %2953 = vmatpush1.msra.mxu0 %v413
      %2954 = vmatprep.subr.mxu0 0.0
      %2955 = vmatpush1.msra.mxu0 %v412
      %2956 = vmatprep.subr.mxu0 0.0
      %2957 = vmatpush1.msra.mxu0 %v411
      %2958 = vmatprep.subr.mxu0 0.0
      %2959 = vmatpush1.msra.mxu0 %v410
      %2960 = vmatprep.subr.mxu0 0.0
      %2961 = vmatpush1.msra.mxu0 %v409
      %2962 = vmatprep.subr.mxu0 0.0
      %2963 = vmatpush1.msra.mxu0 %v408
      %2964 = vmatprep.subr.mxu0 0.0
      %2965 = vmatpush1.msra.mxu0 %v407
      %2966 = vmatprep.subr.mxu0 0.0
      %2967 = vmatpush1.msra.mxu0 %v406
      %2968 = vmatprep.subr.mxu0 0.0
      %2969 = vmatpush1.msra.mxu0 %v405
      %2970 = vmatprep.subr.mxu0 0.0
      %2971 = vmatpush2.msra.mxu0 %v436
      %2972 = vmatprep.subr.mxu0 0.0
      %2973 = vmatpush2.msra.mxu0 %v435
      %2974 = vmatprep.subr.mxu0 0.0
      %2975 = vmatpush2.msra.mxu0 %v434
      %2976 = vmatprep.subr.mxu0 0.0
      %2977 = vmatpush2.msra.mxu0 %v433
      %2978 = vmatprep.subr.mxu0 0.0
      %2979 = vmatpush2.msra.mxu0 %v432
      %2980 = vmatprep.subr.mxu0 0.0
      %2981 = vmatpush2.msra.mxu0 %v431
      %2982 = vmatprep.subr.mxu0 0.0
      %2983 = vmatpush2.msra.mxu0 %v430
      %2984 = vmatprep.subr.mxu0 0.0
      %2985 = vmatpush2.msra.mxu0 %v429
      %2986 = vmatprep.subr.mxu0 0.0
      %2987 = vmatpush2.msra.mxu0 %v428
      %2988 = vmatprep.subr.mxu0 0.0
      %2989 = vmatpush2.msra.mxu0 %v427
      %2990 = vmatprep.subr.mxu0 0.0
      %2991 = vmatpush2.msra.mxu0 %v426
      %2992 = vmatprep.subr.mxu0 0.0
      %2993 = vmatpush2.msra.mxu0 %v425
      %2994 = vmatprep.subr.mxu0 0.0
      %2995 = vmatpush2.msra.mxu0 %v424
      %2996 = vmatprep.subr.mxu0 0.0
      %2997 = vmatpush2.msra.mxu0 %v423
      %2998 = vmatprep.subr.mxu0 0.0
      %2999 = vmatpush2.msra.mxu0 %v422
      %3000 = vmatprep.subr.mxu0 0.0
      %3001 = vmatpush2.msra.mxu0 %v421
      %3002 = vmatprep.mubr.f32.mxu0 %v2321
      %3003 = vmatmul.mubr.f32.gmra.mxu0 %v2320
      %v3004 = vpop.f32.mrf.mxu0
      %v3005 = vadd.f32 %v2915, %v3004
      %v3006 = vpop.f32.mrf.mxu0
      %3007 = vmatprep.mubr.f32.mxu0 %v2339
      %3008 = vmatmul.mubr.f32.gmra.mxu0 %v2338
      %v3009 = vpop.f32.mrf.mxu0
      %v3010 = vadd.f32 %v2920, %v3009
      %v3011 = vpop.f32.mrf.mxu0
      %3012 = vmatprep.mubr.f32.mxu0 %v2357
      %3013 = vmatmul.mubr.f32.gmra.mxu0 %v2356
      %v3014 = vpop.f32.mrf.mxu0
      %v3015 = vadd.f32 %v2925, %v3014
      %v3016 = vpop.f32.mrf.mxu0
      %3017 = vmatprep.mubr.f32.mxu0 %v2375
      %3018 = vmatmul.mubr.f32.gmra.mxu0 %v2374
      %v3019 = vpop.f32.mrf.mxu0
      %v3020 = vadd.f32 %v2930, %v3019
      %v3021 = vpop.f32.mrf.mxu0
      %3022 = vmatprep.mubr.f32.mxu0 %v2393
      %3023 = vmatmul.mubr.f32.gmra.mxu0 %v2392
      %v3024 = vpop.f32.mrf.mxu0
      %v3025 = vadd.f32 %v2935, %v3024
      %v3026 = vpop.f32.mrf.mxu0
      %3027 = vdwg.mxu0
      %3028 = vmatprep.subr.mxu0 0.0
      %3029 = vmatpush1.msra.mxu0 %v452
      %3030 = vmatprep.subr.mxu0 0.0
      %3031 = vmatpush1.msra.mxu0 %v451
      %3032 = vmatprep.subr.mxu0 0.0
      %3033 = vmatpush1.msra.mxu0 %v450
      %3034 = vmatprep.subr.mxu0 0.0
      %3035 = vmatpush1.msra.mxu0 %v449
      %3036 = vmatprep.subr.mxu0 0.0
      %3037 = vmatpush1.msra.mxu0 %v448
      %3038 = vmatprep.subr.mxu0 0.0
      %3039 = vmatpush1.msra.mxu0 %v447
      %3040 = vmatprep.subr.mxu0 0.0
      %3041 = vmatpush1.msra.mxu0 %v446
      %3042 = vmatprep.subr.mxu0 0.0
      %3043 = vmatpush1.msra.mxu0 %v445
      %3044 = vmatprep.subr.mxu0 0.0
      %3045 = vmatpush1.msra.mxu0 %v444
      %3046 = vmatprep.subr.mxu0 0.0
      %3047 = vmatpush1.msra.mxu0 %v443
      %3048 = vmatprep.subr.mxu0 0.0
      %3049 = vmatpush1.msra.mxu0 %v442
      %3050 = vmatprep.subr.mxu0 0.0
      %3051 = vmatpush1.msra.mxu0 %v441
      %3052 = vmatprep.subr.mxu0 0.0
      %3053 = vmatpush1.msra.mxu0 %v440
      %3054 = vmatprep.subr.mxu0 0.0
      %3055 = vmatpush1.msra.mxu0 %v439
      %3056 = vmatprep.subr.mxu0 0.0
      %3057 = vmatpush1.msra.mxu0 %v438
      %3058 = vmatprep.subr.mxu0 0.0
      %3059 = vmatpush1.msra.mxu0 %v437
      %3060 = vmatprep.subr.mxu0 0.0
      %3061 = vmatpush2.msra.mxu0 %v468
      %3062 = vmatprep.subr.mxu0 0.0
      %3063 = vmatpush2.msra.mxu0 %v467
      %3064 = vmatprep.subr.mxu0 0.0
      %3065 = vmatpush2.msra.mxu0 %v466
      %3066 = vmatprep.subr.mxu0 0.0
      %3067 = vmatpush2.msra.mxu0 %v465
      %3068 = vmatprep.subr.mxu0 0.0
      %3069 = vmatpush2.msra.mxu0 %v464
      %3070 = vmatprep.subr.mxu0 0.0
      %3071 = vmatpush2.msra.mxu0 %v463
      %3072 = vmatprep.subr.mxu0 0.0
      %3073 = vmatpush2.msra.mxu0 %v462
      %3074 = vmatprep.subr.mxu0 0.0
      %3075 = vmatpush2.msra.mxu0 %v461
      %3076 = vmatprep.subr.mxu0 0.0
      %3077 = vmatpush2.msra.mxu0 %v460
      %3078 = vmatprep.subr.mxu0 0.0
      %3079 = vmatpush2.msra.mxu0 %v459
      %3080 = vmatprep.subr.mxu0 0.0
      %3081 = vmatpush2.msra.mxu0 %v458
      %3082 = vmatprep.subr.mxu0 0.0
      %3083 = vmatpush2.msra.mxu0 %v457
      %3084 = vmatprep.subr.mxu0 0.0
      %3085 = vmatpush2.msra.mxu0 %v456
      %3086 = vmatprep.subr.mxu0 0.0
      %3087 = vmatpush2.msra.mxu0 %v455
      %3088 = vmatprep.subr.mxu0 0.0
      %3089 = vmatpush2.msra.mxu0 %v454
      %3090 = vmatprep.subr.mxu0 0.0
      %3091 = vmatpush2.msra.mxu0 %v453
      %3092 = vmatprep.mubr.f32.mxu0 %v2323
      %3093 = vmatmul.mubr.f32.gmra.mxu0 %v2322
      %v3094 = vpop.f32.mrf.mxu0
      %v3095 = vadd.f32 %v3005, %v3094
      %v3096 = vpop.f32.mrf.mxu0
      %3097 = vmatprep.mubr.f32.mxu0 %v2341
      %3098 = vmatmul.mubr.f32.gmra.mxu0 %v2340
      %v3099 = vpop.f32.mrf.mxu0
      %v3100 = vadd.f32 %v3010, %v3099
      %v3101 = vpop.f32.mrf.mxu0
      %3102 = vmatprep.mubr.f32.mxu0 %v2359
      %3103 = vmatmul.mubr.f32.gmra.mxu0 %v2358
      %v3104 = vpop.f32.mrf.mxu0
      %v3105 = vadd.f32 %v3015, %v3104
      %v3106 = vpop.f32.mrf.mxu0
      %3107 = vmatprep.mubr.f32.mxu0 %v2377
      %3108 = vmatmul.mubr.f32.gmra.mxu0 %v2376
      %v3109 = vpop.f32.mrf.mxu0
      %v3110 = vadd.f32 %v3020, %v3109
      %v3111 = vpop.f32.mrf.mxu0
      %3112 = vmatprep.mubr.f32.mxu0 %v2395
      %3113 = vmatmul.mubr.f32.gmra.mxu0 %v2394
      %v3114 = vpop.f32.mrf.mxu0
      %v3115 = vadd.f32 %v3025, %v3114
      %v3116 = vpop.f32.mrf.mxu0
      %3117 = vdwg.mxu0
      %3118 = vmatprep.subr.mxu0 0.0
      %3119 = vmatpush1.msra.mxu0 %v484
      %3120 = vmatprep.subr.mxu0 0.0
      %3121 = vmatpush1.msra.mxu0 %v483
      %3122 = vmatprep.subr.mxu0 0.0
      %3123 = vmatpush1.msra.mxu0 %v482
      %3124 = vmatprep.subr.mxu0 0.0
      %3125 = vmatpush1.msra.mxu0 %v481
      %3126 = vmatprep.subr.mxu0 0.0
      %3127 = vmatpush1.msra.mxu0 %v480
      %3128 = vmatprep.subr.mxu0 0.0
      %3129 = vmatpush1.msra.mxu0 %v479
      %3130 = vmatprep.subr.mxu0 0.0
      %3131 = vmatpush1.msra.mxu0 %v478
      %3132 = vmatprep.subr.mxu0 0.0
      %3133 = vmatpush1.msra.mxu0 %v477
      %3134 = vmatprep.subr.mxu0 0.0
      %3135 = vmatpush1.msra.mxu0 %v476
      %3136 = vmatprep.subr.mxu0 0.0
      %3137 = vmatpush1.msra.mxu0 %v475
      %3138 = vmatprep.subr.mxu0 0.0
      %3139 = vmatpush1.msra.mxu0 %v474
      %3140 = vmatprep.subr.mxu0 0.0
      %3141 = vmatpush1.msra.mxu0 %v473
      %3142 = vmatprep.subr.mxu0 0.0
      %3143 = vmatpush1.msra.mxu0 %v472
      %3144 = vmatprep.subr.mxu0 0.0
      %3145 = vmatpush1.msra.mxu0 %v471
      %3146 = vmatprep.subr.mxu0 0.0
      %3147 = vmatpush1.msra.mxu0 %v470
      %3148 = vmatprep.subr.mxu0 0.0
      %3149 = vmatpush1.msra.mxu0 %v469
      %3150 = vmatprep.subr.mxu0 0.0
      %3151 = vmatpush2.msra.mxu0 %v500
      %3152 = vmatprep.subr.mxu0 0.0
      %3153 = vmatpush2.msra.mxu0 %v499
      %3154 = vmatprep.subr.mxu0 0.0
      %3155 = vmatpush2.msra.mxu0 %v498
      %3156 = vmatprep.subr.mxu0 0.0
      %3157 = vmatpush2.msra.mxu0 %v497
      %3158 = vmatprep.subr.mxu0 0.0
      %3159 = vmatpush2.msra.mxu0 %v496
      %3160 = vmatprep.subr.mxu0 0.0
      %3161 = vmatpush2.msra.mxu0 %v495
      %3162 = vmatprep.subr.mxu0 0.0
      %3163 = vmatpush2.msra.mxu0 %v494
      %3164 = vmatprep.subr.mxu0 0.0
      %3165 = vmatpush2.msra.mxu0 %v493
      %3166 = vmatprep.subr.mxu0 0.0
      %3167 = vmatpush2.msra.mxu0 %v492
      %3168 = vmatprep.subr.mxu0 0.0
      %3169 = vmatpush2.msra.mxu0 %v491
      %3170 = vmatprep.subr.mxu0 0.0
      %3171 = vmatpush2.msra.mxu0 %v490
      %3172 = vmatprep.subr.mxu0 0.0
      %3173 = vmatpush2.msra.mxu0 %v489
      %3174 = vmatprep.subr.mxu0 0.0
      %3175 = vmatpush2.msra.mxu0 %v488
      %3176 = vmatprep.subr.mxu0 0.0
      %3177 = vmatpush2.msra.mxu0 %v487
      %3178 = vmatprep.subr.mxu0 0.0
      %3179 = vmatpush2.msra.mxu0 %v486
      %3180 = vmatprep.subr.mxu0 0.0
      %3181 = vmatpush2.msra.mxu0 %v485
      %3182 = vmatprep.mubr.f32.mxu0 %v2325
      %3183 = vmatmul.mubr.f32.gmra.mxu0 %v2324
      %v3184 = vpop.f32.mrf.mxu0
      %v3185 = vadd.f32 %v3095, %v3184
      %v3186 = vpop.f32.mrf.mxu0
      %3187 = vmatprep.mubr.f32.mxu0 %v2343
      %3188 = vmatmul.mubr.f32.gmra.mxu0 %v2342
      %v3189 = vpop.f32.mrf.mxu0
      %v3190 = vadd.f32 %v3100, %v3189
      %v3191 = vpop.f32.mrf.mxu0
      %3192 = vmatprep.mubr.f32.mxu0 %v2361
      %3193 = vmatmul.mubr.f32.gmra.mxu0 %v2360
      %v3194 = vpop.f32.mrf.mxu0
      %v3195 = vadd.f32 %v3105, %v3194
      %v3196 = vpop.f32.mrf.mxu0
      %3197 = vmatprep.mubr.f32.mxu0 %v2379
      %3198 = vmatmul.mubr.f32.gmra.mxu0 %v2378
      %v3199 = vpop.f32.mrf.mxu0
      %v3200 = vadd.f32 %v3110, %v3199
      %v3201 = vpop.f32.mrf.mxu0
      %3202 = vmatprep.mubr.f32.mxu0 %v2397
      %3203 = vmatmul.mubr.f32.gmra.mxu0 %v2396
      %v3204 = vpop.f32.mrf.mxu0
      %v3205 = vadd.f32 %v3115, %v3204
      %v3206 = vpop.f32.mrf.mxu0
      %3207 = vdwg.mxu0
      %v3208 = vmax.f32 %v2302, %v3185
      %v3209 = vmax.f32 %v2303, %v3190
      %v3210 = vmax.f32 %v2304, %v3195
      %v3211 = vmax.f32 %v2305, %v3200
      %v3212 = vmax.f32 %v2306, %v3205
      %s3213 = scalar_lea.vmem %s201, 2160
      %v3214 = vld [vmem:[%s3213] sm:$0xff]
      %v3215 = vld [vmem:[%s3213 + $0x8] sm:$0xff]
      %v3216 = vld [vmem:[%s3213 + $0x10] sm:$0xff]
      %v3217 = vld [vmem:[%s3213 + $0x18] sm:$0xff]
      %v3218 = vld [vmem:[%s3213 + $0x20] sm:$0xff]
      %v3219 = vld [vmem:[%s3213 + $0x28] sm:$0xff]
      %v3220 = vld [vmem:[%s3213 + $0x30] sm:$0xff]
      %v3221 = vld [vmem:[%s3213 + $0x38] sm:$0xff]
      %v3222 = vld [vmem:[%s3213 + $0x40] sm:$0xff]
      %v3223 = vld [vmem:[%s3213 + $0x48] sm:$0xff]
      %v3224 = vld [vmem:[%s3213 + $0x50] sm:$0xff]
      %v3225 = vld [vmem:[%s3213 + $0x58] sm:$0xff]
      %v3226 = vld [vmem:[%s3213 + $0x60] sm:$0xff]
      %v3227 = vld [vmem:[%s3213 + $0x68] sm:$0xff]
      %v3228 = vld [vmem:[%s3213 + $0x70] sm:$0xff]
      %v3229 = vld [vmem:[%s3213 + $0x78] sm:$0xff]
      %v3230 = vld [vmem:[%s3213 + $0x80] sm:$0xff]
      %v3231 = vld [vmem:[%s3213 + $0x88] sm:$0xff]
      %v3232 = vld [vmem:[%s3213 + $0x90] sm:$0xff]
      %v3233 = vld [vmem:[%s3213 + $0x98] sm:$0xff]
      %v3234 = vld [vmem:[%s3213 + $0xa0] sm:$0xff]
      %v3235 = vld [vmem:[%s3213 + $0xa8] sm:$0xff]
      %v3236 = vld [vmem:[%s3213 + $0xb0] sm:$0xff]
      %v3237 = vld [vmem:[%s3213 + $0xb8] sm:$0xff]
      %v3238 = vld [vmem:[%s3213 + $0xc0] sm:$0xff]
      %v3239 = vld [vmem:[%s3213 + $0xc8] sm:$0xff]
      %v3240 = vld [vmem:[%s3213 + $0xd0] sm:$0xff]
      %v3241 = vld [vmem:[%s3213 + $0xd8] sm:$0xff]
      %v3242 = vld [vmem:[%s3213 + $0xe0] sm:$0xff]
      %v3243 = vld [vmem:[%s3213 + $0xe8] sm:$0xff]
      %v3244 = vld [vmem:[%s3213 + $0xf0] sm:$0xff]
      %v3245 = vld [vmem:[%s3213 + $0xf8] sm:$0xff]
      %v3246 = vld [vmem:[%s3213 + $0x100] sm:$0xff]
      %v3247 = vld [vmem:[%s3213 + $0x108] sm:$0xff]
      %v3248 = vld [vmem:[%s3213 + $0x110] sm:$0xff]
      %v3249 = vld [vmem:[%s3213 + $0x118] sm:$0xff]
      %v3250 = vld [vmem:[%s3213 + $0x120] sm:$0xff]
      %v3251 = vld [vmem:[%s3213 + $0x128] sm:$0xff]
      %v3252 = vld [vmem:[%s3213 + $0x130] sm:$0xff]
      %v3253 = vld [vmem:[%s3213 + $0x138] sm:$0xff]
      %v3254 = vld [vmem:[%s3213 + $0x140] sm:$0xff]
      %v3255 = vld [vmem:[%s3213 + $0x148] sm:$0xff]
      %v3256 = vld [vmem:[%s3213 + $0x150] sm:$0xff]
      %v3257 = vld [vmem:[%s3213 + $0x158] sm:$0xff]
      %v3258 = vld [vmem:[%s3213 + $0x160] sm:$0xff]
      %v3259 = vld [vmem:[%s3213 + $0x168] sm:$0xff]
      %v3260 = vld [vmem:[%s3213 + $0x170] sm:$0xff]
      %v3261 = vld [vmem:[%s3213 + $0x178] sm:$0xff]
      %v3262 = vld [vmem:[%s3213 + $0x180] sm:$0xff]
      %v3263 = vld [vmem:[%s3213 + $0x188] sm:$0xff]
      %v3264 = vld [vmem:[%s3213 + $0x190] sm:$0xff]
      %v3265 = vld [vmem:[%s3213 + $0x198] sm:$0xff]
      %v3266 = vld [vmem:[%s3213 + $0x1a0] sm:$0xff]
      %v3267 = vld [vmem:[%s3213 + $0x1a8] sm:$0xff]
      %v3268 = vld [vmem:[%s3213 + $0x1b0] sm:$0xff]
      %v3269 = vld [vmem:[%s3213 + $0x1b8] sm:$0xff]
      %v3270 = vld [vmem:[%s3213 + $0x1c0] sm:$0xff]
      %v3271 = vld [vmem:[%s3213 + $0x1c8] sm:$0xff]
      %v3272 = vld [vmem:[%s3213 + $0x1d0] sm:$0xff]
      %v3273 = vld [vmem:[%s3213 + $0x1d8] sm:$0xff]
      %v3274 = vld [vmem:[%s3213 + $0x1e0] sm:$0xff]
      %v3275 = vld [vmem:[%s3213 + $0x1e8] sm:$0xff]
      %v3276 = vld [vmem:[%s3213 + $0x1f0] sm:$0xff]
      %v3277 = vld [vmem:[%s3213 + $0x1f8] sm:$0xff]
      %v3278 = vld [vmem:[%s3213 + $0x200] sm:$0xff]
      %v3279 = vld [vmem:[%s3213 + $0x208] sm:$0xff]
      %v3280 = vld [vmem:[%s3213 + $0x210] sm:$0xff]
      %v3281 = vld [vmem:[%s3213 + $0x218] sm:$0xff]
      %v3282 = vld [vmem:[%s3213 + $0x220] sm:$0xff]
      %v3283 = vld [vmem:[%s3213 + $0x228] sm:$0xff]
      %v3284 = vld [vmem:[%s3213 + $0x230] sm:$0xff]
      %v3285 = vld [vmem:[%s3213 + $0x238] sm:$0xff]
      %v3286 = vld [vmem:[%s3213 + $0x240] sm:$0xff]
      %v3287 = vld [vmem:[%s3213 + $0x248] sm:$0xff]
      %v3288 = vld [vmem:[%s3213 + $0x250] sm:$0xff]
      %v3289 = vld [vmem:[%s3213 + $0x258] sm:$0xff]
      %v3290 = vld [vmem:[%s3213 + $0x260] sm:$0xff]
      %v3291 = vld [vmem:[%s3213 + $0x268] sm:$0xff]
      %v3292 = vld [vmem:[%s3213 + $0x270] sm:$0xff]
      %v3293 = vld [vmem:[%s3213 + $0x278] sm:$0xff]
      %v3294 = vld [vmem:[%s3213 + $0x280] sm:$0xff]
      %v3295 = vld [vmem:[%s3213 + $0x288] sm:$0xff]
      %v3296 = vld [vmem:[%s3213 + $0x290] sm:$0xff]
      %v3297 = vld [vmem:[%s3213 + $0x298] sm:$0xff]
      %v3298 = vld [vmem:[%s3213 + $0x2a0] sm:$0xff]
      %v3299 = vld [vmem:[%s3213 + $0x2a8] sm:$0xff]
      %v3300 = vld [vmem:[%s3213 + $0x2b0] sm:$0xff]
      %v3301 = vld [vmem:[%s3213 + $0x2b8] sm:$0xff]
      %v3302 = vld [vmem:[%s3213 + $0x2c0] sm:$0xff]
      %v3303 = vld [vmem:[%s3213 + $0x2c8] sm:$0xff]
      %3304 = vmatprep.subr.mxu0 0.0
      %3305 = vmatpush1.msra.mxu0 %v228
      %3306 = vmatprep.subr.mxu0 0.0
      %3307 = vmatpush1.msra.mxu0 %v227
      %3308 = vmatprep.subr.mxu0 0.0
      %3309 = vmatpush1.msra.mxu0 %v226
      %3310 = vmatprep.subr.mxu0 0.0
      %3311 = vmatpush1.msra.mxu0 %v225
      %3312 = vmatprep.subr.mxu0 0.0
      %3313 = vmatpush1.msra.mxu0 %v224
      %3314 = vmatprep.subr.mxu0 0.0
      %3315 = vmatpush1.msra.mxu0 %v223
      %3316 = vmatprep.subr.mxu0 0.0
      %3317 = vmatpush1.msra.mxu0 %v222
      %3318 = vmatprep.subr.mxu0 0.0
      %3319 = vmatpush1.msra.mxu0 %v221
      %3320 = vmatprep.subr.mxu0 0.0
      %3321 = vmatpush1.msra.mxu0 %v220
      %3322 = vmatprep.subr.mxu0 0.0
      %3323 = vmatpush1.msra.mxu0 %v219
      %3324 = vmatprep.subr.mxu0 0.0
      %3325 = vmatpush1.msra.mxu0 %v218
      %3326 = vmatprep.subr.mxu0 0.0
      %3327 = vmatpush1.msra.mxu0 %v217
      %3328 = vmatprep.subr.mxu0 0.0
      %3329 = vmatpush1.msra.mxu0 %v216
      %3330 = vmatprep.subr.mxu0 0.0
      %3331 = vmatpush1.msra.mxu0 %v215
      %3332 = vmatprep.subr.mxu0 0.0
      %3333 = vmatpush1.msra.mxu0 %v214
      %3334 = vmatprep.subr.mxu0 0.0
      %3335 = vmatpush1.msra.mxu0 %v213
      %3336 = vmatprep.subr.mxu0 0.0
      %3337 = vmatpush2.msra.mxu0 %v244
      %3338 = vmatprep.subr.mxu0 0.0
      %3339 = vmatpush2.msra.mxu0 %v243
      %3340 = vmatprep.subr.mxu0 0.0
      %3341 = vmatpush2.msra.mxu0 %v242
      %3342 = vmatprep.subr.mxu0 0.0
      %3343 = vmatpush2.msra.mxu0 %v241
      %3344 = vmatprep.subr.mxu0 0.0
      %3345 = vmatpush2.msra.mxu0 %v240
      %3346 = vmatprep.subr.mxu0 0.0
      %3347 = vmatpush2.msra.mxu0 %v239
      %3348 = vmatprep.subr.mxu0 0.0
      %3349 = vmatpush2.msra.mxu0 %v238
      %3350 = vmatprep.subr.mxu0 0.0
      %3351 = vmatpush2.msra.mxu0 %v237
      %3352 = vmatprep.subr.mxu0 0.0
      %3353 = vmatpush2.msra.mxu0 %v236
      %3354 = vmatprep.subr.mxu0 0.0
      %3355 = vmatpush2.msra.mxu0 %v235
      %3356 = vmatprep.subr.mxu0 0.0
      %3357 = vmatpush2.msra.mxu0 %v234
      %3358 = vmatprep.subr.mxu0 0.0
      %3359 = vmatpush2.msra.mxu0 %v233
      %3360 = vmatprep.subr.mxu0 0.0
      %3361 = vmatpush2.msra.mxu0 %v232
      %3362 = vmatprep.subr.mxu0 0.0
      %3363 = vmatpush2.msra.mxu0 %v231
      %3364 = vmatprep.subr.mxu0 0.0
      %3365 = vmatpush2.msra.mxu0 %v230
      %3366 = vmatprep.subr.mxu0 0.0
      %3367 = vmatpush2.msra.mxu0 %v229
      %3368 = vmatprep.mubr.f32.mxu0 %v3215
      %3369 = vmatmul.mubr.f32.gmra.mxu0 %v3214
      %v3370 = vpop.f32.mrf.mxu0
      %v3371 = vadd.f32 0.0, %v3370
      %v3372 = vpop.f32.mrf.mxu0
      %3373 = vmatprep.mubr.f32.mxu0 %v3233
      %3374 = vmatmul.mubr.f32.gmra.mxu0 %v3232
      %v3375 = vpop.f32.mrf.mxu0
      %v3376 = vadd.f32 0.0, %v3375
      %v3377 = vpop.f32.mrf.mxu0
      %3378 = vmatprep.mubr.f32.mxu0 %v3251
      %3379 = vmatmul.mubr.f32.gmra.mxu0 %v3250
      %v3380 = vpop.f32.mrf.mxu0
      %v3381 = vadd.f32 0.0, %v3380
      %v3382 = vpop.f32.mrf.mxu0
      %3383 = vmatprep.mubr.f32.mxu0 %v3269
      %3384 = vmatmul.mubr.f32.gmra.mxu0 %v3268
      %v3385 = vpop.f32.mrf.mxu0
      %v3386 = vadd.f32 0.0, %v3385
      %v3387 = vpop.f32.mrf.mxu0
      %3388 = vmatprep.mubr.f32.mxu0 %v3287
      %3389 = vmatmul.mubr.f32.gmra.mxu0 %v3286
      %v3390 = vpop.f32.mrf.mxu0
      %v3391 = vadd.f32 0.0, %v3390
      %v3392 = vpop.f32.mrf.mxu0
      %3393 = vdwg.mxu0
      %3394 = vmatprep.subr.mxu0 0.0
      %3395 = vmatpush1.msra.mxu0 %v260
      %3396 = vmatprep.subr.mxu0 0.0
      %3397 = vmatpush1.msra.mxu0 %v259
      %3398 = vmatprep.subr.mxu0 0.0
      %3399 = vmatpush1.msra.mxu0 %v258
      %3400 = vmatprep.subr.mxu0 0.0
      %3401 = vmatpush1.msra.mxu0 %v257
      %3402 = vmatprep.subr.mxu0 0.0
      %3403 = vmatpush1.msra.mxu0 %v256
      %3404 = vmatprep.subr.mxu0 0.0
      %3405 = vmatpush1.msra.mxu0 %v255
      %3406 = vmatprep.subr.mxu0 0.0
      %3407 = vmatpush1.msra.mxu0 %v254
      %3408 = vmatprep.subr.mxu0 0.0
      %3409 = vmatpush1.msra.mxu0 %v253
      %3410 = vmatprep.subr.mxu0 0.0
      %3411 = vmatpush1.msra.mxu0 %v252
      %3412 = vmatprep.subr.mxu0 0.0
      %3413 = vmatpush1.msra.mxu0 %v251
      %3414 = vmatprep.subr.mxu0 0.0
      %3415 = vmatpush1.msra.mxu0 %v250
      %3416 = vmatprep.subr.mxu0 0.0
      %3417 = vmatpush1.msra.mxu0 %v249
      %3418 = vmatprep.subr.mxu0 0.0
      %3419 = vmatpush1.msra.mxu0 %v248
      %3420 = vmatprep.subr.mxu0 0.0
      %3421 = vmatpush1.msra.mxu0 %v247
      %3422 = vmatprep.subr.mxu0 0.0
      %3423 = vmatpush1.msra.mxu0 %v246
      %3424 = vmatprep.subr.mxu0 0.0
      %3425 = vmatpush1.msra.mxu0 %v245
      %3426 = vmatprep.subr.mxu0 0.0
      %3427 = vmatpush2.msra.mxu0 %v276
      %3428 = vmatprep.subr.mxu0 0.0
      %3429 = vmatpush2.msra.mxu0 %v275
      %3430 = vmatprep.subr.mxu0 0.0
      %3431 = vmatpush2.msra.mxu0 %v274
      %3432 = vmatprep.subr.mxu0 0.0
      %3433 = vmatpush2.msra.mxu0 %v273
      %3434 = vmatprep.subr.mxu0 0.0
      %3435 = vmatpush2.msra.mxu0 %v272
      %3436 = vmatprep.subr.mxu0 0.0
      %3437 = vmatpush2.msra.mxu0 %v271
      %3438 = vmatprep.subr.mxu0 0.0
      %3439 = vmatpush2.msra.mxu0 %v270
      %3440 = vmatprep.subr.mxu0 0.0
      %3441 = vmatpush2.msra.mxu0 %v269
      %3442 = vmatprep.subr.mxu0 0.0
      %3443 = vmatpush2.msra.mxu0 %v268
      %3444 = vmatprep.subr.mxu0 0.0
      %3445 = vmatpush2.msra.mxu0 %v267
      %3446 = vmatprep.subr.mxu0 0.0
      %3447 = vmatpush2.msra.mxu0 %v266
      %3448 = vmatprep.subr.mxu0 0.0
      %3449 = vmatpush2.msra.mxu0 %v265
      %3450 = vmatprep.subr.mxu0 0.0
      %3451 = vmatpush2.msra.mxu0 %v264
      %3452 = vmatprep.subr.mxu0 0.0
      %3453 = vmatpush2.msra.mxu0 %v263
      %3454 = vmatprep.subr.mxu0 0.0
      %3455 = vmatpush2.msra.mxu0 %v262
      %3456 = vmatprep.subr.mxu0 0.0
      %3457 = vmatpush2.msra.mxu0 %v261
      %3458 = vmatprep.mubr.f32.mxu0 %v3217
      %3459 = vmatmul.mubr.f32.gmra.mxu0 %v3216
      %v3460 = vpop.f32.mrf.mxu0
      %v3461 = vadd.f32 %v3371, %v3460
      %v3462 = vpop.f32.mrf.mxu0
      %3463 = vmatprep.mubr.f32.mxu0 %v3235
      %3464 = vmatmul.mubr.f32.gmra.mxu0 %v3234
      %v3465 = vpop.f32.mrf.mxu0
      %v3466 = vadd.f32 %v3376, %v3465
      %v3467 = vpop.f32.mrf.mxu0
      %3468 = vmatprep.mubr.f32.mxu0 %v3253
      %3469 = vmatmul.mubr.f32.gmra.mxu0 %v3252
      %v3470 = vpop.f32.mrf.mxu0
      %v3471 = vadd.f32 %v3381, %v3470
      %v3472 = vpop.f32.mrf.mxu0
      %3473 = vmatprep.mubr.f32.mxu0 %v3271
      %3474 = vmatmul.mubr.f32.gmra.mxu0 %v3270
      %v3475 = vpop.f32.mrf.mxu0
      %v3476 = vadd.f32 %v3386, %v3475
      %v3477 = vpop.f32.mrf.mxu0
      %3478 = vmatprep.mubr.f32.mxu0 %v3289
      %3479 = vmatmul.mubr.f32.gmra.mxu0 %v3288
      %v3480 = vpop.f32.mrf.mxu0
      %v3481 = vadd.f32 %v3391, %v3480
      %v3482 = vpop.f32.mrf.mxu0
      %3483 = vdwg.mxu0
      %3484 = vmatprep.subr.mxu0 0.0
      %3485 = vmatpush1.msra.mxu0 %v292
      %3486 = vmatprep.subr.mxu0 0.0
      %3487 = vmatpush1.msra.mxu0 %v291
      %3488 = vmatprep.subr.mxu0 0.0
      %3489 = vmatpush1.msra.mxu0 %v290
      %3490 = vmatprep.subr.mxu0 0.0
      %3491 = vmatpush1.msra.mxu0 %v289
      %3492 = vmatprep.subr.mxu0 0.0
      %3493 = vmatpush1.msra.mxu0 %v288
      %3494 = vmatprep.subr.mxu0 0.0
      %3495 = vmatpush1.msra.mxu0 %v287
      %3496 = vmatprep.subr.mxu0 0.0
      %3497 = vmatpush1.msra.mxu0 %v286
      %3498 = vmatprep.subr.mxu0 0.0
      %3499 = vmatpush1.msra.mxu0 %v285
      %3500 = vmatprep.subr.mxu0 0.0
      %3501 = vmatpush1.msra.mxu0 %v284
      %3502 = vmatprep.subr.mxu0 0.0
      %3503 = vmatpush1.msra.mxu0 %v283
      %3504 = vmatprep.subr.mxu0 0.0
      %3505 = vmatpush1.msra.mxu0 %v282
      %3506 = vmatprep.subr.mxu0 0.0
      %3507 = vmatpush1.msra.mxu0 %v281
      %3508 = vmatprep.subr.mxu0 0.0
      %3509 = vmatpush1.msra.mxu0 %v280
      %3510 = vmatprep.subr.mxu0 0.0
      %3511 = vmatpush1.msra.mxu0 %v279
      %3512 = vmatprep.subr.mxu0 0.0
      %3513 = vmatpush1.msra.mxu0 %v278
      %3514 = vmatprep.subr.mxu0 0.0
      %3515 = vmatpush1.msra.mxu0 %v277
      %3516 = vmatprep.subr.mxu0 0.0
      %3517 = vmatpush2.msra.mxu0 %v308
      %3518 = vmatprep.subr.mxu0 0.0
      %3519 = vmatpush2.msra.mxu0 %v307
      %3520 = vmatprep.subr.mxu0 0.0
      %3521 = vmatpush2.msra.mxu0 %v306
      %3522 = vmatprep.subr.mxu0 0.0
      %3523 = vmatpush2.msra.mxu0 %v305
      %3524 = vmatprep.subr.mxu0 0.0
      %3525 = vmatpush2.msra.mxu0 %v304
      %3526 = vmatprep.subr.mxu0 0.0
      %3527 = vmatpush2.msra.mxu0 %v303
      %3528 = vmatprep.subr.mxu0 0.0
      %3529 = vmatpush2.msra.mxu0 %v302
      %3530 = vmatprep.subr.mxu0 0.0
      %3531 = vmatpush2.msra.mxu0 %v301
      %3532 = vmatprep.subr.mxu0 0.0
      %3533 = vmatpush2.msra.mxu0 %v300
      %3534 = vmatprep.subr.mxu0 0.0
      %3535 = vmatpush2.msra.mxu0 %v299
      %3536 = vmatprep.subr.mxu0 0.0
      %3537 = vmatpush2.msra.mxu0 %v298
      %3538 = vmatprep.subr.mxu0 0.0
      %3539 = vmatpush2.msra.mxu0 %v297
      %3540 = vmatprep.subr.mxu0 0.0
      %3541 = vmatpush2.msra.mxu0 %v296
      %3542 = vmatprep.subr.mxu0 0.0
      %3543 = vmatpush2.msra.mxu0 %v295
      %3544 = vmatprep.subr.mxu0 0.0
      %3545 = vmatpush2.msra.mxu0 %v294
      %3546 = vmatprep.subr.mxu0 0.0
      %3547 = vmatpush2.msra.mxu0 %v293
      %3548 = vmatprep.mubr.f32.mxu0 %v3219
      %3549 = vmatmul.mubr.f32.gmra.mxu0 %v3218
      %v3550 = vpop.f32.mrf.mxu0
      %v3551 = vadd.f32 %v3461, %v3550
      %v3552 = vpop.f32.mrf.mxu0
      %3553 = vmatprep.mubr.f32.mxu0 %v3237
      %3554 = vmatmul.mubr.f32.gmra.mxu0 %v3236
      %v3555 = vpop.f32.mrf.mxu0
      %v3556 = vadd.f32 %v3466, %v3555
      %v3557 = vpop.f32.mrf.mxu0
      %3558 = vmatprep.mubr.f32.mxu0 %v3255
      %3559 = vmatmul.mubr.f32.gmra.mxu0 %v3254
      %v3560 = vpop.f32.mrf.mxu0
      %v3561 = vadd.f32 %v3471, %v3560
      %v3562 = vpop.f32.mrf.mxu0
      %3563 = vmatprep.mubr.f32.mxu0 %v3273
      %3564 = vmatmul.mubr.f32.gmra.mxu0 %v3272
      %v3565 = vpop.f32.mrf.mxu0
      %v3566 = vadd.f32 %v3476, %v3565
      %v3567 = vpop.f32.mrf.mxu0
      %3568 = vmatprep.mubr.f32.mxu0 %v3291
      %3569 = vmatmul.mubr.f32.gmra.mxu0 %v3290
      %v3570 = vpop.f32.mrf.mxu0
      %v3571 = vadd.f32 %v3481, %v3570
      %v3572 = vpop.f32.mrf.mxu0
      %3573 = vdwg.mxu0
      %3574 = vmatprep.subr.mxu0 0.0
      %3575 = vmatpush1.msra.mxu0 %v324
      %3576 = vmatprep.subr.mxu0 0.0
      %3577 = vmatpush1.msra.mxu0 %v323
      %3578 = vmatprep.subr.mxu0 0.0
      %3579 = vmatpush1.msra.mxu0 %v322
      %3580 = vmatprep.subr.mxu0 0.0
      %3581 = vmatpush1.msra.mxu0 %v321
      %3582 = vmatprep.subr.mxu0 0.0
      %3583 = vmatpush1.msra.mxu0 %v320
      %3584 = vmatprep.subr.mxu0 0.0
      %3585 = vmatpush1.msra.mxu0 %v319
      %3586 = vmatprep.subr.mxu0 0.0
      %3587 = vmatpush1.msra.mxu0 %v318
      %3588 = vmatprep.subr.mxu0 0.0
      %3589 = vmatpush1.msra.mxu0 %v317
      %3590 = vmatprep.subr.mxu0 0.0
      %3591 = vmatpush1.msra.mxu0 %v316
      %3592 = vmatprep.subr.mxu0 0.0
      %3593 = vmatpush1.msra.mxu0 %v315
      %3594 = vmatprep.subr.mxu0 0.0
      %3595 = vmatpush1.msra.mxu0 %v314
      %3596 = vmatprep.subr.mxu0 0.0
      %3597 = vmatpush1.msra.mxu0 %v313
      %3598 = vmatprep.subr.mxu0 0.0
      %3599 = vmatpush1.msra.mxu0 %v312
      %3600 = vmatprep.subr.mxu0 0.0
      %3601 = vmatpush1.msra.mxu0 %v311
      %3602 = vmatprep.subr.mxu0 0.0
      %3603 = vmatpush1.msra.mxu0 %v310
      %3604 = vmatprep.subr.mxu0 0.0
      %3605 = vmatpush1.msra.mxu0 %v309
      %3606 = vmatprep.subr.mxu0 0.0
      %3607 = vmatpush2.msra.mxu0 %v340
      %3608 = vmatprep.subr.mxu0 0.0
      %3609 = vmatpush2.msra.mxu0 %v339
      %3610 = vmatprep.subr.mxu0 0.0
      %3611 = vmatpush2.msra.mxu0 %v338
      %3612 = vmatprep.subr.mxu0 0.0
      %3613 = vmatpush2.msra.mxu0 %v337
      %3614 = vmatprep.subr.mxu0 0.0
      %3615 = vmatpush2.msra.mxu0 %v336
      %3616 = vmatprep.subr.mxu0 0.0
      %3617 = vmatpush2.msra.mxu0 %v335
      %3618 = vmatprep.subr.mxu0 0.0
      %3619 = vmatpush2.msra.mxu0 %v334
      %3620 = vmatprep.subr.mxu0 0.0
      %3621 = vmatpush2.msra.mxu0 %v333
      %3622 = vmatprep.subr.mxu0 0.0
      %3623 = vmatpush2.msra.mxu0 %v332
      %3624 = vmatprep.subr.mxu0 0.0
      %3625 = vmatpush2.msra.mxu0 %v331
      %3626 = vmatprep.subr.mxu0 0.0
      %3627 = vmatpush2.msra.mxu0 %v330
      %3628 = vmatprep.subr.mxu0 0.0
      %3629 = vmatpush2.msra.mxu0 %v329
      %3630 = vmatprep.subr.mxu0 0.0
      %3631 = vmatpush2.msra.mxu0 %v328
      %3632 = vmatprep.subr.mxu0 0.0
      %3633 = vmatpush2.msra.mxu0 %v327
      %3634 = vmatprep.subr.mxu0 0.0
      %3635 = vmatpush2.msra.mxu0 %v326
      %3636 = vmatprep.subr.mxu0 0.0
      %3637 = vmatpush2.msra.mxu0 %v325
      %3638 = vmatprep.mubr.f32.mxu0 %v3221
      %3639 = vmatmul.mubr.f32.gmra.mxu0 %v3220
      %v3640 = vpop.f32.mrf.mxu0
      %v3641 = vadd.f32 %v3551, %v3640
      %v3642 = vpop.f32.mrf.mxu0
      %3643 = vmatprep.mubr.f32.mxu0 %v3239
      %3644 = vmatmul.mubr.f32.gmra.mxu0 %v3238
      %v3645 = vpop.f32.mrf.mxu0
      %v3646 = vadd.f32 %v3556, %v3645
      %v3647 = vpop.f32.mrf.mxu0
      %3648 = vmatprep.mubr.f32.mxu0 %v3257
      %3649 = vmatmul.mubr.f32.gmra.mxu0 %v3256
      %v3650 = vpop.f32.mrf.mxu0
      %v3651 = vadd.f32 %v3561, %v3650
      %v3652 = vpop.f32.mrf.mxu0
      %3653 = vmatprep.mubr.f32.mxu0 %v3275
      %3654 = vmatmul.mubr.f32.gmra.mxu0 %v3274
      %v3655 = vpop.f32.mrf.mxu0
      %v3656 = vadd.f32 %v3566, %v3655
      %v3657 = vpop.f32.mrf.mxu0
      %3658 = vmatprep.mubr.f32.mxu0 %v3293
      %3659 = vmatmul.mubr.f32.gmra.mxu0 %v3292
      %v3660 = vpop.f32.mrf.mxu0
      %v3661 = vadd.f32 %v3571, %v3660
      %v3662 = vpop.f32.mrf.mxu0
      %3663 = vdwg.mxu0
      %3664 = vmatprep.subr.mxu0 0.0
      %3665 = vmatpush1.msra.mxu0 %v356
      %3666 = vmatprep.subr.mxu0 0.0
      %3667 = vmatpush1.msra.mxu0 %v355
      %3668 = vmatprep.subr.mxu0 0.0
      %3669 = vmatpush1.msra.mxu0 %v354
      %3670 = vmatprep.subr.mxu0 0.0
      %3671 = vmatpush1.msra.mxu0 %v353
      %3672 = vmatprep.subr.mxu0 0.0
      %3673 = vmatpush1.msra.mxu0 %v352
      %3674 = vmatprep.subr.mxu0 0.0
      %3675 = vmatpush1.msra.mxu0 %v351
      %3676 = vmatprep.subr.mxu0 0.0
      %3677 = vmatpush1.msra.mxu0 %v350
      %3678 = vmatprep.subr.mxu0 0.0
      %3679 = vmatpush1.msra.mxu0 %v349
      %3680 = vmatprep.subr.mxu0 0.0
      %3681 = vmatpush1.msra.mxu0 %v348
      %3682 = vmatprep.subr.mxu0 0.0
      %3683 = vmatpush1.msra.mxu0 %v347
      %3684 = vmatprep.subr.mxu0 0.0
      %3685 = vmatpush1.msra.mxu0 %v346
      %3686 = vmatprep.subr.mxu0 0.0
      %3687 = vmatpush1.msra.mxu0 %v345
      %3688 = vmatprep.subr.mxu0 0.0
      %3689 = vmatpush1.msra.mxu0 %v344
      %3690 = vmatprep.subr.mxu0 0.0
      %3691 = vmatpush1.msra.mxu0 %v343
      %3692 = vmatprep.subr.mxu0 0.0
      %3693 = vmatpush1.msra.mxu0 %v342
      %3694 = vmatprep.subr.mxu0 0.0
      %3695 = vmatpush1.msra.mxu0 %v341
      %3696 = vmatprep.subr.mxu0 0.0
      %3697 = vmatpush2.msra.mxu0 %v372
      %3698 = vmatprep.subr.mxu0 0.0
      %3699 = vmatpush2.msra.mxu0 %v371
      %3700 = vmatprep.subr.mxu0 0.0
      %3701 = vmatpush2.msra.mxu0 %v370
      %3702 = vmatprep.subr.mxu0 0.0
      %3703 = vmatpush2.msra.mxu0 %v369
      %3704 = vmatprep.subr.mxu0 0.0
      %3705 = vmatpush2.msra.mxu0 %v368
      %3706 = vmatprep.subr.mxu0 0.0
      %3707 = vmatpush2.msra.mxu0 %v367
      %3708 = vmatprep.subr.mxu0 0.0
      %3709 = vmatpush2.msra.mxu0 %v366
      %3710 = vmatprep.subr.mxu0 0.0
      %3711 = vmatpush2.msra.mxu0 %v365
      %3712 = vmatprep.subr.mxu0 0.0
      %3713 = vmatpush2.msra.mxu0 %v364
      %3714 = vmatprep.subr.mxu0 0.0
      %3715 = vmatpush2.msra.mxu0 %v363
      %3716 = vmatprep.subr.mxu0 0.0
      %3717 = vmatpush2.msra.mxu0 %v362
      %3718 = vmatprep.subr.mxu0 0.0
      %3719 = vmatpush2.msra.mxu0 %v361
      %3720 = vmatprep.subr.mxu0 0.0
      %3721 = vmatpush2.msra.mxu0 %v360
      %3722 = vmatprep.subr.mxu0 0.0
      %3723 = vmatpush2.msra.mxu0 %v359
      %3724 = vmatprep.subr.mxu0 0.0
      %3725 = vmatpush2.msra.mxu0 %v358
      %3726 = vmatprep.subr.mxu0 0.0
      %3727 = vmatpush2.msra.mxu0 %v357
      %3728 = vmatprep.mubr.f32.mxu0 %v3223
      %3729 = vmatmul.mubr.f32.gmra.mxu0 %v3222
      %v3730 = vpop.f32.mrf.mxu0
      %v3731 = vadd.f32 %v3641, %v3730
      %v3732 = vpop.f32.mrf.mxu0
      %3733 = vmatprep.mubr.f32.mxu0 %v3241
      %3734 = vmatmul.mubr.f32.gmra.mxu0 %v3240
      %v3735 = vpop.f32.mrf.mxu0
      %v3736 = vadd.f32 %v3646, %v3735
      %v3737 = vpop.f32.mrf.mxu0
      %3738 = vmatprep.mubr.f32.mxu0 %v3259
      %3739 = vmatmul.mubr.f32.gmra.mxu0 %v3258
      %v3740 = vpop.f32.mrf.mxu0
      %v3741 = vadd.f32 %v3651, %v3740
      %v3742 = vpop.f32.mrf.mxu0
      %3743 = vmatprep.mubr.f32.mxu0 %v3277
      %3744 = vmatmul.mubr.f32.gmra.mxu0 %v3276
      %v3745 = vpop.f32.mrf.mxu0
      %v3746 = vadd.f32 %v3656, %v3745
      %v3747 = vpop.f32.mrf.mxu0
      %3748 = vmatprep.mubr.f32.mxu0 %v3295
      %3749 = vmatmul.mubr.f32.gmra.mxu0 %v3294
      %v3750 = vpop.f32.mrf.mxu0
      %v3751 = vadd.f32 %v3661, %v3750
      %v3752 = vpop.f32.mrf.mxu0
      %3753 = vdwg.mxu0
      %3754 = vmatprep.subr.mxu0 0.0
      %3755 = vmatpush1.msra.mxu0 %v388
      %3756 = vmatprep.subr.mxu0 0.0
      %3757 = vmatpush1.msra.mxu0 %v387
      %3758 = vmatprep.subr.mxu0 0.0
      %3759 = vmatpush1.msra.mxu0 %v386
      %3760 = vmatprep.subr.mxu0 0.0
      %3761 = vmatpush1.msra.mxu0 %v385
      %3762 = vmatprep.subr.mxu0 0.0
      %3763 = vmatpush1.msra.mxu0 %v384
      %3764 = vmatprep.subr.mxu0 0.0
      %3765 = vmatpush1.msra.mxu0 %v383
      %3766 = vmatprep.subr.mxu0 0.0
      %3767 = vmatpush1.msra.mxu0 %v382
      %3768 = vmatprep.subr.mxu0 0.0
      %3769 = vmatpush1.msra.mxu0 %v381
      %3770 = vmatprep.subr.mxu0 0.0
      %3771 = vmatpush1.msra.mxu0 %v380
      %3772 = vmatprep.subr.mxu0 0.0
      %3773 = vmatpush1.msra.mxu0 %v379
      %3774 = vmatprep.subr.mxu0 0.0
      %3775 = vmatpush1.msra.mxu0 %v378
      %3776 = vmatprep.subr.mxu0 0.0
      %3777 = vmatpush1.msra.mxu0 %v377
      %3778 = vmatprep.subr.mxu0 0.0
      %3779 = vmatpush1.msra.mxu0 %v376
      %3780 = vmatprep.subr.mxu0 0.0
      %3781 = vmatpush1.msra.mxu0 %v375
      %3782 = vmatprep.subr.mxu0 0.0
      %3783 = vmatpush1.msra.mxu0 %v374
      %3784 = vmatprep.subr.mxu0 0.0
      %3785 = vmatpush1.msra.mxu0 %v373
      %3786 = vmatprep.subr.mxu0 0.0
      %3787 = vmatpush2.msra.mxu0 %v404
      %3788 = vmatprep.subr.mxu0 0.0
      %3789 = vmatpush2.msra.mxu0 %v403
      %3790 = vmatprep.subr.mxu0 0.0
      %3791 = vmatpush2.msra.mxu0 %v402
      %3792 = vmatprep.subr.mxu0 0.0
      %3793 = vmatpush2.msra.mxu0 %v401
      %3794 = vmatprep.subr.mxu0 0.0
      %3795 = vmatpush2.msra.mxu0 %v400
      %3796 = vmatprep.subr.mxu0 0.0
      %3797 = vmatpush2.msra.mxu0 %v399
      %3798 = vmatprep.subr.mxu0 0.0
      %3799 = vmatpush2.msra.mxu0 %v398
      %3800 = vmatprep.subr.mxu0 0.0
      %3801 = vmatpush2.msra.mxu0 %v397
      %3802 = vmatprep.subr.mxu0 0.0
      %3803 = vmatpush2.msra.mxu0 %v396
      %3804 = vmatprep.subr.mxu0 0.0
      %3805 = vmatpush2.msra.mxu0 %v395
      %3806 = vmatprep.subr.mxu0 0.0
      %3807 = vmatpush2.msra.mxu0 %v394
      %3808 = vmatprep.subr.mxu0 0.0
      %3809 = vmatpush2.msra.mxu0 %v393
      %3810 = vmatprep.subr.mxu0 0.0
      %3811 = vmatpush2.msra.mxu0 %v392
      %3812 = vmatprep.subr.mxu0 0.0
      %3813 = vmatpush2.msra.mxu0 %v391
      %3814 = vmatprep.subr.mxu0 0.0
      %3815 = vmatpush2.msra.mxu0 %v390
      %3816 = vmatprep.subr.mxu0 0.0
      %3817 = vmatpush2.msra.mxu0 %v389
      %3818 = vmatprep.mubr.f32.mxu0 %v3225
      %3819 = vmatmul.mubr.f32.gmra.mxu0 %v3224
      %v3820 = vpop.f32.mrf.mxu0
      %v3821 = vadd.f32 %v3731, %v3820
      %v3822 = vpop.f32.mrf.mxu0
      %3823 = vmatprep.mubr.f32.mxu0 %v3243
      %3824 = vmatmul.mubr.f32.gmra.mxu0 %v3242
      %v3825 = vpop.f32.mrf.mxu0
      %v3826 = vadd.f32 %v3736, %v3825
      %v3827 = vpop.f32.mrf.mxu0
      %3828 = vmatprep.mubr.f32.mxu0 %v3261
      %3829 = vmatmul.mubr.f32.gmra.mxu0 %v3260
      %v3830 = vpop.f32.mrf.mxu0
      %v3831 = vadd.f32 %v3741, %v3830
      %v3832 = vpop.f32.mrf.mxu0
      %3833 = vmatprep.mubr.f32.mxu0 %v3279
      %3834 = vmatmul.mubr.f32.gmra.mxu0 %v3278
      %v3835 = vpop.f32.mrf.mxu0
      %v3836 = vadd.f32 %v3746, %v3835
      %v3837 = vpop.f32.mrf.mxu0
      %3838 = vmatprep.mubr.f32.mxu0 %v3297
      %3839 = vmatmul.mubr.f32.gmra.mxu0 %v3296
      %v3840 = vpop.f32.mrf.mxu0
      %v3841 = vadd.f32 %v3751, %v3840
      %v3842 = vpop.f32.mrf.mxu0
      %3843 = vdwg.mxu0
      %3844 = vmatprep.subr.mxu0 0.0
      %3845 = vmatpush1.msra.mxu0 %v420
      %3846 = vmatprep.subr.mxu0 0.0
      %3847 = vmatpush1.msra.mxu0 %v419
      %3848 = vmatprep.subr.mxu0 0.0
      %3849 = vmatpush1.msra.mxu0 %v418
      %3850 = vmatprep.subr.mxu0 0.0
      %3851 = vmatpush1.msra.mxu0 %v417
      %3852 = vmatprep.subr.mxu0 0.0
      %3853 = vmatpush1.msra.mxu0 %v416
      %3854 = vmatprep.subr.mxu0 0.0
      %3855 = vmatpush1.msra.mxu0 %v415
      %3856 = vmatprep.subr.mxu0 0.0
      %3857 = vmatpush1.msra.mxu0 %v414
      %3858 = vmatprep.subr.mxu0 0.0
      %3859 = vmatpush1.msra.mxu0 %v413
      %3860 = vmatprep.subr.mxu0 0.0
      %3861 = vmatpush1.msra.mxu0 %v412
      %3862 = vmatprep.subr.mxu0 0.0
      %3863 = vmatpush1.msra.mxu0 %v411
      %3864 = vmatprep.subr.mxu0 0.0
      %3865 = vmatpush1.msra.mxu0 %v410
      %3866 = vmatprep.subr.mxu0 0.0
      %3867 = vmatpush1.msra.mxu0 %v409
      %3868 = vmatprep.subr.mxu0 0.0
      %3869 = vmatpush1.msra.mxu0 %v408
      %3870 = vmatprep.subr.mxu0 0.0
      %3871 = vmatpush1.msra.mxu0 %v407
      %3872 = vmatprep.subr.mxu0 0.0
      %3873 = vmatpush1.msra.mxu0 %v406
      %3874 = vmatprep.subr.mxu0 0.0
      %3875 = vmatpush1.msra.mxu0 %v405
      %3876 = vmatprep.subr.mxu0 0.0
      %3877 = vmatpush2.msra.mxu0 %v436
      %3878 = vmatprep.subr.mxu0 0.0
      %3879 = vmatpush2.msra.mxu0 %v435
      %3880 = vmatprep.subr.mxu0 0.0
      %3881 = vmatpush2.msra.mxu0 %v434
      %3882 = vmatprep.subr.mxu0 0.0
      %3883 = vmatpush2.msra.mxu0 %v433
      %3884 = vmatprep.subr.mxu0 0.0
      %3885 = vmatpush2.msra.mxu0 %v432
      %3886 = vmatprep.subr.mxu0 0.0
      %3887 = vmatpush2.msra.mxu0 %v431
      %3888 = vmatprep.subr.mxu0 0.0
      %3889 = vmatpush2.msra.mxu0 %v430
      %3890 = vmatprep.subr.mxu0 0.0
      %3891 = vmatpush2.msra.mxu0 %v429
      %3892 = vmatprep.subr.mxu0 0.0
      %3893 = vmatpush2.msra.mxu0 %v428
      %3894 = vmatprep.subr.mxu0 0.0
      %3895 = vmatpush2.msra.mxu0 %v427
      %3896 = vmatprep.subr.mxu0 0.0
      %3897 = vmatpush2.msra.mxu0 %v426
      %3898 = vmatprep.subr.mxu0 0.0
      %3899 = vmatpush2.msra.mxu0 %v425
      %3900 = vmatprep.subr.mxu0 0.0
      %3901 = vmatpush2.msra.mxu0 %v424
      %3902 = vmatprep.subr.mxu0 0.0
      %3903 = vmatpush2.msra.mxu0 %v423
      %3904 = vmatprep.subr.mxu0 0.0
      %3905 = vmatpush2.msra.mxu0 %v422
      %3906 = vmatprep.subr.mxu0 0.0
      %3907 = vmatpush2.msra.mxu0 %v421
      %3908 = vmatprep.mubr.f32.mxu0 %v3227
      %3909 = vmatmul.mubr.f32.gmra.mxu0 %v3226
      %v3910 = vpop.f32.mrf.mxu0
      %v3911 = vadd.f32 %v3821, %v3910
      %v3912 = vpop.f32.mrf.mxu0
      %3913 = vmatprep.mubr.f32.mxu0 %v3245
      %3914 = vmatmul.mubr.f32.gmra.mxu0 %v3244
      %v3915 = vpop.f32.mrf.mxu0
      %v3916 = vadd.f32 %v3826, %v3915
      %v3917 = vpop.f32.mrf.mxu0
      %3918 = vmatprep.mubr.f32.mxu0 %v3263
      %3919 = vmatmul.mubr.f32.gmra.mxu0 %v3262
      %v3920 = vpop.f32.mrf.mxu0
      %v3921 = vadd.f32 %v3831, %v3920
      %v3922 = vpop.f32.mrf.mxu0
      %3923 = vmatprep.mubr.f32.mxu0 %v3281
      %3924 = vmatmul.mubr.f32.gmra.mxu0 %v3280
      %v3925 = vpop.f32.mrf.mxu0
      %v3926 = vadd.f32 %v3836, %v3925
      %v3927 = vpop.f32.mrf.mxu0
      %3928 = vmatprep.mubr.f32.mxu0 %v3299
      %3929 = vmatmul.mubr.f32.gmra.mxu0 %v3298
      %v3930 = vpop.f32.mrf.mxu0
      %v3931 = vadd.f32 %v3841, %v3930
      %v3932 = vpop.f32.mrf.mxu0
      %3933 = vdwg.mxu0
      %3934 = vmatprep.subr.mxu0 0.0
      %3935 = vmatpush1.msra.mxu0 %v452
      %3936 = vmatprep.subr.mxu0 0.0
      %3937 = vmatpush1.msra.mxu0 %v451
      %3938 = vmatprep.subr.mxu0 0.0
      %3939 = vmatpush1.msra.mxu0 %v450
      %3940 = vmatprep.subr.mxu0 0.0
      %3941 = vmatpush1.msra.mxu0 %v449
      %3942 = vmatprep.subr.mxu0 0.0
      %3943 = vmatpush1.msra.mxu0 %v448
      %3944 = vmatprep.subr.mxu0 0.0
      %3945 = vmatpush1.msra.mxu0 %v447
      %3946 = vmatprep.subr.mxu0 0.0
      %3947 = vmatpush1.msra.mxu0 %v446
      %3948 = vmatprep.subr.mxu0 0.0
      %3949 = vmatpush1.msra.mxu0 %v445
      %3950 = vmatprep.subr.mxu0 0.0
      %3951 = vmatpush1.msra.mxu0 %v444
      %3952 = vmatprep.subr.mxu0 0.0
      %3953 = vmatpush1.msra.mxu0 %v443
      %3954 = vmatprep.subr.mxu0 0.0
      %3955 = vmatpush1.msra.mxu0 %v442
      %3956 = vmatprep.subr.mxu0 0.0
      %3957 = vmatpush1.msra.mxu0 %v441
      %3958 = vmatprep.subr.mxu0 0.0
      %3959 = vmatpush1.msra.mxu0 %v440
      %3960 = vmatprep.subr.mxu0 0.0
      %3961 = vmatpush1.msra.mxu0 %v439
      %3962 = vmatprep.subr.mxu0 0.0
      %3963 = vmatpush1.msra.mxu0 %v438
      %3964 = vmatprep.subr.mxu0 0.0
      %3965 = vmatpush1.msra.mxu0 %v437
      %3966 = vmatprep.subr.mxu0 0.0
      %3967 = vmatpush2.msra.mxu0 %v468
      %3968 = vmatprep.subr.mxu0 0.0
      %3969 = vmatpush2.msra.mxu0 %v467
      %3970 = vmatprep.subr.mxu0 0.0
      %3971 = vmatpush2.msra.mxu0 %v466
      %3972 = vmatprep.subr.mxu0 0.0
      %3973 = vmatpush2.msra.mxu0 %v465
      %3974 = vmatprep.subr.mxu0 0.0
      %3975 = vmatpush2.msra.mxu0 %v464
      %3976 = vmatprep.subr.mxu0 0.0
      %3977 = vmatpush2.msra.mxu0 %v463
      %3978 = vmatprep.subr.mxu0 0.0
      %3979 = vmatpush2.msra.mxu0 %v462
      %3980 = vmatprep.subr.mxu0 0.0
      %3981 = vmatpush2.msra.mxu0 %v461
      %3982 = vmatprep.subr.mxu0 0.0
      %3983 = vmatpush2.msra.mxu0 %v460
      %3984 = vmatprep.subr.mxu0 0.0
      %3985 = vmatpush2.msra.mxu0 %v459
      %3986 = vmatprep.subr.mxu0 0.0
      %3987 = vmatpush2.msra.mxu0 %v458
      %3988 = vmatprep.subr.mxu0 0.0
      %3989 = vmatpush2.msra.mxu0 %v457
      %3990 = vmatprep.subr.mxu0 0.0
      %3991 = vmatpush2.msra.mxu0 %v456
      %3992 = vmatprep.subr.mxu0 0.0
      %3993 = vmatpush2.msra.mxu0 %v455
      %3994 = vmatprep.subr.mxu0 0.0
      %3995 = vmatpush2.msra.mxu0 %v454
      %3996 = vmatprep.subr.mxu0 0.0
      %3997 = vmatpush2.msra.mxu0 %v453
      %3998 = vmatprep.mubr.f32.mxu0 %v3229
      %3999 = vmatmul.mubr.f32.gmra.mxu0 %v3228
      %v4000 = vpop.f32.mrf.mxu0
      %v4001 = vadd.f32 %v3911, %v4000
      %v4002 = vpop.f32.mrf.mxu0
      %4003 = vmatprep.mubr.f32.mxu0 %v3247
      %4004 = vmatmul.mubr.f32.gmra.mxu0 %v3246
      %v4005 = vpop.f32.mrf.mxu0
      %v4006 = vadd.f32 %v3916, %v4005
      %v4007 = vpop.f32.mrf.mxu0
      %4008 = vmatprep.mubr.f32.mxu0 %v3265
      %4009 = vmatmul.mubr.f32.gmra.mxu0 %v3264
      %v4010 = vpop.f32.mrf.mxu0
      %v4011 = vadd.f32 %v3921, %v4010
      %v4012 = vpop.f32.mrf.mxu0
      %4013 = vmatprep.mubr.f32.mxu0 %v3283
      %4014 = vmatmul.mubr.f32.gmra.mxu0 %v3282
      %v4015 = vpop.f32.mrf.mxu0
      %v4016 = vadd.f32 %v3926, %v4015
      %v4017 = vpop.f32.mrf.mxu0
      %4018 = vmatprep.mubr.f32.mxu0 %v3301
      %4019 = vmatmul.mubr.f32.gmra.mxu0 %v3300
      %v4020 = vpop.f32.mrf.mxu0
      %v4021 = vadd.f32 %v3931, %v4020
      %v4022 = vpop.f32.mrf.mxu0
      %4023 = vdwg.mxu0
      %4024 = vmatprep.subr.mxu0 0.0
      %4025 = vmatpush1.msra.mxu0 %v484
      %4026 = vmatprep.subr.mxu0 0.0
      %4027 = vmatpush1.msra.mxu0 %v483
      %4028 = vmatprep.subr.mxu0 0.0
      %4029 = vmatpush1.msra.mxu0 %v482
      %4030 = vmatprep.subr.mxu0 0.0
      %4031 = vmatpush1.msra.mxu0 %v481
      %4032 = vmatprep.subr.mxu0 0.0
      %4033 = vmatpush1.msra.mxu0 %v480
      %4034 = vmatprep.subr.mxu0 0.0
      %4035 = vmatpush1.msra.mxu0 %v479
      %4036 = vmatprep.subr.mxu0 0.0
      %4037 = vmatpush1.msra.mxu0 %v478
      %4038 = vmatprep.subr.mxu0 0.0
      %4039 = vmatpush1.msra.mxu0 %v477
      %4040 = vmatprep.subr.mxu0 0.0
      %4041 = vmatpush1.msra.mxu0 %v476
      %4042 = vmatprep.subr.mxu0 0.0
      %4043 = vmatpush1.msra.mxu0 %v475
      %4044 = vmatprep.subr.mxu0 0.0
      %4045 = vmatpush1.msra.mxu0 %v474
      %4046 = vmatprep.subr.mxu0 0.0
      %4047 = vmatpush1.msra.mxu0 %v473
      %4048 = vmatprep.subr.mxu0 0.0
      %4049 = vmatpush1.msra.mxu0 %v472
      %4050 = vmatprep.subr.mxu0 0.0
      %4051 = vmatpush1.msra.mxu0 %v471
      %4052 = vmatprep.subr.mxu0 0.0
      %4053 = vmatpush1.msra.mxu0 %v470
      %4054 = vmatprep.subr.mxu0 0.0
      %4055 = vmatpush1.msra.mxu0 %v469
      %4056 = vmatprep.subr.mxu0 0.0
      %4057 = vmatpush2.msra.mxu0 %v500
      %4058 = vmatprep.subr.mxu0 0.0
      %4059 = vmatpush2.msra.mxu0 %v499
      %4060 = vmatprep.subr.mxu0 0.0
      %4061 = vmatpush2.msra.mxu0 %v498
      %4062 = vmatprep.subr.mxu0 0.0
      %4063 = vmatpush2.msra.mxu0 %v497
      %4064 = vmatprep.subr.mxu0 0.0
      %4065 = vmatpush2.msra.mxu0 %v496
      %4066 = vmatprep.subr.mxu0 0.0
      %4067 = vmatpush2.msra.mxu0 %v495
      %4068 = vmatprep.subr.mxu0 0.0
      %4069 = vmatpush2.msra.mxu0 %v494
      %4070 = vmatprep.subr.mxu0 0.0
      %4071 = vmatpush2.msra.mxu0 %v493
      %4072 = vmatprep.subr.mxu0 0.0
      %4073 = vmatpush2.msra.mxu0 %v492
      %4074 = vmatprep.subr.mxu0 0.0
      %4075 = vmatpush2.msra.mxu0 %v491
      %4076 = vmatprep.subr.mxu0 0.0
      %4077 = vmatpush2.msra.mxu0 %v490
      %4078 = vmatprep.subr.mxu0 0.0
      %4079 = vmatpush2.msra.mxu0 %v489
      %4080 = vmatprep.subr.mxu0 0.0
      %4081 = vmatpush2.msra.mxu0 %v488
      %4082 = vmatprep.subr.mxu0 0.0
      %4083 = vmatpush2.msra.mxu0 %v487
      %4084 = vmatprep.subr.mxu0 0.0
      %4085 = vmatpush2.msra.mxu0 %v486
      %4086 = vmatprep.subr.mxu0 0.0
      %4087 = vmatpush2.msra.mxu0 %v485
      %4088 = vmatprep.mubr.f32.mxu0 %v3231
      %4089 = vmatmul.mubr.f32.gmra.mxu0 %v3230
      %v4090 = vpop.f32.mrf.mxu0
      %v4091 = vadd.f32 %v4001, %v4090
      %v4092 = vpop.f32.mrf.mxu0
      %4093 = vmatprep.mubr.f32.mxu0 %v3249
      %4094 = vmatmul.mubr.f32.gmra.mxu0 %v3248
      %v4095 = vpop.f32.mrf.mxu0
      %v4096 = vadd.f32 %v4006, %v4095
      %v4097 = vpop.f32.mrf.mxu0
      %4098 = vmatprep.mubr.f32.mxu0 %v3267
      %4099 = vmatmul.mubr.f32.gmra.mxu0 %v3266
      %v4100 = vpop.f32.mrf.mxu0
      %v4101 = vadd.f32 %v4011, %v4100
      %v4102 = vpop.f32.mrf.mxu0
      %4103 = vmatprep.mubr.f32.mxu0 %v3285
      %4104 = vmatmul.mubr.f32.gmra.mxu0 %v3284
      %v4105 = vpop.f32.mrf.mxu0
      %v4106 = vadd.f32 %v4016, %v4105
      %v4107 = vpop.f32.mrf.mxu0
      %4108 = vmatprep.mubr.f32.mxu0 %v3303
      %4109 = vmatmul.mubr.f32.gmra.mxu0 %v3302
      %v4110 = vpop.f32.mrf.mxu0
      %v4111 = vadd.f32 %v4021, %v4110
      %v4112 = vpop.f32.mrf.mxu0
      %4113 = vdwg.mxu0
      %v4114 = vmax.f32 %v3208, %v4091
      %v4115 = vmax.f32 %v3209, %v4096
      %v4116 = vmax.f32 %v3210, %v4101
      %v4117 = vmax.f32 %v3211, %v4106
      %v4118 = vmax.f32 %v3212, %v4111
      %v4119 = vld [vmem:[%s2] sm:$0x1]
      %v4121 = vlaneseq
      %v4122 = vshrl.u32 %v4121, 7
      %v4123 = vsub.s32 0, %v4122
      %v4124 = vrot.slane %v4119, %v4123
      %v4126 = vadd.f32 %v4114, %v4124
      %v4127 = vadd.f32 %v4115, %v4124
      %v4128 = vadd.f32 %v4116, %v4124
      %v4129 = vadd.f32 %v4117, %v4124
      %v4130 = vadd.f32 %v4118, %v4124
      %v4131 = vmax.f32 %v4126, 0.0
      %v4132 = vmax.f32 %v4127, 0.0
      %v4133 = vmax.f32 %v4128, 0.0
      %v4134 = vmax.f32 %v4129, 0.0
      %v4135 = vmax.f32 %v4130, 0.0
      %vm4136 = vcmask 523264
      %4137 = vst.msk [vmem:[%s211] sm:$0xff] %vm4136, %v4131
      %4138 = vst.msk [vmem:[%s211 + $0x8] sm:$0xff] %vm4136, %v4132
      %4139 = vst.msk [vmem:[%s211 + $0x10] sm:$0xff] %vm4136, %v4133
      %4140 = vst.msk [vmem:[%s211 + $0x18] sm:$0xff] %vm4136, %v4134
      %4141 = vst.msk [vmem:[%s211 + $0x20] sm:$0xff] %vm4136, %v4135
      %s4142 = smul.u32 5, %s19
      %p4143 = scmp.lt.s32.totalorder %s18, 1
      %s4144 = scalar_select %p4143, %s18, 1
      %p4145 = scmp.lt.s32.totalorder %s4142, 4
      %s4146 = scalar_select %p4145, %s4142, 4
      %s4147 = smul.addr %s4144, 5
      %s4148 = sadd.s32 %s4146, %s4147
      %s4149 = smul.addr %s4148, 8
      %s4150 = scalar_lea.vmem %s3, %s4149
      // Predicated region
      $region33: #{captcha_forward.4} parent=31 // pred_check
        %p4151 = pneg %p116
      $region34: #{captcha_forward.4} parent=31 // pred_check_branch
        %4153 = sbr.rel (%p4151) target = $region36
      $region35: #{captcha_forward.4} parent=31 // pred_region
        %s4154 = smul.u32 5, %s19
      $region36: #{captcha_forward.4} parent=31 // pred_fallthru
        _
    $region32: #{captcha_forward.4} parent=5 // pred_fallthru
      _
    %p4155 = scmp.le.s32.totalorder 2, %s9
    // Predicated region
    $region37: #{captcha_forward.4} parent=5 // pred_check
      %p4156 = pneg %p4155
    $region38: #{captcha_forward.4} parent=5 // pred_check_branch
      %4158 = sbr.rel (%p4156) target = $region40
    $region39: #{captcha_forward.4} parent=5 // pred_region
      %s4159 = ssub.s32 %s9, 2
      // Predicated region
      $region41: #{captcha_forward.4} parent=39 // pred_check
        %p4160 = pneg %p122
      $region42: #{captcha_forward.4} parent=39 // pred_check_branch
        %4162 = sbr.rel (%p4160) target = $region44
      $region43: #{captcha_forward.4} parent=39 // pred_region
        %s4163 = smul.u32 5, %s21
        %p4164 = scmp.lt.s32.totalorder %s20, 1
        %s4165 = scalar_select %p4164, %s20, 1
        %p4166 = scmp.lt.s32.totalorder %s4163, 4
        %s4167 = scalar_select %p4166, %s4163, 4
        %s4168 = smul.addr %s4165, 5
        %s4169 = sadd.s32 %s4167, %s4168
        %s4170 = smul.addr %s4169, 8
        %s4171 = scalar_lea.vmem %s3, %s4170
      $region44: #{captcha_forward.4} parent=39 // pred_fallthru
        _
    $region40: #{captcha_forward.4} parent=5 // pred_fallthru
      _
  $region6: #{captcha_forward.4} parent=0 // loop_footer
    %s13 = sadd.s32 1, %s9
  $region7: #{captcha_forward.4} parent=0 // loop_footer_branch
    %8 = sbr.rel target = $region3
  $region8: #{captcha_forward.4} parent=0 // loop_exit
    _

// kernel: captcha_forward.5
$region0: #{captcha_forward.5}
  #allocation0 [shape = 'u32[]', space=smem, size = 0x4, offset = 0x4, fixed_abs, tag = 'smem constant byte address 0x4 - core index']
  #allocation1 [shape = 'u32[144,128]{1,0:T(1,128)}', space=vmem, size = 0x12000, scoped, tag = 'internal scratch']
  #allocation2 [shape = 'f32[32,96]{1,0:T(8,128)}', space=vmem, size = 0x4000, scoped, tag = 'scratch operand']
  #allocation3 [shape = 'f32[32,32]{1,0:T(8,128)}', space=vmem, size = 0x4000, scoped, tag = 'scratch operand']
  #allocation4 [shape = 'f32[32,32]{1,0:T(8,128)}', space=vmem, size = 0x4000, scoped, tag = 'scratch operand']
  %s0 = inlined_call_operand.vmem [shape: f32[32,640], index: 0, kind: input, shape index: {}]
  %s1 = inlined_call_operand.vmem [shape: f32[640,64], index: 1, kind: input, shape index: {}]
  %s2 = inlined_call_operand.vmem [shape: f32[1,64], index: 2, kind: input, shape index: {}]
  %s3 = inlined_call_operand.vmem [shape: f32[4,96,96], index: 3, kind: input, shape index: {}]
  %s4 = inlined_call_operand.vmem [shape: f32[4,2,96], index: 4, kind: input, shape index: {}]
  %s5 = inlined_call_operand.vmem [shape: f32[64,128], index: 5, kind: input, shape index: {}]
  %s6 = inlined_call_operand.vmem [shape: f32[1,128], index: 6, kind: input, shape index: {}]
  %s7 = inlined_call_operand.vmem [shape: f32[32,128], index: 7, kind: output, shape index: {}]
  %s8 = sld [smem:[#allocation0]]
  $region38: #{captcha_forward.5} parent=0
    _
  %s10 = ssub.s32 1, %s8
  %s11 = scalar_select 0, %s10, %s8
  // Predicated region
  $region2: #{captcha_forward.5} parent=0 // pred_check
    _
  $region3: #{captcha_forward.5} parent=0 // pred_check_branch
    %13 = sbr.rel (0) target = $region5
  $region4: #{captcha_forward.5} parent=0 // pred_region
    _
  $region5: #{captcha_forward.5} parent=0 // pred_fallthru
    _
  // Predicated region
  $region6: #{captcha_forward.5} parent=0 // pred_check
    _
  $region7: #{captcha_forward.5} parent=0 // pred_check_branch
    %15 = sbr.rel (0) target = $region9
  $region8: #{captcha_forward.5} parent=0 // pred_region
    _
  $region9: #{captcha_forward.5} parent=0 // pred_fallthru
    _
  // Predicated region
  $region10: #{captcha_forward.5} parent=0 // pred_check
    _
  $region11: #{captcha_forward.5} parent=0 // pred_check_branch
    %17 = sbr.rel (0) target = $region13
  $region12: #{captcha_forward.5} parent=0 // pred_region
    _
  $region13: #{captcha_forward.5} parent=0 // pred_fallthru
    _
  // Predicated region
  $region14: #{captcha_forward.5} parent=0 // pred_check
    _
  $region15: #{captcha_forward.5} parent=0 // pred_check_branch
    %19 = sbr.rel (0) target = $region17
  $region16: #{captcha_forward.5} parent=0 // pred_region
    _
  $region17: #{captcha_forward.5} parent=0 // pred_fallthru
    _
  // Predicated region
  $region18: #{captcha_forward.5} parent=0 // pred_check
    _
  $region19: #{captcha_forward.5} parent=0 // pred_check_branch
    %21 = sbr.rel (0) target = $region21
  $region20: #{captcha_forward.5} parent=0 // pred_region
    _
  $region21: #{captcha_forward.5} parent=0 // pred_fallthru
    _
  // Predicated region
  $region22: #{captcha_forward.5} parent=0 // pred_check
    _
  $region23: #{captcha_forward.5} parent=0 // pred_check_branch
    %23 = sbr.rel (0) target = $region25
  $region24: #{captcha_forward.5} parent=0 // pred_region
    _
  $region25: #{captcha_forward.5} parent=0 // pred_fallthru
    _
  // Predicated region
  $region26: #{captcha_forward.5} parent=0 // pred_check
    _
  $region27: #{captcha_forward.5} parent=0 // pred_check_branch
    %25 = sbr.rel (0) target = $region29
  $region28: #{captcha_forward.5} parent=0 // pred_region
    _
  $region29: #{captcha_forward.5} parent=0 // pred_fallthru
    _
  %v26 = vld [vmem:[%s0] sm:$0xff]
  %v27 = vld [vmem:[%s0 + $0x8] sm:$0xff]
  %v28 = vld [vmem:[%s0 + $0x10] sm:$0xff]
  %v29 = vld [vmem:[%s0 + $0x18] sm:$0xff]
  %v30 = vld [vmem:[%s0 + $0x20] sm:$0xff]
  %v31 = vld [vmem:[%s0 + $0x28] sm:$0xff]
  %v32 = vld [vmem:[%s0 + $0x30] sm:$0xff]
  %v33 = vld [vmem:[%s0 + $0x38] sm:$0xff]
  %v34 = vld [vmem:[%s0 + $0x40] sm:$0xff]
  %v35 = vld [vmem:[%s0 + $0x48] sm:$0xff]
  %v36 = vld [vmem:[%s0 + $0x50] sm:$0xff]
  %v37 = vld [vmem:[%s0 + $0x58] sm:$0xff]
  %v38 = vld [vmem:[%s0 + $0x60] sm:$0xff]
  %v39 = vld [vmem:[%s0 + $0x68] sm:$0xff]
  %v40 = vld [vmem:[%s0 + $0x70] sm:$0xff]
  %v41 = vld [vmem:[%s0 + $0x78] sm:$0xff]
  %v42 = vld [vmem:[%s0 + $0x80] sm:$0xff]
  %v43 = vld [vmem:[%s0 + $0x88] sm:$0xff]
  %v44 = vld [vmem:[%s0 + $0x90] sm:$0xff]
  %v45 = vld [vmem:[%s0 + $0x98] sm:$0xff]
  %v46 = vld [vmem:[%s1] sm:$0xff]
  %v47 = vld [vmem:[%s1 + $0x8] sm:$0xff]
  %v48 = vld [vmem:[%s1 + $0x10] sm:$0xff]
  %v49 = vld [vmem:[%s1 + $0x18] sm:$0xff]
  %v50 = vld [vmem:[%s1 + $0x20] sm:$0xff]
  %v51 = vld [vmem:[%s1 + $0x28] sm:$0xff]
  %v52 = vld [vmem:[%s1 + $0x30] sm:$0xff]
  %v53 = vld [vmem:[%s1 + $0x38] sm:$0xff]
  %v54 = vld [vmem:[%s1 + $0x40] sm:$0xff]
  %v55 = vld [vmem:[%s1 + $0x48] sm:$0xff]
  %v56 = vld [vmem:[%s1 + $0x50] sm:$0xff]
  %v57 = vld [vmem:[%s1 + $0x58] sm:$0xff]
  %v58 = vld [vmem:[%s1 + $0x60] sm:$0xff]
  %v59 = vld [vmem:[%s1 + $0x68] sm:$0xff]
  %v60 = vld [vmem:[%s1 + $0x70] sm:$0xff]
  %v61 = vld [vmem:[%s1 + $0x78] sm:$0xff]
  %v62 = vld [vmem:[%s1 + $0x80] sm:$0xff]
  %v63 = vld [vmem:[%s1 + $0x88] sm:$0xff]
  %v64 = vld [vmem:[%s1 + $0x90] sm:$0xff]
  %v65 = vld [vmem:[%s1 + $0x98] sm:$0xff]
  %v66 = vld [vmem:[%s1 + $0xa0] sm:$0xff]
  %v67 = vld [vmem:[%s1 + $0xa8] sm:$0xff]
  %v68 = vld [vmem:[%s1 + $0xb0] sm:$0xff]
  %v69 = vld [vmem:[%s1 + $0xb8] sm:$0xff]
  %v70 = vld [vmem:[%s1 + $0xc0] sm:$0xff]
  %v71 = vld [vmem:[%s1 + $0xc8] sm:$0xff]
  %v72 = vld [vmem:[%s1 + $0xd0] sm:$0xff]
  %v73 = vld [vmem:[%s1 + $0xd8] sm:$0xff]
  %v74 = vld [vmem:[%s1 + $0xe0] sm:$0xff]
  %v75 = vld [vmem:[%s1 + $0xe8] sm:$0xff]
  %v76 = vld [vmem:[%s1 + $0xf0] sm:$0xff]
  %v77 = vld [vmem:[%s1 + $0xf8] sm:$0xff]
  %v78 = vld [vmem:[%s1 + $0x100] sm:$0xff]
  %v79 = vld [vmem:[%s1 + $0x108] sm:$0xff]
  %v80 = vld [vmem:[%s1 + $0x110] sm:$0xff]
  %v81 = vld [vmem:[%s1 + $0x118] sm:$0xff]
  %v82 = vld [vmem:[%s1 + $0x120] sm:$0xff]
  %v83 = vld [vmem:[%s1 + $0x128] sm:$0xff]
  %v84 = vld [vmem:[%s1 + $0x130] sm:$0xff]
  %v85 = vld [vmem:[%s1 + $0x138] sm:$0xff]
  %v86 = vld [vmem:[%s1 + $0x140] sm:$0xff]
  %v87 = vld [vmem:[%s1 + $0x148] sm:$0xff]
  %v88 = vld [vmem:[%s1 + $0x150] sm:$0xff]
  %v89 = vld [vmem:[%s1 + $0x158] sm:$0xff]
  %v90 = vld [vmem:[%s1 + $0x160] sm:$0xff]
  %v91 = vld [vmem:[%s1 + $0x168] sm:$0xff]
  %v92 = vld [vmem:[%s1 + $0x170] sm:$0xff]
  %v93 = vld [vmem:[%s1 + $0x178] sm:$0xff]
  %v94 = vld [vmem:[%s1 + $0x180] sm:$0xff]
  %v95 = vld [vmem:[%s1 + $0x188] sm:$0xff]
  %v96 = vld [vmem:[%s1 + $0x190] sm:$0xff]
  %v97 = vld [vmem:[%s1 + $0x198] sm:$0xff]
  %v98 = vld [vmem:[%s1 + $0x1a0] sm:$0xff]
  %v99 = vld [vmem:[%s1 + $0x1a8] sm:$0xff]
  %v100 = vld [vmem:[%s1 + $0x1b0] sm:$0xff]
  %v101 = vld [vmem:[%s1 + $0x1b8] sm:$0xff]
  %v102 = vld [vmem:[%s1 + $0x1c0] sm:$0xff]
  %v103 = vld [vmem:[%s1 + $0x1c8] sm:$0xff]
  %v104 = vld [vmem:[%s1 + $0x1d0] sm:$0xff]
  %v105 = vld [vmem:[%s1 + $0x1d8] sm:$0xff]
  %v106 = vld [vmem:[%s1 + $0x1e0] sm:$0xff]
  %v107 = vld [vmem:[%s1 + $0x1e8] sm:$0xff]
  %v108 = vld [vmem:[%s1 + $0x1f0] sm:$0xff]
  %v109 = vld [vmem:[%s1 + $0x1f8] sm:$0xff]
  %v110 = vld [vmem:[%s1 + $0x200] sm:$0xff]
  %v111 = vld [vmem:[%s1 + $0x208] sm:$0xff]
  %v112 = vld [vmem:[%s1 + $0x210] sm:$0xff]
  %v113 = vld [vmem:[%s1 + $0x218] sm:$0xff]
  %v114 = vld [vmem:[%s1 + $0x220] sm:$0xff]
  %v115 = vld [vmem:[%s1 + $0x228] sm:$0xff]
  %v116 = vld [vmem:[%s1 + $0x230] sm:$0xff]
  %v117 = vld [vmem:[%s1 + $0x238] sm:$0xff]
  %v118 = vld [vmem:[%s1 + $0x240] sm:$0xff]
  %v119 = vld [vmem:[%s1 + $0x248] sm:$0xff]
  %v120 = vld [vmem:[%s1 + $0x250] sm:$0xff]
  %v121 = vld [vmem:[%s1 + $0x258] sm:$0xff]
  %v122 = vld [vmem:[%s1 + $0x260] sm:$0xff]
  %v123 = vld [vmem:[%s1 + $0x268] sm:$0xff]
  %v124 = vld [vmem:[%s1 + $0x270] sm:$0xff]
  %v125 = vld [vmem:[%s1 + $0x278] sm:$0xff]
  %v126 = vld [vmem:[%s2] sm:$0x1]
  %v128 = vlaneseq
  %v129 = vshrl.u32 %v128, 7
  %v130 = vsub.s32 0, %v129
  %v131 = vrot.slane %v126, %v130
  %133 = vmatprep.subr.mxu0 0.0
  %134 = vmatpush1.msra.mxu0 %v61
  %135 = vmatprep.subr.mxu0 0.0
  %136 = vmatpush1.msra.mxu0 %v60
  %137 = vmatprep.subr.mxu0 0.0
  %138 = vmatpush1.msra.mxu0 %v59
  %139 = vmatprep.subr.mxu0 0.0
  %140 = vmatpush1.msra.mxu0 %v58
  %141 = vmatprep.subr.mxu0 0.0
  %142 = vmatpush1.msra.mxu0 %v57
  %143 = vmatprep.subr.mxu0 0.0
  %144 = vmatpush1.msra.mxu0 %v56
  %145 = vmatprep.subr.mxu0 0.0
  %146 = vmatpush1.msra.mxu0 %v55
  %147 = vmatprep.subr.mxu0 0.0
  %148 = vmatpush1.msra.mxu0 %v54
  %149 = vmatprep.subr.mxu0 0.0
  %150 = vmatpush1.msra.mxu0 %v53
  %151 = vmatprep.subr.mxu0 0.0
  %152 = vmatpush1.msra.mxu0 %v52
  %153 = vmatprep.subr.mxu0 0.0
  %154 = vmatpush1.msra.mxu0 %v51
  %155 = vmatprep.subr.mxu0 0.0
  %156 = vmatpush1.msra.mxu0 %v50
  %157 = vmatprep.subr.mxu0 0.0
  %158 = vmatpush1.msra.mxu0 %v49
  %159 = vmatprep.subr.mxu0 0.0
  %160 = vmatpush1.msra.mxu0 %v48
  %161 = vmatprep.subr.mxu0 0.0
  %162 = vmatpush1.msra.mxu0 %v47
  %163 = vmatprep.subr.mxu0 0.0
  %164 = vmatpush1.msra.mxu0 %v46
  %165 = vmatprep.subr.mxu0 0.0
  %166 = vmatpush2.msra.mxu0 %v77
  %167 = vmatprep.subr.mxu0 0.0
  %168 = vmatpush2.msra.mxu0 %v76
  %169 = vmatprep.subr.mxu0 0.0
  %170 = vmatpush2.msra.mxu0 %v75
  %171 = vmatprep.subr.mxu0 0.0
  %172 = vmatpush2.msra.mxu0 %v74
  %173 = vmatprep.subr.mxu0 0.0
  %174 = vmatpush2.msra.mxu0 %v73
  %175 = vmatprep.subr.mxu0 0.0
  %176 = vmatpush2.msra.mxu0 %v72
  %177 = vmatprep.subr.mxu0 0.0
  %178 = vmatpush2.msra.mxu0 %v71
  %179 = vmatprep.subr.mxu0 0.0
  %180 = vmatpush2.msra.mxu0 %v70
  %181 = vmatprep.subr.mxu0 0.0
  %182 = vmatpush2.msra.mxu0 %v69
  %183 = vmatprep.subr.mxu0 0.0
  %184 = vmatpush2.msra.mxu0 %v68
  %185 = vmatprep.subr.mxu0 0.0
  %186 = vmatpush2.msra.mxu0 %v67
  %187 = vmatprep.subr.mxu0 0.0
  %188 = vmatpush2.msra.mxu0 %v66
  %189 = vmatprep.subr.mxu0 0.0
  %190 = vmatpush2.msra.mxu0 %v65
  %191 = vmatprep.subr.mxu0 0.0
  %192 = vmatpush2.msra.mxu0 %v64
  %193 = vmatprep.subr.mxu0 0.0
  %194 = vmatpush2.msra.mxu0 %v63
  %195 = vmatprep.subr.mxu0 0.0
  %196 = vmatpush2.msra.mxu0 %v62
  %197 = vmatprep.mubr.f32.mxu0 %v27
  %198 = vmatmul.mubr.f32.gmra.mxu0 %v26
  %v199 = vpop.f32.mrf.mxu0
  %v200 = vadd.f32 %v131, %v199
  %v201 = vpop.f32.mrf.mxu0
  %202 = vmatprep.mubr.f32.mxu0 %v32
  %203 = vmatmul.mubr.f32.gmra.mxu0 %v31
  %v204 = vpop.f32.mrf.mxu0
  %v205 = vadd.f32 %v131, %v204
  %v206 = vpop.f32.mrf.mxu0
  %207 = vmatprep.mubr.f32.mxu0 %v37
  %208 = vmatmul.mubr.f32.gmra.mxu0 %v36
  %v209 = vpop.f32.mrf.mxu0
  %v210 = vadd.f32 %v131, %v209
  %v211 = vpop.f32.mrf.mxu0
  %212 = vmatprep.mubr.f32.mxu0 %v42
  %213 = vmatmul.mubr.f32.gmra.mxu0 %v41
  %v214 = vpop.f32.mrf.mxu0
  %v215 = vadd.f32 %v131, %v214
  %v216 = vpop.f32.mrf.mxu0
  %217 = vdwg.mxu0
  %218 = vmatprep.subr.mxu0 0.0
  %219 = vmatpush1.msra.mxu0 %v93
  %220 = vmatprep.subr.mxu0 0.0
  %221 = vmatpush1.msra.mxu0 %v92
  %222 = vmatprep.subr.mxu0 0.0
  %223 = vmatpush1.msra.mxu0 %v91
  %224 = vmatprep.subr.mxu0 0.0
  %225 = vmatpush1.msra.mxu0 %v90
  %226 = vmatprep.subr.mxu0 0.0
  %227 = vmatpush1.msra.mxu0 %v89
  %228 = vmatprep.subr.mxu0 0.0
  %229 = vmatpush1.msra.mxu0 %v88
  %230 = vmatprep.subr.mxu0 0.0
  %231 = vmatpush1.msra.mxu0 %v87
  %232 = vmatprep.subr.mxu0 0.0
  %233 = vmatpush1.msra.mxu0 %v86
  %234 = vmatprep.subr.mxu0 0.0
  %235 = vmatpush1.msra.mxu0 %v85
  %236 = vmatprep.subr.mxu0 0.0
  %237 = vmatpush1.msra.mxu0 %v84
  %238 = vmatprep.subr.mxu0 0.0
  %239 = vmatpush1.msra.mxu0 %v83
  %240 = vmatprep.subr.mxu0 0.0
  %241 = vmatpush1.msra.mxu0 %v82
  %242 = vmatprep.subr.mxu0 0.0
  %243 = vmatpush1.msra.mxu0 %v81
  %244 = vmatprep.subr.mxu0 0.0
  %245 = vmatpush1.msra.mxu0 %v80
  %246 = vmatprep.subr.mxu0 0.0
  %247 = vmatpush1.msra.mxu0 %v79
  %248 = vmatprep.subr.mxu0 0.0
  %249 = vmatpush1.msra.mxu0 %v78
  %250 = vmatprep.subr.mxu0 0.0
  %251 = vmatpush2.msra.mxu0 %v109
  %252 = vmatprep.subr.mxu0 0.0
  %253 = vmatpush2.msra.mxu0 %v108
  %254 = vmatprep.subr.mxu0 0.0
  %255 = vmatpush2.msra.mxu0 %v107
  %256 = vmatprep.subr.mxu0 0.0
  %257 = vmatpush2.msra.mxu0 %v106
  %258 = vmatprep.subr.mxu0 0.0
  %259 = vmatpush2.msra.mxu0 %v105
  %260 = vmatprep.subr.mxu0 0.0
  %261 = vmatpush2.msra.mxu0 %v104
  %262 = vmatprep.subr.mxu0 0.0
  %263 = vmatpush2.msra.mxu0 %v103
  %264 = vmatprep.subr.mxu0 0.0
  %265 = vmatpush2.msra.mxu0 %v102
  %266 = vmatprep.subr.mxu0 0.0
  %267 = vmatpush2.msra.mxu0 %v101
  %268 = vmatprep.subr.mxu0 0.0
  %269 = vmatpush2.msra.mxu0 %v100
  %270 = vmatprep.subr.mxu0 0.0
  %271 = vmatpush2.msra.mxu0 %v99
  %272 = vmatprep.subr.mxu0 0.0
  %273 = vmatpush2.msra.mxu0 %v98
  %274 = vmatprep.subr.mxu0 0.0
  %275 = vmatpush2.msra.mxu0 %v97
  %276 = vmatprep.subr.mxu0 0.0
  %277 = vmatpush2.msra.mxu0 %v96
  %278 = vmatprep.subr.mxu0 0.0
  %279 = vmatpush2.msra.mxu0 %v95
  %280 = vmatprep.subr.mxu0 0.0
  %281 = vmatpush2.msra.mxu0 %v94
  %282 = vmatprep.mubr.f32.mxu0 %v29
  %283 = vmatmul.mubr.f32.gmra.mxu0 %v28
  %v284 = vpop.f32.mrf.mxu0
  %v285 = vadd.f32 %v200, %v284
  %v286 = vpop.f32.mrf.mxu0
  %287 = vmatprep.mubr.f32.mxu0 %v34
  %288 = vmatmul.mubr.f32.gmra.mxu0 %v33
  %v289 = vpop.f32.mrf.mxu0
  %v290 = vadd.f32 %v205, %v289
  %v291 = vpop.f32.mrf.mxu0
  %292 = vmatprep.mubr.f32.mxu0 %v39
  %293 = vmatmul.mubr.f32.gmra.mxu0 %v38
  %v294 = vpop.f32.mrf.mxu0
  %v295 = vadd.f32 %v210, %v294
  %v296 = vpop.f32.mrf.mxu0
  %297 = vmatprep.mubr.f32.mxu0 %v44
  %298 = vmatmul.mubr.f32.gmra.mxu0 %v43
  %v299 = vpop.f32.mrf.mxu0
  %v300 = vadd.f32 %v215, %v299
  %v301 = vpop.f32.mrf.mxu0
  %302 = vdwg.mxu0
  %303 = vmatprep.subr.mxu0 0.0
  %304 = vmatpush1.msra.mxu0 %v125
  %305 = vmatprep.subr.mxu0 0.0
  %306 = vmatpush1.msra.mxu0 %v124
  %307 = vmatprep.subr.mxu0 0.0
  %308 = vmatpush1.msra.mxu0 %v123
  %309 = vmatprep.subr.mxu0 0.0
  %310 = vmatpush1.msra.mxu0 %v122
  %311 = vmatprep.subr.mxu0 0.0
  %312 = vmatpush1.msra.mxu0 %v121
  %313 = vmatprep.subr.mxu0 0.0
  %314 = vmatpush1.msra.mxu0 %v120
  %315 = vmatprep.subr.mxu0 0.0
  %316 = vmatpush1.msra.mxu0 %v119
  %317 = vmatprep.subr.mxu0 0.0
  %318 = vmatpush1.msra.mxu0 %v118
  %319 = vmatprep.subr.mxu0 0.0
  %320 = vmatpush1.msra.mxu0 %v117
  %321 = vmatprep.subr.mxu0 0.0
  %322 = vmatpush1.msra.mxu0 %v116
  %323 = vmatprep.subr.mxu0 0.0
  %324 = vmatpush1.msra.mxu0 %v115
  %325 = vmatprep.subr.mxu0 0.0
  %326 = vmatpush1.msra.mxu0 %v114
  %327 = vmatprep.subr.mxu0 0.0
  %328 = vmatpush1.msra.mxu0 %v113
  %329 = vmatprep.subr.mxu0 0.0
  %330 = vmatpush1.msra.mxu0 %v112
  %331 = vmatprep.subr.mxu0 0.0
  %332 = vmatpush1.msra.mxu0 %v111
  %333 = vmatprep.subr.mxu0 0.0
  %334 = vmatpush1.msra.mxu0 %v110
  %335 = vmatprep.subr.mxu0 0.0
  %336 = vmatpush2.msra.mxu0 0.0
  %337 = vmatprep.subr.mxu0 0.0
  %338 = vmatpush2.msra.mxu0 0.0
  %339 = vmatprep.subr.mxu0 0.0
  %340 = vmatpush2.msra.mxu0 0.0
  %341 = vmatprep.subr.mxu0 0.0
  %342 = vmatpush2.msra.mxu0 0.0
  %343 = vmatprep.subr.mxu0 0.0
  %344 = vmatpush2.msra.mxu0 0.0
  %345 = vmatprep.subr.mxu0 0.0
  %346 = vmatpush2.msra.mxu0 0.0
  %347 = vmatprep.subr.mxu0 0.0
  %348 = vmatpush2.msra.mxu0 0.0
  %349 = vmatprep.subr.mxu0 0.0
  %350 = vmatpush2.msra.mxu0 0.0
  %351 = vmatprep.subr.mxu0 0.0
  %352 = vmatpush2.msra.mxu0 0.0
  %353 = vmatprep.subr.mxu0 0.0
  %354 = vmatpush2.msra.mxu0 0.0
  %355 = vmatprep.subr.mxu0 0.0
  %356 = vmatpush2.msra.mxu0 0.0
  %357 = vmatprep.subr.mxu0 0.0
  %358 = vmatpush2.msra.mxu0 0.0
  %359 = vmatprep.subr.mxu0 0.0
  %360 = vmatpush2.msra.mxu0 0.0
  %361 = vmatprep.subr.mxu0 0.0
  %362 = vmatpush2.msra.mxu0 0.0
  %363 = vmatprep.subr.mxu0 0.0
  %364 = vmatpush2.msra.mxu0 0.0
  %365 = vmatprep.subr.mxu0 0.0
  %366 = vmatpush2.msra.mxu0 0.0
  %367 = vmatprep.mubr.f32.mxu0 0.0
  %368 = vmatmul.mubr.f32.gmra.mxu0 %v30
  %v369 = vpop.f32.mrf.mxu0
  %v370 = vadd.f32 %v285, %v369
  %v371 = vpop.f32.mrf.mxu0
  %372 = vmatprep.mubr.f32.mxu0 0.0
  %373 = vmatmul.mubr.f32.gmra.mxu0 %v35
  %v374 = vpop.f32.mrf.mxu0
  %v375 = vadd.f32 %v290, %v374
  %v376 = vpop.f32.mrf.mxu0
  %377 = vmatprep.mubr.f32.mxu0 0.0
  %378 = vmatmul.mubr.f32.gmra.mxu0 %v40
  %v379 = vpop.f32.mrf.mxu0
  %v380 = vadd.f32 %v295, %v379
  %v381 = vpop.f32.mrf.mxu0
  %382 = vmatprep.mubr.f32.mxu0 0.0
  %383 = vmatmul.mubr.f32.gmra.mxu0 %v45
  %v384 = vpop.f32.mrf.mxu0
  %v385 = vadd.f32 %v300, %v384
  %v386 = vpop.f32.mrf.mxu0
  %387 = vdwg.mxu0
  %v388 = vmax.f32 %v370, 0.0
  %v389 = vmax.f32 %v375, 0.0
  %v390 = vmax.f32 %v380, 0.0
  %v391 = vmax.f32 %v385, 0.0
  %v392 = vld [vmem:[%s4] sm:$0x1]
  %v393 = vld [vmem:[%s3] sm:$0xff]
  %v394 = vld [vmem:[%s3 + $0x8] sm:$0xff]
  %v395 = vld [vmem:[%s3 + $0x10] sm:$0xff]
  %v396 = vld [vmem:[%s3 + $0x18] sm:$0xff]
  %v397 = vld [vmem:[%s3 + $0x20] sm:$0xff]
  %v398 = vld [vmem:[%s3 + $0x28] sm:$0xff]
  %v399 = vld [vmem:[%s3 + $0x30] sm:$0xff]
  %v400 = vld [vmem:[%s3 + $0x38] sm:$0xff]
  %vm401 = vcmask 523264
  %v403 = vsel %vm401, %v388, 0
  %v406 = vsel %vm401, %v389, 0
  %v409 = vsel %vm401, %v390, 0
  %v412 = vsel %vm401, %v391, 0
  %414 = vmatprep.subr.mxu0 0.0
  %415 = vmatpush1.msra.mxu0 0.0
  %416 = vmatprep.subr.mxu0 0.0
  %417 = vmatpush1.msra.mxu0 0.0
  %418 = vmatprep.subr.mxu0 0.0
  %419 = vmatpush1.msra.mxu0 0.0
  %420 = vmatprep.subr.mxu0 0.0
  %421 = vmatpush1.msra.mxu0 0.0
  %422 = vmatprep.subr.mxu0 0.0
  %423 = vmatpush1.msra.mxu0 0.0
  %424 = vmatprep.subr.mxu0 0.0
  %425 = vmatpush1.msra.mxu0 0.0
  %426 = vmatprep.subr.mxu0 0.0
  %427 = vmatpush1.msra.mxu0 0.0
  %428 = vmatprep.subr.mxu0 0.0
  %429 = vmatpush1.msra.mxu0 0.0
  %430 = vmatprep.subr.mxu0 0.0
  %431 = vmatpush1.msra.mxu0 %v400
  %432 = vmatprep.subr.mxu0 0.0
  %433 = vmatpush1.msra.mxu0 %v399
  %434 = vmatprep.subr.mxu0 0.0
  %435 = vmatpush1.msra.mxu0 %v398
  %436 = vmatprep.subr.mxu0 0.0
  %437 = vmatpush1.msra.mxu0 %v397
  %438 = vmatprep.subr.mxu0 0.0
  %439 = vmatpush1.msra.mxu0 %v396
  %440 = vmatprep.subr.mxu0 0.0
  %441 = vmatpush1.msra.mxu0 %v395
  %442 = vmatprep.subr.mxu0 0.0
  %443 = vmatpush1.msra.mxu0 %v394
  %444 = vmatprep.subr.mxu0 0.0
  %445 = vmatpush1.msra.mxu0 %v393
  %446 = vmatprep.subr.mxu0 0.0
  %447 = vmatpush2.msra.mxu0 0.0
  %448 = vmatprep.subr.mxu0 0.0
  %449 = vmatpush2.msra.mxu0 0.0
  %450 = vmatprep.subr.mxu0 0.0
  %451 = vmatpush2.msra.mxu0 0.0
  %452 = vmatprep.subr.mxu0 0.0
  %453 = vmatpush2.msra.mxu0 0.0
  %454 = vmatprep.subr.mxu0 0.0
  %455 = vmatpush2.msra.mxu0 0.0
  %456 = vmatprep.subr.mxu0 0.0
  %457 = vmatpush2.msra.mxu0 0.0
  %458 = vmatprep.subr.mxu0 0.0
  %459 = vmatpush2.msra.mxu0 0.0
  %460 = vmatprep.subr.mxu0 0.0
  %461 = vmatpush2.msra.mxu0 0.0
  %462 = vmatprep.subr.mxu0 0.0
  %463 = vmatpush2.msra.mxu0 0.0
  %464 = vmatprep.subr.mxu0 0.0
  %465 = vmatpush2.msra.mxu0 0.0
  %466 = vmatprep.subr.mxu0 0.0
  %467 = vmatpush2.msra.mxu0 0.0
  %468 = vmatprep.subr.mxu0 0.0
  %469 = vmatpush2.msra.mxu0 0.0
  %470 = vmatprep.subr.mxu0 0.0
  %471 = vmatpush2.msra.mxu0 0.0
  %472 = vmatprep.subr.mxu0 0.0
  %473 = vmatpush2.msra.mxu0 0.0
  %474 = vmatprep.subr.mxu0 0.0
  %475 = vmatpush2.msra.mxu0 0.0
  %476 = vmatprep.subr.mxu0 0.0
  %477 = vmatpush2.msra.mxu0 0.0
  %478 = vmatprep.mubr.f32.mxu0 0.0
  %479 = vmatmul.mubr.f32.gmra.mxu0 %v403
  %v480 = vpop.f32.mrf.mxu0
  %v481 = vadd.f32 0.0, %v480
  %v482 = vpop.f32.mrf.mxu0
  %483 = vmatprep.mubr.f32.mxu0 0.0
  %484 = vmatmul.mubr.f32.gmra.mxu0 %v406
  %v485 = vpop.f32.mrf.mxu0
  %v486 = vadd.f32 0.0, %v485
  %v487 = vpop.f32.mrf.mxu0
  %488 = vmatprep.mubr.f32.mxu0 0.0
  %489 = vmatmul.mubr.f32.gmra.mxu0 %v409
  %v490 = vpop.f32.mrf.mxu0
  %v491 = vadd.f32 0.0, %v490
  %v492 = vpop.f32.mrf.mxu0
  %493 = vmatprep.mubr.f32.mxu0 0.0
  %494 = vmatmul.mubr.f32.gmra.mxu0 %v412
  %v495 = vpop.f32.mrf.mxu0
  %v496 = vadd.f32 0.0, %v495
  %v497 = vpop.f32.mrf.mxu0
  %498 = vdwg.mxu0
  %v499 = vlaneseq
  %v500 = vshrl.u32 %v499, 7
  %v501 = vsub.s32 0, %v500
  %v502 = vrot.slane %v392, %v501
  %v503 = vadd.f32 %v502, %v481
  %v504 = vadd.f32 %v502, %v486
  %v505 = vadd.f32 %v502, %v491
  %v506 = vadd.f32 %v502, %v496
  %vm507 = vcmask 785408
  %508 = vst.msk [vmem:[#allocation2] sm:$0xff] %vm507, %v503
  %509 = vst.msk [vmem:[#allocation2 + $0x8] sm:$0xff] %vm507, %v504
  %510 = vst.msk [vmem:[#allocation2 + $0x10] sm:$0xff] %vm507, %v505
  %511 = vst.msk [vmem:[#allocation2 + $0x18] sm:$0xff] %vm507, %v506
  %v512 = vld [vmem:[%s3 + $0x40] sm:$0xff]
  %v513 = vld [vmem:[%s3 + $0x48] sm:$0xff]
  %v514 = vld [vmem:[%s3 + $0x50] sm:$0xff]
  %v515 = vld [vmem:[%s3 + $0x58] sm:$0xff]
  %v516 = vld [vmem:[%s4 + $0x1] sm:$0x1]
  %v517 = vld [vmem:[#allocation2] sm:$0xff]
  %v518 = vlaneseq
  %v519 = vshrl.u32 %v518, 7
  %v520 = vsub.s32 0, %v519
  %v521 = vrot.slane %v516, %v520
  %vm522 = vcmask 261120
  %v524 = vsel %vm522, 0.0, 0
  %526 = vmatprep.subr.mxu0 0.0
  %527 = vmatpush1.msra.mxu0 0.0
  %528 = vmatprep.subr.mxu0 0.0
  %529 = vmatpush1.msra.mxu0 0.0
  %530 = vmatprep.subr.mxu0 0.0
  %531 = vmatpush1.msra.mxu0 0.0
  %532 = vmatprep.subr.mxu0 0.0
  %533 = vmatpush1.msra.mxu0 0.0
  %534 = vmatprep.subr.mxu0 0.0
  %535 = vmatpush1.msra.mxu0 0.0
  %536 = vmatprep.subr.mxu0 0.0
  %537 = vmatpush1.msra.mxu0 0.0
  %538 = vmatprep.subr.mxu0 0.0
  %539 = vmatpush1.msra.mxu0 0.0
  %540 = vmatprep.subr.mxu0 0.0
  %541 = vmatpush1.msra.mxu0 0.0
  %542 = vmatprep.subr.mxu0 0.0
  %543 = vmatpush1.msra.mxu0 0.0
  %544 = vmatprep.subr.mxu0 0.0
  %545 = vmatpush1.msra.mxu0 0.0
  %546 = vmatprep.subr.mxu0 0.0
  %547 = vmatpush1.msra.mxu0 0.0
  %548 = vmatprep.subr.mxu0 0.0
  %549 = vmatpush1.msra.mxu0 0.0
  %550 = vmatprep.subr.mxu0 0.0
  %551 = vmatpush1.msra.mxu0 %v515
  %552 = vmatprep.subr.mxu0 0.0
  %553 = vmatpush1.msra.mxu0 %v514
  %554 = vmatprep.subr.mxu0 0.0
  %555 = vmatpush1.msra.mxu0 %v513
  %556 = vmatprep.subr.mxu0 0.0
  %557 = vmatpush1.msra.mxu0 %v512
  %558 = vmatprep.subr.mxu0 0.0
  %559 = vmatpush2.msra.mxu0 0.0
  %560 = vmatprep.subr.mxu0 0.0
  %561 = vmatpush2.msra.mxu0 0.0
  %562 = vmatprep.subr.mxu0 0.0
  %563 = vmatpush2.msra.mxu0 0.0
  %564 = vmatprep.subr.mxu0 0.0
  %565 = vmatpush2.msra.mxu0 0.0
  %566 = vmatprep.subr.mxu0 0.0
  %567 = vmatpush2.msra.mxu0 0.0
  %568 = vmatprep.subr.mxu0 0.0
  %569 = vmatpush2.msra.mxu0 0.0
  %570 = vmatprep.subr.mxu0 0.0
  %571 = vmatpush2.msra.mxu0 0.0
  %572 = vmatprep.subr.mxu0 0.0
  %573 = vmatpush2.msra.mxu0 0.0
  %574 = vmatprep.subr.mxu0 0.0
  %575 = vmatpush2.msra.mxu0 0.0
  %576 = vmatprep.subr.mxu0 0.0
  %577 = vmatpush2.msra.mxu0 0.0
  %578 = vmatprep.subr.mxu0 0.0
  %579 = vmatpush2.msra.mxu0 0.0
  %580 = vmatprep.subr.mxu0 0.0
  %581 = vmatpush2.msra.mxu0 0.0
  %582 = vmatprep.subr.mxu0 0.0
  %583 = vmatpush2.msra.mxu0 0.0
  %584 = vmatprep.subr.mxu0 0.0
  %585 = vmatpush2.msra.mxu0 0.0
  %586 = vmatprep.subr.mxu0 0.0
  %587 = vmatpush2.msra.mxu0 0.0
  %588 = vmatprep.subr.mxu0 0.0
  %589 = vmatpush2.msra.mxu0 0.0
  %590 = vmatprep.mubr.f32.mxu0 0.0
  %591 = vmatmul.mubr.f32.gmra.mxu0 %v524
  %v592 = vpop.f32.mrf.mxu0
  %v593 = vadd.f32 %v521, %v592
  %v594 = vpop.f32.mrf.mxu0
  %595 = vdwg.mxu0
  %v596 = vadd.f32 %v517, %v593
  %v597 = vxor.u32 %v596, 2147483648
  %v598 = vmul.f32 %v597, 1.442695
  %v599 = vpow.pop %v598
  %v600 = vadd.f32 %v599, 1.0
  %v601 = vrcp.pop %v600
  %v602 = vmul.f32 1.0, %v601
  %604 = vrot.lane.b32.xlu0 %v593, 64
  %v605 = vpop.permute.xlu0 %604
  %v607 = vmul.f32 %v602, %v605
  %609 = vrot.lane.b32.xlu0 %v607, 64
  %v610 = vpop.permute.xlu0 %609
  %v612 = vadd.f32 %v517, %v610
  %v613 = vtanh.pop %v612
  %v614 = vsub.f32 1.0, %v602
  %616 = vrot.lane.b32.xlu0 %v613, 96
  %v617 = vpop.permute.xlu0 %616
  %v619 = vmul.f32 %v614, %v617
  %v620 = vmul.f32 %v602, 0.0
  %v621 = vadd.f32 %v619, %v620
  %623 = vrot.lane.b32.xlu0 %v621, 96
  %v624 = vpop.permute.xlu0 %623
  %626 = vst.msk [vmem:[#allocation3] sm:$0xff] %vm522, %v624
  %s627 = scalar_lea.vmem [#allocation2], 8
  %v628 = vld [vmem:[%s627] sm:$0xff]
  %v629 = vsel %vm522, %v624, 0
  %631 = vmatprep.subr.mxu0 0.0
  %632 = vmatpush1.msra.mxu0 0.0
  %633 = vmatprep.subr.mxu0 0.0
  %634 = vmatpush1.msra.mxu0 0.0
  %635 = vmatprep.subr.mxu0 0.0
  %636 = vmatpush1.msra.mxu0 0.0
  %637 = vmatprep.subr.mxu0 0.0
  %638 = vmatpush1.msra.mxu0 0.0
  %639 = vmatprep.subr.mxu0 0.0
  %640 = vmatpush1.msra.mxu0 0.0
  %641 = vmatprep.subr.mxu0 0.0
  %642 = vmatpush1.msra.mxu0 0.0
  %643 = vmatprep.subr.mxu0 0.0
  %644 = vmatpush1.msra.mxu0 0.0
  %645 = vmatprep.subr.mxu0 0.0
  %646 = vmatpush1.msra.mxu0 0.0
  %647 = vmatprep.subr.mxu0 0.0
  %648 = vmatpush1.msra.mxu0 0.0
  %649 = vmatprep.subr.mxu0 0.0
  %650 = vmatpush1.msra.mxu0 0.0
  %651 = vmatprep.subr.mxu0 0.0
  %652 = vmatpush1.msra.mxu0 0.0
  %653 = vmatprep.subr.mxu0 0.0
  %654 = vmatpush1.msra.mxu0 0.0
  %655 = vmatprep.subr.mxu0 0.0
  %656 = vmatpush1.msra.mxu0 %v515
  %657 = vmatprep.subr.mxu0 0.0
  %658 = vmatpush1.msra.mxu0 %v514
  %659 = vmatprep.subr.mxu0 0.0
  %660 = vmatpush1.msra.mxu0 %v513
  %661 = vmatprep.subr.mxu0 0.0
  %662 = vmatpush1.msra.mxu0 %v512
  %663 = vmatprep.subr.mxu0 0.0
  %664 = vmatpush2.msra.mxu0 0.0
  %665 = vmatprep.subr.mxu0 0.0
  %666 = vmatpush2.msra.mxu0 0.0
  %667 = vmatprep.subr.mxu0 0.0
  %668 = vmatpush2.msra.mxu0 0.0
  %669 = vmatprep.subr.mxu0 0.0
  %670 = vmatpush2.msra.mxu0 0.0
  %671 = vmatprep.subr.mxu0 0.0
  %672 = vmatpush2.msra.mxu0 0.0
  %673 = vmatprep.subr.mxu0 0.0
  %674 = vmatpush2.msra.mxu0 0.0
  %675 = vmatprep.subr.mxu0 0.0
  %676 = vmatpush2.msra.mxu0 0.0
  %677 = vmatprep.subr.mxu0 0.0
  %678 = vmatpush2.msra.mxu0 0.0
  %679 = vmatprep.subr.mxu0 0.0
  %680 = vmatpush2.msra.mxu0 0.0
  %681 = vmatprep.subr.mxu0 0.0
  %682 = vmatpush2.msra.mxu0 0.0
  %683 = vmatprep.subr.mxu0 0.0
  %684 = vmatpush2.msra.mxu0 0.0
  %685 = vmatprep.subr.mxu0 0.0
  %686 = vmatpush2.msra.mxu0 0.0
  %687 = vmatprep.subr.mxu0 0.0
  %688 = vmatpush2.msra.mxu0 0.0
  %689 = vmatprep.subr.mxu0 0.0
  %690 = vmatpush2.msra.mxu0 0.0
  %691 = vmatprep.subr.mxu0 0.0
  %692 = vmatpush2.msra.mxu0 0.0
  %693 = vmatprep.subr.mxu0 0.0
  %694 = vmatpush2.msra.mxu0 0.0
  %695 = vmatprep.mubr.f32.mxu0 0.0
  %696 = vmatmul.mubr.f32.gmra.mxu0 %v629
  %v697 = vpop.f32.mrf.mxu0
  %v698 = vadd.f32 %v521, %v697
  %v699 = vpop.f32.mrf.mxu0
  %700 = vdwg.mxu0
  %v701 = vadd.f32 %v628, %v698
  %v702 = vxor.u32 %v701, 2147483648
  %v703 = vmul.f32 %v702, 1.442695
  %v704 = vpow.pop %v703
  %v705 = vadd.f32 %v704, 1.0
  %v706 = vrcp.pop %v705
  %v707 = vmul.f32 1.0, %v706
  %709 = vrot.lane.b32.xlu0 %v698, 64
  %v710 = vpop.permute.xlu0 %709
  %v712 = vmul.f32 %v707, %v710
  %714 = vrot.lane.b32.xlu0 %v712, 64
  %v715 = vpop.permute.xlu0 %714
  %v717 = vadd.f32 %v628, %v715
  %v718 = vtanh.pop %v717
  %v719 = vsub.f32 1.0, %v707
  %721 = vrot.lane.b32.xlu0 %v718, 96
  %v722 = vpop.permute.xlu0 %721
  %v724 = vmul.f32 %v719, %v722
  %v725 = vmul.f32 %v707, %v621
  %v726 = vadd.f32 %v724, %v725
  %728 = vrot.lane.b32.xlu0 %v726, 96
  %v729 = vpop.permute.xlu0 %728
  %s731 = scalar_lea.vmem [#allocation3], 8
  %732 = vst.msk [vmem:[%s731] sm:$0xff] %vm522, %v729
  %s733 = scalar_lea.vmem [#allocation2], 16
  %v734 = vld [vmem:[%s733] sm:$0xff]
  %v735 = vsel %vm522, %v729, 0
  %737 = vmatprep.subr.mxu0 0.0
  %738 = vmatpush1.msra.mxu0 0.0
  %739 = vmatprep.subr.mxu0 0.0
  %740 = vmatpush1.msra.mxu0 0.0
  %741 = vmatprep.subr.mxu0 0.0
  %742 = vmatpush1.msra.mxu0 0.0
  %743 = vmatprep.subr.mxu0 0.0
  %744 = vmatpush1.msra.mxu0 0.0
  %745 = vmatprep.subr.mxu0 0.0
  %746 = vmatpush1.msra.mxu0 0.0
  %747 = vmatprep.subr.mxu0 0.0
  %748 = vmatpush1.msra.mxu0 0.0
  %749 = vmatprep.subr.mxu0 0.0
  %750 = vmatpush1.msra.mxu0 0.0
  %751 = vmatprep.subr.mxu0 0.0
  %752 = vmatpush1.msra.mxu0 0.0
  %753 = vmatprep.subr.mxu0 0.0
  %754 = vmatpush1.msra.mxu0 0.0
  %755 = vmatprep.subr.mxu0 0.0
  %756 = vmatpush1.msra.mxu0 0.0
  %757 = vmatprep.subr.mxu0 0.0
  %758 = vmatpush1.msra.mxu0 0.0
  %759 = vmatprep.subr.mxu0 0.0
  %760 = vmatpush1.msra.mxu0 0.0
  %761 = vmatprep.subr.mxu0 0.0
  %762 = vmatpush1.msra.mxu0 %v515
  %763 = vmatprep.subr.mxu0 0.0
  %764 = vmatpush1.msra.mxu0 %v514
  %765 = vmatprep.subr.mxu0 0.0
  %766 = vmatpush1.msra.mxu0 %v513
  %767 = vmatprep.subr.mxu0 0.0
  %768 = vmatpush1.msra.mxu0 %v512
  %769 = vmatprep.subr.mxu0 0.0
  %770 = vmatpush2.msra.mxu0 0.0
  %771 = vmatprep.subr.mxu0 0.0
  %772 = vmatpush2.msra.mxu0 0.0
  %773 = vmatprep.subr.mxu0 0.0
  %774 = vmatpush2.msra.mxu0 0.0
  %775 = vmatprep.subr.mxu0 0.0
  %776 = vmatpush2.msra.mxu0 0.0
  %777 = vmatprep.subr.mxu0 0.0
  %778 = vmatpush2.msra.mxu0 0.0
  %779 = vmatprep.subr.mxu0 0.0
  %780 = vmatpush2.msra.mxu0 0.0
  %781 = vmatprep.subr.mxu0 0.0
  %782 = vmatpush2.msra.mxu0 0.0
  %783 = vmatprep.subr.mxu0 0.0
  %784 = vmatpush2.msra.mxu0 0.0
  %785 = vmatprep.subr.mxu0 0.0
  %786 = vmatpush2.msra.mxu0 0.0
  %787 = vmatprep.subr.mxu0 0.0
  %788 = vmatpush2.msra.mxu0 0.0
  %789 = vmatprep.subr.mxu0 0.0
  %790 = vmatpush2.msra.mxu0 0.0
  %791 = vmatprep.subr.mxu0 0.0
  %792 = vmatpush2.msra.mxu0 0.0
  %793 = vmatprep.subr.mxu0 0.0
  %794 = vmatpush2.msra.mxu0 0.0
  %795 = vmatprep.subr.mxu0 0.0
  %796 = vmatpush2.msra.mxu0 0.0
  %797 = vmatprep.subr.mxu0 0.0
  %798 = vmatpush2.msra.mxu0 0.0
  %799 = vmatprep.subr.mxu0 0.0
  %800 = vmatpush2.msra.mxu0 0.0
  %801 = vmatprep.mubr.f32.mxu0 0.0
  %802 = vmatmul.mubr.f32.gmra.mxu0 %v735
  %v803 = vpop.f32.mrf.mxu0
  %v804 = vadd.f32 %v521, %v803
  %v805 = vpop.f32.mrf.mxu0
  %806 = vdwg.mxu0
  %v807 = vadd.f32 %v734, %v804
  %v808 = vxor.u32 %v807, 2147483648
  %v809 = vmul.f32 %v808, 1.442695
  %v810 = vpow.pop %v809
  %v811 = vadd.f32 %v810, 1.0
  %v812 = vrcp.pop %v811
  %v813 = vmul.f32 1.0, %v812
  %815 = vrot.lane.b32.xlu0 %v804, 64
  %v816 = vpop.permute.xlu0 %815
  %v818 = vmul.f32 %v813, %v816
  %820 = vrot.lane.b32.xlu0 %v818, 64
  %v821 = vpop.permute.xlu0 %820
  %v823 = vadd.f32 %v734, %v821
  %v824 = vtanh.pop %v823
  %v825 = vsub.f32 1.0, %v813
  %827 = vrot.lane.b32.xlu0 %v824, 96
  %v828 = vpop.permute.xlu0 %827
  %v830 = vmul.f32 %v825, %v828
  %v831 = vmul.f32 %v813, %v726
  %v832 = vadd.f32 %v830, %v831
  %834 = vrot.lane.b32.xlu0 %v832, 96
  %v835 = vpop.permute.xlu0 %834
  %s837 = scalar_lea.vmem [#allocation3], 16
  %838 = vst.msk [vmem:[%s837] sm:$0xff] %vm522, %v835
  %s839 = scalar_lea.vmem [#allocation2], 24
  %v840 = vld [vmem:[%s839] sm:$0xff]
  %v841 = vsel %vm522, %v835, 0
  %843 = vmatprep.subr.mxu0 0.0
  %844 = vmatpush1.msra.mxu0 0.0
  %845 = vmatprep.subr.mxu0 0.0
  %846 = vmatpush1.msra.mxu0 0.0
  %847 = vmatprep.subr.mxu0 0.0
  %848 = vmatpush1.msra.mxu0 0.0
  %849 = vmatprep.subr.mxu0 0.0
  %850 = vmatpush1.msra.mxu0 0.0
  %851 = vmatprep.subr.mxu0 0.0
  %852 = vmatpush1.msra.mxu0 0.0
  %853 = vmatprep.subr.mxu0 0.0
  %854 = vmatpush1.msra.mxu0 0.0
  %855 = vmatprep.subr.mxu0 0.0
  %856 = vmatpush1.msra.mxu0 0.0
  %857 = vmatprep.subr.mxu0 0.0
  %858 = vmatpush1.msra.mxu0 0.0
  %859 = vmatprep.subr.mxu0 0.0
  %860 = vmatpush1.msra.mxu0 0.0
  %861 = vmatprep.subr.mxu0 0.0
  %862 = vmatpush1.msra.mxu0 0.0
  %863 = vmatprep.subr.mxu0 0.0
  %864 = vmatpush1.msra.mxu0 0.0
  %865 = vmatprep.subr.mxu0 0.0
  %866 = vmatpush1.msra.mxu0 0.0
  %867 = vmatprep.subr.mxu0 0.0
  %868 = vmatpush1.msra.mxu0 %v515
  %869 = vmatprep.subr.mxu0 0.0
  %870 = vmatpush1.msra.mxu0 %v514
  %871 = vmatprep.subr.mxu0 0.0
  %872 = vmatpush1.msra.mxu0 %v513
  %873 = vmatprep.subr.mxu0 0.0
  %874 = vmatpush1.msra.mxu0 %v512
  %875 = vmatprep.subr.mxu0 0.0
  %876 = vmatpush2.msra.mxu0 0.0
  %877 = vmatprep.subr.mxu0 0.0
  %878 = vmatpush2.msra.mxu0 0.0
  %879 = vmatprep.subr.mxu0 0.0
  %880 = vmatpush2.msra.mxu0 0.0
  %881 = vmatprep.subr.mxu0 0.0
  %882 = vmatpush2.msra.mxu0 0.0
  %883 = vmatprep.subr.mxu0 0.0
  %884 = vmatpush2.msra.mxu0 0.0
  %885 = vmatprep.subr.mxu0 0.0
  %886 = vmatpush2.msra.mxu0 0.0
  %887 = vmatprep.subr.mxu0 0.0
  %888 = vmatpush2.msra.mxu0 0.0
  %889 = vmatprep.subr.mxu0 0.0
  %890 = vmatpush2.msra.mxu0 0.0
  %891 = vmatprep.subr.mxu0 0.0
  %892 = vmatpush2.msra.mxu0 0.0
  %893 = vmatprep.subr.mxu0 0.0
  %894 = vmatpush2.msra.mxu0 0.0
  %895 = vmatprep.subr.mxu0 0.0
  %896 = vmatpush2.msra.mxu0 0.0
  %897 = vmatprep.subr.mxu0 0.0
  %898 = vmatpush2.msra.mxu0 0.0
  %899 = vmatprep.subr.mxu0 0.0
  %900 = vmatpush2.msra.mxu0 0.0
  %901 = vmatprep.subr.mxu0 0.0
  %902 = vmatpush2.msra.mxu0 0.0
  %903 = vmatprep.subr.mxu0 0.0
  %904 = vmatpush2.msra.mxu0 0.0
  %905 = vmatprep.subr.mxu0 0.0
  %906 = vmatpush2.msra.mxu0 0.0
  %907 = vmatprep.mubr.f32.mxu0 0.0
  %908 = vmatmul.mubr.f32.gmra.mxu0 %v841
  %v909 = vpop.f32.mrf.mxu0
  %v910 = vadd.f32 %v521, %v909
  %v911 = vpop.f32.mrf.mxu0
  %912 = vdwg.mxu0
  %v913 = vadd.f32 %v840, %v910
  %v914 = vxor.u32 %v913, 2147483648
  %v915 = vmul.f32 %v914, 1.442695
  %v916 = vpow.pop %v915
  %v917 = vadd.f32 %v916, 1.0
  %v918 = vrcp.pop %v917
  %v919 = vmul.f32 1.0, %v918
  %921 = vrot.lane.b32.xlu0 %v910, 64
  %v922 = vpop.permute.xlu0 %921
  %v924 = vmul.f32 %v919, %v922
  %926 = vrot.lane.b32.xlu0 %v924, 64
  %v927 = vpop.permute.xlu0 %926
  %v929 = vadd.f32 %v840, %v927
  %v930 = vtanh.pop %v929
  %v931 = vsub.f32 1.0, %v919
  %933 = vrot.lane.b32.xlu0 %v930, 96
  %v934 = vpop.permute.xlu0 %933
  %v936 = vmul.f32 %v931, %v934
  %v937 = vmul.f32 %v919, %v832
  %v938 = vadd.f32 %v936, %v937
  %940 = vrot.lane.b32.xlu0 %v938, 96
  %v941 = vpop.permute.xlu0 %940
  %s943 = scalar_lea.vmem [#allocation3], 24
  %944 = vst.msk [vmem:[%s943] sm:$0xff] %vm522, %v941
  %s945 = scalar_lea.vmem %s4, 2
  %v946 = vld [vmem:[%s945] sm:$0x1]
  %s947 = scalar_lea.vmem %s3, 96
  %v948 = vld [vmem:[%s947] sm:$0xff]
  %v949 = vld [vmem:[%s947 + $0x8] sm:$0xff]
  %v950 = vld [vmem:[%s947 + $0x10] sm:$0xff]
  %v951 = vld [vmem:[%s947 + $0x18] sm:$0xff]
  %v952 = vld [vmem:[%s947 + $0x20] sm:$0xff]
  %v953 = vld [vmem:[%s947 + $0x28] sm:$0xff]
  %v954 = vld [vmem:[%s947 + $0x30] sm:$0xff]
  %v955 = vld [vmem:[%s947 + $0x38] sm:$0xff]
  %956 = vmatprep.subr.mxu0 0.0
  %957 = vmatpush1.msra.mxu0 0.0
  %958 = vmatprep.subr.mxu0 0.0
  %959 = vmatpush1.msra.mxu0 0.0
  %960 = vmatprep.subr.mxu0 0.0
  %961 = vmatpush1.msra.mxu0 0.0
  %962 = vmatprep.subr.mxu0 0.0
  %963 = vmatpush1.msra.mxu0 0.0
  %964 = vmatprep.subr.mxu0 0.0
  %965 = vmatpush1.msra.mxu0 0.0
  %966 = vmatprep.subr.mxu0 0.0
  %967 = vmatpush1.msra.mxu0 0.0
  %968 = vmatprep.subr.mxu0 0.0
  %969 = vmatpush1.msra.mxu0 0.0
  %970 = vmatprep.subr.mxu0 0.0
  %971 = vmatpush1.msra.mxu0 0.0
  %972 = vmatprep.subr.mxu0 0.0
  %973 = vmatpush1.msra.mxu0 %v955
  %974 = vmatprep.subr.mxu0 0.0
  %975 = vmatpush1.msra.mxu0 %v954
  %976 = vmatprep.subr.mxu0 0.0
  %977 = vmatpush1.msra.mxu0 %v953
  %978 = vmatprep.subr.mxu0 0.0
  %979 = vmatpush1.msra.mxu0 %v952
  %980 = vmatprep.subr.mxu0 0.0
  %981 = vmatpush1.msra.mxu0 %v951
  %982 = vmatprep.subr.mxu0 0.0
  %983 = vmatpush1.msra.mxu0 %v950
  %984 = vmatprep.subr.mxu0 0.0
  %985 = vmatpush1.msra.mxu0 %v949
  %986 = vmatprep.subr.mxu0 0.0
  %987 = vmatpush1.msra.mxu0 %v948
  %988 = vmatprep.subr.mxu0 0.0
  %989 = vmatpush2.msra.mxu0 0.0
  %990 = vmatprep.subr.mxu0 0.0
  %991 = vmatpush2.msra.mxu0 0.0
  %992 = vmatprep.subr.mxu0 0.0
  %993 = vmatpush2.msra.mxu0 0.0
  %994 = vmatprep.subr.mxu0 0.0
  %995 = vmatpush2.msra.mxu0 0.0
  %996 = vmatprep.subr.mxu0 0.0
  %997 = vmatpush2.msra.mxu0 0.0
  %998 = vmatprep.subr.mxu0 0.0
  %999 = vmatpush2.msra.mxu0 0.0
  %1000 = vmatprep.subr.mxu0 0.0
  %1001 = vmatpush2.msra.mxu0 0.0
  %1002 = vmatprep.subr.mxu0 0.0
  %1003 = vmatpush2.msra.mxu0 0.0
  %1004 = vmatprep.subr.mxu0 0.0
  %1005 = vmatpush2.msra.mxu0 0.0
  %1006 = vmatprep.subr.mxu0 0.0
  %1007 = vmatpush2.msra.mxu0 0.0
  %1008 = vmatprep.subr.mxu0 0.0
  %1009 = vmatpush2.msra.mxu0 0.0
  %1010 = vmatprep.subr.mxu0 0.0
  %1011 = vmatpush2.msra.mxu0 0.0
  %1012 = vmatprep.subr.mxu0 0.0
  %1013 = vmatpush2.msra.mxu0 0.0
  %1014 = vmatprep.subr.mxu0 0.0
  %1015 = vmatpush2.msra.mxu0 0.0
  %1016 = vmatprep.subr.mxu0 0.0
  %1017 = vmatpush2.msra.mxu0 0.0
  %1018 = vmatprep.subr.mxu0 0.0
  %1019 = vmatpush2.msra.mxu0 0.0
  %1020 = vmatprep.mubr.f32.mxu0 0.0
  %1021 = vmatmul.mubr.f32.gmra.mxu0 %v403
  %v1022 = vpop.f32.mrf.mxu0
  %v1023 = vadd.f32 0.0, %v1022
  %v1024 = vpop.f32.mrf.mxu0
  %1025 = vmatprep.mubr.f32.mxu0 0.0
  %1026 = vmatmul.mubr.f32.gmra.mxu0 %v406
  %v1027 = vpop.f32.mrf.mxu0
  %v1028 = vadd.f32 0.0, %v1027
  %v1029 = vpop.f32.mrf.mxu0
  %1030 = vmatprep.mubr.f32.mxu0 0.0
  %1031 = vmatmul.mubr.f32.gmra.mxu0 %v409
  %v1032 = vpop.f32.mrf.mxu0
  %v1033 = vadd.f32 0.0, %v1032
  %v1034 = vpop.f32.mrf.mxu0
  %1035 = vmatprep.mubr.f32.mxu0 0.0
  %1036 = vmatmul.mubr.f32.gmra.mxu0 %v412
  %v1037 = vpop.f32.mrf.mxu0
  %v1038 = vadd.f32 0.0, %v1037
  %v1039 = vpop.f32.mrf.mxu0
  %1040 = vdwg.mxu0
  %v1041 = vlaneseq
  %v1042 = vshrl.u32 %v1041, 7
  %v1043 = vsub.s32 0, %v1042
  %v1044 = vrot.slane %v946, %v1043
  %v1045 = vadd.f32 %v1044, %v1023
  %v1046 = vadd.f32 %v1044, %v1028
  %v1047 = vadd.f32 %v1044, %v1033
  %v1048 = vadd.f32 %v1044, %v1038
  %1049 = vst.msk [vmem:[#allocation2] sm:$0xff] %vm507, %v1045
  %1050 = vst.msk [vmem:[#allocation2 + $0x8] sm:$0xff] %vm507, %v1046
  %1051 = vst.msk [vmem:[#allocation2 + $0x10] sm:$0xff] %vm507, %v1047
  %1052 = vst.msk [vmem:[#allocation2 + $0x18] sm:$0xff] %vm507, %v1048
  %v1053 = vld [vmem:[%s947 + $0x40] sm:$0xff]
  %v1054 = vld [vmem:[%s947 + $0x48] sm:$0xff]
  %v1055 = vld [vmem:[%s947 + $0x50] sm:$0xff]
  %v1056 = vld [vmem:[%s947 + $0x58] sm:$0xff]
  %v1057 = vld [vmem:[%s945 + $0x1] sm:$0x1]
  %v1058 = vld [vmem:[%s839] sm:$0xff]
  %v1059 = vlaneseq
  %v1060 = vshrl.u32 %v1059, 7
  %v1061 = vsub.s32 0, %v1060
  %v1062 = vrot.slane %v1057, %v1061
  %1063 = vmatprep.subr.mxu0 0.0
  %1064 = vmatpush1.msra.mxu0 0.0
  %1065 = vmatprep.subr.mxu0 0.0
  %1066 = vmatpush1.msra.mxu0 0.0
  %1067 = vmatprep.subr.mxu0 0.0
  %1068 = vmatpush1.msra.mxu0 0.0
  %1069 = vmatprep.subr.mxu0 0.0
  %1070 = vmatpush1.msra.mxu0 0.0
  %1071 = vmatprep.subr.mxu0 0.0
  %1072 = vmatpush1.msra.mxu0 0.0
  %1073 = vmatprep.subr.mxu0 0.0
  %1074 = vmatpush1.msra.mxu0 0.0
  %1075 = vmatprep.subr.mxu0 0.0
  %1076 = vmatpush1.msra.mxu0 0.0
  %1077 = vmatprep.subr.mxu0 0.0
  %1078 = vmatpush1.msra.mxu0 0.0
  %1079 = vmatprep.subr.mxu0 0.0
  %1080 = vmatpush1.msra.mxu0 0.0
  %1081 = vmatprep.subr.mxu0 0.0
  %1082 = vmatpush1.msra.mxu0 0.0
  %1083 = vmatprep.subr.mxu0 0.0
  %1084 = vmatpush1.msra.mxu0 0.0
  %1085 = vmatprep.subr.mxu0 0.0
  %1086 = vmatpush1.msra.mxu0 0.0
  %1087 = vmatprep.subr.mxu0 0.0
  %1088 = vmatpush1.msra.mxu0 %v1056
  %1089 = vmatprep.subr.mxu0 0.0
  %1090 = vmatpush1.msra.mxu0 %v1055
  %1091 = vmatprep.subr.mxu0 0.0
  %1092 = vmatpush1.msra.mxu0 %v1054
  %1093 = vmatprep.subr.mxu0 0.0
  %1094 = vmatpush1.msra.mxu0 %v1053
  %1095 = vmatprep.subr.mxu0 0.0
  %1096 = vmatpush2.msra.mxu0 0.0
  %1097 = vmatprep.subr.mxu0 0.0
  %1098 = vmatpush2.msra.mxu0 0.0
  %1099 = vmatprep.subr.mxu0 0.0
  %1100 = vmatpush2.msra.mxu0 0.0
  %1101 = vmatprep.subr.mxu0 0.0
  %1102 = vmatpush2.msra.mxu0 0.0
  %1103 = vmatprep.subr.mxu0 0.0
  %1104 = vmatpush2.msra.mxu0 0.0
  %1105 = vmatprep.subr.mxu0 0.0
  %1106 = vmatpush2.msra.mxu0 0.0
  %1107 = vmatprep.subr.mxu0 0.0
  %1108 = vmatpush2.msra.mxu0 0.0
  %1109 = vmatprep.subr.mxu0 0.0
  %1110 = vmatpush2.msra.mxu0 0.0
  %1111 = vmatprep.subr.mxu0 0.0
  %1112 = vmatpush2.msra.mxu0 0.0
  %1113 = vmatprep.subr.mxu0 0.0
  %1114 = vmatpush2.msra.mxu0 0.0
  %1115 = vmatprep.subr.mxu0 0.0
  %1116 = vmatpush2.msra.mxu0 0.0
  %1117 = vmatprep.subr.mxu0 0.0
  %1118 = vmatpush2.msra.mxu0 0.0
  %1119 = vmatprep.subr.mxu0 0.0
  %1120 = vmatpush2.msra.mxu0 0.0
  %1121 = vmatprep.subr.mxu0 0.0
  %1122 = vmatpush2.msra.mxu0 0.0
  %1123 = vmatprep.subr.mxu0 0.0
  %1124 = vmatpush2.msra.mxu0 0.0
  %1125 = vmatprep.subr.mxu0 0.0
  %1126 = vmatpush2.msra.mxu0 0.0
  %1127 = vmatprep.mubr.f32.mxu0 0.0
  %1128 = vmatmul.mubr.f32.gmra.mxu0 %v524
  %v1129 = vpop.f32.mrf.mxu0
  %v1130 = vadd.f32 %v1062, %v1129
  %v1131 = vpop.f32.mrf.mxu0
  %1132 = vdwg.mxu0
  %v1133 = vadd.f32 %v1058, %v1130
  %v1134 = vxor.u32 %v1133, 2147483648
  %v1135 = vmul.f32 %v1134, 1.442695
  %v1136 = vpow.pop %v1135
  %v1137 = vadd.f32 %v1136, 1.0
  %v1138 = vrcp.pop %v1137
  %v1139 = vmul.f32 1.0, %v1138
  %1141 = vrot.lane.b32.xlu0 %v1130, 64
  %v1142 = vpop.permute.xlu0 %1141
  %v1144 = vmul.f32 %v1139, %v1142
  %1146 = vrot.lane.b32.xlu0 %v1144, 64
  %v1147 = vpop.permute.xlu0 %1146
  %v1149 = vadd.f32 %v1058, %v1147
  %v1150 = vtanh.pop %v1149
  %v1151 = vsub.f32 1.0, %v1139
  %1153 = vrot.lane.b32.xlu0 %v1150, 96
  %v1154 = vpop.permute.xlu0 %1153
  %v1156 = vmul.f32 %v1151, %v1154
  %v1157 = vmul.f32 %v1139, 0.0
  %v1158 = vadd.f32 %v1156, %v1157
  %1160 = vrot.lane.b32.xlu0 %v1158, 96
  %v1161 = vpop.permute.xlu0 %1160
  %s1163 = scalar_lea.vmem [#allocation4], 24
  %1164 = vst.msk [vmem:[%s1163] sm:$0xff] %vm522, %v1161
  %v1165 = vld [vmem:[%s733] sm:$0xff]
  %v1166 = vsel %vm522, %v1161, 0
  %1168 = vmatprep.subr.mxu0 0.0
  %1169 = vmatpush1.msra.mxu0 0.0
  %1170 = vmatprep.subr.mxu0 0.0
  %1171 = vmatpush1.msra.mxu0 0.0
  %1172 = vmatprep.subr.mxu0 0.0
  %1173 = vmatpush1.msra.mxu0 0.0
  %1174 = vmatprep.subr.mxu0 0.0
  %1175 = vmatpush1.msra.mxu0 0.0
  %1176 = vmatprep.subr.mxu0 0.0
  %1177 = vmatpush1.msra.mxu0 0.0
  %1178 = vmatprep.subr.mxu0 0.0
  %1179 = vmatpush1.msra.mxu0 0.0
  %1180 = vmatprep.subr.mxu0 0.0
  %1181 = vmatpush1.msra.mxu0 0.0
  %1182 = vmatprep.subr.mxu0 0.0
  %1183 = vmatpush1.msra.mxu0 0.0
  %1184 = vmatprep.subr.mxu0 0.0
  %1185 = vmatpush1.msra.mxu0 0.0
  %1186 = vmatprep.subr.mxu0 0.0
  %1187 = vmatpush1.msra.mxu0 0.0
  %1188 = vmatprep.subr.mxu0 0.0
  %1189 = vmatpush1.msra.mxu0 0.0
  %1190 = vmatprep.subr.mxu0 0.0
  %1191 = vmatpush1.msra.mxu0 0.0
  %1192 = vmatprep.subr.mxu0 0.0
  %1193 = vmatpush1.msra.mxu0 %v1056
  %1194 = vmatprep.subr.mxu0 0.0
  %1195 = vmatpush1.msra.mxu0 %v1055
  %1196 = vmatprep.subr.mxu0 0.0
  %1197 = vmatpush1.msra.mxu0 %v1054
  %1198 = vmatprep.subr.mxu0 0.0
  %1199 = vmatpush1.msra.mxu0 %v1053
  %1200 = vmatprep.subr.mxu0 0.0
  %1201 = vmatpush2.msra.mxu0 0.0
  %1202 = vmatprep.subr.mxu0 0.0
  %1203 = vmatpush2.msra.mxu0 0.0
  %1204 = vmatprep.subr.mxu0 0.0
  %1205 = vmatpush2.msra.mxu0 0.0
  %1206 = vmatprep.subr.mxu0 0.0
  %1207 = vmatpush2.msra.mxu0 0.0
  %1208 = vmatprep.subr.mxu0 0.0
  %1209 = vmatpush2.msra.mxu0 0.0
  %1210 = vmatprep.subr.mxu0 0.0
  %1211 = vmatpush2.msra.mxu0 0.0
  %1212 = vmatprep.subr.mxu0 0.0
  %1213 = vmatpush2.msra.mxu0 0.0
  %1214 = vmatprep.subr.mxu0 0.0
  %1215 = vmatpush2.msra.mxu0 0.0
  %1216 = vmatprep.subr.mxu0 0.0
  %1217 = vmatpush2.msra.mxu0 0.0
  %1218 = vmatprep.subr.mxu0 0.0
  %1219 = vmatpush2.msra.mxu0 0.0
  %1220 = vmatprep.subr.mxu0 0.0
  %1221 = vmatpush2.msra.mxu0 0.0
  %1222 = vmatprep.subr.mxu0 0.0
  %1223 = vmatpush2.msra.mxu0 0.0
  %1224 = vmatprep.subr.mxu0 0.0
  %1225 = vmatpush2.msra.mxu0 0.0
  %1226 = vmatprep.subr.mxu0 0.0
  %1227 = vmatpush2.msra.mxu0 0.0
  %1228 = vmatprep.subr.mxu0 0.0
  %1229 = vmatpush2.msra.mxu0 0.0
  %1230 = vmatprep.subr.mxu0 0.0
  %1231 = vmatpush2.msra.mxu0 0.0
  %1232 = vmatprep.mubr.f32.mxu0 0.0
  %1233 = vmatmul.mubr.f32.gmra.mxu0 %v1166
  %v1234 = vpop.f32.mrf.mxu0
  %v1235 = vadd.f32 %v1062, %v1234
  %v1236 = vpop.f32.mrf.mxu0
  %1237 = vdwg.mxu0
  %v1238 = vadd.f32 %v1165, %v1235
  %v1239 = vxor.u32 %v1238, 2147483648
  %v1240 = vmul.f32 %v1239, 1.442695
  %v1241 = vpow.pop %v1240
  %v1242 = vadd.f32 %v1241, 1.0
  %v1243 = vrcp.pop %v1242
  %v1244 = vmul.f32 1.0, %v1243
  %1246 = vrot.lane.b32.xlu0 %v1235, 64
  %v1247 = vpop.permute.xlu0 %1246
  %v1249 = vmul.f32 %v1244, %v1247
  %1251 = vrot.lane.b32.xlu0 %v1249, 64
  %v1252 = vpop.permute.xlu0 %1251
  %v1254 = vadd.f32 %v1165, %v1252
  %v1255 = vtanh.pop %v1254
  %v1256 = vsub.f32 1.0, %v1244
  %1258 = vrot.lane.b32.xlu0 %v1255, 96
  %v1259 = vpop.permute.xlu0 %1258
  %v1261 = vmul.f32 %v1256, %v1259
  %v1262 = vmul.f32 %v1244, %v1158
  %v1263 = vadd.f32 %v1261, %v1262
  %1265 = vrot.lane.b32.xlu0 %v1263, 96
  %v1266 = vpop.permute.xlu0 %1265
  %s1268 = scalar_lea.vmem [#allocation4], 16
  %1269 = vst.msk [vmem:[%s1268] sm:$0xff] %vm522, %v1266
  %v1270 = vld [vmem:[%s627] sm:$0xff]
  %v1271 = vsel %vm522, %v1266, 0
  %1273 = vmatprep.subr.mxu0 0.0
  %1274 = vmatpush1.msra.mxu0 0.0
  %1275 = vmatprep.subr.mxu0 0.0
  %1276 = vmatpush1.msra.mxu0 0.0
  %1277 = vmatprep.subr.mxu0 0.0
  %1278 = vmatpush1.msra.mxu0 0.0
  %1279 = vmatprep.subr.mxu0 0.0
  %1280 = vmatpush1.msra.mxu0 0.0
  %1281 = vmatprep.subr.mxu0 0.0
  %1282 = vmatpush1.msra.mxu0 0.0
  %1283 = vmatprep.subr.mxu0 0.0
  %1284 = vmatpush1.msra.mxu0 0.0
  %1285 = vmatprep.subr.mxu0 0.0
  %1286 = vmatpush1.msra.mxu0 0.0
  %1287 = vmatprep.subr.mxu0 0.0
  %1288 = vmatpush1.msra.mxu0 0.0
  %1289 = vmatprep.subr.mxu0 0.0
  %1290 = vmatpush1.msra.mxu0 0.0
  %1291 = vmatprep.subr.mxu0 0.0
  %1292 = vmatpush1.msra.mxu0 0.0
  %1293 = vmatprep.subr.mxu0 0.0
  %1294 = vmatpush1.msra.mxu0 0.0
  %1295 = vmatprep.subr.mxu0 0.0
  %1296 = vmatpush1.msra.mxu0 0.0
  %1297 = vmatprep.subr.mxu0 0.0
  %1298 = vmatpush1.msra.mxu0 %v1056
  %1299 = vmatprep.subr.mxu0 0.0
  %1300 = vmatpush1.msra.mxu0 %v1055
  %1301 = vmatprep.subr.mxu0 0.0
  %1302 = vmatpush1.msra.mxu0 %v1054
  %1303 = vmatprep.subr.mxu0 0.0
  %1304 = vmatpush1.msra.mxu0 %v1053
  %1305 = vmatprep.subr.mxu0 0.0
  %1306 = vmatpush2.msra.mxu0 0.0
  %1307 = vmatprep.subr.mxu0 0.0
  %1308 = vmatpush2.msra.mxu0 0.0
  %1309 = vmatprep.subr.mxu0 0.0
  %1310 = vmatpush2.msra.mxu0 0.0
  %1311 = vmatprep.subr.mxu0 0.0
  %1312 = vmatpush2.msra.mxu0 0.0
  %1313 = vmatprep.subr.mxu0 0.0
  %1314 = vmatpush2.msra.mxu0 0.0
  %1315 = vmatprep.subr.mxu0 0.0
  %1316 = vmatpush2.msra.mxu0 0.0
  %1317 = vmatprep.subr.mxu0 0.0
  %1318 = vmatpush2.msra.mxu0 0.0
  %1319 = vmatprep.subr.mxu0 0.0
  %1320 = vmatpush2.msra.mxu0 0.0
  %1321 = vmatprep.subr.mxu0 0.0
  %1322 = vmatpush2.msra.mxu0 0.0
  %1323 = vmatprep.subr.mxu0 0.0
  %1324 = vmatpush2.msra.mxu0 0.0
  %1325 = vmatprep.subr.mxu0 0.0
  %1326 = vmatpush2.msra.mxu0 0.0
  %1327 = vmatprep.subr.mxu0 0.0
  %1328 = vmatpush2.msra.mxu0 0.0
  %1329 = vmatprep.subr.mxu0 0.0
  %1330 = vmatpush2.msra.mxu0 0.0
  %1331 = vmatprep.subr.mxu0 0.0
  %1332 = vmatpush2.msra.mxu0 0.0
  %1333 = vmatprep.subr.mxu0 0.0
  %1334 = vmatpush2.msra.mxu0 0.0
  %1335 = vmatprep.subr.mxu0 0.0
  %1336 = vmatpush2.msra.mxu0 0.0
  %1337 = vmatprep.mubr.f32.mxu0 0.0
  %1338 = vmatmul.mubr.f32.gmra.mxu0 %v1271
  %v1339 = vpop.f32.mrf.mxu0
  %v1340 = vadd.f32 %v1062, %v1339
  %v1341 = vpop.f32.mrf.mxu0
  %1342 = vdwg.mxu0
  %v1343 = vadd.f32 %v1270, %v1340
  %v1344 = vxor.u32 %v1343, 2147483648
  %v1345 = vmul.f32 %v1344, 1.442695
  %v1346 = vpow.pop %v1345
  %v1347 = vadd.f32 %v1346, 1.0
  %v1348 = vrcp.pop %v1347
  %v1349 = vmul.f32 1.0, %v1348
  %1351 = vrot.lane.b32.xlu0 %v1340, 64
  %v1352 = vpop.permute.xlu0 %1351
  %v1354 = vmul.f32 %v1349, %v1352
  %1356 = vrot.lane.b32.xlu0 %v1354, 64
  %v1357 = vpop.permute.xlu0 %1356
  %v1359 = vadd.f32 %v1270, %v1357
  %v1360 = vtanh.pop %v1359
  %v1361 = vsub.f32 1.0, %v1349
  %1363 = vrot.lane.b32.xlu0 %v1360, 96
  %v1364 = vpop.permute.xlu0 %1363
  %v1366 = vmul.f32 %v1361, %v1364
  %v1367 = vmul.f32 %v1349, %v1263
  %v1368 = vadd.f32 %v1366, %v1367
  %1370 = vrot.lane.b32.xlu0 %v1368, 96
  %v1371 = vpop.permute.xlu0 %1370
  %s1373 = scalar_lea.vmem [#allocation4], 8
  %1374 = vst.msk [vmem:[%s1373] sm:$0xff] %vm522, %v1371
  %v1375 = vld [vmem:[#allocation2] sm:$0xff]
  %v1376 = vsel %vm522, %v1371, 0
  %1378 = vmatprep.subr.mxu0 0.0
  %1379 = vmatpush1.msra.mxu0 0.0
  %1380 = vmatprep.subr.mxu0 0.0
  %1381 = vmatpush1.msra.mxu0 0.0
  %1382 = vmatprep.subr.mxu0 0.0
  %1383 = vmatpush1.msra.mxu0 0.0
  %1384 = vmatprep.subr.mxu0 0.0
  %1385 = vmatpush1.msra.mxu0 0.0
  %1386 = vmatprep.subr.mxu0 0.0
  %1387 = vmatpush1.msra.mxu0 0.0
  %1388 = vmatprep.subr.mxu0 0.0
  %1389 = vmatpush1.msra.mxu0 0.0
  %1390 = vmatprep.subr.mxu0 0.0
  %1391 = vmatpush1.msra.mxu0 0.0
  %1392 = vmatprep.subr.mxu0 0.0
  %1393 = vmatpush1.msra.mxu0 0.0
  %1394 = vmatprep.subr.mxu0 0.0
  %1395 = vmatpush1.msra.mxu0 0.0
  %1396 = vmatprep.subr.mxu0 0.0
  %1397 = vmatpush1.msra.mxu0 0.0
  %1398 = vmatprep.subr.mxu0 0.0
  %1399 = vmatpush1.msra.mxu0 0.0
  %1400 = vmatprep.subr.mxu0 0.0
  %1401 = vmatpush1.msra.mxu0 0.0
  %1402 = vmatprep.subr.mxu0 0.0
  %1403 = vmatpush1.msra.mxu0 %v1056
  %1404 = vmatprep.subr.mxu0 0.0
  %1405 = vmatpush1.msra.mxu0 %v1055
  %1406 = vmatprep.subr.mxu0 0.0
  %1407 = vmatpush1.msra.mxu0 %v1054
  %1408 = vmatprep.subr.mxu0 0.0
  %1409 = vmatpush1.msra.mxu0 %v1053
  %1410 = vmatprep.subr.mxu0 0.0
  %1411 = vmatpush2.msra.mxu0 0.0
  %1412 = vmatprep.subr.mxu0 0.0
  %1413 = vmatpush2.msra.mxu0 0.0
  %1414 = vmatprep.subr.mxu0 0.0
  %1415 = vmatpush2.msra.mxu0 0.0
  %1416 = vmatprep.subr.mxu0 0.0
  %1417 = vmatpush2.msra.mxu0 0.0
  %1418 = vmatprep.subr.mxu0 0.0
  %1419 = vmatpush2.msra.mxu0 0.0
  %1420 = vmatprep.subr.mxu0 0.0
  %1421 = vmatpush2.msra.mxu0 0.0
  %1422 = vmatprep.subr.mxu0 0.0
  %1423 = vmatpush2.msra.mxu0 0.0
  %1424 = vmatprep.subr.mxu0 0.0
  %1425 = vmatpush2.msra.mxu0 0.0
  %1426 = vmatprep.subr.mxu0 0.0
  %1427 = vmatpush2.msra.mxu0 0.0
  %1428 = vmatprep.subr.mxu0 0.0
  %1429 = vmatpush2.msra.mxu0 0.0
  %1430 = vmatprep.subr.mxu0 0.0
  %1431 = vmatpush2.msra.mxu0 0.0
  %1432 = vmatprep.subr.mxu0 0.0
  %1433 = vmatpush2.msra.mxu0 0.0
  %1434 = vmatprep.subr.mxu0 0.0
  %1435 = vmatpush2.msra.mxu0 0.0
  %1436 = vmatprep.subr.mxu0 0.0
  %1437 = vmatpush2.msra.mxu0 0.0
  %1438 = vmatprep.subr.mxu0 0.0
  %1439 = vmatpush2.msra.mxu0 0.0
  %1440 = vmatprep.subr.mxu0 0.0
  %1441 = vmatpush2.msra.mxu0 0.0
  %1442 = vmatprep.mubr.f32.mxu0 0.0
  %1443 = vmatmul.mubr.f32.gmra.mxu0 %v1376
  %v1444 = vpop.f32.mrf.mxu0
  %v1445 = vadd.f32 %v1062, %v1444
  %v1446 = vpop.f32.mrf.mxu0
  %1447 = vdwg.mxu0
  %v1448 = vadd.f32 %v1375, %v1445
  %v1449 = vxor.u32 %v1448, 2147483648
  %v1450 = vmul.f32 %v1449, 1.442695
  %v1451 = vpow.pop %v1450
  %v1452 = vadd.f32 %v1451, 1.0
  %v1453 = vrcp.pop %v1452
  %v1454 = vmul.f32 1.0, %v1453
  %1456 = vrot.lane.b32.xlu0 %v1445, 64
  %v1457 = vpop.permute.xlu0 %1456
  %v1459 = vmul.f32 %v1454, %v1457
  %1461 = vrot.lane.b32.xlu0 %v1459, 64
  %v1462 = vpop.permute.xlu0 %1461
  %v1464 = vadd.f32 %v1375, %v1462
  %v1465 = vtanh.pop %v1464
  %v1466 = vsub.f32 1.0, %v1454
  %1468 = vrot.lane.b32.xlu0 %v1465, 96
  %v1469 = vpop.permute.xlu0 %1468
  %v1471 = vmul.f32 %v1466, %v1469
  %v1472 = vmul.f32 %v1454, %v1368
  %v1473 = vadd.f32 %v1471, %v1472
  %1475 = vrot.lane.b32.xlu0 %v1473, 96
  %v1476 = vpop.permute.xlu0 %1475
  %1478 = vst.msk [vmem:[#allocation4] sm:$0xff] %vm522, %v1476
  %v1479 = vld [vmem:[#allocation3] sm:$0xff]
  %v1480 = vld [vmem:[#allocation3 + $0x8] sm:$0xff]
  %v1481 = vld [vmem:[#allocation3 + $0x10] sm:$0xff]
  %v1482 = vld [vmem:[#allocation3 + $0x18] sm:$0xff]
  %v1483 = vld [vmem:[#allocation4] sm:$0xff]
  %v1484 = vld [vmem:[#allocation4 + $0x8] sm:$0xff]
  %v1485 = vld [vmem:[#allocation4 + $0x10] sm:$0xff]
  %v1486 = vld [vmem:[#allocation4 + $0x18] sm:$0xff]
  %s1487 = scalar_lea.vmem %s4, 4
  %v1488 = vld [vmem:[%s1487] sm:$0x1]
  %s1489 = scalar_lea.vmem %s3, 192
  %v1490 = vld [vmem:[%s1489] sm:$0xff]
  %v1491 = vld [vmem:[%s1489 + $0x8] sm:$0xff]
  %v1492 = vld [vmem:[%s1489 + $0x10] sm:$0xff]
  %v1493 = vld [vmem:[%s1489 + $0x18] sm:$0xff]
  %v1495 = vsel %vm522, %v1479, 0
  %v1498 = vsel %vm522, %v1480, 0
  %v1501 = vsel %vm522, %v1481, 0
  %v1504 = vsel %vm522, %v1482, 0
  %1506 = vmatprep.subr.mxu0 0.0
  %1507 = vmatpush1.msra.mxu0 0.0
  %1508 = vmatprep.subr.mxu0 0.0
  %1509 = vmatpush1.msra.mxu0 0.0
  %1510 = vmatprep.subr.mxu0 0.0
  %1511 = vmatpush1.msra.mxu0 0.0
  %1512 = vmatprep.subr.mxu0 0.0
  %1513 = vmatpush1.msra.mxu0 0.0
  %1514 = vmatprep.subr.mxu0 0.0
  %1515 = vmatpush1.msra.mxu0 0.0
  %1516 = vmatprep.subr.mxu0 0.0
  %1517 = vmatpush1.msra.mxu0 0.0
  %1518 = vmatprep.subr.mxu0 0.0
  %1519 = vmatpush1.msra.mxu0 0.0
  %1520 = vmatprep.subr.mxu0 0.0
  %1521 = vmatpush1.msra.mxu0 0.0
  %1522 = vmatprep.subr.mxu0 0.0
  %1523 = vmatpush1.msra.mxu0 0.0
  %1524 = vmatprep.subr.mxu0 0.0
  %1525 = vmatpush1.msra.mxu0 0.0
  %1526 = vmatprep.subr.mxu0 0.0
  %1527 = vmatpush1.msra.mxu0 0.0
  %1528 = vmatprep.subr.mxu0 0.0
  %1529 = vmatpush1.msra.mxu0 0.0
  %1530 = vmatprep.subr.mxu0 0.0
  %1531 = vmatpush1.msra.mxu0 %v1493
  %1532 = vmatprep.subr.mxu0 0.0
  %1533 = vmatpush1.msra.mxu0 %v1492
  %1534 = vmatprep.subr.mxu0 0.0
  %1535 = vmatpush1.msra.mxu0 %v1491
  %1536 = vmatprep.subr.mxu0 0.0
  %1537 = vmatpush1.msra.mxu0 %v1490
  %1538 = vmatprep.subr.mxu0 0.0
  %1539 = vmatpush2.msra.mxu0 0.0
  %1540 = vmatprep.subr.mxu0 0.0
  %1541 = vmatpush2.msra.mxu0 0.0
  %1542 = vmatprep.subr.mxu0 0.0
  %1543 = vmatpush2.msra.mxu0 0.0
  %1544 = vmatprep.subr.mxu0 0.0
  %1545 = vmatpush2.msra.mxu0 0.0
  %1546 = vmatprep.subr.mxu0 0.0
  %1547 = vmatpush2.msra.mxu0 0.0
  %1548 = vmatprep.subr.mxu0 0.0
  %1549 = vmatpush2.msra.mxu0 0.0
  %1550 = vmatprep.subr.mxu0 0.0
  %1551 = vmatpush2.msra.mxu0 0.0
  %1552 = vmatprep.subr.mxu0 0.0
  %1553 = vmatpush2.msra.mxu0 0.0
  %1554 = vmatprep.subr.mxu0 0.0
  %1555 = vmatpush2.msra.mxu0 0.0
  %1556 = vmatprep.subr.mxu0 0.0
  %1557 = vmatpush2.msra.mxu0 0.0
  %1558 = vmatprep.subr.mxu0 0.0
  %1559 = vmatpush2.msra.mxu0 0.0
  %1560 = vmatprep.subr.mxu0 0.0
  %1561 = vmatpush2.msra.mxu0 0.0
  %1562 = vmatprep.subr.mxu0 0.0
  %1563 = vmatpush2.msra.mxu0 0.0
  %1564 = vmatprep.subr.mxu0 0.0
  %1565 = vmatpush2.msra.mxu0 0.0
  %1566 = vmatprep.subr.mxu0 0.0
  %1567 = vmatpush2.msra.mxu0 0.0
  %1568 = vmatprep.subr.mxu0 0.0
  %1569 = vmatpush2.msra.mxu0 0.0
  %1570 = vmatprep.mubr.f32.mxu0 0.0
  %1571 = vmatmul.mubr.f32.gmra.mxu0 %v1495
  %v1572 = vpop.f32.mrf.mxu0
  %v1573 = vadd.f32 0.0, %v1572
  %v1574 = vpop.f32.mrf.mxu0
  %1575 = vmatprep.mubr.f32.mxu0 0.0
  %1576 = vmatmul.mubr.f32.gmra.mxu0 %v1498
  %v1577 = vpop.f32.mrf.mxu0
  %v1578 = vadd.f32 0.0, %v1577
  %v1579 = vpop.f32.mrf.mxu0
  %1580 = vmatprep.mubr.f32.mxu0 0.0
  %1581 = vmatmul.mubr.f32.gmra.mxu0 %v1501
  %v1582 = vpop.f32.mrf.mxu0
  %v1583 = vadd.f32 0.0, %v1582
  %v1584 = vpop.f32.mrf.mxu0
  %1585 = vmatprep.mubr.f32.mxu0 0.0
  %1586 = vmatmul.mubr.f32.gmra.mxu0 %v1504
  %v1587 = vpop.f32.mrf.mxu0
  %v1588 = vadd.f32 0.0, %v1587
  %v1589 = vpop.f32.mrf.mxu0
  %1590 = vdwg.mxu0
  %v1591 = vlaneseq
  %v1592 = vshrl.u32 %v1591, 7
  %v1593 = vsub.s32 0, %v1592
  %v1594 = vrot.slane %v1488, %v1593
  %v1595 = vadd.f32 %v1594, %v1573
  %v1596 = vadd.f32 %v1594, %v1578
  %v1597 = vadd.f32 %v1594, %v1583
  %v1598 = vadd.f32 %v1594, %v1588
  %v1599 = vld [vmem:[%s1489 + $0x20] sm:$0xff]
  %v1600 = vld [vmem:[%s1489 + $0x28] sm:$0xff]
  %v1601 = vld [vmem:[%s1489 + $0x30] sm:$0xff]
  %v1602 = vld [vmem:[%s1489 + $0x38] sm:$0xff]
  %v1604 = vsel %vm522, %v1483, 0
  %v1607 = vsel %vm522, %v1484, 0
  %v1610 = vsel %vm522, %v1485, 0
  %v1613 = vsel %vm522, %v1486, 0
  %1615 = vmatprep.subr.mxu0 0.0
  %1616 = vmatpush1.msra.mxu0 0.0
  %1617 = vmatprep.subr.mxu0 0.0
  %1618 = vmatpush1.msra.mxu0 0.0
  %1619 = vmatprep.subr.mxu0 0.0
  %1620 = vmatpush1.msra.mxu0 0.0
  %1621 = vmatprep.subr.mxu0 0.0
  %1622 = vmatpush1.msra.mxu0 0.0
  %1623 = vmatprep.subr.mxu0 0.0
  %1624 = vmatpush1.msra.mxu0 0.0
  %1625 = vmatprep.subr.mxu0 0.0
  %1626 = vmatpush1.msra.mxu0 0.0
  %1627 = vmatprep.subr.mxu0 0.0
  %1628 = vmatpush1.msra.mxu0 0.0
  %1629 = vmatprep.subr.mxu0 0.0
  %1630 = vmatpush1.msra.mxu0 0.0
  %1631 = vmatprep.subr.mxu0 0.0
  %1632 = vmatpush1.msra.mxu0 0.0
  %1633 = vmatprep.subr.mxu0 0.0
  %1634 = vmatpush1.msra.mxu0 0.0
  %1635 = vmatprep.subr.mxu0 0.0
  %1636 = vmatpush1.msra.mxu0 0.0
  %1637 = vmatprep.subr.mxu0 0.0
  %1638 = vmatpush1.msra.mxu0 0.0
  %1639 = vmatprep.subr.mxu0 0.0
  %1640 = vmatpush1.msra.mxu0 %v1602
  %1641 = vmatprep.subr.mxu0 0.0
  %1642 = vmatpush1.msra.mxu0 %v1601
  %1643 = vmatprep.subr.mxu0 0.0
  %1644 = vmatpush1.msra.mxu0 %v1600
  %1645 = vmatprep.subr.mxu0 0.0
  %1646 = vmatpush1.msra.mxu0 %v1599
  %1647 = vmatprep.subr.mxu0 0.0
  %1648 = vmatpush2.msra.mxu0 0.0
  %1649 = vmatprep.subr.mxu0 0.0
  %1650 = vmatpush2.msra.mxu0 0.0
  %1651 = vmatprep.subr.mxu0 0.0
  %1652 = vmatpush2.msra.mxu0 0.0
  %1653 = vmatprep.subr.mxu0 0.0
  %1654 = vmatpush2.msra.mxu0 0.0
  %1655 = vmatprep.subr.mxu0 0.0
  %1656 = vmatpush2.msra.mxu0 0.0
  %1657 = vmatprep.subr.mxu0 0.0
  %1658 = vmatpush2.msra.mxu0 0.0
  %1659 = vmatprep.subr.mxu0 0.0
  %1660 = vmatpush2.msra.mxu0 0.0
  %1661 = vmatprep.subr.mxu0 0.0
  %1662 = vmatpush2.msra.mxu0 0.0
  %1663 = vmatprep.subr.mxu0 0.0
  %1664 = vmatpush2.msra.mxu0 0.0
  %1665 = vmatprep.subr.mxu0 0.0
  %1666 = vmatpush2.msra.mxu0 0.0
  %1667 = vmatprep.subr.mxu0 0.0
  %1668 = vmatpush2.msra.mxu0 0.0
  %1669 = vmatprep.subr.mxu0 0.0
  %1670 = vmatpush2.msra.mxu0 0.0
  %1671 = vmatprep.subr.mxu0 0.0
  %1672 = vmatpush2.msra.mxu0 0.0
  %1673 = vmatprep.subr.mxu0 0.0
  %1674 = vmatpush2.msra.mxu0 0.0
  %1675 = vmatprep.subr.mxu0 0.0
  %1676 = vmatpush2.msra.mxu0 0.0
  %1677 = vmatprep.subr.mxu0 0.0
  %1678 = vmatpush2.msra.mxu0 0.0
  %1679 = vmatprep.mubr.f32.mxu0 0.0
  %1680 = vmatmul.mubr.f32.gmra.mxu0 %v1604
  %v1681 = vpop.f32.mrf.mxu0
  %v1682 = vadd.f32 0.0, %v1681
  %v1683 = vpop.f32.mrf.mxu0
  %1684 = vmatprep.mubr.f32.mxu0 0.0
  %1685 = vmatmul.mubr.f32.gmra.mxu0 %v1607
  %v1686 = vpop.f32.mrf.mxu0
  %v1687 = vadd.f32 0.0, %v1686
  %v1688 = vpop.f32.mrf.mxu0
  %1689 = vmatprep.mubr.f32.mxu0 0.0
  %1690 = vmatmul.mubr.f32.gmra.mxu0 %v1610
  %v1691 = vpop.f32.mrf.mxu0
  %v1692 = vadd.f32 0.0, %v1691
  %v1693 = vpop.f32.mrf.mxu0
  %1694 = vmatprep.mubr.f32.mxu0 0.0
  %1695 = vmatmul.mubr.f32.gmra.mxu0 %v1613
  %v1696 = vpop.f32.mrf.mxu0
  %v1697 = vadd.f32 0.0, %v1696
  %v1698 = vpop.f32.mrf.mxu0
  %1699 = vdwg.mxu0
  %v1700 = vadd.f32 %v1595, %v1682
  %v1701 = vadd.f32 %v1596, %v1687
  %v1702 = vadd.f32 %v1597, %v1692
  %v1703 = vadd.f32 %v1598, %v1697
  %1704 = vst.msk [vmem:[#allocation2] sm:$0xff] %vm507, %v1700
  %1705 = vst.msk [vmem:[#allocation2 + $0x8] sm:$0xff] %vm507, %v1701
  %1706 = vst.msk [vmem:[#allocation2 + $0x10] sm:$0xff] %vm507, %v1702
  %1707 = vst.msk [vmem:[#allocation2 + $0x18] sm:$0xff] %vm507, %v1703
  %v1708 = vld [vmem:[%s1489 + $0x40] sm:$0xff]
  %v1709 = vld [vmem:[%s1489 + $0x48] sm:$0xff]
  %v1710 = vld [vmem:[%s1489 + $0x50] sm:$0xff]
  %v1711 = vld [vmem:[%s1489 + $0x58] sm:$0xff]
  %v1712 = vld [vmem:[%s1487 + $0x1] sm:$0x1]
  %v1713 = vld [vmem:[#allocation2] sm:$0xff]
  %v1714 = vlaneseq
  %v1715 = vshrl.u32 %v1714, 7
  %v1716 = vsub.s32 0, %v1715
  %v1717 = vrot.slane %v1712, %v1716
  %1718 = vmatprep.subr.mxu0 0.0
  %1719 = vmatpush1.msra.mxu0 0.0
  %1720 = vmatprep.subr.mxu0 0.0
  %1721 = vmatpush1.msra.mxu0 0.0
  %1722 = vmatprep.subr.mxu0 0.0
  %1723 = vmatpush1.msra.mxu0 0.0
  %1724 = vmatprep.subr.mxu0 0.0
  %1725 = vmatpush1.msra.mxu0 0.0
  %1726 = vmatprep.subr.mxu0 0.0
  %1727 = vmatpush1.msra.mxu0 0.0
  %1728 = vmatprep.subr.mxu0 0.0
  %1729 = vmatpush1.msra.mxu0 0.0
  %1730 = vmatprep.subr.mxu0 0.0
  %1731 = vmatpush1.msra.mxu0 0.0
  %1732 = vmatprep.subr.mxu0 0.0
  %1733 = vmatpush1.msra.mxu0 0.0
  %1734 = vmatprep.subr.mxu0 0.0
  %1735 = vmatpush1.msra.mxu0 0.0
  %1736 = vmatprep.subr.mxu0 0.0
  %1737 = vmatpush1.msra.mxu0 0.0
  %1738 = vmatprep.subr.mxu0 0.0
  %1739 = vmatpush1.msra.mxu0 0.0
  %1740 = vmatprep.subr.mxu0 0.0
  %1741 = vmatpush1.msra.mxu0 0.0
  %1742 = vmatprep.subr.mxu0 0.0
  %1743 = vmatpush1.msra.mxu0 %v1711
  %1744 = vmatprep.subr.mxu0 0.0
  %1745 = vmatpush1.msra.mxu0 %v1710
  %1746 = vmatprep.subr.mxu0 0.0
  %1747 = vmatpush1.msra.mxu0 %v1709
  %1748 = vmatprep.subr.mxu0 0.0
  %1749 = vmatpush1.msra.mxu0 %v1708
  %1750 = vmatprep.subr.mxu0 0.0
  %1751 = vmatpush2.msra.mxu0 0.0
  %1752 = vmatprep.subr.mxu0 0.0
  %1753 = vmatpush2.msra.mxu0 0.0
  %1754 = vmatprep.subr.mxu0 0.0
  %1755 = vmatpush2.msra.mxu0 0.0
  %1756 = vmatprep.subr.mxu0 0.0
  %1757 = vmatpush2.msra.mxu0 0.0
  %1758 = vmatprep.subr.mxu0 0.0
  %1759 = vmatpush2.msra.mxu0 0.0
  %1760 = vmatprep.subr.mxu0 0.0
  %1761 = vmatpush2.msra.mxu0 0.0
  %1762 = vmatprep.subr.mxu0 0.0
  %1763 = vmatpush2.msra.mxu0 0.0
  %1764 = vmatprep.subr.mxu0 0.0
  %1765 = vmatpush2.msra.mxu0 0.0
  %1766 = vmatprep.subr.mxu0 0.0
  %1767 = vmatpush2.msra.mxu0 0.0
  %1768 = vmatprep.subr.mxu0 0.0
  %1769 = vmatpush2.msra.mxu0 0.0
  %1770 = vmatprep.subr.mxu0 0.0
  %1771 = vmatpush2.msra.mxu0 0.0
  %1772 = vmatprep.subr.mxu0 0.0
  %1773 = vmatpush2.msra.mxu0 0.0
  %1774 = vmatprep.subr.mxu0 0.0
  %1775 = vmatpush2.msra.mxu0 0.0
  %1776 = vmatprep.subr.mxu0 0.0
  %1777 = vmatpush2.msra.mxu0 0.0
  %1778 = vmatprep.subr.mxu0 0.0
  %1779 = vmatpush2.msra.mxu0 0.0
  %1780 = vmatprep.subr.mxu0 0.0
  %1781 = vmatpush2.msra.mxu0 0.0
  %1782 = vmatprep.mubr.f32.mxu0 0.0
  %1783 = vmatmul.mubr.f32.gmra.mxu0 %v524
  %v1784 = vpop.f32.mrf.mxu0
  %v1785 = vadd.f32 %v1717, %v1784
  %v1786 = vpop.f32.mrf.mxu0
  %1787 = vdwg.mxu0
  %v1788 = vadd.f32 %v1713, %v1785
  %v1789 = vxor.u32 %v1788, 2147483648
  %v1790 = vmul.f32 %v1789, 1.442695
  %v1791 = vpow.pop %v1790
  %v1792 = vadd.f32 %v1791, 1.0
  %v1793 = vrcp.pop %v1792
  %v1794 = vmul.f32 1.0, %v1793
  %1796 = vrot.lane.b32.xlu0 %v1785, 64
  %v1797 = vpop.permute.xlu0 %1796
  %v1799 = vmul.f32 %v1794, %v1797
  %1801 = vrot.lane.b32.xlu0 %v1799, 64
  %v1802 = vpop.permute.xlu0 %1801
  %v1804 = vadd.f32 %v1713, %v1802
  %v1805 = vtanh.pop %v1804
  %v1806 = vsub.f32 1.0, %v1794
  %1808 = vrot.lane.b32.xlu0 %v1805, 96
  %v1809 = vpop.permute.xlu0 %1808
  %v1811 = vmul.f32 %v1806, %v1809
  %v1812 = vmul.f32 %v1794, 0.0
  %v1813 = vadd.f32 %v1811, %v1812
  %1815 = vrot.lane.b32.xlu0 %v1813, 96
  %v1816 = vpop.permute.xlu0 %1815
  %1818 = vst.msk [vmem:[#allocation3] sm:$0xff] %vm522, %v1816
  %v1819 = vld [vmem:[%s627] sm:$0xff]
  %v1820 = vsel %vm522, %v1816, 0
  %1822 = vmatprep.subr.mxu0 0.0
  %1823 = vmatpush1.msra.mxu0 0.0
  %1824 = vmatprep.subr.mxu0 0.0
  %1825 = vmatpush1.msra.mxu0 0.0
  %1826 = vmatprep.subr.mxu0 0.0
  %1827 = vmatpush1.msra.mxu0 0.0
  %1828 = vmatprep.subr.mxu0 0.0
  %1829 = vmatpush1.msra.mxu0 0.0
  %1830 = vmatprep.subr.mxu0 0.0
  %1831 = vmatpush1.msra.mxu0 0.0
  %1832 = vmatprep.subr.mxu0 0.0
  %1833 = vmatpush1.msra.mxu0 0.0
  %1834 = vmatprep.subr.mxu0 0.0
  %1835 = vmatpush1.msra.mxu0 0.0
  %1836 = vmatprep.subr.mxu0 0.0
  %1837 = vmatpush1.msra.mxu0 0.0
  %1838 = vmatprep.subr.mxu0 0.0
  %1839 = vmatpush1.msra.mxu0 0.0
  %1840 = vmatprep.subr.mxu0 0.0
  %1841 = vmatpush1.msra.mxu0 0.0
  %1842 = vmatprep.subr.mxu0 0.0
  %1843 = vmatpush1.msra.mxu0 0.0
  %1844 = vmatprep.subr.mxu0 0.0
  %1845 = vmatpush1.msra.mxu0 0.0
  %1846 = vmatprep.subr.mxu0 0.0
  %1847 = vmatpush1.msra.mxu0 %v1711
  %1848 = vmatprep.subr.mxu0 0.0
  %1849 = vmatpush1.msra.mxu0 %v1710
  %1850 = vmatprep.subr.mxu0 0.0
  %1851 = vmatpush1.msra.mxu0 %v1709
  %1852 = vmatprep.subr.mxu0 0.0
  %1853 = vmatpush1.msra.mxu0 %v1708
  %1854 = vmatprep.subr.mxu0 0.0
  %1855 = vmatpush2.msra.mxu0 0.0
  %1856 = vmatprep.subr.mxu0 0.0
  %1857 = vmatpush2.msra.mxu0 0.0
  %1858 = vmatprep.subr.mxu0 0.0
  %1859 = vmatpush2.msra.mxu0 0.0
  %1860 = vmatprep.subr.mxu0 0.0
  %1861 = vmatpush2.msra.mxu0 0.0
  %1862 = vmatprep.subr.mxu0 0.0
  %1863 = vmatpush2.msra.mxu0 0.0
  %1864 = vmatprep.subr.mxu0 0.0
  %1865 = vmatpush2.msra.mxu0 0.0
  %1866 = vmatprep.subr.mxu0 0.0
  %1867 = vmatpush2.msra.mxu0 0.0
  %1868 = vmatprep.subr.mxu0 0.0
  %1869 = vmatpush2.msra.mxu0 0.0
  %1870 = vmatprep.subr.mxu0 0.0
  %1871 = vmatpush2.msra.mxu0 0.0
  %1872 = vmatprep.subr.mxu0 0.0
  %1873 = vmatpush2.msra.mxu0 0.0
  %1874 = vmatprep.subr.mxu0 0.0
  %1875 = vmatpush2.msra.mxu0 0.0
  %1876 = vmatprep.subr.mxu0 0.0
  %1877 = vmatpush2.msra.mxu0 0.0
  %1878 = vmatprep.subr.mxu0 0.0
  %1879 = vmatpush2.msra.mxu0 0.0
  %1880 = vmatprep.subr.mxu0 0.0
  %1881 = vmatpush2.msra.mxu0 0.0
  %1882 = vmatprep.subr.mxu0 0.0
  %1883 = vmatpush2.msra.mxu0 0.0
  %1884 = vmatprep.subr.mxu0 0.0
  %1885 = vmatpush2.msra.mxu0 0.0
  %1886 = vmatprep.mubr.f32.mxu0 0.0
  %1887 = vmatmul.mubr.f32.gmra.mxu0 %v1820
  %v1888 = vpop.f32.mrf.mxu0
  %v1889 = vadd.f32 %v1717, %v1888
  %v1890 = vpop.f32.mrf.mxu0
  %1891 = vdwg.mxu0
  %v1892 = vadd.f32 %v1819, %v1889
  %v1893 = vxor.u32 %v1892, 2147483648
  %v1894 = vmul.f32 %v1893, 1.442695
  %v1895 = vpow.pop %v1894
  %v1896 = vadd.f32 %v1895, 1.0
  %v1897 = vrcp.pop %v1896
  %v1898 = vmul.f32 1.0, %v1897
  %1900 = vrot.lane.b32.xlu0 %v1889, 64
  %v1901 = vpop.permute.xlu0 %1900
  %v1903 = vmul.f32 %v1898, %v1901
  %1905 = vrot.lane.b32.xlu0 %v1903, 64
  %v1906 = vpop.permute.xlu0 %1905
  %v1908 = vadd.f32 %v1819, %v1906
  %v1909 = vtanh.pop %v1908
  %v1910 = vsub.f32 1.0, %v1898
  %1912 = vrot.lane.b32.xlu0 %v1909, 96
  %v1913 = vpop.permute.xlu0 %1912
  %v1915 = vmul.f32 %v1910, %v1913
  %v1916 = vmul.f32 %v1898, %v1813
  %v1917 = vadd.f32 %v1915, %v1916
  %1919 = vrot.lane.b32.xlu0 %v1917, 96
  %v1920 = vpop.permute.xlu0 %1919
  %1922 = vst.msk [vmem:[%s731] sm:$0xff] %vm522, %v1920
  %v1923 = vld [vmem:[%s733] sm:$0xff]
  %v1924 = vsel %vm522, %v1920, 0
  %1926 = vmatprep.subr.mxu0 0.0
  %1927 = vmatpush1.msra.mxu0 0.0
  %1928 = vmatprep.subr.mxu0 0.0
  %1929 = vmatpush1.msra.mxu0 0.0
  %1930 = vmatprep.subr.mxu0 0.0
  %1931 = vmatpush1.msra.mxu0 0.0
  %1932 = vmatprep.subr.mxu0 0.0
  %1933 = vmatpush1.msra.mxu0 0.0
  %1934 = vmatprep.subr.mxu0 0.0
  %1935 = vmatpush1.msra.mxu0 0.0
  %1936 = vmatprep.subr.mxu0 0.0
  %1937 = vmatpush1.msra.mxu0 0.0
  %1938 = vmatprep.subr.mxu0 0.0
  %1939 = vmatpush1.msra.mxu0 0.0
  %1940 = vmatprep.subr.mxu0 0.0
  %1941 = vmatpush1.msra.mxu0 0.0
  %1942 = vmatprep.subr.mxu0 0.0
  %1943 = vmatpush1.msra.mxu0 0.0
  %1944 = vmatprep.subr.mxu0 0.0
  %1945 = vmatpush1.msra.mxu0 0.0
  %1946 = vmatprep.subr.mxu0 0.0
  %1947 = vmatpush1.msra.mxu0 0.0
  %1948 = vmatprep.subr.mxu0 0.0
  %1949 = vmatpush1.msra.mxu0 0.0
  %1950 = vmatprep.subr.mxu0 0.0
  %1951 = vmatpush1.msra.mxu0 %v1711
  %1952 = vmatprep.subr.mxu0 0.0
  %1953 = vmatpush1.msra.mxu0 %v1710
  %1954 = vmatprep.subr.mxu0 0.0
  %1955 = vmatpush1.msra.mxu0 %v1709
  %1956 = vmatprep.subr.mxu0 0.0
  %1957 = vmatpush1.msra.mxu0 %v1708
  %1958 = vmatprep.subr.mxu0 0.0
  %1959 = vmatpush2.msra.mxu0 0.0
  %1960 = vmatprep.subr.mxu0 0.0
  %1961 = vmatpush2.msra.mxu0 0.0
  %1962 = vmatprep.subr.mxu0 0.0
  %1963 = vmatpush2.msra.mxu0 0.0
  %1964 = vmatprep.subr.mxu0 0.0
  %1965 = vmatpush2.msra.mxu0 0.0
  %1966 = vmatprep.subr.mxu0 0.0
  %1967 = vmatpush2.msra.mxu0 0.0
  %1968 = vmatprep.subr.mxu0 0.0
  %1969 = vmatpush2.msra.mxu0 0.0
  %1970 = vmatprep.subr.mxu0 0.0
  %1971 = vmatpush2.msra.mxu0 0.0
  %1972 = vmatprep.subr.mxu0 0.0
  %1973 = vmatpush2.msra.mxu0 0.0
  %1974 = vmatprep.subr.mxu0 0.0
  %1975 = vmatpush2.msra.mxu0 0.0
  %1976 = vmatprep.subr.mxu0 0.0
  %1977 = vmatpush2.msra.mxu0 0.0
  %1978 = vmatprep.subr.mxu0 0.0
  %1979 = vmatpush2.msra.mxu0 0.0
  %1980 = vmatprep.subr.mxu0 0.0
  %1981 = vmatpush2.msra.mxu0 0.0
  %1982 = vmatprep.subr.mxu0 0.0
  %1983 = vmatpush2.msra.mxu0 0.0
  %1984 = vmatprep.subr.mxu0 0.0
  %1985 = vmatpush2.msra.mxu0 0.0
  %1986 = vmatprep.subr.mxu0 0.0
  %1987 = vmatpush2.msra.mxu0 0.0
  %1988 = vmatprep.subr.mxu0 0.0
  %1989 = vmatpush2.msra.mxu0 0.0
  %1990 = vmatprep.mubr.f32.mxu0 0.0
  %1991 = vmatmul.mubr.f32.gmra.mxu0 %v1924
  %v1992 = vpop.f32.mrf.mxu0
  %v1993 = vadd.f32 %v1717, %v1992
  %v1994 = vpop.f32.mrf.mxu0
  %1995 = vdwg.mxu0
  %v1996 = vadd.f32 %v1923, %v1993
  %v1997 = vxor.u32 %v1996, 2147483648
  %v1998 = vmul.f32 %v1997, 1.442695
  %v1999 = vpow.pop %v1998
  %v2000 = vadd.f32 %v1999, 1.0
  %v2001 = vrcp.pop %v2000
  %v2002 = vmul.f32 1.0, %v2001
  %2004 = vrot.lane.b32.xlu0 %v1993, 64
  %v2005 = vpop.permute.xlu0 %2004
  %v2007 = vmul.f32 %v2002, %v2005
  %2009 = vrot.lane.b32.xlu0 %v2007, 64
  %v2010 = vpop.permute.xlu0 %2009
  %v2012 = vadd.f32 %v1923, %v2010
  %v2013 = vtanh.pop %v2012
  %v2014 = vsub.f32 1.0, %v2002
  %2016 = vrot.lane.b32.xlu0 %v2013, 96
  %v2017 = vpop.permute.xlu0 %2016
  %v2019 = vmul.f32 %v2014, %v2017
  %v2020 = vmul.f32 %v2002, %v1917
  %v2021 = vadd.f32 %v2019, %v2020
  %2023 = vrot.lane.b32.xlu0 %v2021, 96
  %v2024 = vpop.permute.xlu0 %2023
  %2026 = vst.msk [vmem:[%s837] sm:$0xff] %vm522, %v2024
  %v2027 = vld [vmem:[%s839] sm:$0xff]
  %v2028 = vsel %vm522, %v2024, 0
  %2030 = vmatprep.subr.mxu0 0.0
  %2031 = vmatpush1.msra.mxu0 0.0
  %2032 = vmatprep.subr.mxu0 0.0
  %2033 = vmatpush1.msra.mxu0 0.0
  %2034 = vmatprep.subr.mxu0 0.0
  %2035 = vmatpush1.msra.mxu0 0.0
  %2036 = vmatprep.subr.mxu0 0.0
  %2037 = vmatpush1.msra.mxu0 0.0
  %2038 = vmatprep.subr.mxu0 0.0
  %2039 = vmatpush1.msra.mxu0 0.0
  %2040 = vmatprep.subr.mxu0 0.0
  %2041 = vmatpush1.msra.mxu0 0.0
  %2042 = vmatprep.subr.mxu0 0.0
  %2043 = vmatpush1.msra.mxu0 0.0
  %2044 = vmatprep.subr.mxu0 0.0
  %2045 = vmatpush1.msra.mxu0 0.0
  %2046 = vmatprep.subr.mxu0 0.0
  %2047 = vmatpush1.msra.mxu0 0.0
  %2048 = vmatprep.subr.mxu0 0.0
  %2049 = vmatpush1.msra.mxu0 0.0
  %2050 = vmatprep.subr.mxu0 0.0
  %2051 = vmatpush1.msra.mxu0 0.0
  %2052 = vmatprep.subr.mxu0 0.0
  %2053 = vmatpush1.msra.mxu0 0.0
  %2054 = vmatprep.subr.mxu0 0.0
  %2055 = vmatpush1.msra.mxu0 %v1711
  %2056 = vmatprep.subr.mxu0 0.0
  %2057 = vmatpush1.msra.mxu0 %v1710
  %2058 = vmatprep.subr.mxu0 0.0
  %2059 = vmatpush1.msra.mxu0 %v1709
  %2060 = vmatprep.subr.mxu0 0.0
  %2061 = vmatpush1.msra.mxu0 %v1708
  %2062 = vmatprep.subr.mxu0 0.0
  %2063 = vmatpush2.msra.mxu0 0.0
  %2064 = vmatprep.subr.mxu0 0.0
  %2065 = vmatpush2.msra.mxu0 0.0
  %2066 = vmatprep.subr.mxu0 0.0
  %2067 = vmatpush2.msra.mxu0 0.0
  %2068 = vmatprep.subr.mxu0 0.0
  %2069 = vmatpush2.msra.mxu0 0.0
  %2070 = vmatprep.subr.mxu0 0.0
  %2071 = vmatpush2.msra.mxu0 0.0
  %2072 = vmatprep.subr.mxu0 0.0
  %2073 = vmatpush2.msra.mxu0 0.0
  %2074 = vmatprep.subr.mxu0 0.0
  %2075 = vmatpush2.msra.mxu0 0.0
  %2076 = vmatprep.subr.mxu0 0.0
  %2077 = vmatpush2.msra.mxu0 0.0
  %2078 = vmatprep.subr.mxu0 0.0
  %2079 = vmatpush2.msra.mxu0 0.0
  %2080 = vmatprep.subr.mxu0 0.0
  %2081 = vmatpush2.msra.mxu0 0.0
  %2082 = vmatprep.subr.mxu0 0.0
  %2083 = vmatpush2.msra.mxu0 0.0
  %2084 = vmatprep.subr.mxu0 0.0
  %2085 = vmatpush2.msra.mxu0 0.0
  %2086 = vmatprep.subr.mxu0 0.0
  %2087 = vmatpush2.msra.mxu0 0.0
  %2088 = vmatprep.subr.mxu0 0.0
  %2089 = vmatpush2.msra.mxu0 0.0
  %2090 = vmatprep.subr.mxu0 0.0
  %2091 = vmatpush2.msra.mxu0 0.0
  %2092 = vmatprep.subr.mxu0 0.0
  %2093 = vmatpush2.msra.mxu0 0.0
  %2094 = vmatprep.mubr.f32.mxu0 0.0
  %2095 = vmatmul.mubr.f32.gmra.mxu0 %v2028
  %v2096 = vpop.f32.mrf.mxu0
  %v2097 = vadd.f32 %v1717, %v2096
  %v2098 = vpop.f32.mrf.mxu0
  %2099 = vdwg.mxu0
  %v2100 = vadd.f32 %v2027, %v2097
  %v2101 = vxor.u32 %v2100, 2147483648
  %v2102 = vmul.f32 %v2101, 1.442695
  %v2103 = vpow.pop %v2102
  %v2104 = vadd.f32 %v2103, 1.0
  %v2105 = vrcp.pop %v2104
  %v2106 = vmul.f32 1.0, %v2105
  %2108 = vrot.lane.b32.xlu0 %v2097, 64
  %v2109 = vpop.permute.xlu0 %2108
  %v2111 = vmul.f32 %v2106, %v2109
  %2113 = vrot.lane.b32.xlu0 %v2111, 64
  %v2114 = vpop.permute.xlu0 %2113
  %v2116 = vadd.f32 %v2027, %v2114
  %v2117 = vtanh.pop %v2116
  %v2118 = vsub.f32 1.0, %v2106
  %2120 = vrot.lane.b32.xlu0 %v2117, 96
  %v2121 = vpop.permute.xlu0 %2120
  %v2123 = vmul.f32 %v2118, %v2121
  %v2124 = vmul.f32 %v2106, %v2021
  %v2125 = vadd.f32 %v2123, %v2124
  %2127 = vrot.lane.b32.xlu0 %v2125, 96
  %v2128 = vpop.permute.xlu0 %2127
  %2130 = vst.msk [vmem:[%s943] sm:$0xff] %vm522, %v2128
  %s2131 = scalar_lea.vmem %s4, 6
  %v2132 = vld [vmem:[%s2131] sm:$0x1]
  %s2133 = scalar_lea.vmem %s3, 288
  %v2134 = vld [vmem:[%s2133] sm:$0xff]
  %v2135 = vld [vmem:[%s2133 + $0x8] sm:$0xff]
  %v2136 = vld [vmem:[%s2133 + $0x10] sm:$0xff]
  %v2137 = vld [vmem:[%s2133 + $0x18] sm:$0xff]
  %2138 = vmatprep.subr.mxu0 0.0
  %2139 = vmatpush1.msra.mxu0 0.0
  %2140 = vmatprep.subr.mxu0 0.0
  %2141 = vmatpush1.msra.mxu0 0.0
  %2142 = vmatprep.subr.mxu0 0.0
  %2143 = vmatpush1.msra.mxu0 0.0
  %2144 = vmatprep.subr.mxu0 0.0
  %2145 = vmatpush1.msra.mxu0 0.0
  %2146 = vmatprep.subr.mxu0 0.0
  %2147 = vmatpush1.msra.mxu0 0.0
  %2148 = vmatprep.subr.mxu0 0.0
  %2149 = vmatpush1.msra.mxu0 0.0
  %2150 = vmatprep.subr.mxu0 0.0
  %2151 = vmatpush1.msra.mxu0 0.0
  %2152 = vmatprep.subr.mxu0 0.0
  %2153 = vmatpush1.msra.mxu0 0.0
  %2154 = vmatprep.subr.mxu0 0.0
  %2155 = vmatpush1.msra.mxu0 0.0
  %2156 = vmatprep.subr.mxu0 0.0
  %2157 = vmatpush1.msra.mxu0 0.0
  %2158 = vmatprep.subr.mxu0 0.0
  %2159 = vmatpush1.msra.mxu0 0.0
  %2160 = vmatprep.subr.mxu0 0.0
  %2161 = vmatpush1.msra.mxu0 0.0
  %2162 = vmatprep.subr.mxu0 0.0
  %2163 = vmatpush1.msra.mxu0 %v2137
  %2164 = vmatprep.subr.mxu0 0.0
  %2165 = vmatpush1.msra.mxu0 %v2136
  %2166 = vmatprep.subr.mxu0 0.0
  %2167 = vmatpush1.msra.mxu0 %v2135
  %2168 = vmatprep.subr.mxu0 0.0
  %2169 = vmatpush1.msra.mxu0 %v2134
  %2170 = vmatprep.subr.mxu0 0.0
  %2171 = vmatpush2.msra.mxu0 0.0
  %2172 = vmatprep.subr.mxu0 0.0
  %2173 = vmatpush2.msra.mxu0 0.0
  %2174 = vmatprep.subr.mxu0 0.0
  %2175 = vmatpush2.msra.mxu0 0.0
  %2176 = vmatprep.subr.mxu0 0.0
  %2177 = vmatpush2.msra.mxu0 0.0
  %2178 = vmatprep.subr.mxu0 0.0
  %2179 = vmatpush2.msra.mxu0 0.0
  %2180 = vmatprep.subr.mxu0 0.0
  %2181 = vmatpush2.msra.mxu0 0.0
  %2182 = vmatprep.subr.mxu0 0.0
  %2183 = vmatpush2.msra.mxu0 0.0
  %2184 = vmatprep.subr.mxu0 0.0
  %2185 = vmatpush2.msra.mxu0 0.0
  %2186 = vmatprep.subr.mxu0 0.0
  %2187 = vmatpush2.msra.mxu0 0.0
  %2188 = vmatprep.subr.mxu0 0.0
  %2189 = vmatpush2.msra.mxu0 0.0
  %2190 = vmatprep.subr.mxu0 0.0
  %2191 = vmatpush2.msra.mxu0 0.0
  %2192 = vmatprep.subr.mxu0 0.0
  %2193 = vmatpush2.msra.mxu0 0.0
  %2194 = vmatprep.subr.mxu0 0.0
  %2195 = vmatpush2.msra.mxu0 0.0
  %2196 = vmatprep.subr.mxu0 0.0
  %2197 = vmatpush2.msra.mxu0 0.0
  %2198 = vmatprep.subr.mxu0 0.0
  %2199 = vmatpush2.msra.mxu0 0.0
  %2200 = vmatprep.subr.mxu0 0.0
  %2201 = vmatpush2.msra.mxu0 0.0
  %2202 = vmatprep.mubr.f32.mxu0 0.0
  %2203 = vmatmul.mubr.f32.gmra.mxu0 %v1495
  %v2204 = vpop.f32.mrf.mxu0
  %v2205 = vadd.f32 0.0, %v2204
  %v2206 = vpop.f32.mrf.mxu0
  %2207 = vmatprep.mubr.f32.mxu0 0.0
  %2208 = vmatmul.mubr.f32.gmra.mxu0 %v1498
  %v2209 = vpop.f32.mrf.mxu0
  %v2210 = vadd.f32 0.0, %v2209
  %v2211 = vpop.f32.mrf.mxu0
  %2212 = vmatprep.mubr.f32.mxu0 0.0
  %2213 = vmatmul.mubr.f32.gmra.mxu0 %v1501
  %v2214 = vpop.f32.mrf.mxu0
  %v2215 = vadd.f32 0.0, %v2214
  %v2216 = vpop.f32.mrf.mxu0
  %2217 = vmatprep.mubr.f32.mxu0 0.0
  %2218 = vmatmul.mubr.f32.gmra.mxu0 %v1504
  %v2219 = vpop.f32.mrf.mxu0
  %v2220 = vadd.f32 0.0, %v2219
  %v2221 = vpop.f32.mrf.mxu0
  %2222 = vdwg.mxu0
  %v2223 = vlaneseq
  %v2224 = vshrl.u32 %v2223, 7
  %v2225 = vsub.s32 0, %v2224
  %v2226 = vrot.slane %v2132, %v2225
  %v2227 = vadd.f32 %v2226, %v2205
  %v2228 = vadd.f32 %v2226, %v2210
  %v2229 = vadd.f32 %v2226, %v2215
  %v2230 = vadd.f32 %v2226, %v2220
  %v2231 = vld [vmem:[%s2133 + $0x20] sm:$0xff]
  %v2232 = vld [vmem:[%s2133 + $0x28] sm:$0xff]
  %v2233 = vld [vmem:[%s2133 + $0x30] sm:$0xff]
  %v2234 = vld [vmem:[%s2133 + $0x38] sm:$0xff]
  %2235 = vmatprep.subr.mxu0 0.0
  %2236 = vmatpush1.msra.mxu0 0.0
  %2237 = vmatprep.subr.mxu0 0.0
  %2238 = vmatpush1.msra.mxu0 0.0
  %2239 = vmatprep.subr.mxu0 0.0
  %2240 = vmatpush1.msra.mxu0 0.0
  %2241 = vmatprep.subr.mxu0 0.0
  %2242 = vmatpush1.msra.mxu0 0.0
  %2243 = vmatprep.subr.mxu0 0.0
  %2244 = vmatpush1.msra.mxu0 0.0
  %2245 = vmatprep.subr.mxu0 0.0
  %2246 = vmatpush1.msra.mxu0 0.0
  %2247 = vmatprep.subr.mxu0 0.0
  %2248 = vmatpush1.msra.mxu0 0.0
  %2249 = vmatprep.subr.mxu0 0.0
  %2250 = vmatpush1.msra.mxu0 0.0
  %2251 = vmatprep.subr.mxu0 0.0
  %2252 = vmatpush1.msra.mxu0 0.0
  %2253 = vmatprep.subr.mxu0 0.0
  %2254 = vmatpush1.msra.mxu0 0.0
  %2255 = vmatprep.subr.mxu0 0.0
  %2256 = vmatpush1.msra.mxu0 0.0
  %2257 = vmatprep.subr.mxu0 0.0
  %2258 = vmatpush1.msra.mxu0 0.0
  %2259 = vmatprep.subr.mxu0 0.0
  %2260 = vmatpush1.msra.mxu0 %v2234
  %2261 = vmatprep.subr.mxu0 0.0
  %2262 = vmatpush1.msra.mxu0 %v2233
  %2263 = vmatprep.subr.mxu0 0.0
  %2264 = vmatpush1.msra.mxu0 %v2232
  %2265 = vmatprep.subr.mxu0 0.0
  %2266 = vmatpush1.msra.mxu0 %v2231
  %2267 = vmatprep.subr.mxu0 0.0
  %2268 = vmatpush2.msra.mxu0 0.0
  %2269 = vmatprep.subr.mxu0 0.0
  %2270 = vmatpush2.msra.mxu0 0.0
  %2271 = vmatprep.subr.mxu0 0.0
  %2272 = vmatpush2.msra.mxu0 0.0
  %2273 = vmatprep.subr.mxu0 0.0
  %2274 = vmatpush2.msra.mxu0 0.0
  %2275 = vmatprep.subr.mxu0 0.0
  %2276 = vmatpush2.msra.mxu0 0.0
  %2277 = vmatprep.subr.mxu0 0.0
  %2278 = vmatpush2.msra.mxu0 0.0
  %2279 = vmatprep.subr.mxu0 0.0
  %2280 = vmatpush2.msra.mxu0 0.0
  %2281 = vmatprep.subr.mxu0 0.0
  %2282 = vmatpush2.msra.mxu0 0.0
  %2283 = vmatprep.subr.mxu0 0.0
  %2284 = vmatpush2.msra.mxu0 0.0
  %2285 = vmatprep.subr.mxu0 0.0
  %2286 = vmatpush2.msra.mxu0 0.0
  %2287 = vmatprep.subr.mxu0 0.0
  %2288 = vmatpush2.msra.mxu0 0.0
  %2289 = vmatprep.subr.mxu0 0.0
  %2290 = vmatpush2.msra.mxu0 0.0
  %2291 = vmatprep.subr.mxu0 0.0
  %2292 = vmatpush2.msra.mxu0 0.0
  %2293 = vmatprep.subr.mxu0 0.0
  %2294 = vmatpush2.msra.mxu0 0.0
  %2295 = vmatprep.subr.mxu0 0.0
  %2296 = vmatpush2.msra.mxu0 0.0
  %2297 = vmatprep.subr.mxu0 0.0
  %2298 = vmatpush2.msra.mxu0 0.0
  %2299 = vmatprep.mubr.f32.mxu0 0.0
  %2300 = vmatmul.mubr.f32.gmra.mxu0 %v1604
  %v2301 = vpop.f32.mrf.mxu0
  %v2302 = vadd.f32 0.0, %v2301
  %v2303 = vpop.f32.mrf.mxu0
  %2304 = vmatprep.mubr.f32.mxu0 0.0
  %2305 = vmatmul.mubr.f32.gmra.mxu0 %v1607
  %v2306 = vpop.f32.mrf.mxu0
  %v2307 = vadd.f32 0.0, %v2306
  %v2308 = vpop.f32.mrf.mxu0
  %2309 = vmatprep.mubr.f32.mxu0 0.0
  %2310 = vmatmul.mubr.f32.gmra.mxu0 %v1610
  %v2311 = vpop.f32.mrf.mxu0
  %v2312 = vadd.f32 0.0, %v2311
  %v2313 = vpop.f32.mrf.mxu0
  %2314 = vmatprep.mubr.f32.mxu0 0.0
  %2315 = vmatmul.mubr.f32.gmra.mxu0 %v1613
  %v2316 = vpop.f32.mrf.mxu0
  %v2317 = vadd.f32 0.0, %v2316
  %v2318 = vpop.f32.mrf.mxu0
  %2319 = vdwg.mxu0
  %v2320 = vadd.f32 %v2227, %v2302
  %v2321 = vadd.f32 %v2228, %v2307
  %v2322 = vadd.f32 %v2229, %v2312
  %v2323 = vadd.f32 %v2230, %v2317
  %2324 = vst.msk [vmem:[#allocation2] sm:$0xff] %vm507, %v2320
  %2325 = vst.msk [vmem:[#allocation2 + $0x8] sm:$0xff] %vm507, %v2321
  %2326 = vst.msk [vmem:[#allocation2 + $0x10] sm:$0xff] %vm507, %v2322
  %2327 = vst.msk [vmem:[#allocation2 + $0x18] sm:$0xff] %vm507, %v2323
  %v2328 = vld [vmem:[%s2133 + $0x40] sm:$0xff]
  %v2329 = vld [vmem:[%s2133 + $0x48] sm:$0xff]
  %v2330 = vld [vmem:[%s2133 + $0x50] sm:$0xff]
  %v2331 = vld [vmem:[%s2133 + $0x58] sm:$0xff]
  %v2332 = vld [vmem:[%s2131 + $0x1] sm:$0x1]
  %v2333 = vld [vmem:[%s839] sm:$0xff]
  %v2334 = vlaneseq
  %v2335 = vshrl.u32 %v2334, 7
  %v2336 = vsub.s32 0, %v2335
  %v2337 = vrot.slane %v2332, %v2336
  %2338 = vmatprep.subr.mxu0 0.0
  %2339 = vmatpush1.msra.mxu0 0.0
  %2340 = vmatprep.subr.mxu0 0.0
  %2341 = vmatpush1.msra.mxu0 0.0
  %2342 = vmatprep.subr.mxu0 0.0
  %2343 = vmatpush1.msra.mxu0 0.0
  %2344 = vmatprep.subr.mxu0 0.0
  %2345 = vmatpush1.msra.mxu0 0.0
  %2346 = vmatprep.subr.mxu0 0.0
  %2347 = vmatpush1.msra.mxu0 0.0
  %2348 = vmatprep.subr.mxu0 0.0
  %2349 = vmatpush1.msra.mxu0 0.0
  %2350 = vmatprep.subr.mxu0 0.0
  %2351 = vmatpush1.msra.mxu0 0.0
  %2352 = vmatprep.subr.mxu0 0.0
  %2353 = vmatpush1.msra.mxu0 0.0
  %2354 = vmatprep.subr.mxu0 0.0
  %2355 = vmatpush1.msra.mxu0 0.0
  %2356 = vmatprep.subr.mxu0 0.0
  %2357 = vmatpush1.msra.mxu0 0.0
  %2358 = vmatprep.subr.mxu0 0.0
  %2359 = vmatpush1.msra.mxu0 0.0
  %2360 = vmatprep.subr.mxu0 0.0
  %2361 = vmatpush1.msra.mxu0 0.0
  %2362 = vmatprep.subr.mxu0 0.0
  %2363 = vmatpush1.msra.mxu0 %v2331
  %2364 = vmatprep.subr.mxu0 0.0
  %2365 = vmatpush1.msra.mxu0 %v2330
  %2366 = vmatprep.subr.mxu0 0.0
  %2367 = vmatpush1.msra.mxu0 %v2329
  %2368 = vmatprep.subr.mxu0 0.0
  %2369 = vmatpush1.msra.mxu0 %v2328
  %2370 = vmatprep.subr.mxu0 0.0
  %2371 = vmatpush2.msra.mxu0 0.0
  %2372 = vmatprep.subr.mxu0 0.0
  %2373 = vmatpush2.msra.mxu0 0.0
  %2374 = vmatprep.subr.mxu0 0.0
  %2375 = vmatpush2.msra.mxu0 0.0
  %2376 = vmatprep.subr.mxu0 0.0
  %2377 = vmatpush2.msra.mxu0 0.0
  %2378 = vmatprep.subr.mxu0 0.0
  %2379 = vmatpush2.msra.mxu0 0.0
  %2380 = vmatprep.subr.mxu0 0.0
  %2381 = vmatpush2.msra.mxu0 0.0
  %2382 = vmatprep.subr.mxu0 0.0
  %2383 = vmatpush2.msra.mxu0 0.0
  %2384 = vmatprep.subr.mxu0 0.0
  %2385 = vmatpush2.msra.mxu0 0.0
  %2386 = vmatprep.subr.mxu0 0.0
  %2387 = vmatpush2.msra.mxu0 0.0
  %2388 = vmatprep.subr.mxu0 0.0
  %2389 = vmatpush2.msra.mxu0 0.0
  %2390 = vmatprep.subr.mxu0 0.0
  %2391 = vmatpush2.msra.mxu0 0.0
  %2392 = vmatprep.subr.mxu0 0.0
  %2393 = vmatpush2.msra.mxu0 0.0
  %2394 = vmatprep.subr.mxu0 0.0
  %2395 = vmatpush2.msra.mxu0 0.0
  %2396 = vmatprep.subr.mxu0 0.0
  %2397 = vmatpush2.msra.mxu0 0.0
  %2398 = vmatprep.subr.mxu0 0.0
  %2399 = vmatpush2.msra.mxu0 0.0
  %2400 = vmatprep.subr.mxu0 0.0
  %2401 = vmatpush2.msra.mxu0 0.0
  %2402 = vmatprep.mubr.f32.mxu0 0.0
  %2403 = vmatmul.mubr.f32.gmra.mxu0 %v524
  %v2404 = vpop.f32.mrf.mxu0
  %v2405 = vadd.f32 %v2337, %v2404
  %v2406 = vpop.f32.mrf.mxu0
  %2407 = vdwg.mxu0
  %v2408 = vadd.f32 %v2333, %v2405
  %v2409 = vxor.u32 %v2408, 2147483648
  %v2410 = vmul.f32 %v2409, 1.442695
  %v2411 = vpow.pop %v2410
  %v2412 = vadd.f32 %v2411, 1.0
  %v2413 = vrcp.pop %v2412
  %v2414 = vmul.f32 1.0, %v2413
  %2416 = vrot.lane.b32.xlu0 %v2405, 64
  %v2417 = vpop.permute.xlu0 %2416
  %v2419 = vmul.f32 %v2414, %v2417
  %2421 = vrot.lane.b32.xlu0 %v2419, 64
  %v2422 = vpop.permute.xlu0 %2421
  %v2424 = vadd.f32 %v2333, %v2422
  %v2425 = vtanh.pop %v2424
  %v2426 = vsub.f32 1.0, %v2414
  %2428 = vrot.lane.b32.xlu0 %v2425, 96
  %v2429 = vpop.permute.xlu0 %2428
  %v2431 = vmul.f32 %v2426, %v2429
  %v2432 = vmul.f32 %v2414, 0.0
  %v2433 = vadd.f32 %v2431, %v2432
  %2435 = vrot.lane.b32.xlu0 %v2433, 96
  %v2436 = vpop.permute.xlu0 %2435
  %2438 = vst.msk [vmem:[%s1163] sm:$0xff] %vm522, %v2436
  %v2439 = vld [vmem:[%s733] sm:$0xff]
  %v2440 = vsel %vm522, %v2436, 0
  %2442 = vmatprep.subr.mxu0 0.0
  %2443 = vmatpush1.msra.mxu0 0.0
  %2444 = vmatprep.subr.mxu0 0.0
  %2445 = vmatpush1.msra.mxu0 0.0
  %2446 = vmatprep.subr.mxu0 0.0
  %2447 = vmatpush1.msra.mxu0 0.0
  %2448 = vmatprep.subr.mxu0 0.0
  %2449 = vmatpush1.msra.mxu0 0.0
  %2450 = vmatprep.subr.mxu0 0.0
  %2451 = vmatpush1.msra.mxu0 0.0
  %2452 = vmatprep.subr.mxu0 0.0
  %2453 = vmatpush1.msra.mxu0 0.0
  %2454 = vmatprep.subr.mxu0 0.0
  %2455 = vmatpush1.msra.mxu0 0.0
  %2456 = vmatprep.subr.mxu0 0.0
  %2457 = vmatpush1.msra.mxu0 0.0
  %2458 = vmatprep.subr.mxu0 0.0
  %2459 = vmatpush1.msra.mxu0 0.0
  %2460 = vmatprep.subr.mxu0 0.0
  %2461 = vmatpush1.msra.mxu0 0.0
  %2462 = vmatprep.subr.mxu0 0.0
  %2463 = vmatpush1.msra.mxu0 0.0
  %2464 = vmatprep.subr.mxu0 0.0
  %2465 = vmatpush1.msra.mxu0 0.0
  %2466 = vmatprep.subr.mxu0 0.0
  %2467 = vmatpush1.msra.mxu0 %v2331
  %2468 = vmatprep.subr.mxu0 0.0
  %2469 = vmatpush1.msra.mxu0 %v2330
  %2470 = vmatprep.subr.mxu0 0.0
  %2471 = vmatpush1.msra.mxu0 %v2329
  %2472 = vmatprep.subr.mxu0 0.0
  %2473 = vmatpush1.msra.mxu0 %v2328
  %2474 = vmatprep.subr.mxu0 0.0
  %2475 = vmatpush2.msra.mxu0 0.0
  %2476 = vmatprep.subr.mxu0 0.0
  %2477 = vmatpush2.msra.mxu0 0.0
  %2478 = vmatprep.subr.mxu0 0.0
  %2479 = vmatpush2.msra.mxu0 0.0
  %2480 = vmatprep.subr.mxu0 0.0
  %2481 = vmatpush2.msra.mxu0 0.0
  %2482 = vmatprep.subr.mxu0 0.0
  %2483 = vmatpush2.msra.mxu0 0.0
  %2484 = vmatprep.subr.mxu0 0.0
  %2485 = vmatpush2.msra.mxu0 0.0
  %2486 = vmatprep.subr.mxu0 0.0
  %2487 = vmatpush2.msra.mxu0 0.0
  %2488 = vmatprep.subr.mxu0 0.0
  %2489 = vmatpush2.msra.mxu0 0.0
  %2490 = vmatprep.subr.mxu0 0.0
  %2491 = vmatpush2.msra.mxu0 0.0
  %2492 = vmatprep.subr.mxu0 0.0
  %2493 = vmatpush2.msra.mxu0 0.0
  %2494 = vmatprep.subr.mxu0 0.0
  %2495 = vmatpush2.msra.mxu0 0.0
  %2496 = vmatprep.subr.mxu0 0.0
  %2497 = vmatpush2.msra.mxu0 0.0
  %2498 = vmatprep.subr.mxu0 0.0
  %2499 = vmatpush2.msra.mxu0 0.0
  %2500 = vmatprep.subr.mxu0 0.0
  %2501 = vmatpush2.msra.mxu0 0.0
  %2502 = vmatprep.subr.mxu0 0.0
  %2503 = vmatpush2.msra.mxu0 0.0
  %2504 = vmatprep.subr.mxu0 0.0
  %2505 = vmatpush2.msra.mxu0 0.0
  %2506 = vmatprep.mubr.f32.mxu0 0.0
  %2507 = vmatmul.mubr.f32.gmra.mxu0 %v2440
  %v2508 = vpop.f32.mrf.mxu0
  %v2509 = vadd.f32 %v2337, %v2508
  %v2510 = vpop.f32.mrf.mxu0
  %2511 = vdwg.mxu0
  %v2512 = vadd.f32 %v2439, %v2509
  %v2513 = vxor.u32 %v2512, 2147483648
  %v2514 = vmul.f32 %v2513, 1.442695
  %v2515 = vpow.pop %v2514
  %v2516 = vadd.f32 %v2515, 1.0
  %v2517 = vrcp.pop %v2516
  %v2518 = vmul.f32 1.0, %v2517
  %2520 = vrot.lane.b32.xlu0 %v2509, 64
  %v2521 = vpop.permute.xlu0 %2520
  %v2523 = vmul.f32 %v2518, %v2521
  %2525 = vrot.lane.b32.xlu0 %v2523, 64
  %v2526 = vpop.permute.xlu0 %2525
  %v2528 = vadd.f32 %v2439, %v2526
  %v2529 = vtanh.pop %v2528
  %v2530 = vsub.f32 1.0, %v2518
  %2532 = vrot.lane.b32.xlu0 %v2529, 96
  %v2533 = vpop.permute.xlu0 %2532
  %v2535 = vmul.f32 %v2530, %v2533
  %v2536 = vmul.f32 %v2518, %v2433
  %v2537 = vadd.f32 %v2535, %v2536
  %2539 = vrot.lane.b32.xlu0 %v2537, 96
  %v2540 = vpop.permute.xlu0 %2539
  %2542 = vst.msk [vmem:[%s1268] sm:$0xff] %vm522, %v2540
  %v2543 = vld [vmem:[%s627] sm:$0xff]
  %v2544 = vsel %vm522, %v2540, 0
  %2546 = vmatprep.subr.mxu0 0.0
  %2547 = vmatpush1.msra.mxu0 0.0
  %2548 = vmatprep.subr.mxu0 0.0
  %2549 = vmatpush1.msra.mxu0 0.0
  %2550 = vmatprep.subr.mxu0 0.0
  %2551 = vmatpush1.msra.mxu0 0.0
  %2552 = vmatprep.subr.mxu0 0.0
  %2553 = vmatpush1.msra.mxu0 0.0
  %2554 = vmatprep.subr.mxu0 0.0
  %2555 = vmatpush1.msra.mxu0 0.0
  %2556 = vmatprep.subr.mxu0 0.0
  %2557 = vmatpush1.msra.mxu0 0.0
  %2558 = vmatprep.subr.mxu0 0.0
  %2559 = vmatpush1.msra.mxu0 0.0
  %2560 = vmatprep.subr.mxu0 0.0
  %2561 = vmatpush1.msra.mxu0 0.0
  %2562 = vmatprep.subr.mxu0 0.0
  %2563 = vmatpush1.msra.mxu0 0.0
  %2564 = vmatprep.subr.mxu0 0.0
  %2565 = vmatpush1.msra.mxu0 0.0
  %2566 = vmatprep.subr.mxu0 0.0
  %2567 = vmatpush1.msra.mxu0 0.0
  %2568 = vmatprep.subr.mxu0 0.0
  %2569 = vmatpush1.msra.mxu0 0.0
  %2570 = vmatprep.subr.mxu0 0.0
  %2571 = vmatpush1.msra.mxu0 %v2331
  %2572 = vmatprep.subr.mxu0 0.0
  %2573 = vmatpush1.msra.mxu0 %v2330
  %2574 = vmatprep.subr.mxu0 0.0
  %2575 = vmatpush1.msra.mxu0 %v2329
  %2576 = vmatprep.subr.mxu0 0.0
  %2577 = vmatpush1.msra.mxu0 %v2328
  %2578 = vmatprep.subr.mxu0 0.0
  %2579 = vmatpush2.msra.mxu0 0.0
  %2580 = vmatprep.subr.mxu0 0.0
  %2581 = vmatpush2.msra.mxu0 0.0
  %2582 = vmatprep.subr.mxu0 0.0
  %2583 = vmatpush2.msra.mxu0 0.0
  %2584 = vmatprep.subr.mxu0 0.0
  %2585 = vmatpush2.msra.mxu0 0.0
  %2586 = vmatprep.subr.mxu0 0.0
  %2587 = vmatpush2.msra.mxu0 0.0
  %2588 = vmatprep.subr.mxu0 0.0
  %2589 = vmatpush2.msra.mxu0 0.0
  %2590 = vmatprep.subr.mxu0 0.0
  %2591 = vmatpush2.msra.mxu0 0.0
  %2592 = vmatprep.subr.mxu0 0.0
  %2593 = vmatpush2.msra.mxu0 0.0
  %2594 = vmatprep.subr.mxu0 0.0
  %2595 = vmatpush2.msra.mxu0 0.0
  %2596 = vmatprep.subr.mxu0 0.0
  %2597 = vmatpush2.msra.mxu0 0.0
  %2598 = vmatprep.subr.mxu0 0.0
  %2599 = vmatpush2.msra.mxu0 0.0
  %2600 = vmatprep.subr.mxu0 0.0
  %2601 = vmatpush2.msra.mxu0 0.0
  %2602 = vmatprep.subr.mxu0 0.0
  %2603 = vmatpush2.msra.mxu0 0.0
  %2604 = vmatprep.subr.mxu0 0.0
  %2605 = vmatpush2.msra.mxu0 0.0
  %2606 = vmatprep.subr.mxu0 0.0
  %2607 = vmatpush2.msra.mxu0 0.0
  %2608 = vmatprep.subr.mxu0 0.0
  %2609 = vmatpush2.msra.mxu0 0.0
  %2610 = vmatprep.mubr.f32.mxu0 0.0
  %2611 = vmatmul.mubr.f32.gmra.mxu0 %v2544
  %v2612 = vpop.f32.mrf.mxu0
  %v2613 = vadd.f32 %v2337, %v2612
  %v2614 = vpop.f32.mrf.mxu0
  %2615 = vdwg.mxu0
  %v2616 = vadd.f32 %v2543, %v2613
  %v2617 = vxor.u32 %v2616, 2147483648
  %v2618 = vmul.f32 %v2617, 1.442695
  %v2619 = vpow.pop %v2618
  %v2620 = vadd.f32 %v2619, 1.0
  %v2621 = vrcp.pop %v2620
  %v2622 = vmul.f32 1.0, %v2621
  %2624 = vrot.lane.b32.xlu0 %v2613, 64
  %v2625 = vpop.permute.xlu0 %2624
  %v2627 = vmul.f32 %v2622, %v2625
  %2629 = vrot.lane.b32.xlu0 %v2627, 64
  %v2630 = vpop.permute.xlu0 %2629
  %v2632 = vadd.f32 %v2543, %v2630
  %v2633 = vtanh.pop %v2632
  %v2634 = vsub.f32 1.0, %v2622
  %2636 = vrot.lane.b32.xlu0 %v2633, 96
  %v2637 = vpop.permute.xlu0 %2636
  %v2639 = vmul.f32 %v2634, %v2637
  %v2640 = vmul.f32 %v2622, %v2537
  %v2641 = vadd.f32 %v2639, %v2640
  %2643 = vrot.lane.b32.xlu0 %v2641, 96
  %v2644 = vpop.permute.xlu0 %2643
  %2646 = vst.msk [vmem:[%s1373] sm:$0xff] %vm522, %v2644
  %v2647 = vld [vmem:[#allocation2] sm:$0xff]
  %v2648 = vsel %vm522, %v2644, 0
  %2650 = vmatprep.subr.mxu0 0.0
  %2651 = vmatpush1.msra.mxu0 0.0
  %2652 = vmatprep.subr.mxu0 0.0
  %2653 = vmatpush1.msra.mxu0 0.0
  %2654 = vmatprep.subr.mxu0 0.0
  %2655 = vmatpush1.msra.mxu0 0.0
  %2656 = vmatprep.subr.mxu0 0.0
  %2657 = vmatpush1.msra.mxu0 0.0
  %2658 = vmatprep.subr.mxu0 0.0
  %2659 = vmatpush1.msra.mxu0 0.0
  %2660 = vmatprep.subr.mxu0 0.0
  %2661 = vmatpush1.msra.mxu0 0.0
  %2662 = vmatprep.subr.mxu0 0.0
  %2663 = vmatpush1.msra.mxu0 0.0
  %2664 = vmatprep.subr.mxu0 0.0
  %2665 = vmatpush1.msra.mxu0 0.0
  %2666 = vmatprep.subr.mxu0 0.0
  %2667 = vmatpush1.msra.mxu0 0.0
  %2668 = vmatprep.subr.mxu0 0.0
  %2669 = vmatpush1.msra.mxu0 0.0
  %2670 = vmatprep.subr.mxu0 0.0
  %2671 = vmatpush1.msra.mxu0 0.0
  %2672 = vmatprep.subr.mxu0 0.0
  %2673 = vmatpush1.msra.mxu0 0.0
  %2674 = vmatprep.subr.mxu0 0.0
  %2675 = vmatpush1.msra.mxu0 %v2331
  %2676 = vmatprep.subr.mxu0 0.0
  %2677 = vmatpush1.msra.mxu0 %v2330
  %2678 = vmatprep.subr.mxu0 0.0
  %2679 = vmatpush1.msra.mxu0 %v2329
  %2680 = vmatprep.subr.mxu0 0.0
  %2681 = vmatpush1.msra.mxu0 %v2328
  %2682 = vmatprep.subr.mxu0 0.0
  %2683 = vmatpush2.msra.mxu0 0.0
  %2684 = vmatprep.subr.mxu0 0.0
  %2685 = vmatpush2.msra.mxu0 0.0
  %2686 = vmatprep.subr.mxu0 0.0
  %2687 = vmatpush2.msra.mxu0 0.0
  %2688 = vmatprep.subr.mxu0 0.0
  %2689 = vmatpush2.msra.mxu0 0.0
  %2690 = vmatprep.subr.mxu0 0.0
  %2691 = vmatpush2.msra.mxu0 0.0
  %2692 = vmatprep.subr.mxu0 0.0
  %2693 = vmatpush2.msra.mxu0 0.0
  %2694 = vmatprep.subr.mxu0 0.0
  %2695 = vmatpush2.msra.mxu0 0.0
  %2696 = vmatprep.subr.mxu0 0.0
  %2697 = vmatpush2.msra.mxu0 0.0
  %2698 = vmatprep.subr.mxu0 0.0
  %2699 = vmatpush2.msra.mxu0 0.0
  %2700 = vmatprep.subr.mxu0 0.0
  %2701 = vmatpush2.msra.mxu0 0.0
  %2702 = vmatprep.subr.mxu0 0.0
  %2703 = vmatpush2.msra.mxu0 0.0
  %2704 = vmatprep.subr.mxu0 0.0
  %2705 = vmatpush2.msra.mxu0 0.0
  %2706 = vmatprep.subr.mxu0 0.0
  %2707 = vmatpush2.msra.mxu0 0.0
  %2708 = vmatprep.subr.mxu0 0.0
  %2709 = vmatpush2.msra.mxu0 0.0
  %2710 = vmatprep.subr.mxu0 0.0
  %2711 = vmatpush2.msra.mxu0 0.0
  %2712 = vmatprep.subr.mxu0 0.0
  %2713 = vmatpush2.msra.mxu0 0.0
  %2714 = vmatprep.mubr.f32.mxu0 0.0
  %2715 = vmatmul.mubr.f32.gmra.mxu0 %v2648
  %v2716 = vpop.f32.mrf.mxu0
  %v2717 = vadd.f32 %v2337, %v2716
  %v2718 = vpop.f32.mrf.mxu0
  %2719 = vdwg.mxu0
  %v2720 = vadd.f32 %v2647, %v2717
  %v2721 = vxor.u32 %v2720, 2147483648
  %v2722 = vmul.f32 %v2721, 1.442695
  %v2723 = vpow.pop %v2722
  %v2724 = vadd.f32 %v2723, 1.0
  %v2725 = vrcp.pop %v2724
  %v2726 = vmul.f32 1.0, %v2725
  %2728 = vrot.lane.b32.xlu0 %v2717, 64
  %v2729 = vpop.permute.xlu0 %2728
  %v2731 = vmul.f32 %v2726, %v2729
  %2733 = vrot.lane.b32.xlu0 %v2731, 64
  %v2734 = vpop.permute.xlu0 %2733
  %v2736 = vadd.f32 %v2647, %v2734
  %v2737 = vtanh.pop %v2736
  %v2738 = vsub.f32 1.0, %v2726
  %2740 = vrot.lane.b32.xlu0 %v2737, 96
  %v2741 = vpop.permute.xlu0 %2740
  %v2743 = vmul.f32 %v2738, %v2741
  %v2744 = vmul.f32 %v2726, %v2641
  %v2745 = vadd.f32 %v2743, %v2744
  %2747 = vrot.lane.b32.xlu0 %v2745, 96
  %v2748 = vpop.permute.xlu0 %2747
  %2750 = vst.msk [vmem:[#allocation4] sm:$0xff] %vm522, %v2748
  %v2751 = vld [vmem:[#allocation3] sm:$0xff]
  %v2752 = vld [vmem:[#allocation3 + $0x8] sm:$0xff]
  %v2753 = vld [vmem:[#allocation3 + $0x10] sm:$0xff]
  %v2754 = vld [vmem:[#allocation3 + $0x18] sm:$0xff]
  %v2755 = vld [vmem:[#allocation4] sm:$0xff]
  %v2756 = vld [vmem:[#allocation4 + $0x8] sm:$0xff]
  %v2757 = vld [vmem:[#allocation4 + $0x10] sm:$0xff]
  %v2758 = vld [vmem:[#allocation4 + $0x18] sm:$0xff]
  %v2759 = vld [vmem:[%s6] sm:$0x1]
  %v2760 = vld [vmem:[%s5] sm:$0xff]
  %v2761 = vld [vmem:[%s5 + $0x8] sm:$0xff]
  %v2762 = vld [vmem:[%s5 + $0x10] sm:$0xff]
  %v2763 = vld [vmem:[%s5 + $0x18] sm:$0xff]
  %v2765 = vsel %vm522, %v2751, 0
  %v2768 = vsel %vm522, %v2752, 0
  %v2771 = vsel %vm522, %v2753, 0
  %v2774 = vsel %vm522, %v2754, 0
  %2776 = vmatprep.subr.mxu0 0.0
  %2777 = vmatpush1.msra.mxu0 0.0
  %2778 = vmatprep.subr.mxu0 0.0
  %2779 = vmatpush1.msra.mxu0 0.0
  %2780 = vmatprep.subr.mxu0 0.0
  %2781 = vmatpush1.msra.mxu0 0.0
  %2782 = vmatprep.subr.mxu0 0.0
  %2783 = vmatpush1.msra.mxu0 0.0
  %2784 = vmatprep.subr.mxu0 0.0
  %2785 = vmatpush1.msra.mxu0 0.0
  %2786 = vmatprep.subr.mxu0 0.0
  %2787 = vmatpush1.msra.mxu0 0.0
  %2788 = vmatprep.subr.mxu0 0.0
  %2789 = vmatpush1.msra.mxu0 0.0
  %2790 = vmatprep.subr.mxu0 0.0
  %2791 = vmatpush1.msra.mxu0 0.0
  %2792 = vmatprep.subr.mxu0 0.0
  %2793 = vmatpush1.msra.mxu0 0.0
  %2794 = vmatprep.subr.mxu0 0.0
  %2795 = vmatpush1.msra.mxu0 0.0
  %2796 = vmatprep.subr.mxu0 0.0
  %2797 = vmatpush1.msra.mxu0 0.0
  %2798 = vmatprep.subr.mxu0 0.0
  %2799 = vmatpush1.msra.mxu0 0.0
  %2800 = vmatprep.subr.mxu0 0.0
  %2801 = vmatpush1.msra.mxu0 %v2763
  %2802 = vmatprep.subr.mxu0 0.0
  %2803 = vmatpush1.msra.mxu0 %v2762
  %2804 = vmatprep.subr.mxu0 0.0
  %2805 = vmatpush1.msra.mxu0 %v2761
  %2806 = vmatprep.subr.mxu0 0.0
  %2807 = vmatpush1.msra.mxu0 %v2760
  %2808 = vmatprep.subr.mxu0 0.0
  %2809 = vmatpush2.msra.mxu0 0.0
  %2810 = vmatprep.subr.mxu0 0.0
  %2811 = vmatpush2.msra.mxu0 0.0
  %2812 = vmatprep.subr.mxu0 0.0
  %2813 = vmatpush2.msra.mxu0 0.0
  %2814 = vmatprep.subr.mxu0 0.0
  %2815 = vmatpush2.msra.mxu0 0.0
  %2816 = vmatprep.subr.mxu0 0.0
  %2817 = vmatpush2.msra.mxu0 0.0
  %2818 = vmatprep.subr.mxu0 0.0
  %2819 = vmatpush2.msra.mxu0 0.0
  %2820 = vmatprep.subr.mxu0 0.0
  %2821 = vmatpush2.msra.mxu0 0.0
  %2822 = vmatprep.subr.mxu0 0.0
  %2823 = vmatpush2.msra.mxu0 0.0
  %2824 = vmatprep.subr.mxu0 0.0
  %2825 = vmatpush2.msra.mxu0 0.0
  %2826 = vmatprep.subr.mxu0 0.0
  %2827 = vmatpush2.msra.mxu0 0.0
  %2828 = vmatprep.subr.mxu0 0.0
  %2829 = vmatpush2.msra.mxu0 0.0
  %2830 = vmatprep.subr.mxu0 0.0
  %2831 = vmatpush2.msra.mxu0 0.0
  %2832 = vmatprep.subr.mxu0 0.0
  %2833 = vmatpush2.msra.mxu0 0.0
  %2834 = vmatprep.subr.mxu0 0.0
  %2835 = vmatpush2.msra.mxu0 0.0
  %2836 = vmatprep.subr.mxu0 0.0
  %2837 = vmatpush2.msra.mxu0 0.0
  %2838 = vmatprep.subr.mxu0 0.0
  %2839 = vmatpush2.msra.mxu0 0.0
  %2840 = vmatprep.mubr.f32.mxu0 0.0
  %2841 = vmatmul.mubr.f32.gmra.mxu0 %v2765
  %v2842 = vpop.f32.mrf.mxu0
  %v2843 = vadd.f32 0.0, %v2842
  %v2844 = vpop.f32.mrf.mxu0
  %2845 = vmatprep.mubr.f32.mxu0 0.0
  %2846 = vmatmul.mubr.f32.gmra.mxu0 %v2768
  %v2847 = vpop.f32.mrf.mxu0
  %v2848 = vadd.f32 0.0, %v2847
  %v2849 = vpop.f32.mrf.mxu0
  %2850 = vmatprep.mubr.f32.mxu0 0.0
  %2851 = vmatmul.mubr.f32.gmra.mxu0 %v2771
  %v2852 = vpop.f32.mrf.mxu0
  %v2853 = vadd.f32 0.0, %v2852
  %v2854 = vpop.f32.mrf.mxu0
  %2855 = vmatprep.mubr.f32.mxu0 0.0
  %2856 = vmatmul.mubr.f32.gmra.mxu0 %v2774
  %v2857 = vpop.f32.mrf.mxu0
  %v2858 = vadd.f32 0.0, %v2857
  %v2859 = vpop.f32.mrf.mxu0
  %2860 = vdwg.mxu0
  %v2862 = vlaneseq
  %v2863 = vshrl.u32 %v2862, 7
  %v2864 = vsub.s32 0, %v2863
  %v2865 = vrot.slane %v2759, %v2864
  %v2867 = vadd.f32 %v2865, %v2843
  %v2868 = vadd.f32 %v2865, %v2848
  %v2869 = vadd.f32 %v2865, %v2853
  %v2870 = vadd.f32 %v2865, %v2858
  %v2871 = vld [vmem:[%s5 + $0x20] sm:$0xff]
  %v2872 = vld [vmem:[%s5 + $0x28] sm:$0xff]
  %v2873 = vld [vmem:[%s5 + $0x30] sm:$0xff]
  %v2874 = vld [vmem:[%s5 + $0x38] sm:$0xff]
  %v2876 = vsel %vm522, %v2755, 0
  %v2879 = vsel %vm522, %v2756, 0
  %v2882 = vsel %vm522, %v2757, 0
  %v2885 = vsel %vm522, %v2758, 0
  %2887 = vmatprep.subr.mxu0 0.0
  %2888 = vmatpush1.msra.mxu0 0.0
  %2889 = vmatprep.subr.mxu0 0.0
  %2890 = vmatpush1.msra.mxu0 0.0
  %2891 = vmatprep.subr.mxu0 0.0
  %2892 = vmatpush1.msra.mxu0 0.0
  %2893 = vmatprep.subr.mxu0 0.0
  %2894 = vmatpush1.msra.mxu0 0.0
  %2895 = vmatprep.subr.mxu0 0.0
  %2896 = vmatpush1.msra.mxu0 0.0
  %2897 = vmatprep.subr.mxu0 0.0
  %2898 = vmatpush1.msra.mxu0 0.0
  %2899 = vmatprep.subr.mxu0 0.0
  %2900 = vmatpush1.msra.mxu0 0.0
  %2901 = vmatprep.subr.mxu0 0.0
  %2902 = vmatpush1.msra.mxu0 0.0
  %2903 = vmatprep.subr.mxu0 0.0
  %2904 = vmatpush1.msra.mxu0 0.0
  %2905 = vmatprep.subr.mxu0 0.0
  %2906 = vmatpush1.msra.mxu0 0.0
  %2907 = vmatprep.subr.mxu0 0.0
  %2908 = vmatpush1.msra.mxu0 0.0
  %2909 = vmatprep.subr.mxu0 0.0
  %2910 = vmatpush1.msra.mxu0 0.0
  %2911 = vmatprep.subr.mxu0 0.0
  %2912 = vmatpush1.msra.mxu0 %v2874
  %2913 = vmatprep.subr.mxu0 0.0
  %2914 = vmatpush1.msra.mxu0 %v2873
  %2915 = vmatprep.subr.mxu0 0.0
  %2916 = vmatpush1.msra.mxu0 %v2872
  %2917 = vmatprep.subr.mxu0 0.0
  %2918 = vmatpush1.msra.mxu0 %v2871
  %2919 = vmatprep.subr.mxu0 0.0
  %2920 = vmatpush2.msra.mxu0 0.0
  %2921 = vmatprep.subr.mxu0 0.0
  %2922 = vmatpush2.msra.mxu0 0.0
  %2923 = vmatprep.subr.mxu0 0.0
  %2924 = vmatpush2.msra.mxu0 0.0
  %2925 = vmatprep.subr.mxu0 0.0
  %2926 = vmatpush2.msra.mxu0 0.0
  %2927 = vmatprep.subr.mxu0 0.0
  %2928 = vmatpush2.msra.mxu0 0.0
  %2929 = vmatprep.subr.mxu0 0.0
  %2930 = vmatpush2.msra.mxu0 0.0
  %2931 = vmatprep.subr.mxu0 0.0
  %2932 = vmatpush2.msra.mxu0 0.0
  %2933 = vmatprep.subr.mxu0 0.0
  %2934 = vmatpush2.msra.mxu0 0.0
  %2935 = vmatprep.subr.mxu0 0.0
  %2936 = vmatpush2.msra.mxu0 0.0
  %2937 = vmatprep.subr.mxu0 0.0
  %2938 = vmatpush2.msra.mxu0 0.0
  %2939 = vmatprep.subr.mxu0 0.0
  %2940 = vmatpush2.msra.mxu0 0.0
  %2941 = vmatprep.subr.mxu0 0.0
  %2942 = vmatpush2.msra.mxu0 0.0
  %2943 = vmatprep.subr.mxu0 0.0
  %2944 = vmatpush2.msra.mxu0 0.0
  %2945 = vmatprep.subr.mxu0 0.0
  %2946 = vmatpush2.msra.mxu0 0.0
  %2947 = vmatprep.subr.mxu0 0.0
  %2948 = vmatpush2.msra.mxu0 0.0
  %2949 = vmatprep.subr.mxu0 0.0
  %2950 = vmatpush2.msra.mxu0 0.0
  %2951 = vmatprep.mubr.f32.mxu0 0.0
  %2952 = vmatmul.mubr.f32.gmra.mxu0 %v2876
  %v2953 = vpop.f32.mrf.mxu0
  %v2954 = vadd.f32 0.0, %v2953
  %v2955 = vpop.f32.mrf.mxu0
  %2956 = vmatprep.mubr.f32.mxu0 0.0
  %2957 = vmatmul.mubr.f32.gmra.mxu0 %v2879
  %v2958 = vpop.f32.mrf.mxu0
  %v2959 = vadd.f32 0.0, %v2958
  %v2960 = vpop.f32.mrf.mxu0
  %2961 = vmatprep.mubr.f32.mxu0 0.0
  %2962 = vmatmul.mubr.f32.gmra.mxu0 %v2882
  %v2963 = vpop.f32.mrf.mxu0
  %v2964 = vadd.f32 0.0, %v2963
  %v2965 = vpop.f32.mrf.mxu0
  %2966 = vmatprep.mubr.f32.mxu0 0.0
  %2967 = vmatmul.mubr.f32.gmra.mxu0 %v2885
  %v2968 = vpop.f32.mrf.mxu0
  %v2969 = vadd.f32 0.0, %v2968
  %v2970 = vpop.f32.mrf.mxu0
  %2971 = vdwg.mxu0
  %v2972 = vadd.f32 %v2867, %v2954
  %v2973 = vadd.f32 %v2868, %v2959
  %v2974 = vadd.f32 %v2869, %v2964
  %v2975 = vadd.f32 %v2870, %v2969
  %2976 = vst [vmem:[%s7] sm:$0xff] %v2972
  %2977 = vst [vmem:[%s7 + $0x8] sm:$0xff] %v2973
  %2978 = vst [vmem:[%s7 + $0x10] sm:$0xff] %v2974
  %2979 = vst [vmem:[%s7 + $0x18] sm:$0xff] %v2975
  // Predicated region
  $region30: #{captcha_forward.5} parent=0 // pred_check
    _
  $region31: #{captcha_forward.5} parent=0 // pred_check_branch
    %2981 = sbr.rel (0) target = $region33
  $region32: #{captcha_forward.5} parent=0 // pred_region
    _
  $region33: #{captcha_forward.5} parent=0 // pred_fallthru
    _
  // Predicated region
  $region34: #{captcha_forward.5} parent=0 // pred_check
    _
  $region35: #{captcha_forward.5} parent=0 // pred_check_branch
    %2983 = sbr.rel (0) target = $region37
  $region36: #{captcha_forward.5} parent=0 // pred_region
    _
  $region37: #{captcha_forward.5} parent=0 // pred_fallthru
    _

</llo_original>
